<compile_context>
chip_gen: v7x
topology: tpu7x:2x2x1
jax: 0.10.0
libtpu: 0.0.40
codegen_flags: <defaults>
</compile_context>

<pallas_src>
import functools
import math

import jax
import jax.numpy as jnp
from jax import lax
from jax.experimental import pallas as pl
from jax.experimental.pallas import tpu as pltpu

SQRT2 = math.sqrt(2.0)


# ------------------------------ Pallas kernels -------------------------------

def _conv3x3_taps(x_f32, w_ref, H, W):
    """9-tap 3x3 conv: x_f32 is the padded (H+2, W+2, Cin) activation (f32),
    w_ref a (9, Cin, Cout) bf16 ref.  Returns flattened (H*W, Cout) f32."""
    cin = x_f32.shape[-1]
    cout = w_ref.shape[-1]
    acc = jnp.zeros((H * W, cout), jnp.float32)
    for dy in range(3):
        for dx in range(3):
            tap = x_f32[dy:dy + H, dx:dx + W, :].reshape(H * W, cin)
            acc = acc + jnp.dot(tap.astype(jnp.bfloat16), w_ref[dy * 3 + dx],
                                preferred_element_type=jnp.float32)
    return acc


def _conv1_kernel(xpad_ref, w_ref, b_ref, o_ref, *, H, W):
    """y1 = ReLU(conv3x3(ReLU(x)) + b1).  (ReLU(pad(x)) == pad(ReLU(x)))."""
    x = jnp.maximum(xpad_ref[0].astype(jnp.float32), 0.0)
    acc = _conv3x3_taps(x, w_ref, H, W) + b_ref[...]
    o_ref[0] = jnp.maximum(acc, 0.0).astype(o_ref.dtype)


def _tail_body(ypad_ref, x_ref, w2_ref, b2_ref, wb_ref, bb_ref, p_ref, o_ref, *, H, W):
    """out = pool(conv3x3(y1) + b2) + (pool(x) @ Wb + bb)   [pool optional]."""
    y = ypad_ref[0].astype(jnp.float32)                         # (H+2, W+2, Cmid)
    h = _conv3x3_taps(y, w2_ref, H, W) + b2_ref[...]            # (H*W, Cout) f32
    cin = x_ref.shape[-1]
    xf = x_ref[0].astype(jnp.float32).reshape(H * W, cin)       # raw x (no ReLU)
    if p_ref is not None:
        pool = p_ref[...]                                       # (Ho*Wo, H*W) f32
        h = jnp.dot(pool, h, preferred_element_type=jnp.float32)
        xf = jnp.dot(pool, xf, preferred_element_type=jnp.float32)
    byp = jnp.dot(xf.astype(jnp.bfloat16), wb_ref[...],
                  preferred_element_type=jnp.float32) + bb_ref[...]
    o_ref[0] = (h + byp).astype(o_ref.dtype)


def _tail_pool_kernel(ypad_ref, x_ref, w2_ref, b2_ref, wb_ref, bb_ref, p_ref, o_ref, *, H, W):
    _tail_body(ypad_ref, x_ref, w2_ref, b2_ref, wb_ref, bb_ref, p_ref, o_ref, H=H, W=W)


def _tail_nopool_kernel(ypad_ref, x_ref, w2_ref, b2_ref, wb_ref, bb_ref, o_ref, *, H, W):
    _tail_body(ypad_ref, x_ref, w2_ref, b2_ref, wb_ref, bb_ref, None, o_ref, H=H, W=W)


# ------------------------------ pallas_call glue ------------------------------

def _pool_matrix(H, W, stride):
    """Exact AvgPool2d(kernel=2, stride, pad=0) as a (Ho*Wo, H*W) matrix."""
    ho = (H - 2) // stride + 1
    wo = (W - 2) // stride + 1
    ii, jj, di, dj = jnp.meshgrid(jnp.arange(ho), jnp.arange(wo),
                                  jnp.arange(2), jnp.arange(2), indexing="ij")
    rows = (ii * wo + jj).reshape(-1)
    cols = ((stride * ii + di) * W + (stride * jj + dj)).reshape(-1)
    return jnp.zeros((ho * wo, H * W), jnp.float32).at[rows, cols].set(0.25)


def _conv1_call(xpad, w_taps, bias, *, H, W):
    B = xpad.shape[0]
    cin = xpad.shape[-1]
    cout = w_taps.shape[-1]
    flops = int(2 * B * H * W * 9 * cin * cout)
    bytes_accessed = int(xpad.size * 4 + w_taps.size * 2 + bias.size * 4
                         + B * H * W * cout * 2)
    return pl.pallas_call(
        functools.partial(_conv1_kernel, H=H, W=W),
        out_shape=jax.ShapeDtypeStruct((B, H * W, cout), jnp.bfloat16),
        grid=(B,),
        in_specs=[pl.BlockSpec((1, H + 2, W + 2, cin), lambda b: (b, 0, 0, 0)),
                  pl.BlockSpec((9, cin, cout), lambda b: (0, 0, 0)),
                  pl.BlockSpec((1, cout), lambda b: (0, 0))],
        out_specs=pl.BlockSpec((1, H * W, cout), lambda b: (b, 0, 0)),
        compiler_params=pltpu.CompilerParams(dimension_semantics=("parallel",)),
        cost_estimate=pl.CostEstimate(flops=flops, transcendentals=0,
                                      bytes_accessed=bytes_accessed),
    )(xpad, w_taps, bias)


def _tail_call(y1pad, x, w2_taps, b2, wb, bb, pool_mat, *, H, W):
    B = x.shape[0]
    cin = x.shape[-1]
    cout = w2_taps.shape[-1]
    rows_out = H * W if pool_mat is None else pool_mat.shape[0]
    flops = 2 * B * (H * W * 9 * cout * cout + rows_out * cin * cout)
    if pool_mat is not None:
        flops += 2 * B * rows_out * H * W * (cout + cin)
    bytes_accessed = int(y1pad.size * 2 + x.size * 4 + w2_taps.size * 2
                         + wb.size * 2 + B * rows_out * cout * 4)
    in_specs = [pl.BlockSpec((1, H + 2, W + 2, cout), lambda b: (b, 0, 0, 0)),
                pl.BlockSpec((1, H, W, cin), lambda b: (b, 0, 0, 0)),
                pl.BlockSpec((9, cout, cout), lambda b: (0, 0, 0)),
                pl.BlockSpec((1, cout), lambda b: (0, 0)),
                pl.BlockSpec((cin, cout), lambda b: (0, 0)),
                pl.BlockSpec((1, cout), lambda b: (0, 0))]
    operands = [y1pad, x, w2_taps, b2, wb, bb]
    if pool_mat is not None:
        in_specs.append(pl.BlockSpec((rows_out, H * W), lambda b: (0, 0)))
        operands.append(pool_mat)
        kern = functools.partial(_tail_pool_kernel, H=H, W=W)
    else:
        kern = functools.partial(_tail_nopool_kernel, H=H, W=W)
    return pl.pallas_call(
        kern,
        out_shape=jax.ShapeDtypeStruct((B, rows_out, cout), jnp.float32),
        grid=(B,),
        in_specs=in_specs,
        out_specs=pl.BlockSpec((1, rows_out, cout), lambda b: (b, 0, 0)),
        compiler_params=pltpu.CompilerParams(dimension_semantics=("parallel",)),
        cost_estimate=pl.CostEstimate(flops=int(flops), transcendentals=0,
                                      bytes_accessed=bytes_accessed),
    )(*operands)


# ------------------------------- forward pass --------------------------------

def resblock_forward(params, x_nchw, stride):
    """ResBlockDiscriminator.forward: model(x) + bypass(x).  NCHW in, NCHW out."""
    x = jnp.transpose(x_nchw, (0, 2, 3, 1)).astype(jnp.float32)      # NHWC
    B, H, W, _ = x.shape
    cout = params["w1t"].shape[-1]
    xpad = jnp.pad(x, ((0, 0), (1, 1), (1, 1), (0, 0)))
    # kernel 1: ReLU -> conv1 -> ReLU (fused)
    y1 = _conv1_call(xpad, params["w1t"], params["b1"], H=H, W=W)    # (B,H*W,Cout) bf16
    y1pad = jnp.pad(y1.reshape(B, H, W, cout), ((0, 0), (1, 1), (1, 1), (0, 0)))
    # kernel 2: conv2 (+ pool) + bypass 1x1 (+ pool) + residual add (fused)
    if stride != 1:
        pool_mat = _pool_matrix(H, W, stride)
        ho = (H - 2) // stride + 1
        wo = (W - 2) // stride + 1
    else:
        pool_mat, ho, wo = None, H, W
    out = _tail_call(y1pad, x, params["w2t"], params["b2"],
                     params["wbt"], params["bb"], pool_mat, H=H, W=W)
    return jnp.transpose(out.reshape(B, ho, wo, cout), (0, 3, 1, 2))  # back to NCHW


# ------------------------------ parameter setup -------------------------------

def _xavier_uniform(key, shape, gain, fan_in, fan_out):
    bound = gain * math.sqrt(6.0 / (fan_in + fan_out))
    return jax.random.uniform(key, shape, jnp.float32, -bound, bound)


def spectral_normalize(w, n_iter=30):
    # TODO(synk): PyTorch's spectral_norm does ONE power iteration per forward
    # with a persistent randomly-initialized u; here we use a converged
    # deterministic power iteration at parameter-setup time (not the hot path).
    wm = w.reshape(w.shape[0], -1).astype(jnp.float32)
    u = jnp.ones((wm.shape[0],), jnp.float32)
    u = u / jnp.linalg.norm(u)
    for _ in range(n_iter):
        v = wm.T @ u
        v = v / (jnp.linalg.norm(v) + 1e-12)
        u = wm @ v
        u = u / (jnp.linalg.norm(u) + 1e-12)
    v = wm.T @ u
    v = v / (jnp.linalg.norm(v) + 1e-12)
    sigma = u @ (wm @ v)
    return w / sigma


def _conv_params(key, cin, cout, k, gain):
    kw, kb = jax.random.split(key)
    fan_in, fan_out = cin * k * k, cout * k * k
    w = _xavier_uniform(kw, (cout, cin, k, k), gain, fan_in, fan_out)
    bound = 1.0 / math.sqrt(fan_in)
    b = jax.random.uniform(kb, (cout,), jnp.float32, -bound, bound)
    return spectral_normalize(w), b


def _stack_taps(w):
    """(Cout, Cin, 3, 3) -> (9, Cin, Cout), tap index = dy*3 + dx."""
    return jnp.transpose(w, (2, 3, 1, 0)).reshape(9, w.shape[1], w.shape[0])


def make_params(key, cin, cout):
    k1, k2, k3 = jax.random.split(key, 3)
    w1, b1 = _conv_params(k1, cin, cout, 3, SQRT2)
    w2, b2 = _conv_params(k2, cout, cout, 3, SQRT2)
    wb, bb = _conv_params(k3, cin, cout, 1, 1.0)
    return {
        "w1t": _stack_taps(w1).astype(jnp.bfloat16), "b1": b1.reshape(1, cout),
        "w2t": _stack_taps(w2).astype(jnp.bfloat16), "b2": b2.reshape(1, cout),
        "wbt": jnp.transpose(wb[:, :, 0, 0]).astype(jnp.bfloat16), "bb": bb.reshape(1, cout),
        "ref": {"w1": w1, "b1": b1, "w2": w2, "b2": b2, "wb": wb, "bb": bb},
    }


# ------------------------------ XLA reference ---------------------------------

def reference_forward(params, x_nchw, stride):
    r = params["ref"]

    def conv(v, w, b, pad):
        y = lax.conv_general_dilated(v, w, (1, 1), [(pad, pad), (pad, pad)],
                                     dimension_numbers=("NCHW", "OIHW", "NCHW"))
        return y + b[None, :, None, None]

    def pool(v):
        y = lax.reduce_window(v, 0.0, lax.add, (1, 1, 2, 2),
                              (1, 1, stride, stride), "VALID")
        return y * 0.25

    h = jnp.maximum(x_nchw, 0.0)
    h = conv(h, r["w1"], r["b1"], 1)
    h = jnp.maximum(h, 0.0)
    h = conv(h, r["w2"], r["b2"], 1)
    byp = conv(x_nchw, r["wb"], r["bb"], 0)
    if stride != 1:
        h = pool(h)
        byp = pool(byp)
    return h + byp


# ----------------------------------- main -------------------------------------

if __name__ == "__main__":
    key = jax.random.PRNGKey(0)
    kparams, kx = jax.random.split(key)
    B, CIN, COUT, H, W = 2, 64, 128, 16, 16

    params = make_params(kparams, CIN, COUT)
    x = jax.random.normal(kx, (B, CIN, H, W), jnp.float32)

    fwd = jax.jit(resblock_forward, static_argnames=("stride",))
    for stride in (2, 1):
        out = fwd(params, x, stride=stride)
        out = jax.block_until_ready(out)
        ref = reference_forward(params, x, stride)
        assert out.shape == ref.shape, (out.shape, ref.shape)
        assert bool(jnp.all(jnp.isfinite(out)))
        scale = float(jnp.maximum(1.0, jnp.max(jnp.abs(ref))))
        err = float(jnp.max(jnp.abs(out - ref)))
        assert err <= 5e-2 * scale, (stride, err, scale)

    print("KERNEL_OK")
</pallas_src>

<mosaic_0001>
module attributes {stable_mosaic.version = 11 : i64} {
  func.func @_conv1_kernel(%arg0: i32, %arg1: memref<1x18x18x64xf32, #tpu.memory_space<vmem>>, %arg2: memref<9x64x128xbf16, #tpu.memory_space<vmem>>, %arg3: memref<1x128xf32, #tpu.memory_space<vmem>>, %arg4: memref<1x256x128xbf16, #tpu.memory_space<vmem>>) attributes {dimension_semantics = [#tpu.dimension_semantics<parallel>], iteration_bounds = array<i64: 2>, scalar_prefetch = 0 : i64, scratch_operands = 0 : i64, tpu.core_type = #tpu.core_type<tc>, window_params = [{transform_indices = @transform_0, window_bounds = array<i64: 1, 18, 18, 64>}, {pipeline_mode = #tpu.pipeline_mode<synchronous>, transform_indices = @transform_1, window_bounds = array<i64: 9, 64, 128>}, {pipeline_mode = #tpu.pipeline_mode<synchronous>, transform_indices = @transform_2, window_bounds = array<i64: 1, 128>}, {transform_indices = @transform_3, window_bounds = array<i64: 1, 256, 128>}]} {
    %c0 = arith.constant 0 : index
    %c0_0 = arith.constant 0 : index
    %c0_1 = arith.constant 0 : index
    %c0_2 = arith.constant 0 : index
    %0 = vector.load %arg1[%c0, %c0_0, %c0_1, %c0_2] : memref<1x18x18x64xf32, #tpu.memory_space<vmem>>, vector<1x18x18x64xf32>
    %1 = vector.shape_cast %0 : vector<1x18x18x64xf32> to vector<18x18x64xf32>
    %cst = arith.constant 0.000000e+00 : f32
    %2 = vector.broadcast %cst : f32 to vector<18x18x64xf32>
    %3 = arith.maximumf %1, %2 : vector<18x18x64xf32>
    %cst_3 = arith.constant 0.000000e+00 : f32
    %4 = vector.broadcast %cst_3 : f32 to vector<256x128xf32>
    %5 = vector.extract_strided_slice %3 {offsets = [0, 0, 0], sizes = [16, 16, 64], strides = [1, 1, 1]} : vector<18x18x64xf32> to vector<16x16x64xf32>
    %6 = vector.shape_cast %5 : vector<16x16x64xf32> to vector<256x64xf32>
    %7 = arith.truncf %6 : vector<256x64xf32> to vector<256x64xbf16>
    %c0_4 = arith.constant 0 : index
    %c0_5 = arith.constant 0 : index
    %c0_6 = arith.constant 0 : index
    %8 = vector.load %arg2[%c0_4, %c0_5, %c0_6] : memref<9x64x128xbf16, #tpu.memory_space<vmem>>, vector<1x64x128xbf16>
    %9 = vector.shape_cast %8 : vector<1x64x128xbf16> to vector<64x128xbf16>
    %cst_7 = arith.constant dense<0.000000e+00> : vector<256x128xf32>
    %10 = tpu.matmul %7, %9, %cst_7 {dimension_numbers = #tpu.dot_dimension_numbers<[1], [0], [0], [1], [0, 0, 1, 1], [], []>} : vector<256x64xbf16>, vector<64x128xbf16>, vector<256x128xf32> -> vector<256x128xf32>
    %11 = arith.addf %4, %10 : vector<256x128xf32>
    %12 = vector.extract_strided_slice %3 {offsets = [0, 1, 0], sizes = [16, 16, 64], strides = [1, 1, 1]} : vector<18x18x64xf32> to vector<16x16x64xf32>
    %13 = vector.shape_cast %12 : vector<16x16x64xf32> to vector<256x64xf32>
    %14 = arith.truncf %13 : vector<256x64xf32> to vector<256x64xbf16>
    %c1 = arith.constant 1 : index
    %c0_8 = arith.constant 0 : index
    %c0_9 = arith.constant 0 : index
    %15 = vector.load %arg2[%c1, %c0_8, %c0_9] : memref<9x64x128xbf16, #tpu.memory_space<vmem>>, vector<1x64x128xbf16>
    %16 = vector.shape_cast %15 : vector<1x64x128xbf16> to vector<64x128xbf16>
    %cst_10 = arith.constant dense<0.000000e+00> : vector<256x128xf32>
    %17 = tpu.matmul %14, %16, %cst_10 {dimension_numbers = #tpu.dot_dimension_numbers<[1], [0], [0], [1], [0, 0, 1, 1], [], []>} : vector<256x64xbf16>, vector<64x128xbf16>, vector<256x128xf32> -> vector<256x128xf32>
    %18 = arith.addf %11, %17 : vector<256x128xf32>
    %19 = vector.extract_strided_slice %3 {offsets = [0, 2, 0], sizes = [16, 16, 64], strides = [1, 1, 1]} : vector<18x18x64xf32> to vector<16x16x64xf32>
    %20 = vector.shape_cast %19 : vector<16x16x64xf32> to vector<256x64xf32>
    %21 = arith.truncf %20 : vector<256x64xf32> to vector<256x64xbf16>
    %c2 = arith.constant 2 : index
    %c0_11 = arith.constant 0 : index
    %c0_12 = arith.constant 0 : index
    %22 = vector.load %arg2[%c2, %c0_11, %c0_12] : memref<9x64x128xbf16, #tpu.memory_space<vmem>>, vector<1x64x128xbf16>
    %23 = vector.shape_cast %22 : vector<1x64x128xbf16> to vector<64x128xbf16>
    %cst_13 = arith.constant dense<0.000000e+00> : vector<256x128xf32>
    %24 = tpu.matmul %21, %23, %cst_13 {dimension_numbers = #tpu.dot_dimension_numbers<[1], [0], [0], [1], [0, 0, 1, 1], [], []>} : vector<256x64xbf16>, vector<64x128xbf16>, vector<256x128xf32> -> vector<256x128xf32>
    %25 = arith.addf %18, %24 : vector<256x128xf32>
    %26 = vector.extract_strided_slice %3 {offsets = [1, 0, 0], sizes = [16, 16, 64], strides = [1, 1, 1]} : vector<18x18x64xf32> to vector<16x16x64xf32>
    %27 = vector.shape_cast %26 : vector<16x16x64xf32> to vector<256x64xf32>
    %28 = arith.truncf %27 : vector<256x64xf32> to vector<256x64xbf16>
    %c3 = arith.constant 3 : index
    %c0_14 = arith.constant 0 : index
    %c0_15 = arith.constant 0 : index
    %29 = vector.load %arg2[%c3, %c0_14, %c0_15] : memref<9x64x128xbf16, #tpu.memory_space<vmem>>, vector<1x64x128xbf16>
    %30 = vector.shape_cast %29 : vector<1x64x128xbf16> to vector<64x128xbf16>
    %cst_16 = arith.constant dense<0.000000e+00> : vector<256x128xf32>
    %31 = tpu.matmul %28, %30, %cst_16 {dimension_numbers = #tpu.dot_dimension_numbers<[1], [0], [0], [1], [0, 0, 1, 1], [], []>} : vector<256x64xbf16>, vector<64x128xbf16>, vector<256x128xf32> -> vector<256x128xf32>
    %32 = arith.addf %25, %31 : vector<256x128xf32>
    %33 = vector.extract_strided_slice %3 {offsets = [1, 1, 0], sizes = [16, 16, 64], strides = [1, 1, 1]} : vector<18x18x64xf32> to vector<16x16x64xf32>
    %34 = vector.shape_cast %33 : vector<16x16x64xf32> to vector<256x64xf32>
    %35 = arith.truncf %34 : vector<256x64xf32> to vector<256x64xbf16>
    %c4 = arith.constant 4 : index
    %c0_17 = arith.constant 0 : index
    %c0_18 = arith.constant 0 : index
    %36 = vector.load %arg2[%c4, %c0_17, %c0_18] : memref<9x64x128xbf16, #tpu.memory_space<vmem>>, vector<1x64x128xbf16>
    %37 = vector.shape_cast %36 : vector<1x64x128xbf16> to vector<64x128xbf16>
    %cst_19 = arith.constant dense<0.000000e+00> : vector<256x128xf32>
    %38 = tpu.matmul %35, %37, %cst_19 {dimension_numbers = #tpu.dot_dimension_numbers<[1], [0], [0], [1], [0, 0, 1, 1], [], []>} : vector<256x64xbf16>, vector<64x128xbf16>, vector<256x128xf32> -> vector<256x128xf32>
    %39 = arith.addf %32, %38 : vector<256x128xf32>
    %40 = vector.extract_strided_slice %3 {offsets = [1, 2, 0], sizes = [16, 16, 64], strides = [1, 1, 1]} : vector<18x18x64xf32> to vector<16x16x64xf32>
    %41 = vector.shape_cast %40 : vector<16x16x64xf32> to vector<256x64xf32>
    %42 = arith.truncf %41 : vector<256x64xf32> to vector<256x64xbf16>
    %c5 = arith.constant 5 : index
    %c0_20 = arith.constant 0 : index
    %c0_21 = arith.constant 0 : index
    %43 = vector.load %arg2[%c5, %c0_20, %c0_21] : memref<9x64x128xbf16, #tpu.memory_space<vmem>>, vector<1x64x128xbf16>
    %44 = vector.shape_cast %43 : vector<1x64x128xbf16> to vector<64x128xbf16>
    %cst_22 = arith.constant dense<0.000000e+00> : vector<256x128xf32>
    %45 = tpu.matmul %42, %44, %cst_22 {dimension_numbers = #tpu.dot_dimension_numbers<[1], [0], [0], [1], [0, 0, 1, 1], [], []>} : vector<256x64xbf16>, vector<64x128xbf16>, vector<256x128xf32> -> vector<256x128xf32>
    %46 = arith.addf %39, %45 : vector<256x128xf32>
    %47 = vector.extract_strided_slice %3 {offsets = [2, 0, 0], sizes = [16, 16, 64], strides = [1, 1, 1]} : vector<18x18x64xf32> to vector<16x16x64xf32>
    %48 = vector.shape_cast %47 : vector<16x16x64xf32> to vector<256x64xf32>
    %49 = arith.truncf %48 : vector<256x64xf32> to vector<256x64xbf16>
    %c6 = arith.constant 6 : index
    %c0_23 = arith.constant 0 : index
    %c0_24 = arith.constant 0 : index
    %50 = vector.load %arg2[%c6, %c0_23, %c0_24] : memref<9x64x128xbf16, #tpu.memory_space<vmem>>, vector<1x64x128xbf16>
    %51 = vector.shape_cast %50 : vector<1x64x128xbf16> to vector<64x128xbf16>
    %cst_25 = arith.constant dense<0.000000e+00> : vector<256x128xf32>
    %52 = tpu.matmul %49, %51, %cst_25 {dimension_numbers = #tpu.dot_dimension_numbers<[1], [0], [0], [1], [0, 0, 1, 1], [], []>} : vector<256x64xbf16>, vector<64x128xbf16>, vector<256x128xf32> -> vector<256x128xf32>
    %53 = arith.addf %46, %52 : vector<256x128xf32>
    %54 = vector.extract_strided_slice %3 {offsets = [2, 1, 0], sizes = [16, 16, 64], strides = [1, 1, 1]} : vector<18x18x64xf32> to vector<16x16x64xf32>
    %55 = vector.shape_cast %54 : vector<16x16x64xf32> to vector<256x64xf32>
    %56 = arith.truncf %55 : vector<256x64xf32> to vector<256x64xbf16>
    %c7 = arith.constant 7 : index
    %c0_26 = arith.constant 0 : index
    %c0_27 = arith.constant 0 : index
    %57 = vector.load %arg2[%c7, %c0_26, %c0_27] : memref<9x64x128xbf16, #tpu.memory_space<vmem>>, vector<1x64x128xbf16>
    %58 = vector.shape_cast %57 : vector<1x64x128xbf16> to vector<64x128xbf16>
    %cst_28 = arith.constant dense<0.000000e+00> : vector<256x128xf32>
    %59 = tpu.matmul %56, %58, %cst_28 {dimension_numbers = #tpu.dot_dimension_numbers<[1], [0], [0], [1], [0, 0, 1, 1], [], []>} : vector<256x64xbf16>, vector<64x128xbf16>, vector<256x128xf32> -> vector<256x128xf32>
    %60 = arith.addf %53, %59 : vector<256x128xf32>
    %61 = vector.extract_strided_slice %3 {offsets = [2, 2, 0], sizes = [16, 16, 64], strides = [1, 1, 1]} : vector<18x18x64xf32> to vector<16x16x64xf32>
    %62 = vector.shape_cast %61 : vector<16x16x64xf32> to vector<256x64xf32>
    %63 = arith.truncf %62 : vector<256x64xf32> to vector<256x64xbf16>
    %c8 = arith.constant 8 : index
    %c0_29 = arith.constant 0 : index
    %c0_30 = arith.constant 0 : index
    %64 = vector.load %arg2[%c8, %c0_29, %c0_30] : memref<9x64x128xbf16, #tpu.memory_space<vmem>>, vector<1x64x128xbf16>
    %65 = vector.shape_cast %64 : vector<1x64x128xbf16> to vector<64x128xbf16>
    %cst_31 = arith.constant dense<0.000000e+00> : vector<256x128xf32>
    %66 = tpu.matmul %63, %65, %cst_31 {dimension_numbers = #tpu.dot_dimension_numbers<[1], [0], [0], [1], [0, 0, 1, 1], [], []>} : vector<256x64xbf16>, vector<64x128xbf16>, vector<256x128xf32> -> vector<256x128xf32>
    %67 = arith.addf %60, %66 : vector<256x128xf32>
    %c0_32 = arith.constant 0 : index
    %c0_33 = arith.constant 0 : index
    %68 = vector.load %arg3[%c0_32, %c0_33] : memref<1x128xf32, #tpu.memory_space<vmem>>, vector<1x128xf32>
    %69 = vector.broadcast %68 : vector<1x128xf32> to vector<256x128xf32>
    %70 = arith.addf %67, %69 : vector<256x128xf32>
    %cst_34 = arith.constant 0.000000e+00 : f32
    %71 = vector.broadcast %cst_34 : f32 to vector<256x128xf32>
    %72 = arith.maximumf %70, %71 : vector<256x128xf32>
    %73 = arith.truncf %72 : vector<256x128xf32> to vector<256x128xbf16>
    %c0_35 = arith.constant 0 : index
    %c0_36 = arith.constant 0 : index
    %c0_37 = arith.constant 0 : index
    %74 = vector.load %arg4[%c0_35, %c0_36, %c0_37] : memref<1x256x128xbf16, #tpu.memory_space<vmem>>, vector<1x256x128xbf16>
    %75 = vector.shape_cast %74 : vector<1x256x128xbf16> to vector<256x128xbf16>
    %76 = vector.shape_cast %73 : vector<256x128xbf16> to vector<1x256x128xbf16>
    tpu.vector_store %arg4[%c0_35, %c0_36, %c0_37], %76 {strides = array<i32>} : memref<1x256x128xbf16, #tpu.memory_space<vmem>>, vector<1x256x128xbf16>,
    return
  }
  func.func @transform_0(%arg0: i32) -> (i32, i32, i32, i32) {
    %c0_i32 = arith.constant 0 : i32
    %c0_i32_0 = arith.constant 0 : i32
    %c0_i32_1 = arith.constant 0 : i32
    %c0_i32_2 = arith.constant 0 : i32
    return %arg0, %c0_i32, %c0_i32_0, %c0_i32_1 : i32, i32, i32, i32
  }
  func.func @transform_1(%arg0: i32) -> (i32, i32, i32) {
    %c0_i32 = arith.constant 0 : i32
    %c0_i32_0 = arith.constant 0 : i32
    %c0_i32_1 = arith.constant 0 : i32
    %c0_i32_2 = arith.constant 0 : i32
    return %c0_i32, %c0_i32_0, %c0_i32_1 : i32, i32, i32
  }
  func.func @transform_2(%arg0: i32) -> (i32, i32) {
    %c0_i32 = arith.constant 0 : i32
    %c0_i32_0 = arith.constant 0 : i32
    %c0_i32_1 = arith.constant 0 : i32
    return %c0_i32, %c0_i32_0 : i32, i32
  }
  func.func @transform_3(%arg0: i32) -> (i32, i32, i32) {
    %c0_i32 = arith.constant 0 : i32
    %c0_i32_0 = arith.constant 0 : i32
    %c0_i32_1 = arith.constant 0 : i32
    return %arg0, %c0_i32, %c0_i32_0 : i32, i32, i32
  }
}

module attributes {stable_mosaic.version = 11 : i64} {
  func.func @_tail_pool_kernel(%arg0: i32, %arg1: memref<1x18x18x128xbf16, #tpu.memory_space<vmem>>, %arg2: memref<1x16x16x64xf32, #tpu.memory_space<vmem>>, %arg3: memref<9x128x128xbf16, #tpu.memory_space<vmem>>, %arg4: memref<1x128xf32, #tpu.memory_space<vmem>>, %arg5: memref<64x128xbf16, #tpu.memory_space<vmem>>, %arg6: memref<1x128xf32, #tpu.memory_space<vmem>>, %arg7: memref<64x256xf32, #tpu.memory_space<vmem>>, %arg8: memref<1x64x128xf32, #tpu.memory_space<vmem>>) attributes {dimension_semantics = [#tpu.dimension_semantics<parallel>], iteration_bounds = array<i64: 2>, scalar_prefetch = 0 : i64, scratch_operands = 0 : i64, tpu.core_type = #tpu.core_type<tc>, window_params = [{transform_indices = @transform_0, window_bounds = array<i64: 1, 18, 18, 128>}, {transform_indices = @transform_1, window_bounds = array<i64: 1, 16, 16, 64>}, {pipeline_mode = #tpu.pipeline_mode<synchronous>, transform_indices = @transform_2, window_bounds = array<i64: 9, 128, 128>}, {pipeline_mode = #tpu.pipeline_mode<synchronous>, transform_indices = @transform_3, window_bounds = array<i64: 1, 128>}, {pipeline_mode = #tpu.pipeline_mode<synchronous>, transform_indices = @transform_4, window_bounds = array<i64: 64, 128>}, {pipeline_mode = #tpu.pipeline_mode<synchronous>, transform_indices = @transform_5, window_bounds = array<i64: 1, 128>}, {pipeline_mode = #tpu.pipeline_mode<synchronous>, transform_indices = @transform_6, window_bounds = array<i64: 64, 256>}, {transform_indices = @transform_7, window_bounds = array<i64: 1, 64, 128>}]} {
    %c0 = arith.constant 0 : index
    %c0_0 = arith.constant 0 : index
    %c0_1 = arith.constant 0 : index
    %c0_2 = arith.constant 0 : index
    %0 = vector.load %arg1[%c0, %c0_0, %c0_1, %c0_2] : memref<1x18x18x128xbf16, #tpu.memory_space<vmem>>, vector<1x18x18x128xbf16>
    %1 = vector.shape_cast %0 : vector<1x18x18x128xbf16> to vector<18x18x128xbf16>
    %2 = arith.extf %1 : vector<18x18x128xbf16> to vector<18x18x128xf32>
    %cst = arith.constant 0.000000e+00 : f32
    %3 = vector.broadcast %cst : f32 to vector<256x128xf32>
    %4 = vector.extract_strided_slice %2 {offsets = [0, 0, 0], sizes = [16, 16, 128], strides = [1, 1, 1]} : vector<18x18x128xf32> to vector<16x16x128xf32>
    %5 = vector.shape_cast %4 : vector<16x16x128xf32> to vector<256x128xf32>
    %6 = arith.truncf %5 : vector<256x128xf32> to vector<256x128xbf16>
    %c0_3 = arith.constant 0 : index
    %c0_4 = arith.constant 0 : index
    %c0_5 = arith.constant 0 : index
    %7 = vector.load %arg3[%c0_3, %c0_4, %c0_5] : memref<9x128x128xbf16, #tpu.memory_space<vmem>>, vector<1x128x128xbf16>
    %8 = vector.shape_cast %7 : vector<1x128x128xbf16> to vector<128x128xbf16>
    %cst_6 = arith.constant dense<0.000000e+00> : vector<256x128xf32>
    %9 = tpu.matmul %6, %8, %cst_6 {dimension_numbers = #tpu.dot_dimension_numbers<[1], [0], [0], [1], [0, 0, 1, 1], [], []>} : vector<256x128xbf16>, vector<128x128xbf16>, vector<256x128xf32> -> vector<256x128xf32>
    %10 = arith.addf %3, %9 : vector<256x128xf32>
    %11 = vector.extract_strided_slice %2 {offsets = [0, 1, 0], sizes = [16, 16, 128], strides = [1, 1, 1]} : vector<18x18x128xf32> to vector<16x16x128xf32>
    %12 = vector.shape_cast %11 : vector<16x16x128xf32> to vector<256x128xf32>
    %13 = arith.truncf %12 : vector<256x128xf32> to vector<256x128xbf16>
    %c1 = arith.constant 1 : index
    %c0_7 = arith.constant 0 : index
    %c0_8 = arith.constant 0 : index
    %14 = vector.load %arg3[%c1, %c0_7, %c0_8] : memref<9x128x128xbf16, #tpu.memory_space<vmem>>, vector<1x128x128xbf16>
    %15 = vector.shape_cast %14 : vector<1x128x128xbf16> to vector<128x128xbf16>
    %cst_9 = arith.constant dense<0.000000e+00> : vector<256x128xf32>
    %16 = tpu.matmul %13, %15, %cst_9 {dimension_numbers = #tpu.dot_dimension_numbers<[1], [0], [0], [1], [0, 0, 1, 1], [], []>} : vector<256x128xbf16>, vector<128x128xbf16>, vector<256x128xf32> -> vector<256x128xf32>
    %17 = arith.addf %10, %16 : vector<256x128xf32>
    %18 = vector.extract_strided_slice %2 {offsets = [0, 2, 0], sizes = [16, 16, 128], strides = [1, 1, 1]} : vector<18x18x128xf32> to vector<16x16x128xf32>
    %19 = vector.shape_cast %18 : vector<16x16x128xf32> to vector<256x128xf32>
    %20 = arith.truncf %19 : vector<256x128xf32> to vector<256x128xbf16>
    %c2 = arith.constant 2 : index
    %c0_10 = arith.constant 0 : index
    %c0_11 = arith.constant 0 : index
    %21 = vector.load %arg3[%c2, %c0_10, %c0_11] : memref<9x128x128xbf16, #tpu.memory_space<vmem>>, vector<1x128x128xbf16>
    %22 = vector.shape_cast %21 : vector<1x128x128xbf16> to vector<128x128xbf16>
    %cst_12 = arith.constant dense<0.000000e+00> : vector<256x128xf32>
    %23 = tpu.matmul %20, %22, %cst_12 {dimension_numbers = #tpu.dot_dimension_numbers<[1], [0], [0], [1], [0, 0, 1, 1], [], []>} : vector<256x128xbf16>, vector<128x128xbf16>, vector<256x128xf32> -> vector<256x128xf32>
    %24 = arith.addf %17, %23 : vector<256x128xf32>
    %25 = vector.extract_strided_slice %2 {offsets = [1, 0, 0], sizes = [16, 16, 128], strides = [1, 1, 1]} : vector<18x18x128xf32> to vector<16x16x128xf32>
    %26 = vector.shape_cast %25 : vector<16x16x128xf32> to vector<256x128xf32>
    %27 = arith.truncf %26 : vector<256x128xf32> to vector<256x128xbf16>
    %c3 = arith.constant 3 : index
    %c0_13 = arith.constant 0 : index
    %c0_14 = arith.constant 0 : index
    %28 = vector.load %arg3[%c3, %c0_13, %c0_14] : memref<9x128x128xbf16, #tpu.memory_space<vmem>>, vector<1x128x128xbf16>
    %29 = vector.shape_cast %28 : vector<1x128x128xbf16> to vector<128x128xbf16>
    %cst_15 = arith.constant dense<0.000000e+00> : vector<256x128xf32>
    %30 = tpu.matmul %27, %29, %cst_15 {dimension_numbers = #tpu.dot_dimension_numbers<[1], [0], [0], [1], [0, 0, 1, 1], [], []>} : vector<256x128xbf16>, vector<128x128xbf16>, vector<256x128xf32> -> vector<256x128xf32>
    %31 = arith.addf %24, %30 : vector<256x128xf32>
    %32 = vector.extract_strided_slice %2 {offsets = [1, 1, 0], sizes = [16, 16, 128], strides = [1, 1, 1]} : vector<18x18x128xf32> to vector<16x16x128xf32>
    %33 = vector.shape_cast %32 : vector<16x16x128xf32> to vector<256x128xf32>
    %34 = arith.truncf %33 : vector<256x128xf32> to vector<256x128xbf16>
    %c4 = arith.constant 4 : index
    %c0_16 = arith.constant 0 : index
    %c0_17 = arith.constant 0 : index
    %35 = vector.load %arg3[%c4, %c0_16, %c0_17] : memref<9x128x128xbf16, #tpu.memory_space<vmem>>, vector<1x128x128xbf16>
    %36 = vector.shape_cast %35 : vector<1x128x128xbf16> to vector<128x128xbf16>
    %cst_18 = arith.constant dense<0.000000e+00> : vector<256x128xf32>
    %37 = tpu.matmul %34, %36, %cst_18 {dimension_numbers = #tpu.dot_dimension_numbers<[1], [0], [0], [1], [0, 0, 1, 1], [], []>} : vector<256x128xbf16>, vector<128x128xbf16>, vector<256x128xf32> -> vector<256x128xf32>
    %38 = arith.addf %31, %37 : vector<256x128xf32>
    %39 = vector.extract_strided_slice %2 {offsets = [1, 2, 0], sizes = [16, 16, 128], strides = [1, 1, 1]} : vector<18x18x128xf32> to vector<16x16x128xf32>
    %40 = vector.shape_cast %39 : vector<16x16x128xf32> to vector<256x128xf32>
    %41 = arith.truncf %40 : vector<256x128xf32> to vector<256x128xbf16>
    %c5 = arith.constant 5 : index
    %c0_19 = arith.constant 0 : index
    %c0_20 = arith.constant 0 : index
    %42 = vector.load %arg3[%c5, %c0_19, %c0_20] : memref<9x128x128xbf16, #tpu.memory_space<vmem>>, vector<1x128x128xbf16>
    %43 = vector.shape_cast %42 : vector<1x128x128xbf16> to vector<128x128xbf16>
    %cst_21 = arith.constant dense<0.000000e+00> : vector<256x128xf32>
    %44 = tpu.matmul %41, %43, %cst_21 {dimension_numbers = #tpu.dot_dimension_numbers<[1], [0], [0], [1], [0, 0, 1, 1], [], []>} : vector<256x128xbf16>, vector<128x128xbf16>, vector<256x128xf32> -> vector<256x128xf32>
    %45 = arith.addf %38, %44 : vector<256x128xf32>
    %46 = vector.extract_strided_slice %2 {offsets = [2, 0, 0], sizes = [16, 16, 128], strides = [1, 1, 1]} : vector<18x18x128xf32> to vector<16x16x128xf32>
    %47 = vector.shape_cast %46 : vector<16x16x128xf32> to vector<256x128xf32>
    %48 = arith.truncf %47 : vector<256x128xf32> to vector<256x128xbf16>
    %c6 = arith.constant 6 : index
    %c0_22 = arith.constant 0 : index
    %c0_23 = arith.constant 0 : index
    %49 = vector.load %arg3[%c6, %c0_22, %c0_23] : memref<9x128x128xbf16, #tpu.memory_space<vmem>>, vector<1x128x128xbf16>
    %50 = vector.shape_cast %49 : vector<1x128x128xbf16> to vector<128x128xbf16>
    %cst_24 = arith.constant dense<0.000000e+00> : vector<256x128xf32>
    %51 = tpu.matmul %48, %50, %cst_24 {dimension_numbers = #tpu.dot_dimension_numbers<[1], [0], [0], [1], [0, 0, 1, 1], [], []>} : vector<256x128xbf16>, vector<128x128xbf16>, vector<256x128xf32> -> vector<256x128xf32>
    %52 = arith.addf %45, %51 : vector<256x128xf32>
    %53 = vector.extract_strided_slice %2 {offsets = [2, 1, 0], sizes = [16, 16, 128], strides = [1, 1, 1]} : vector<18x18x128xf32> to vector<16x16x128xf32>
    %54 = vector.shape_cast %53 : vector<16x16x128xf32> to vector<256x128xf32>
    %55 = arith.truncf %54 : vector<256x128xf32> to vector<256x128xbf16>
    %c7 = arith.constant 7 : index
    %c0_25 = arith.constant 0 : index
    %c0_26 = arith.constant 0 : index
    %56 = vector.load %arg3[%c7, %c0_25, %c0_26] : memref<9x128x128xbf16, #tpu.memory_space<vmem>>, vector<1x128x128xbf16>
    %57 = vector.shape_cast %56 : vector<1x128x128xbf16> to vector<128x128xbf16>
    %cst_27 = arith.constant dense<0.000000e+00> : vector<256x128xf32>
    %58 = tpu.matmul %55, %57, %cst_27 {dimension_numbers = #tpu.dot_dimension_numbers<[1], [0], [0], [1], [0, 0, 1, 1], [], []>} : vector<256x128xbf16>, vector<128x128xbf16>, vector<256x128xf32> -> vector<256x128xf32>
    %59 = arith.addf %52, %58 : vector<256x128xf32>
    %60 = vector.extract_strided_slice %2 {offsets = [2, 2, 0], sizes = [16, 16, 128], strides = [1, 1, 1]} : vector<18x18x128xf32> to vector<16x16x128xf32>
    %61 = vector.shape_cast %60 : vector<16x16x128xf32> to vector<256x128xf32>
    %62 = arith.truncf %61 : vector<256x128xf32> to vector<256x128xbf16>
    %c8 = arith.constant 8 : index
    %c0_28 = arith.constant 0 : index
    %c0_29 = arith.constant 0 : index
    %63 = vector.load %arg3[%c8, %c0_28, %c0_29] : memref<9x128x128xbf16, #tpu.memory_space<vmem>>, vector<1x128x128xbf16>
    %64 = vector.shape_cast %63 : vector<1x128x128xbf16> to vector<128x128xbf16>
    %cst_30 = arith.constant dense<0.000000e+00> : vector<256x128xf32>
    %65 = tpu.matmul %62, %64, %cst_30 {dimension_numbers = #tpu.dot_dimension_numbers<[1], [0], [0], [1], [0, 0, 1, 1], [], []>} : vector<256x128xbf16>, vector<128x128xbf16>, vector<256x128xf32> -> vector<256x128xf32>
    %66 = arith.addf %59, %65 : vector<256x128xf32>
    %c0_31 = arith.constant 0 : index
    %c0_32 = arith.constant 0 : index
    %67 = vector.load %arg4[%c0_31, %c0_32] : memref<1x128xf32, #tpu.memory_space<vmem>>, vector<1x128xf32>
    %68 = vector.broadcast %67 : vector<1x128xf32> to vector<256x128xf32>
    %69 = arith.addf %66, %68 : vector<256x128xf32>
    %c0_33 = arith.constant 0 : index
    %c0_34 = arith.constant 0 : index
    %c0_35 = arith.constant 0 : index
    %c0_36 = arith.constant 0 : index
    %70 = vector.load %arg2[%c0_33, %c0_34, %c0_35, %c0_36] : memref<1x16x16x64xf32, #tpu.memory_space<vmem>>, vector<1x16x16x64xf32>
    %71 = vector.shape_cast %70 : vector<1x16x16x64xf32> to vector<16x16x64xf32>
    %72 = vector.shape_cast %71 : vector<16x16x64xf32> to vector<256x64xf32>
    %c0_37 = arith.constant 0 : index
    %c0_38 = arith.constant 0 : index
    %73 = vector.load %arg7[%c0_37, %c0_38] : memref<64x256xf32, #tpu.memory_space<vmem>>, vector<64x256xf32>
    %cst_39 = arith.constant dense<0.000000e+00> : vector<64x128xf32>
    %74 = tpu.matmul %73, %69, %cst_39 {dimension_numbers = #tpu.dot_dimension_numbers<[1], [0], [0], [1], [0, 0, 1, 1], [], []>} : vector<64x256xf32>, vector<256x128xf32>, vector<64x128xf32> -> vector<64x128xf32>
    %cst_40 = arith.constant dense<0.000000e+00> : vector<64x64xf32>
    %75 = tpu.matmul %73, %72, %cst_40 {dimension_numbers = #tpu.dot_dimension_numbers<[1], [0], [0], [1], [0, 0, 1, 1], [], []>} : vector<64x256xf32>, vector<256x64xf32>, vector<64x64xf32> -> vector<64x64xf32>
    %76 = arith.truncf %75 : vector<64x64xf32> to vector<64x64xbf16>
    %c0_41 = arith.constant 0 : index
    %c0_42 = arith.constant 0 : index
    %77 = vector.load %arg5[%c0_41, %c0_42] : memref<64x128xbf16, #tpu.memory_space<vmem>>, vector<64x128xbf16>
    %cst_43 = arith.constant dense<0.000000e+00> : vector<64x128xf32>
    %78 = tpu.matmul %76, %77, %cst_43 {dimension_numbers = #tpu.dot_dimension_numbers<[1], [0], [0], [1], [0, 0, 1, 1], [], []>} : vector<64x64xbf16>, vector<64x128xbf16>, vector<64x128xf32> -> vector<64x128xf32>
    %c0_44 = arith.constant 0 : index
    %c0_45 = arith.constant 0 : index
    %79 = vector.load %arg6[%c0_44, %c0_45] : memref<1x128xf32, #tpu.memory_space<vmem>>, vector<1x128xf32>
    %80 = vector.broadcast %79 : vector<1x128xf32> to vector<64x128xf32>
    %81 = arith.addf %78, %80 : vector<64x128xf32>
    %82 = arith.addf %74, %81 : vector<64x128xf32>
    %c0_46 = arith.constant 0 : index
    %c0_47 = arith.constant 0 : index
    %c0_48 = arith.constant 0 : index
    %83 = vector.load %arg8[%c0_46, %c0_47, %c0_48] : memref<1x64x128xf32, #tpu.memory_space<vmem>>, vector<1x64x128xf32>
    %84 = vector.shape_cast %83 : vector<1x64x128xf32> to vector<64x128xf32>
    %85 = vector.shape_cast %82 : vector<64x128xf32> to vector<1x64x128xf32>
    tpu.vector_store %arg8[%c0_46, %c0_47, %c0_48], %85 {strides = array<i32>} : memref<1x64x128xf32, #tpu.memory_space<vmem>>, vector<1x64x128xf32>,
    return
  }
  func.func @transform_0(%arg0: i32) -> (i32, i32, i32, i32) {
    %c0_i32 = arith.constant 0 : i32
    %c0_i32_0 = arith.constant 0 : i32
    %c0_i32_1 = arith.constant 0 : i32
    %c0_i32_2 = arith.constant 0 : i32
    return %arg0, %c0_i32, %c0_i32_0, %c0_i32_1 : i32, i32, i32, i32
  }
  func.func @transform_1(%arg0: i32) -> (i32, i32, i32, i32) {
    %c0_i32 = arith.constant 0 : i32
    %c0_i32_0 = arith.constant 0 : i32
    %c0_i32_1 = arith.constant 0 : i32
    %c0_i32_2 = arith.constant 0 : i32
    return %arg0, %c0_i32, %c0_i32_0, %c0_i32_1 : i32, i32, i32, i32
  }
  func.func @transform_2(%arg0: i32) -> (i32, i32, i32) {
    %c0_i32 = arith.constant 0 : i32
    %c0_i32_0 = arith.constant 0 : i32
    %c0_i32_1 = arith.constant 0 : i32
    %c0_i32_2 = arith.constant 0 : i32
    return %c0_i32, %c0_i32_0, %c0_i32_1 : i32, i32, i32
  }
  func.func @transform_3(%arg0: i32) -> (i32, i32) {
    %c0_i32 = arith.constant 0 : i32
    %c0_i32_0 = arith.constant 0 : i32
    %c0_i32_1 = arith.constant 0 : i32
    return %c0_i32, %c0_i32_0 : i32, i32
  }
  func.func @transform_4(%arg0: i32) -> (i32, i32) {
    %c0_i32 = arith.constant 0 : i32
    %c0_i32_0 = arith.constant 0 : i32
    %c0_i32_1 = arith.constant 0 : i32
    return %c0_i32, %c0_i32_0 : i32, i32
  }
  func.func @transform_5(%arg0: i32) -> (i32, i32) {
    %c0_i32 = arith.constant 0 : i32
    %c0_i32_0 = arith.constant 0 : i32
    %c0_i32_1 = arith.constant 0 : i32
    return %c0_i32, %c0_i32_0 : i32, i32
  }
  func.func @transform_6(%arg0: i32) -> (i32, i32) {
    %c0_i32 = arith.constant 0 : i32
    %c0_i32_0 = arith.constant 0 : i32
    %c0_i32_1 = arith.constant 0 : i32
    return %c0_i32, %c0_i32_0 : i32, i32
  }
  func.func @transform_7(%arg0: i32) -> (i32, i32, i32) {
    %c0_i32 = arith.constant 0 : i32
    %c0_i32_0 = arith.constant 0 : i32
    %c0_i32_1 = arith.constant 0 : i32
    return %arg0, %c0_i32, %c0_i32_0 : i32, i32, i32
  }
}

</mosaic_0001>

<llo_original>
// kernel: resblock_forward.2
$region0: #{resblock_forward.2}
  #allocation0 [shape = 'u32[]', space=smem, size = 0x4, offset = 0x4, fixed_abs, tag = 'smem constant byte address 0x4 - core index']
  #allocation1 [shape = 'u32[144,128]{1,0:T(1,128)}', space=vmem, size = 0x12000, scoped, tag = 'internal scratch']
  %s0 = inlined_call_operand.vmem [shape: f32[2,18,18,64], index: 0, kind: input, shape index: {}]
  %s1 = inlined_call_operand.vmem [shape: bf16[9,64,128], index: 1, kind: input, shape index: {}]
  %s2 = inlined_call_operand.vmem [shape: f32[1,128], index: 2, kind: input, shape index: {}]
  %s3 = inlined_call_operand.vmem [shape: bf16[2,256,128], index: 3, kind: output, shape index: {}]
  %s4 = sld [smem:[#allocation0]]
  $region45: #{resblock_forward.2} parent=0
    _
  %s6 = ssub.s32 1, %s4
  %s7 = scalar_select 0, %s6, %s4
  loop: start=0, step=1, limit=4
  $region2: #{resblock_forward.2} parent=0 // loop_pre_header
    _
  $region3: #{resblock_forward.2} parent=0 // loop_header
    %s9 = sphi 0, %s13
    %p10 = scmp.ge.s32.totalorder %s9, 4
    %s19 = sphi 0, %s21
    %s22 = sphi 0, %s19
    %s23 = sphi 0, %s22
    %s39 = sphi 0, %s23
    %s43 = sphi 0, %s43
    %s45 = sphi 0, %s43
    %s46 = sphi 0, %s45
    %s60 = sphi 0, %s46
    %s64 = sphi 0, %s64
    %s66 = sphi 0, %s64
    %s67 = sphi 0, %s66
    %s81 = sphi 0, %s67
    %s87 = sphi 0, %s89
    %s90 = sphi 0, %s87
    %s91 = sphi 0, %s90
    %s107 = sphi 0, %s91
  $region4: #{resblock_forward.2} parent=0 // loop_header_branch
    %12 = sbr.rel (%p10) target = $region8
  $region5: #{resblock_forward.2} parent=0 // loop_body
    %s14 = ssub.s32 %s9, 1
    %s15 = ssub.s32 %s9, 2
    %s16 = sadd.s32 %s9, 1
    %s17 = ssub.s32 %s9, %s16
    %p18 = scmp.eq.s32.totalorder %s17, 0
    %s20 = sadd.s32 %s19, 1
    %s21 = scalar_select %p18, %s19, %s20
    %p24 = pneg %p18
    %p25 = scmp.eq.s32.totalorder %s9, 1
    %p26 = por %p24, %p25
    %p27 = scmp.ne.s32.totalorder %s19, %s22
    %p28 = scmp.eq.s32.totalorder %s9, 0
    %p29 = por %p27, %p28
    %p30 = scmp.ne.s32.totalorder %s19, %s22
    %p31 = scmp.eq.s32.totalorder %s14, 1
    %p32 = por %p30, %p31
    %p33 = scmp.ne.s32.totalorder %s22, %s23
    %p34 = scmp.eq.s32.totalorder %s14, 0
    %p35 = por %p33, %p34
    %p36 = scmp.ne.s32.totalorder %s22, %s23
    %p37 = scmp.eq.s32.totalorder %s15, 1
    %p38 = por %p36, %p37
    %p40 = scmp.ne.s32.totalorder %s23, %s39
    %p41 = scmp.eq.s32.totalorder %s15, 0
    %p42 = por %p40, %p41
    %s44 = sadd.s32 %s43, 1
    %p47 = scmp.eq.s32.totalorder %s9, 1
    %p48 = scmp.ne.s32.totalorder %s43, %s45
    %p49 = scmp.eq.s32.totalorder %s9, 0
    %p50 = por %p48, %p49
    %p51 = scmp.ne.s32.totalorder %s43, %s45
    %p52 = scmp.eq.s32.totalorder %s14, 1
    %p53 = por %p51, %p52
    %p54 = scmp.ne.s32.totalorder %s45, %s46
    %p55 = scmp.eq.s32.totalorder %s14, 0
    %p56 = por %p54, %p55
    %p57 = scmp.ne.s32.totalorder %s45, %s46
    %p58 = scmp.eq.s32.totalorder %s15, 1
    %p59 = por %p57, %p58
    %p61 = scmp.ne.s32.totalorder %s46, %s60
    %p62 = scmp.eq.s32.totalorder %s15, 0
    %p63 = por %p61, %p62
    %s65 = sadd.s32 %s64, 1
    %p68 = scmp.eq.s32.totalorder %s9, 1
    %p69 = scmp.ne.s32.totalorder %s64, %s66
    %p70 = scmp.eq.s32.totalorder %s9, 0
    %p71 = por %p69, %p70
    %p72 = scmp.ne.s32.totalorder %s64, %s66
    %p73 = scmp.eq.s32.totalorder %s14, 1
    %p74 = por %p72, %p73
    %p75 = scmp.ne.s32.totalorder %s66, %s67
    %p76 = scmp.eq.s32.totalorder %s14, 0
    %p77 = por %p75, %p76
    %p78 = scmp.ne.s32.totalorder %s66, %s67
    %p79 = scmp.eq.s32.totalorder %s15, 1
    %p80 = por %p78, %p79
    %p82 = scmp.ne.s32.totalorder %s67, %s81
    %p83 = scmp.eq.s32.totalorder %s15, 0
    %p84 = por %p82, %p83
    %s85 = ssub.s32 %s9, %s16
    %p86 = scmp.eq.s32.totalorder %s85, 0
    %s88 = sadd.s32 %s87, 1
    %s89 = scalar_select %p86, %s87, %s88
    %p92 = pneg %p86
    %p93 = scmp.eq.s32.totalorder %s9, 1
    %p94 = por %p92, %p93
    %p95 = scmp.ne.s32.totalorder %s87, %s90
    %p96 = scmp.eq.s32.totalorder %s9, 0
    %p97 = por %p95, %p96
    %p98 = scmp.ne.s32.totalorder %s87, %s90
    %p99 = scmp.eq.s32.totalorder %s14, 1
    %p100 = por %p98, %p99
    %p101 = scmp.ne.s32.totalorder %s90, %s91
    %p102 = scmp.eq.s32.totalorder %s14, 0
    %p103 = por %p101, %p102
    %p104 = scmp.ne.s32.totalorder %s90, %s91
    %p105 = scmp.eq.s32.totalorder %s15, 1
    %p106 = por %p104, %p105
    %p108 = scmp.ne.s32.totalorder %s91, %s107
    %p109 = scmp.eq.s32.totalorder %s15, 0
    %p110 = por %p108, %p109
    %p111 = scmp.le.s32.totalorder 1, %s9
    %p112 = scmp.lt.s32.totalorder %s9, 3
    %p113 = pnand %p111, %p112
    %p114 = pneg %p113
    // Predicated region
    $region9: #{resblock_forward.2} parent=5 // pred_check
      _
    $region10: #{resblock_forward.2} parent=5 // pred_check_branch
      %116 = sbr.rel (%p113) target = $region12
    $region11: #{resblock_forward.2} parent=5 // pred_region
      %s117 = ssub.s32 %s9, 1
      // Predicated region
      $region13: #{resblock_forward.2} parent=11 // pred_check
        %p118 = pneg %p56
      $region14: #{resblock_forward.2} parent=11 // pred_check_branch
        %120 = sbr.rel (%p118) target = $region16
      $region15: #{resblock_forward.2} parent=11 // pred_region
        _
      $region16: #{resblock_forward.2} parent=11 // pred_fallthru
        _
      // Predicated region
      $region17: #{resblock_forward.2} parent=11 // pred_check
        %p121 = pneg %p77
      $region18: #{resblock_forward.2} parent=11 // pred_check_branch
        %123 = sbr.rel (%p121) target = $region20
      $region19: #{resblock_forward.2} parent=11 // pred_region
        _
      $region20: #{resblock_forward.2} parent=11 // pred_fallthru
        _
    $region12: #{resblock_forward.2} parent=5 // pred_fallthru
      _
    %p124 = scmp.lt.s32.totalorder %s9, 2
    // Predicated region
    $region21: #{resblock_forward.2} parent=5 // pred_check
      %p125 = pneg %p124
    $region22: #{resblock_forward.2} parent=5 // pred_check_branch
      %127 = sbr.rel (%p125) target = $region24
    $region23: #{resblock_forward.2} parent=5 // pred_region
      // Predicated region
      $region25: #{resblock_forward.2} parent=23 // pred_check
        %p128 = pneg %p29
      $region26: #{resblock_forward.2} parent=23 // pred_check_branch
        %130 = sbr.rel (%p128) target = $region28
      $region27: #{resblock_forward.2} parent=23 // pred_region
        %p131 = scmp.lt.s32.totalorder %s9, 1
        %s132 = scalar_select %p131, %s9, 1
        %s133 = smul.addr %s132, 54
        %s134 = smul.addr %s133, 8
        %s135 = scalar_lea.vmem %s0, %s134
      $region28: #{resblock_forward.2} parent=23 // pred_fallthru
        _
    $region24: #{resblock_forward.2} parent=5 // pred_fallthru
      _
    %p136 = scmp.le.s32.totalorder 1, %s9
    %p137 = scmp.lt.s32.totalorder %s9, 3
    %p138 = pnand %p136, %p137
    %p139 = pneg %p138
    // Predicated region
    $region29: #{resblock_forward.2} parent=5 // pred_check
      _
    $region30: #{resblock_forward.2} parent=5 // pred_check_branch
      %141 = sbr.rel (%p138) target = $region32
    $region31: #{resblock_forward.2} parent=5 // pred_region
      %s142 = ssub.s32 %s9, 1
      %p143 = scmp.lt.s32.totalorder %s14, 1
      %s144 = scalar_select %p143, %s14, 1
      %s145 = smul.addr %s144, 54
      %s146 = smul.addr %s145, 8
      %s147 = scalar_lea.vmem %s0, %s146
      %p148 = pneg %p35
      %p149 = pneg %p32
      %p150 = pneg %p56
      %p151 = pneg %p53
      %p152 = pneg %p77
      %p153 = pneg %p74
      %p154 = pneg %p103
      %p155 = pneg %p100
      %p156 = scmp.lt.s32.totalorder %s14, 1
      %s157 = scalar_select %p156, %s14, 1
      %s158 = smul.addr %s157, 32
      %s159 = smul.addr %s158, 4
      %s160 = scalar_lea.vmem %s3, %s159
      %p161 = scmp.lt.s32.totalorder %s14, 1
      %s162 = scalar_select %p161, %s14, 1
      %s163 = smul.addr %s162, 54
      %s164 = smul.addr %s163, 8
      %s165 = scalar_lea.vmem %s0, %s164
      %p166 = scmp.lt.s32.totalorder %s14, 1
      %s167 = scalar_select %p166, %s14, 1
      %s168 = smul.addr %s167, 32
      %s169 = smul.addr %s168, 4
      %s170 = scalar_lea.vmem %s3, %s169
      %v172 = vld [vmem:[%s165] sm:$0xff]
      %v173 = vld [vmem:[%s165 + $0x8] sm:$0xff]
      %v174 = vld [vmem:[%s165 + $0x10] sm:$0x3]
      %v175 = vld [vmem:[%s165 + $0x18] sm:$0xff]
      %v176 = vld [vmem:[%s165 + $0x20] sm:$0xff]
      %v177 = vld [vmem:[%s165 + $0x28] sm:$0x3]
      %v178 = vld [vmem:[%s165 + $0x30] sm:$0xff]
      %v179 = vld [vmem:[%s165 + $0x38] sm:$0xff]
      %v180 = vld [vmem:[%s165 + $0x40] sm:$0x3]
      %v181 = vld [vmem:[%s165 + $0x48] sm:$0xff]
      %v182 = vld [vmem:[%s165 + $0x50] sm:$0xff]
      %v183 = vld [vmem:[%s165 + $0x58] sm:$0x3]
      %v184 = vld [vmem:[%s165 + $0x60] sm:$0xff]
      %v185 = vld [vmem:[%s165 + $0x68] sm:$0xff]
      %v186 = vld [vmem:[%s165 + $0x70] sm:$0x3]
      %v187 = vld [vmem:[%s165 + $0x78] sm:$0xff]
      %v188 = vld [vmem:[%s165 + $0x80] sm:$0xff]
      %v189 = vld [vmem:[%s165 + $0x88] sm:$0x3]
      %v190 = vld [vmem:[%s165 + $0x90] sm:$0xff]
      %v191 = vld [vmem:[%s165 + $0x98] sm:$0xff]
      %v192 = vld [vmem:[%s165 + $0xa0] sm:$0x3]
      %v193 = vld [vmem:[%s165 + $0xa8] sm:$0xff]
      %v194 = vld [vmem:[%s165 + $0xb0] sm:$0xff]
      %v195 = vld [vmem:[%s165 + $0xb8] sm:$0x3]
      %v196 = vld [vmem:[%s165 + $0xc0] sm:$0xff]
      %v197 = vld [vmem:[%s165 + $0xc8] sm:$0xff]
      %v198 = vld [vmem:[%s165 + $0xd0] sm:$0x3]
      %v199 = vld [vmem:[%s165 + $0xd8] sm:$0xff]
      %v200 = vld [vmem:[%s165 + $0xe0] sm:$0xff]
      %v201 = vld [vmem:[%s165 + $0xe8] sm:$0x3]
      %v202 = vld [vmem:[%s165 + $0xf0] sm:$0xff]
      %v203 = vld [vmem:[%s165 + $0xf8] sm:$0xff]
      %v204 = vld [vmem:[%s165 + $0x100] sm:$0x3]
      %v205 = vld [vmem:[%s165 + $0x108] sm:$0xff]
      %v206 = vld [vmem:[%s165 + $0x110] sm:$0xff]
      %v207 = vld [vmem:[%s165 + $0x118] sm:$0x3]
      %v208 = vld [vmem:[%s165 + $0x120] sm:$0xff]
      %v209 = vld [vmem:[%s165 + $0x128] sm:$0xff]
      %v210 = vld [vmem:[%s165 + $0x130] sm:$0x3]
      %v211 = vld [vmem:[%s165 + $0x138] sm:$0xff]
      %v212 = vld [vmem:[%s165 + $0x140] sm:$0xff]
      %v213 = vld [vmem:[%s165 + $0x148] sm:$0x3]
      %v214 = vld [vmem:[%s165 + $0x150] sm:$0xff]
      %v215 = vld [vmem:[%s165 + $0x158] sm:$0xff]
      %v216 = vld [vmem:[%s165 + $0x160] sm:$0x3]
      %v217 = vld [vmem:[%s165 + $0x168] sm:$0xff]
      %v218 = vld [vmem:[%s165 + $0x170] sm:$0xff]
      %v219 = vld [vmem:[%s165 + $0x178] sm:$0x3]
      %v220 = vld [vmem:[%s165 + $0x180] sm:$0xff]
      %v221 = vld [vmem:[%s165 + $0x188] sm:$0xff]
      %v222 = vld [vmem:[%s165 + $0x190] sm:$0x3]
      %v223 = vld [vmem:[%s165 + $0x198] sm:$0xff]
      %v224 = vld [vmem:[%s165 + $0x1a0] sm:$0xff]
      %v225 = vld [vmem:[%s165 + $0x1a8] sm:$0x3]
      %v226 = vmax.f32 %v172, 0.0
      %v227 = vmax.f32 %v173, 0.0
      %v228 = vmax.f32 %v174, 0.0
      %v229 = vmax.f32 %v175, 0.0
      %v230 = vmax.f32 %v176, 0.0
      %v231 = vmax.f32 %v177, 0.0
      %v232 = vmax.f32 %v178, 0.0
      %v233 = vmax.f32 %v179, 0.0
      %v234 = vmax.f32 %v180, 0.0
      %v235 = vmax.f32 %v181, 0.0
      %v236 = vmax.f32 %v182, 0.0
      %v237 = vmax.f32 %v183, 0.0
      %v238 = vmax.f32 %v184, 0.0
      %v239 = vmax.f32 %v185, 0.0
      %v240 = vmax.f32 %v186, 0.0
      %v241 = vmax.f32 %v187, 0.0
      %v242 = vmax.f32 %v188, 0.0
      %v243 = vmax.f32 %v189, 0.0
      %v244 = vmax.f32 %v190, 0.0
      %v245 = vmax.f32 %v191, 0.0
      %v246 = vmax.f32 %v192, 0.0
      %v247 = vmax.f32 %v193, 0.0
      %v248 = vmax.f32 %v194, 0.0
      %v249 = vmax.f32 %v195, 0.0
      %v250 = vmax.f32 %v196, 0.0
      %v251 = vmax.f32 %v197, 0.0
      %v252 = vmax.f32 %v198, 0.0
      %v253 = vmax.f32 %v199, 0.0
      %v254 = vmax.f32 %v200, 0.0
      %v255 = vmax.f32 %v201, 0.0
      %v256 = vmax.f32 %v202, 0.0
      %v257 = vmax.f32 %v203, 0.0
      %v258 = vmax.f32 %v204, 0.0
      %v259 = vmax.f32 %v205, 0.0
      %v260 = vmax.f32 %v206, 0.0
      %v261 = vmax.f32 %v207, 0.0
      %v262 = vmax.f32 %v208, 0.0
      %v263 = vmax.f32 %v209, 0.0
      %v264 = vmax.f32 %v210, 0.0
      %v265 = vmax.f32 %v211, 0.0
      %v266 = vmax.f32 %v212, 0.0
      %v267 = vmax.f32 %v213, 0.0
      %v268 = vmax.f32 %v214, 0.0
      %v269 = vmax.f32 %v215, 0.0
      %v270 = vmax.f32 %v216, 0.0
      %v271 = vmax.f32 %v217, 0.0
      %v272 = vmax.f32 %v218, 0.0
      %v273 = vmax.f32 %v219, 0.0
      %v274 = vmax.f32 %v220, 0.0
      %v275 = vmax.f32 %v221, 0.0
      %v276 = vmax.f32 %v222, 0.0
      %v277 = vmax.f32 %v223, 0.0
      %v278 = vmax.f32 %v224, 0.0
      %v279 = vmax.f32 %v225, 0.0
      %v280 = vpack.c.bf16 %v227, %v226
      %v281 = vpack.c.bf16 %v230, %v229
      %v282 = vpack.c.bf16 %v233, %v232
      %v283 = vpack.c.bf16 %v236, %v235
      %v284 = vpack.c.bf16 %v239, %v238
      %v285 = vpack.c.bf16 %v242, %v241
      %v286 = vpack.c.bf16 %v245, %v244
      %v287 = vpack.c.bf16 %v248, %v247
      %v288 = vpack.c.bf16 %v251, %v250
      %v289 = vpack.c.bf16 %v254, %v253
      %v290 = vpack.c.bf16 %v257, %v256
      %v291 = vpack.c.bf16 %v260, %v259
      %v292 = vpack.c.bf16 %v263, %v262
      %v293 = vpack.c.bf16 %v266, %v265
      %v294 = vpack.c.bf16 %v269, %v268
      %v295 = vpack.c.bf16 %v272, %v271
      %v296 = vld [vmem:[%s1] sm:$0xf]
      %v297 = vld [vmem:[%s1 + $0x4] sm:$0xf]
      %v298 = vld [vmem:[%s1 + $0x8] sm:$0xf]
      %v299 = vld [vmem:[%s1 + $0xc] sm:$0xf]
      %v300 = vld [vmem:[%s1 + $0x10] sm:$0xf]
      %v301 = vld [vmem:[%s1 + $0x14] sm:$0xf]
      %v302 = vld [vmem:[%s1 + $0x18] sm:$0xf]
      %v303 = vld [vmem:[%s1 + $0x1c] sm:$0xf]
      %vm352 = vcmask 1046528
      %v353 = vrot.slane %v226, 1
      %v354 = vrot.slane %v227, 1
      %v355 = vsel %vm352, %v353, %v354
      %v356 = vrot.slane %v228, 1
      %v357 = vsel %vm352, %v354, %v356
      %v358 = vrot.slane %v229, 1
      %v359 = vrot.slane %v230, 1
      %v360 = vsel %vm352, %v358, %v359
      %v361 = vrot.slane %v231, 1
      %v362 = vsel %vm352, %v359, %v361
      %v363 = vrot.slane %v232, 1
      %v364 = vrot.slane %v233, 1
      %v365 = vsel %vm352, %v363, %v364
      %v366 = vrot.slane %v234, 1
      %v367 = vsel %vm352, %v364, %v366
      %v368 = vrot.slane %v235, 1
      %v369 = vrot.slane %v236, 1
      %v370 = vsel %vm352, %v368, %v369
      %v371 = vrot.slane %v237, 1
      %v372 = vsel %vm352, %v369, %v371
      %v373 = vrot.slane %v238, 1
      %v374 = vrot.slane %v239, 1
      %v375 = vsel %vm352, %v373, %v374
      %v376 = vrot.slane %v240, 1
      %v377 = vsel %vm352, %v374, %v376
      %v378 = vrot.slane %v241, 1
      %v379 = vrot.slane %v242, 1
      %v380 = vsel %vm352, %v378, %v379
      %v381 = vrot.slane %v243, 1
      %v382 = vsel %vm352, %v379, %v381
      %v383 = vrot.slane %v244, 1
      %v384 = vrot.slane %v245, 1
      %v385 = vsel %vm352, %v383, %v384
      %v386 = vrot.slane %v246, 1
      %v387 = vsel %vm352, %v384, %v386
      %v388 = vrot.slane %v247, 1
      %v389 = vrot.slane %v248, 1
      %v390 = vsel %vm352, %v388, %v389
      %v391 = vrot.slane %v249, 1
      %v392 = vsel %vm352, %v389, %v391
      %v393 = vrot.slane %v250, 1
      %v394 = vrot.slane %v251, 1
      %v395 = vsel %vm352, %v393, %v394
      %v396 = vrot.slane %v252, 1
      %v397 = vsel %vm352, %v394, %v396
      %v398 = vrot.slane %v253, 1
      %v399 = vrot.slane %v254, 1
      %v400 = vsel %vm352, %v398, %v399
      %v401 = vrot.slane %v255, 1
      %v402 = vsel %vm352, %v399, %v401
      %v403 = vrot.slane %v256, 1
      %v404 = vrot.slane %v257, 1
      %v405 = vsel %vm352, %v403, %v404
      %v406 = vrot.slane %v258, 1
      %v407 = vsel %vm352, %v404, %v406
      %v408 = vrot.slane %v259, 1
      %v409 = vrot.slane %v260, 1
      %v410 = vsel %vm352, %v408, %v409
      %v411 = vrot.slane %v261, 1
      %v412 = vsel %vm352, %v409, %v411
      %v413 = vrot.slane %v262, 1
      %v414 = vrot.slane %v263, 1
      %v415 = vsel %vm352, %v413, %v414
      %v416 = vrot.slane %v264, 1
      %v417 = vsel %vm352, %v414, %v416
      %v418 = vrot.slane %v265, 1
      %v419 = vrot.slane %v266, 1
      %v420 = vsel %vm352, %v418, %v419
      %v421 = vrot.slane %v267, 1
      %v422 = vsel %vm352, %v419, %v421
      %v423 = vrot.slane %v268, 1
      %v424 = vrot.slane %v269, 1
      %v425 = vsel %vm352, %v423, %v424
      %v426 = vrot.slane %v270, 1
      %v427 = vsel %vm352, %v424, %v426
      %v428 = vrot.slane %v271, 1
      %v429 = vrot.slane %v272, 1
      %v430 = vsel %vm352, %v428, %v429
      %v431 = vrot.slane %v273, 1
      %v432 = vsel %vm352, %v429, %v431
      %v465 = vpack.c.bf16 %v357, %v355
      %v466 = vpack.c.bf16 %v362, %v360
      %v467 = vpack.c.bf16 %v367, %v365
      %v468 = vpack.c.bf16 %v372, %v370
      %v469 = vpack.c.bf16 %v377, %v375
      %v470 = vpack.c.bf16 %v382, %v380
      %v471 = vpack.c.bf16 %v387, %v385
      %v472 = vpack.c.bf16 %v392, %v390
      %v473 = vpack.c.bf16 %v397, %v395
      %v474 = vpack.c.bf16 %v402, %v400
      %v475 = vpack.c.bf16 %v407, %v405
      %v476 = vpack.c.bf16 %v412, %v410
      %v477 = vpack.c.bf16 %v417, %v415
      %v478 = vpack.c.bf16 %v422, %v420
      %v479 = vpack.c.bf16 %v427, %v425
      %v480 = vpack.c.bf16 %v432, %v430
      %s481 = scalar_lea.vmem %s1, 32
      %v482 = vld [vmem:[%s481] sm:$0xf]
      %v483 = vld [vmem:[%s481 + $0x4] sm:$0xf]
      %v484 = vld [vmem:[%s481 + $0x8] sm:$0xf]
      %v485 = vld [vmem:[%s481 + $0xc] sm:$0xf]
      %v486 = vld [vmem:[%s481 + $0x10] sm:$0xf]
      %v487 = vld [vmem:[%s481 + $0x14] sm:$0xf]
      %v488 = vld [vmem:[%s481 + $0x18] sm:$0xf]
      %v489 = vld [vmem:[%s481 + $0x1c] sm:$0xf]
      %v498 = vunpack.c.l.b16 %v482
      %v499 = vunpack.c.l.b16 %v483
      %v500 = vunpack.c.l.b16 %v484
      %v501 = vunpack.c.l.b16 %v485
      %v502 = vunpack.c.l.b16 %v486
      %v503 = vunpack.c.l.b16 %v487
      %v504 = vunpack.c.l.b16 %v488
      %v505 = vunpack.c.l.b16 %v489
      %v506 = vpack.c.b16 %v499, %v498
      %v507 = vpack.c.b16 %v501, %v500
      %v508 = vpack.c.b16 %v503, %v502
      %v509 = vpack.c.b16 %v505, %v504
      %vm514 = vcmask 523264
      %v516 = vsel %vm514, %v465, 0
      %v519 = vsel %vm514, %v466, 0
      %v522 = vsel %vm514, %v467, 0
      %v525 = vsel %vm514, %v468, 0
      %v528 = vsel %vm514, %v469, 0
      %v531 = vsel %vm514, %v470, 0
      %v534 = vsel %vm514, %v471, 0
      %v537 = vsel %vm514, %v472, 0
      %v540 = vsel %vm514, %v473, 0
      %v543 = vsel %vm514, %v474, 0
      %v546 = vsel %vm514, %v475, 0
      %v549 = vsel %vm514, %v476, 0
      %v552 = vsel %vm514, %v477, 0
      %v555 = vsel %vm514, %v478, 0
      %v558 = vsel %vm514, %v479, 0
      %v561 = vsel %vm514, %v480, 0
      %563 = vmatprep.subr.bf16.mxu0 0
      %564 = vmatpush1.bf16.msra.mxu0 %v506
      %565 = vmatprep.subr.bf16.mxu0 0
      %566 = vmatpush1.bf16.msra.mxu0 %v507
      %567 = vmatprep.subr.bf16.mxu0 0
      %568 = vmatpush1.bf16.msra.mxu0 %v508
      %569 = vmatprep.subr.bf16.mxu0 0
      %570 = vmatpush1.bf16.msra.mxu0 %v509
      %571 = vmatprep.subr.bf16.mxu0 0
      %572 = vmatpush1.bf16.msra.mxu0 0
      %573 = vmatprep.subr.bf16.mxu0 0
      %574 = vmatpush1.bf16.msra.mxu0 0
      %575 = vmatprep.subr.bf16.mxu0 0
      %576 = vmatpush1.bf16.msra.mxu0 0
      %577 = vmatprep.subr.bf16.mxu0 0
      %578 = vmatpush1.bf16.msra.mxu0 0
      %579 = vmatprep.subr.bf16.mxu0 0
      %580 = vmatpush1.bf16.msra.mxu0 0
      %581 = vmatprep.subr.bf16.mxu0 0
      %582 = vmatpush1.bf16.msra.mxu0 0
      %583 = vmatprep.subr.bf16.mxu0 0
      %584 = vmatpush1.bf16.msra.mxu0 0
      %585 = vmatprep.subr.bf16.mxu0 0
      %586 = vmatpush1.bf16.msra.mxu0 0
      %587 = vmatprep.subr.bf16.mxu0 0
      %588 = vmatpush1.bf16.msra.mxu0 0
      %589 = vmatprep.subr.bf16.mxu0 0
      %590 = vmatpush1.bf16.msra.mxu0 0
      %591 = vmatprep.subr.bf16.mxu0 0
      %592 = vmatpush1.bf16.msra.mxu0 0
      %593 = vmatprep.subr.bf16.mxu0 0
      %594 = vmatpush1.bf16.msra.mxu0 0
      %595 = vmatprep.mubr.bf16.mxu0 0
      %596 = vmatmul.mubr.bf16.gmra.mrb[0].mxu0 %v516
      %v597 = vpop.f32.mrb[0].mxu0
      %v598 = vadd.f32 0.0, %v597
      %v599 = vpop.f32.mrb[0].mxu0
      %v600 = vpop.f32.mrb[0].mxu0
      %v601 = vadd.f32 0.0, %v600
      %v602 = vpop.f32.mrb[0].mxu0
      %603 = vmatprep.mubr.bf16.mxu0 0
      %604 = vmatmul.mubr.bf16.gmra.mrb[0].mxu0 %v519
      %v605 = vpop.f32.mrb[0].mxu0
      %v606 = vadd.f32 0.0, %v605
      %v607 = vpop.f32.mrb[0].mxu0
      %v608 = vpop.f32.mrb[0].mxu0
      %v609 = vadd.f32 0.0, %v608
      %v610 = vpop.f32.mrb[0].mxu0
      %611 = vmatprep.mubr.bf16.mxu0 0
      %612 = vmatmul.mubr.bf16.gmra.mrb[0].mxu0 %v522
      %v613 = vpop.f32.mrb[0].mxu0
      %v614 = vadd.f32 0.0, %v613
      %v615 = vpop.f32.mrb[0].mxu0
      %v616 = vpop.f32.mrb[0].mxu0
      %v617 = vadd.f32 0.0, %v616
      %v618 = vpop.f32.mrb[0].mxu0
      %619 = vmatprep.mubr.bf16.mxu0 0
      %620 = vmatmul.mubr.bf16.gmra.mrb[0].mxu0 %v525
      %v621 = vpop.f32.mrb[0].mxu0
      %v622 = vadd.f32 0.0, %v621
      %v623 = vpop.f32.mrb[0].mxu0
      %v624 = vpop.f32.mrb[0].mxu0
      %v625 = vadd.f32 0.0, %v624
      %v626 = vpop.f32.mrb[0].mxu0
      %627 = vmatprep.mubr.bf16.mxu0 0
      %628 = vmatmul.mubr.bf16.gmra.mrb[0].mxu0 %v528
      %v629 = vpop.f32.mrb[0].mxu0
      %v630 = vadd.f32 0.0, %v629
      %v631 = vpop.f32.mrb[0].mxu0
      %v632 = vpop.f32.mrb[0].mxu0
      %v633 = vadd.f32 0.0, %v632
      %v634 = vpop.f32.mrb[0].mxu0
      %635 = vmatprep.mubr.bf16.mxu0 0
      %636 = vmatmul.mubr.bf16.gmra.mrb[0].mxu0 %v531
      %v637 = vpop.f32.mrb[0].mxu0
      %v638 = vadd.f32 0.0, %v637
      %v639 = vpop.f32.mrb[0].mxu0
      %v640 = vpop.f32.mrb[0].mxu0
      %v641 = vadd.f32 0.0, %v640
      %v642 = vpop.f32.mrb[0].mxu0
      %643 = vmatprep.mubr.bf16.mxu0 0
      %644 = vmatmul.mubr.bf16.gmra.mrb[0].mxu0 %v534
      %v645 = vpop.f32.mrb[0].mxu0
      %v646 = vadd.f32 0.0, %v645
      %v647 = vpop.f32.mrb[0].mxu0
      %v648 = vpop.f32.mrb[0].mxu0
      %v649 = vadd.f32 0.0, %v648
      %v650 = vpop.f32.mrb[0].mxu0
      %651 = vmatprep.mubr.bf16.mxu0 0
      %652 = vmatmul.mubr.bf16.gmra.mrb[0].mxu0 %v537
      %v653 = vpop.f32.mrb[0].mxu0
      %v654 = vadd.f32 0.0, %v653
      %v655 = vpop.f32.mrb[0].mxu0
      %v656 = vpop.f32.mrb[0].mxu0
      %v657 = vadd.f32 0.0, %v656
      %v658 = vpop.f32.mrb[0].mxu0
      %659 = vmatprep.mubr.bf16.mxu0 0
      %660 = vmatmul.mubr.bf16.gmra.mrb[0].mxu0 %v540
      %v661 = vpop.f32.mrb[0].mxu0
      %v662 = vadd.f32 0.0, %v661
      %v663 = vpop.f32.mrb[0].mxu0
      %v664 = vpop.f32.mrb[0].mxu0
      %v665 = vadd.f32 0.0, %v664
      %v666 = vpop.f32.mrb[0].mxu0
      %667 = vmatprep.mubr.bf16.mxu0 0
      %668 = vmatmul.mubr.bf16.gmra.mrb[0].mxu0 %v543
      %v669 = vpop.f32.mrb[0].mxu0
      %v670 = vadd.f32 0.0, %v669
      %v671 = vpop.f32.mrb[0].mxu0
      %v672 = vpop.f32.mrb[0].mxu0
      %v673 = vadd.f32 0.0, %v672
      %v674 = vpop.f32.mrb[0].mxu0
      %675 = vmatprep.mubr.bf16.mxu0 0
      %676 = vmatmul.mubr.bf16.gmra.mrb[0].mxu0 %v546
      %v677 = vpop.f32.mrb[0].mxu0
      %v678 = vadd.f32 0.0, %v677
      %v679 = vpop.f32.mrb[0].mxu0
      %v680 = vpop.f32.mrb[0].mxu0
      %v681 = vadd.f32 0.0, %v680
      %v682 = vpop.f32.mrb[0].mxu0
      %683 = vmatprep.mubr.bf16.mxu0 0
      %684 = vmatmul.mubr.bf16.gmra.mrb[0].mxu0 %v549
      %v685 = vpop.f32.mrb[0].mxu0
      %v686 = vadd.f32 0.0, %v685
      %v687 = vpop.f32.mrb[0].mxu0
      %v688 = vpop.f32.mrb[0].mxu0
      %v689 = vadd.f32 0.0, %v688
      %v690 = vpop.f32.mrb[0].mxu0
      %691 = vmatprep.mubr.bf16.mxu0 0
      %692 = vmatmul.mubr.bf16.gmra.mrb[0].mxu0 %v552
      %v693 = vpop.f32.mrb[0].mxu0
      %v694 = vadd.f32 0.0, %v693
      %v695 = vpop.f32.mrb[0].mxu0
      %v696 = vpop.f32.mrb[0].mxu0
      %v697 = vadd.f32 0.0, %v696
      %v698 = vpop.f32.mrb[0].mxu0
      %699 = vmatprep.mubr.bf16.mxu0 0
      %700 = vmatmul.mubr.bf16.gmra.mrb[0].mxu0 %v555
      %v701 = vpop.f32.mrb[0].mxu0
      %v702 = vadd.f32 0.0, %v701
      %v703 = vpop.f32.mrb[0].mxu0
      %v704 = vpop.f32.mrb[0].mxu0
      %v705 = vadd.f32 0.0, %v704
      %v706 = vpop.f32.mrb[0].mxu0
      %707 = vmatprep.mubr.bf16.mxu0 0
      %708 = vmatmul.mubr.bf16.gmra.mrb[0].mxu0 %v558
      %v709 = vpop.f32.mrb[0].mxu0
      %v710 = vadd.f32 0.0, %v709
      %v711 = vpop.f32.mrb[0].mxu0
      %v712 = vpop.f32.mrb[0].mxu0
      %v713 = vadd.f32 0.0, %v712
      %v714 = vpop.f32.mrb[0].mxu0
      %715 = vmatprep.mubr.bf16.mxu0 0
      %716 = vmatmul.mubr.bf16.gmra.mrb[0].mxu0 %v561
      %v717 = vpop.f32.mrb[0].mxu0
      %v718 = vadd.f32 0.0, %v717
      %v719 = vpop.f32.mrb[0].mxu0
      %v720 = vpop.f32.mrb[0].mxu0
      %v721 = vadd.f32 0.0, %v720
      %v722 = vpop.f32.mrb[0].mxu0
      %723 = vdwg.mxu0
      %v732 = vunpack.c.l.b16 %v296
      %v733 = vunpack.c.l.b16 %v297
      %v734 = vunpack.c.l.b16 %v298
      %v735 = vunpack.c.l.b16 %v299
      %v736 = vunpack.c.l.b16 %v300
      %v737 = vunpack.c.l.b16 %v301
      %v738 = vunpack.c.l.b16 %v302
      %v739 = vunpack.c.l.b16 %v303
      %v740 = vpack.c.b16 %v733, %v732
      %v741 = vpack.c.b16 %v735, %v734
      %v742 = vpack.c.b16 %v737, %v736
      %v743 = vpack.c.b16 %v739, %v738
      %v749 = vsel %vm514, %v280, 0
      %v752 = vsel %vm514, %v281, 0
      %v755 = vsel %vm514, %v282, 0
      %v758 = vsel %vm514, %v283, 0
      %v761 = vsel %vm514, %v284, 0
      %v764 = vsel %vm514, %v285, 0
      %v767 = vsel %vm514, %v286, 0
      %v770 = vsel %vm514, %v287, 0
      %v773 = vsel %vm514, %v288, 0
      %v776 = vsel %vm514, %v289, 0
      %v779 = vsel %vm514, %v290, 0
      %v782 = vsel %vm514, %v291, 0
      %v785 = vsel %vm514, %v292, 0
      %v788 = vsel %vm514, %v293, 0
      %v791 = vsel %vm514, %v294, 0
      %v794 = vsel %vm514, %v295, 0
      %796 = vmatprep.subr.bf16.mxu0 0
      %797 = vmatpush1.bf16.msra.mxu0 %v740
      %798 = vmatprep.subr.bf16.mxu0 0
      %799 = vmatpush1.bf16.msra.mxu0 %v741
      %800 = vmatprep.subr.bf16.mxu0 0
      %801 = vmatpush1.bf16.msra.mxu0 %v742
      %802 = vmatprep.subr.bf16.mxu0 0
      %803 = vmatpush1.bf16.msra.mxu0 %v743
      %804 = vmatprep.subr.bf16.mxu0 0
      %805 = vmatpush1.bf16.msra.mxu0 0
      %806 = vmatprep.subr.bf16.mxu0 0
      %807 = vmatpush1.bf16.msra.mxu0 0
      %808 = vmatprep.subr.bf16.mxu0 0
      %809 = vmatpush1.bf16.msra.mxu0 0
      %810 = vmatprep.subr.bf16.mxu0 0
      %811 = vmatpush1.bf16.msra.mxu0 0
      %812 = vmatprep.subr.bf16.mxu0 0
      %813 = vmatpush1.bf16.msra.mxu0 0
      %814 = vmatprep.subr.bf16.mxu0 0
      %815 = vmatpush1.bf16.msra.mxu0 0
      %816 = vmatprep.subr.bf16.mxu0 0
      %817 = vmatpush1.bf16.msra.mxu0 0
      %818 = vmatprep.subr.bf16.mxu0 0
      %819 = vmatpush1.bf16.msra.mxu0 0
      %820 = vmatprep.subr.bf16.mxu0 0
      %821 = vmatpush1.bf16.msra.mxu0 0
      %822 = vmatprep.subr.bf16.mxu0 0
      %823 = vmatpush1.bf16.msra.mxu0 0
      %824 = vmatprep.subr.bf16.mxu0 0
      %825 = vmatpush1.bf16.msra.mxu0 0
      %826 = vmatprep.subr.bf16.mxu0 0
      %827 = vmatpush1.bf16.msra.mxu0 0
      %828 = vmatprep.mubr.bf16.mxu0 0
      %829 = vmatmul.mubr.bf16.gmra.mrb[0].mxu0 %v749
      %v830 = vpop.f32.mrb[0].mxu0
      %v831 = vadd.f32 %v598, %v830
      %v832 = vpop.f32.mrb[0].mxu0
      %v833 = vpop.f32.mrb[0].mxu0
      %v834 = vadd.f32 %v601, %v833
      %v835 = vpop.f32.mrb[0].mxu0
      %836 = vmatprep.mubr.bf16.mxu0 0
      %837 = vmatmul.mubr.bf16.gmra.mrb[0].mxu0 %v752
      %v838 = vpop.f32.mrb[0].mxu0
      %v839 = vadd.f32 %v606, %v838
      %v840 = vpop.f32.mrb[0].mxu0
      %v841 = vpop.f32.mrb[0].mxu0
      %v842 = vadd.f32 %v609, %v841
      %v843 = vpop.f32.mrb[0].mxu0
      %844 = vmatprep.mubr.bf16.mxu0 0
      %845 = vmatmul.mubr.bf16.gmra.mrb[0].mxu0 %v755
      %v846 = vpop.f32.mrb[0].mxu0
      %v847 = vadd.f32 %v614, %v846
      %v848 = vpop.f32.mrb[0].mxu0
      %v849 = vpop.f32.mrb[0].mxu0
      %v850 = vadd.f32 %v617, %v849
      %v851 = vpop.f32.mrb[0].mxu0
      %852 = vmatprep.mubr.bf16.mxu0 0
      %853 = vmatmul.mubr.bf16.gmra.mrb[0].mxu0 %v758
      %v854 = vpop.f32.mrb[0].mxu0
      %v855 = vadd.f32 %v622, %v854
      %v856 = vpop.f32.mrb[0].mxu0
      %v857 = vpop.f32.mrb[0].mxu0
      %v858 = vadd.f32 %v625, %v857
      %v859 = vpop.f32.mrb[0].mxu0
      %860 = vmatprep.mubr.bf16.mxu0 0
      %861 = vmatmul.mubr.bf16.gmra.mrb[0].mxu0 %v761
      %v862 = vpop.f32.mrb[0].mxu0
      %v863 = vadd.f32 %v630, %v862
      %v864 = vpop.f32.mrb[0].mxu0
      %v865 = vpop.f32.mrb[0].mxu0
      %v866 = vadd.f32 %v633, %v865
      %v867 = vpop.f32.mrb[0].mxu0
      %868 = vmatprep.mubr.bf16.mxu0 0
      %869 = vmatmul.mubr.bf16.gmra.mrb[0].mxu0 %v764
      %v870 = vpop.f32.mrb[0].mxu0
      %v871 = vadd.f32 %v638, %v870
      %v872 = vpop.f32.mrb[0].mxu0
      %v873 = vpop.f32.mrb[0].mxu0
      %v874 = vadd.f32 %v641, %v873
      %v875 = vpop.f32.mrb[0].mxu0
      %876 = vmatprep.mubr.bf16.mxu0 0
      %877 = vmatmul.mubr.bf16.gmra.mrb[0].mxu0 %v767
      %v878 = vpop.f32.mrb[0].mxu0
      %v879 = vadd.f32 %v646, %v878
      %v880 = vpop.f32.mrb[0].mxu0
      %v881 = vpop.f32.mrb[0].mxu0
      %v882 = vadd.f32 %v649, %v881
      %v883 = vpop.f32.mrb[0].mxu0
      %884 = vmatprep.mubr.bf16.mxu0 0
      %885 = vmatmul.mubr.bf16.gmra.mrb[0].mxu0 %v770
      %v886 = vpop.f32.mrb[0].mxu0
      %v887 = vadd.f32 %v654, %v886
      %v888 = vpop.f32.mrb[0].mxu0
      %v889 = vpop.f32.mrb[0].mxu0
      %v890 = vadd.f32 %v657, %v889
      %v891 = vpop.f32.mrb[0].mxu0
      %892 = vmatprep.mubr.bf16.mxu0 0
      %893 = vmatmul.mubr.bf16.gmra.mrb[0].mxu0 %v773
      %v894 = vpop.f32.mrb[0].mxu0
      %v895 = vadd.f32 %v662, %v894
      %v896 = vpop.f32.mrb[0].mxu0
      %v897 = vpop.f32.mrb[0].mxu0
      %v898 = vadd.f32 %v665, %v897
      %v899 = vpop.f32.mrb[0].mxu0
      %900 = vmatprep.mubr.bf16.mxu0 0
      %901 = vmatmul.mubr.bf16.gmra.mrb[0].mxu0 %v776
      %v902 = vpop.f32.mrb[0].mxu0
      %v903 = vadd.f32 %v670, %v902
      %v904 = vpop.f32.mrb[0].mxu0
      %v905 = vpop.f32.mrb[0].mxu0
      %v906 = vadd.f32 %v673, %v905
      %v907 = vpop.f32.mrb[0].mxu0
      %908 = vmatprep.mubr.bf16.mxu0 0
      %909 = vmatmul.mubr.bf16.gmra.mrb[0].mxu0 %v779
      %v910 = vpop.f32.mrb[0].mxu0
      %v911 = vadd.f32 %v678, %v910
      %v912 = vpop.f32.mrb[0].mxu0
      %v913 = vpop.f32.mrb[0].mxu0
      %v914 = vadd.f32 %v681, %v913
      %v915 = vpop.f32.mrb[0].mxu0
      %916 = vmatprep.mubr.bf16.mxu0 0
      %917 = vmatmul.mubr.bf16.gmra.mrb[0].mxu0 %v782
      %v918 = vpop.f32.mrb[0].mxu0
      %v919 = vadd.f32 %v686, %v918
      %v920 = vpop.f32.mrb[0].mxu0
      %v921 = vpop.f32.mrb[0].mxu0
      %v922 = vadd.f32 %v689, %v921
      %v923 = vpop.f32.mrb[0].mxu0
      %924 = vmatprep.mubr.bf16.mxu0 0
      %925 = vmatmul.mubr.bf16.gmra.mrb[0].mxu0 %v785
      %v926 = vpop.f32.mrb[0].mxu0
      %v927 = vadd.f32 %v694, %v926
      %v928 = vpop.f32.mrb[0].mxu0
      %v929 = vpop.f32.mrb[0].mxu0
      %v930 = vadd.f32 %v697, %v929
      %v931 = vpop.f32.mrb[0].mxu0
      %932 = vmatprep.mubr.bf16.mxu0 0
      %933 = vmatmul.mubr.bf16.gmra.mrb[0].mxu0 %v788
      %v934 = vpop.f32.mrb[0].mxu0
      %v935 = vadd.f32 %v702, %v934
      %v936 = vpop.f32.mrb[0].mxu0
      %v937 = vpop.f32.mrb[0].mxu0
      %v938 = vadd.f32 %v705, %v937
      %v939 = vpop.f32.mrb[0].mxu0
      %940 = vmatprep.mubr.bf16.mxu0 0
      %941 = vmatmul.mubr.bf16.gmra.mrb[0].mxu0 %v791
      %v942 = vpop.f32.mrb[0].mxu0
      %v943 = vadd.f32 %v710, %v942
      %v944 = vpop.f32.mrb[0].mxu0
      %v945 = vpop.f32.mrb[0].mxu0
      %v946 = vadd.f32 %v713, %v945
      %v947 = vpop.f32.mrb[0].mxu0
      %948 = vmatprep.mubr.bf16.mxu0 0
      %949 = vmatmul.mubr.bf16.gmra.mrb[0].mxu0 %v794
      %v950 = vpop.f32.mrb[0].mxu0
      %v951 = vadd.f32 %v718, %v950
      %v952 = vpop.f32.mrb[0].mxu0
      %v953 = vpop.f32.mrb[0].mxu0
      %v954 = vadd.f32 %v721, %v953
      %v955 = vpop.f32.mrb[0].mxu0
      %956 = vdwg.mxu0
      %vm957 = vcmask 1045504
      %v958 = vrot.slane %v226, 2
      %v959 = vrot.slane %v227, 2
      %v960 = vsel %vm957, %v958, %v959
      %v961 = vrot.slane %v228, 2
      %v962 = vsel %vm957, %v959, %v961
      %v963 = vrot.slane %v229, 2
      %v964 = vrot.slane %v230, 2
      %v965 = vsel %vm957, %v963, %v964
      %v966 = vrot.slane %v231, 2
      %v967 = vsel %vm957, %v964, %v966
      %v968 = vrot.slane %v232, 2
      %v969 = vrot.slane %v233, 2
      %v970 = vsel %vm957, %v968, %v969
      %v971 = vrot.slane %v234, 2
      %v972 = vsel %vm957, %v969, %v971
      %v973 = vrot.slane %v235, 2
      %v974 = vrot.slane %v236, 2
      %v975 = vsel %vm957, %v973, %v974
      %v976 = vrot.slane %v237, 2
      %v977 = vsel %vm957, %v974, %v976
      %v978 = vrot.slane %v238, 2
      %v979 = vrot.slane %v239, 2
      %v980 = vsel %vm957, %v978, %v979
      %v981 = vrot.slane %v240, 2
      %v982 = vsel %vm957, %v979, %v981
      %v983 = vrot.slane %v241, 2
      %v984 = vrot.slane %v242, 2
      %v985 = vsel %vm957, %v983, %v984
      %v986 = vrot.slane %v243, 2
      %v987 = vsel %vm957, %v984, %v986
      %v988 = vrot.slane %v244, 2
      %v989 = vrot.slane %v245, 2
      %v990 = vsel %vm957, %v988, %v989
      %v991 = vrot.slane %v246, 2
      %v992 = vsel %vm957, %v989, %v991
      %v993 = vrot.slane %v247, 2
      %v994 = vrot.slane %v248, 2
      %v995 = vsel %vm957, %v993, %v994
      %v996 = vrot.slane %v249, 2
      %v997 = vsel %vm957, %v994, %v996
      %v998 = vrot.slane %v250, 2
      %v999 = vrot.slane %v251, 2
      %v1000 = vsel %vm957, %v998, %v999
      %v1001 = vrot.slane %v252, 2
      %v1002 = vsel %vm957, %v999, %v1001
      %v1003 = vrot.slane %v253, 2
      %v1004 = vrot.slane %v254, 2
      %v1005 = vsel %vm957, %v1003, %v1004
      %v1006 = vrot.slane %v255, 2
      %v1007 = vsel %vm957, %v1004, %v1006
      %v1008 = vrot.slane %v256, 2
      %v1009 = vrot.slane %v257, 2
      %v1010 = vsel %vm957, %v1008, %v1009
      %v1011 = vrot.slane %v258, 2
      %v1012 = vsel %vm957, %v1009, %v1011
      %v1013 = vrot.slane %v259, 2
      %v1014 = vrot.slane %v260, 2
      %v1015 = vsel %vm957, %v1013, %v1014
      %v1016 = vrot.slane %v261, 2
      %v1017 = vsel %vm957, %v1014, %v1016
      %v1018 = vrot.slane %v262, 2
      %v1019 = vrot.slane %v263, 2
      %v1020 = vsel %vm957, %v1018, %v1019
      %v1021 = vrot.slane %v264, 2
      %v1022 = vsel %vm957, %v1019, %v1021
      %v1023 = vrot.slane %v265, 2
      %v1024 = vrot.slane %v266, 2
      %v1025 = vsel %vm957, %v1023, %v1024
      %v1026 = vrot.slane %v267, 2
      %v1027 = vsel %vm957, %v1024, %v1026
      %v1028 = vrot.slane %v268, 2
      %v1029 = vrot.slane %v269, 2
      %v1030 = vsel %vm957, %v1028, %v1029
      %v1031 = vrot.slane %v270, 2
      %v1032 = vsel %vm957, %v1029, %v1031
      %v1033 = vrot.slane %v271, 2
      %v1034 = vrot.slane %v272, 2
      %v1035 = vsel %vm957, %v1033, %v1034
      %v1036 = vrot.slane %v273, 2
      %v1037 = vsel %vm957, %v1034, %v1036
      %v1070 = vpack.c.bf16 %v962, %v960
      %v1071 = vpack.c.bf16 %v967, %v965
      %v1072 = vpack.c.bf16 %v972, %v970
      %v1073 = vpack.c.bf16 %v977, %v975
      %v1074 = vpack.c.bf16 %v982, %v980
      %v1075 = vpack.c.bf16 %v987, %v985
      %v1076 = vpack.c.bf16 %v992, %v990
      %v1077 = vpack.c.bf16 %v997, %v995
      %v1078 = vpack.c.bf16 %v1002, %v1000
      %v1079 = vpack.c.bf16 %v1007, %v1005
      %v1080 = vpack.c.bf16 %v1012, %v1010
      %v1081 = vpack.c.bf16 %v1017, %v1015
      %v1082 = vpack.c.bf16 %v1022, %v1020
      %v1083 = vpack.c.bf16 %v1027, %v1025
      %v1084 = vpack.c.bf16 %v1032, %v1030
      %v1085 = vpack.c.bf16 %v1037, %v1035
      %s1086 = scalar_lea.vmem %s1, 64
      %v1087 = vld [vmem:[%s1086] sm:$0xf]
      %v1088 = vld [vmem:[%s1086 + $0x4] sm:$0xf]
      %v1089 = vld [vmem:[%s1086 + $0x8] sm:$0xf]
      %v1090 = vld [vmem:[%s1086 + $0xc] sm:$0xf]
      %v1091 = vld [vmem:[%s1086 + $0x10] sm:$0xf]
      %v1092 = vld [vmem:[%s1086 + $0x14] sm:$0xf]
      %v1093 = vld [vmem:[%s1086 + $0x18] sm:$0xf]
      %v1094 = vld [vmem:[%s1086 + $0x1c] sm:$0xf]
      %v1103 = vunpack.c.l.b16 %v1087
      %v1104 = vunpack.c.l.b16 %v1088
      %v1105 = vunpack.c.l.b16 %v1089
      %v1106 = vunpack.c.l.b16 %v1090
      %v1107 = vunpack.c.l.b16 %v1091
      %v1108 = vunpack.c.l.b16 %v1092
      %v1109 = vunpack.c.l.b16 %v1093
      %v1110 = vunpack.c.l.b16 %v1094
      %v1111 = vpack.c.b16 %v1104, %v1103
      %v1112 = vpack.c.b16 %v1106, %v1105
      %v1113 = vpack.c.b16 %v1108, %v1107
      %v1114 = vpack.c.b16 %v1110, %v1109
      %v1120 = vsel %vm514, %v1070, 0
      %v1123 = vsel %vm514, %v1071, 0
      %v1126 = vsel %vm514, %v1072, 0
      %v1129 = vsel %vm514, %v1073, 0
      %v1132 = vsel %vm514, %v1074, 0
      %v1135 = vsel %vm514, %v1075, 0
      %v1138 = vsel %vm514, %v1076, 0
      %v1141 = vsel %vm514, %v1077, 0
      %v1144 = vsel %vm514, %v1078, 0
      %v1147 = vsel %vm514, %v1079, 0
      %v1150 = vsel %vm514, %v1080, 0
      %v1153 = vsel %vm514, %v1081, 0
      %v1156 = vsel %vm514, %v1082, 0
      %v1159 = vsel %vm514, %v1083, 0
      %v1162 = vsel %vm514, %v1084, 0
      %v1165 = vsel %vm514, %v1085, 0
      %1167 = vmatprep.subr.bf16.mxu0 0
      %1168 = vmatpush1.bf16.msra.mxu0 %v1111
      %1169 = vmatprep.subr.bf16.mxu0 0
      %1170 = vmatpush1.bf16.msra.mxu0 %v1112
      %1171 = vmatprep.subr.bf16.mxu0 0
      %1172 = vmatpush1.bf16.msra.mxu0 %v1113
      %1173 = vmatprep.subr.bf16.mxu0 0
      %1174 = vmatpush1.bf16.msra.mxu0 %v1114
      %1175 = vmatprep.subr.bf16.mxu0 0
      %1176 = vmatpush1.bf16.msra.mxu0 0
      %1177 = vmatprep.subr.bf16.mxu0 0
      %1178 = vmatpush1.bf16.msra.mxu0 0
      %1179 = vmatprep.subr.bf16.mxu0 0
      %1180 = vmatpush1.bf16.msra.mxu0 0
      %1181 = vmatprep.subr.bf16.mxu0 0
      %1182 = vmatpush1.bf16.msra.mxu0 0
      %1183 = vmatprep.subr.bf16.mxu0 0
      %1184 = vmatpush1.bf16.msra.mxu0 0
      %1185 = vmatprep.subr.bf16.mxu0 0
      %1186 = vmatpush1.bf16.msra.mxu0 0
      %1187 = vmatprep.subr.bf16.mxu0 0
      %1188 = vmatpush1.bf16.msra.mxu0 0
      %1189 = vmatprep.subr.bf16.mxu0 0
      %1190 = vmatpush1.bf16.msra.mxu0 0
      %1191 = vmatprep.subr.bf16.mxu0 0
      %1192 = vmatpush1.bf16.msra.mxu0 0
      %1193 = vmatprep.subr.bf16.mxu0 0
      %1194 = vmatpush1.bf16.msra.mxu0 0
      %1195 = vmatprep.subr.bf16.mxu0 0
      %1196 = vmatpush1.bf16.msra.mxu0 0
      %1197 = vmatprep.subr.bf16.mxu0 0
      %1198 = vmatpush1.bf16.msra.mxu0 0
      %1199 = vmatprep.mubr.bf16.mxu0 0
      %1200 = vmatmul.mubr.bf16.gmra.mrb[0].mxu0 %v1120
      %v1201 = vpop.f32.mrb[0].mxu0
      %v1202 = vadd.f32 0.0, %v1201
      %v1203 = vpop.f32.mrb[0].mxu0
      %v1204 = vpop.f32.mrb[0].mxu0
      %v1205 = vadd.f32 0.0, %v1204
      %v1206 = vpop.f32.mrb[0].mxu0
      %1207 = vmatprep.mubr.bf16.mxu0 0
      %1208 = vmatmul.mubr.bf16.gmra.mrb[0].mxu0 %v1123
      %v1209 = vpop.f32.mrb[0].mxu0
      %v1210 = vadd.f32 0.0, %v1209
      %v1211 = vpop.f32.mrb[0].mxu0
      %v1212 = vpop.f32.mrb[0].mxu0
      %v1213 = vadd.f32 0.0, %v1212
      %v1214 = vpop.f32.mrb[0].mxu0
      %1215 = vmatprep.mubr.bf16.mxu0 0
      %1216 = vmatmul.mubr.bf16.gmra.mrb[0].mxu0 %v1126
      %v1217 = vpop.f32.mrb[0].mxu0
      %v1218 = vadd.f32 0.0, %v1217
      %v1219 = vpop.f32.mrb[0].mxu0
      %v1220 = vpop.f32.mrb[0].mxu0
      %v1221 = vadd.f32 0.0, %v1220
      %v1222 = vpop.f32.mrb[0].mxu0
      %1223 = vmatprep.mubr.bf16.mxu0 0
      %1224 = vmatmul.mubr.bf16.gmra.mrb[0].mxu0 %v1129
      %v1225 = vpop.f32.mrb[0].mxu0
      %v1226 = vadd.f32 0.0, %v1225
      %v1227 = vpop.f32.mrb[0].mxu0
      %v1228 = vpop.f32.mrb[0].mxu0
      %v1229 = vadd.f32 0.0, %v1228
      %v1230 = vpop.f32.mrb[0].mxu0
      %1231 = vmatprep.mubr.bf16.mxu0 0
      %1232 = vmatmul.mubr.bf16.gmra.mrb[0].mxu0 %v1132
      %v1233 = vpop.f32.mrb[0].mxu0
      %v1234 = vadd.f32 0.0, %v1233
      %v1235 = vpop.f32.mrb[0].mxu0
      %v1236 = vpop.f32.mrb[0].mxu0
      %v1237 = vadd.f32 0.0, %v1236
      %v1238 = vpop.f32.mrb[0].mxu0
      %1239 = vmatprep.mubr.bf16.mxu0 0
      %1240 = vmatmul.mubr.bf16.gmra.mrb[0].mxu0 %v1135
      %v1241 = vpop.f32.mrb[0].mxu0
      %v1242 = vadd.f32 0.0, %v1241
      %v1243 = vpop.f32.mrb[0].mxu0
      %v1244 = vpop.f32.mrb[0].mxu0
      %v1245 = vadd.f32 0.0, %v1244
      %v1246 = vpop.f32.mrb[0].mxu0
      %1247 = vmatprep.mubr.bf16.mxu0 0
      %1248 = vmatmul.mubr.bf16.gmra.mrb[0].mxu0 %v1138
      %v1249 = vpop.f32.mrb[0].mxu0
      %v1250 = vadd.f32 0.0, %v1249
      %v1251 = vpop.f32.mrb[0].mxu0
      %v1252 = vpop.f32.mrb[0].mxu0
      %v1253 = vadd.f32 0.0, %v1252
      %v1254 = vpop.f32.mrb[0].mxu0
      %1255 = vmatprep.mubr.bf16.mxu0 0
      %1256 = vmatmul.mubr.bf16.gmra.mrb[0].mxu0 %v1141
      %v1257 = vpop.f32.mrb[0].mxu0
      %v1258 = vadd.f32 0.0, %v1257
      %v1259 = vpop.f32.mrb[0].mxu0
      %v1260 = vpop.f32.mrb[0].mxu0
      %v1261 = vadd.f32 0.0, %v1260
      %v1262 = vpop.f32.mrb[0].mxu0
      %1263 = vmatprep.mubr.bf16.mxu0 0
      %1264 = vmatmul.mubr.bf16.gmra.mrb[0].mxu0 %v1144
      %v1265 = vpop.f32.mrb[0].mxu0
      %v1266 = vadd.f32 0.0, %v1265
      %v1267 = vpop.f32.mrb[0].mxu0
      %v1268 = vpop.f32.mrb[0].mxu0
      %v1269 = vadd.f32 0.0, %v1268
      %v1270 = vpop.f32.mrb[0].mxu0
      %1271 = vmatprep.mubr.bf16.mxu0 0
      %1272 = vmatmul.mubr.bf16.gmra.mrb[0].mxu0 %v1147
      %v1273 = vpop.f32.mrb[0].mxu0
      %v1274 = vadd.f32 0.0, %v1273
      %v1275 = vpop.f32.mrb[0].mxu0
      %v1276 = vpop.f32.mrb[0].mxu0
      %v1277 = vadd.f32 0.0, %v1276
      %v1278 = vpop.f32.mrb[0].mxu0
      %1279 = vmatprep.mubr.bf16.mxu0 0
      %1280 = vmatmul.mubr.bf16.gmra.mrb[0].mxu0 %v1150
      %v1281 = vpop.f32.mrb[0].mxu0
      %v1282 = vadd.f32 0.0, %v1281
      %v1283 = vpop.f32.mrb[0].mxu0
      %v1284 = vpop.f32.mrb[0].mxu0
      %v1285 = vadd.f32 0.0, %v1284
      %v1286 = vpop.f32.mrb[0].mxu0
      %1287 = vmatprep.mubr.bf16.mxu0 0
      %1288 = vmatmul.mubr.bf16.gmra.mrb[0].mxu0 %v1153
      %v1289 = vpop.f32.mrb[0].mxu0
      %v1290 = vadd.f32 0.0, %v1289
      %v1291 = vpop.f32.mrb[0].mxu0
      %v1292 = vpop.f32.mrb[0].mxu0
      %v1293 = vadd.f32 0.0, %v1292
      %v1294 = vpop.f32.mrb[0].mxu0
      %1295 = vmatprep.mubr.bf16.mxu0 0
      %1296 = vmatmul.mubr.bf16.gmra.mrb[0].mxu0 %v1156
      %v1297 = vpop.f32.mrb[0].mxu0
      %v1298 = vadd.f32 0.0, %v1297
      %v1299 = vpop.f32.mrb[0].mxu0
      %v1300 = vpop.f32.mrb[0].mxu0
      %v1301 = vadd.f32 0.0, %v1300
      %v1302 = vpop.f32.mrb[0].mxu0
      %1303 = vmatprep.mubr.bf16.mxu0 0
      %1304 = vmatmul.mubr.bf16.gmra.mrb[0].mxu0 %v1159
      %v1305 = vpop.f32.mrb[0].mxu0
      %v1306 = vadd.f32 0.0, %v1305
      %v1307 = vpop.f32.mrb[0].mxu0
      %v1308 = vpop.f32.mrb[0].mxu0
      %v1309 = vadd.f32 0.0, %v1308
      %v1310 = vpop.f32.mrb[0].mxu0
      %1311 = vmatprep.mubr.bf16.mxu0 0
      %1312 = vmatmul.mubr.bf16.gmra.mrb[0].mxu0 %v1162
      %v1313 = vpop.f32.mrb[0].mxu0
      %v1314 = vadd.f32 0.0, %v1313
      %v1315 = vpop.f32.mrb[0].mxu0
      %v1316 = vpop.f32.mrb[0].mxu0
      %v1317 = vadd.f32 0.0, %v1316
      %v1318 = vpop.f32.mrb[0].mxu0
      %1319 = vmatprep.mubr.bf16.mxu0 0
      %1320 = vmatmul.mubr.bf16.gmra.mrb[0].mxu0 %v1165
      %v1321 = vpop.f32.mrb[0].mxu0
      %v1322 = vadd.f32 0.0, %v1321
      %v1323 = vpop.f32.mrb[0].mxu0
      %v1324 = vpop.f32.mrb[0].mxu0
      %v1325 = vadd.f32 0.0, %v1324
      %v1326 = vpop.f32.mrb[0].mxu0
      %1327 = vdwg.mxu0
      %v1328 = vadd.f32 %v831, %v1202
      %v1329 = vadd.f32 %v834, %v1205
      %v1330 = vadd.f32 %v839, %v1210
      %v1331 = vadd.f32 %v842, %v1213
      %v1332 = vadd.f32 %v847, %v1218
      %v1333 = vadd.f32 %v850, %v1221
      %v1334 = vadd.f32 %v855, %v1226
      %v1335 = vadd.f32 %v858, %v1229
      %v1336 = vadd.f32 %v863, %v1234
      %v1337 = vadd.f32 %v866, %v1237
      %v1338 = vadd.f32 %v871, %v1242
      %v1339 = vadd.f32 %v874, %v1245
      %v1340 = vadd.f32 %v879, %v1250
      %v1341 = vadd.f32 %v882, %v1253
      %v1342 = vadd.f32 %v887, %v1258
      %v1343 = vadd.f32 %v890, %v1261
      %v1344 = vadd.f32 %v895, %v1266
      %v1345 = vadd.f32 %v898, %v1269
      %v1346 = vadd.f32 %v903, %v1274
      %v1347 = vadd.f32 %v906, %v1277
      %v1348 = vadd.f32 %v911, %v1282
      %v1349 = vadd.f32 %v914, %v1285
      %v1350 = vadd.f32 %v919, %v1290
      %v1351 = vadd.f32 %v922, %v1293
      %v1352 = vadd.f32 %v927, %v1298
      %v1353 = vadd.f32 %v930, %v1301
      %v1354 = vadd.f32 %v935, %v1306
      %v1355 = vadd.f32 %v938, %v1309
      %v1356 = vadd.f32 %v943, %v1314
      %v1357 = vadd.f32 %v946, %v1317
      %v1358 = vadd.f32 %v951, %v1322
      %v1359 = vadd.f32 %v954, %v1325
      %v1360 = vpack.c.bf16 %v275, %v274
      %s1361 = scalar_lea.vmem %s1, 96
      %v1362 = vld [vmem:[%s1361] sm:$0xf]
      %v1363 = vld [vmem:[%s1361 + $0x4] sm:$0xf]
      %v1364 = vld [vmem:[%s1361 + $0x8] sm:$0xf]
      %v1365 = vld [vmem:[%s1361 + $0xc] sm:$0xf]
      %v1366 = vld [vmem:[%s1361 + $0x10] sm:$0xf]
      %v1367 = vld [vmem:[%s1361 + $0x14] sm:$0xf]
      %v1368 = vld [vmem:[%s1361 + $0x18] sm:$0xf]
      %v1369 = vld [vmem:[%s1361 + $0x1c] sm:$0xf]
      %v1378 = vunpack.c.l.b16 %v1362
      %v1379 = vunpack.c.l.b16 %v1363
      %v1380 = vunpack.c.l.b16 %v1364
      %v1381 = vunpack.c.l.b16 %v1365
      %v1382 = vunpack.c.l.b16 %v1366
      %v1383 = vunpack.c.l.b16 %v1367
      %v1384 = vunpack.c.l.b16 %v1368
      %v1385 = vunpack.c.l.b16 %v1369
      %v1386 = vpack.c.b16 %v1379, %v1378
      %v1387 = vpack.c.b16 %v1381, %v1380
      %v1388 = vpack.c.b16 %v1383, %v1382
      %v1389 = vpack.c.b16 %v1385, %v1384
      %v1395 = vsel %vm514, %v1360, 0
      %1397 = vmatprep.subr.bf16.mxu0 0
      %1398 = vmatpush1.bf16.msra.mxu0 %v1386
      %1399 = vmatprep.subr.bf16.mxu0 0
      %1400 = vmatpush1.bf16.msra.mxu0 %v1387
      %1401 = vmatprep.subr.bf16.mxu0 0
      %1402 = vmatpush1.bf16.msra.mxu0 %v1388
      %1403 = vmatprep.subr.bf16.mxu0 0
      %1404 = vmatpush1.bf16.msra.mxu0 %v1389
      %1405 = vmatprep.subr.bf16.mxu0 0
      %1406 = vmatpush1.bf16.msra.mxu0 0
      %1407 = vmatprep.subr.bf16.mxu0 0
      %1408 = vmatpush1.bf16.msra.mxu0 0
      %1409 = vmatprep.subr.bf16.mxu0 0
      %1410 = vmatpush1.bf16.msra.mxu0 0
      %1411 = vmatprep.subr.bf16.mxu0 0
      %1412 = vmatpush1.bf16.msra.mxu0 0
      %1413 = vmatprep.subr.bf16.mxu0 0
      %1414 = vmatpush1.bf16.msra.mxu0 0
      %1415 = vmatprep.subr.bf16.mxu0 0
      %1416 = vmatpush1.bf16.msra.mxu0 0
      %1417 = vmatprep.subr.bf16.mxu0 0
      %1418 = vmatpush1.bf16.msra.mxu0 0
      %1419 = vmatprep.subr.bf16.mxu0 0
      %1420 = vmatpush1.bf16.msra.mxu0 0
      %1421 = vmatprep.subr.bf16.mxu0 0
      %1422 = vmatpush1.bf16.msra.mxu0 0
      %1423 = vmatprep.subr.bf16.mxu0 0
      %1424 = vmatpush1.bf16.msra.mxu0 0
      %1425 = vmatprep.subr.bf16.mxu0 0
      %1426 = vmatpush1.bf16.msra.mxu0 0
      %1427 = vmatprep.subr.bf16.mxu0 0
      %1428 = vmatpush1.bf16.msra.mxu0 0
      %1429 = vmatprep.mubr.bf16.mxu0 0
      %1430 = vmatmul.mubr.bf16.gmra.mrb[0].mxu0 %v752
      %v1431 = vpop.f32.mrb[0].mxu0
      %v1432 = vadd.f32 0.0, %v1431
      %v1433 = vpop.f32.mrb[0].mxu0
      %v1434 = vpop.f32.mrb[0].mxu0
      %v1435 = vadd.f32 0.0, %v1434
      %v1436 = vpop.f32.mrb[0].mxu0
      %1437 = vmatprep.mubr.bf16.mxu0 0
      %1438 = vmatmul.mubr.bf16.gmra.mrb[0].mxu0 %v755
      %v1439 = vpop.f32.mrb[0].mxu0
      %v1440 = vadd.f32 0.0, %v1439
      %v1441 = vpop.f32.mrb[0].mxu0
      %v1442 = vpop.f32.mrb[0].mxu0
      %v1443 = vadd.f32 0.0, %v1442
      %v1444 = vpop.f32.mrb[0].mxu0
      %1445 = vmatprep.mubr.bf16.mxu0 0
      %1446 = vmatmul.mubr.bf16.gmra.mrb[0].mxu0 %v758
      %v1447 = vpop.f32.mrb[0].mxu0
      %v1448 = vadd.f32 0.0, %v1447
      %v1449 = vpop.f32.mrb[0].mxu0
      %v1450 = vpop.f32.mrb[0].mxu0
      %v1451 = vadd.f32 0.0, %v1450
      %v1452 = vpop.f32.mrb[0].mxu0
      %1453 = vmatprep.mubr.bf16.mxu0 0
      %1454 = vmatmul.mubr.bf16.gmra.mrb[0].mxu0 %v761
      %v1455 = vpop.f32.mrb[0].mxu0
      %v1456 = vadd.f32 0.0, %v1455
      %v1457 = vpop.f32.mrb[0].mxu0
      %v1458 = vpop.f32.mrb[0].mxu0
      %v1459 = vadd.f32 0.0, %v1458
      %v1460 = vpop.f32.mrb[0].mxu0
      %1461 = vmatprep.mubr.bf16.mxu0 0
      %1462 = vmatmul.mubr.bf16.gmra.mrb[0].mxu0 %v764
      %v1463 = vpop.f32.mrb[0].mxu0
      %v1464 = vadd.f32 0.0, %v1463
      %v1465 = vpop.f32.mrb[0].mxu0
      %v1466 = vpop.f32.mrb[0].mxu0
      %v1467 = vadd.f32 0.0, %v1466
      %v1468 = vpop.f32.mrb[0].mxu0
      %1469 = vmatprep.mubr.bf16.mxu0 0
      %1470 = vmatmul.mubr.bf16.gmra.mrb[0].mxu0 %v767
      %v1471 = vpop.f32.mrb[0].mxu0
      %v1472 = vadd.f32 0.0, %v1471
      %v1473 = vpop.f32.mrb[0].mxu0
      %v1474 = vpop.f32.mrb[0].mxu0
      %v1475 = vadd.f32 0.0, %v1474
      %v1476 = vpop.f32.mrb[0].mxu0
      %1477 = vmatprep.mubr.bf16.mxu0 0
      %1478 = vmatmul.mubr.bf16.gmra.mrb[0].mxu0 %v770
      %v1479 = vpop.f32.mrb[0].mxu0
      %v1480 = vadd.f32 0.0, %v1479
      %v1481 = vpop.f32.mrb[0].mxu0
      %v1482 = vpop.f32.mrb[0].mxu0
      %v1483 = vadd.f32 0.0, %v1482
      %v1484 = vpop.f32.mrb[0].mxu0
      %1485 = vmatprep.mubr.bf16.mxu0 0
      %1486 = vmatmul.mubr.bf16.gmra.mrb[0].mxu0 %v773
      %v1487 = vpop.f32.mrb[0].mxu0
      %v1488 = vadd.f32 0.0, %v1487
      %v1489 = vpop.f32.mrb[0].mxu0
      %v1490 = vpop.f32.mrb[0].mxu0
      %v1491 = vadd.f32 0.0, %v1490
      %v1492 = vpop.f32.mrb[0].mxu0
      %1493 = vmatprep.mubr.bf16.mxu0 0
      %1494 = vmatmul.mubr.bf16.gmra.mrb[0].mxu0 %v776
      %v1495 = vpop.f32.mrb[0].mxu0
      %v1496 = vadd.f32 0.0, %v1495
      %v1497 = vpop.f32.mrb[0].mxu0
      %v1498 = vpop.f32.mrb[0].mxu0
      %v1499 = vadd.f32 0.0, %v1498
      %v1500 = vpop.f32.mrb[0].mxu0
      %1501 = vmatprep.mubr.bf16.mxu0 0
      %1502 = vmatmul.mubr.bf16.gmra.mrb[0].mxu0 %v779
      %v1503 = vpop.f32.mrb[0].mxu0
      %v1504 = vadd.f32 0.0, %v1503
      %v1505 = vpop.f32.mrb[0].mxu0
      %v1506 = vpop.f32.mrb[0].mxu0
      %v1507 = vadd.f32 0.0, %v1506
      %v1508 = vpop.f32.mrb[0].mxu0
      %1509 = vmatprep.mubr.bf16.mxu0 0
      %1510 = vmatmul.mubr.bf16.gmra.mrb[0].mxu0 %v782
      %v1511 = vpop.f32.mrb[0].mxu0
      %v1512 = vadd.f32 0.0, %v1511
      %v1513 = vpop.f32.mrb[0].mxu0
      %v1514 = vpop.f32.mrb[0].mxu0
      %v1515 = vadd.f32 0.0, %v1514
      %v1516 = vpop.f32.mrb[0].mxu0
      %1517 = vmatprep.mubr.bf16.mxu0 0
      %1518 = vmatmul.mubr.bf16.gmra.mrb[0].mxu0 %v785
      %v1519 = vpop.f32.mrb[0].mxu0
      %v1520 = vadd.f32 0.0, %v1519
      %v1521 = vpop.f32.mrb[0].mxu0
      %v1522 = vpop.f32.mrb[0].mxu0
      %v1523 = vadd.f32 0.0, %v1522
      %v1524 = vpop.f32.mrb[0].mxu0
      %1525 = vmatprep.mubr.bf16.mxu0 0
      %1526 = vmatmul.mubr.bf16.gmra.mrb[0].mxu0 %v788
      %v1527 = vpop.f32.mrb[0].mxu0
      %v1528 = vadd.f32 0.0, %v1527
      %v1529 = vpop.f32.mrb[0].mxu0
      %v1530 = vpop.f32.mrb[0].mxu0
      %v1531 = vadd.f32 0.0, %v1530
      %v1532 = vpop.f32.mrb[0].mxu0
      %1533 = vmatprep.mubr.bf16.mxu0 0
      %1534 = vmatmul.mubr.bf16.gmra.mrb[0].mxu0 %v791
      %v1535 = vpop.f32.mrb[0].mxu0
      %v1536 = vadd.f32 0.0, %v1535
      %v1537 = vpop.f32.mrb[0].mxu0
      %v1538 = vpop.f32.mrb[0].mxu0
      %v1539 = vadd.f32 0.0, %v1538
      %v1540 = vpop.f32.mrb[0].mxu0
      %1541 = vmatprep.mubr.bf16.mxu0 0
      %1542 = vmatmul.mubr.bf16.gmra.mrb[0].mxu0 %v794
      %v1543 = vpop.f32.mrb[0].mxu0
      %v1544 = vadd.f32 0.0, %v1543
      %v1545 = vpop.f32.mrb[0].mxu0
      %v1546 = vpop.f32.mrb[0].mxu0
      %v1547 = vadd.f32 0.0, %v1546
      %v1548 = vpop.f32.mrb[0].mxu0
      %1549 = vmatprep.mubr.bf16.mxu0 0
      %1550 = vmatmul.mubr.bf16.gmra.mrb[0].mxu0 %v1395
      %v1551 = vpop.f32.mrb[0].mxu0
      %v1552 = vadd.f32 0.0, %v1551
      %v1553 = vpop.f32.mrb[0].mxu0
      %v1554 = vpop.f32.mrb[0].mxu0
      %v1555 = vadd.f32 0.0, %v1554
      %v1556 = vpop.f32.mrb[0].mxu0
      %1557 = vdwg.mxu0
      %v1558 = vadd.f32 %v1328, %v1432
      %v1559 = vadd.f32 %v1329, %v1435
      %v1560 = vadd.f32 %v1330, %v1440
      %v1561 = vadd.f32 %v1331, %v1443
      %v1562 = vadd.f32 %v1332, %v1448
      %v1563 = vadd.f32 %v1333, %v1451
      %v1564 = vadd.f32 %v1334, %v1456
      %v1565 = vadd.f32 %v1335, %v1459
      %v1566 = vadd.f32 %v1336, %v1464
      %v1567 = vadd.f32 %v1337, %v1467
      %v1568 = vadd.f32 %v1338, %v1472
      %v1569 = vadd.f32 %v1339, %v1475
      %v1570 = vadd.f32 %v1340, %v1480
      %v1571 = vadd.f32 %v1341, %v1483
      %v1572 = vadd.f32 %v1342, %v1488
      %v1573 = vadd.f32 %v1343, %v1491
      %v1574 = vadd.f32 %v1344, %v1496
      %v1575 = vadd.f32 %v1345, %v1499
      %v1576 = vadd.f32 %v1346, %v1504
      %v1577 = vadd.f32 %v1347, %v1507
      %v1578 = vadd.f32 %v1348, %v1512
      %v1579 = vadd.f32 %v1349, %v1515
      %v1580 = vadd.f32 %v1350, %v1520
      %v1581 = vadd.f32 %v1351, %v1523
      %v1582 = vadd.f32 %v1352, %v1528
      %v1583 = vadd.f32 %v1353, %v1531
      %v1584 = vadd.f32 %v1354, %v1536
      %v1585 = vadd.f32 %v1355, %v1539
      %v1586 = vadd.f32 %v1356, %v1544
      %v1587 = vadd.f32 %v1357, %v1547
      %v1588 = vadd.f32 %v1358, %v1552
      %v1589 = vadd.f32 %v1359, %v1555
      %v1593 = vrot.slane %v274, 1
      %v1594 = vrot.slane %v275, 1
      %v1595 = vsel %vm352, %v1593, %v1594
      %v1596 = vrot.slane %v276, 1
      %v1597 = vsel %vm352, %v1594, %v1596
      %v1600 = vpack.c.bf16 %v1597, %v1595
      %s1601 = scalar_lea.vmem %s1, 128
      %v1602 = vld [vmem:[%s1601] sm:$0xf]
      %v1603 = vld [vmem:[%s1601 + $0x4] sm:$0xf]
      %v1604 = vld [vmem:[%s1601 + $0x8] sm:$0xf]
      %v1605 = vld [vmem:[%s1601 + $0xc] sm:$0xf]
      %v1606 = vld [vmem:[%s1601 + $0x10] sm:$0xf]
      %v1607 = vld [vmem:[%s1601 + $0x14] sm:$0xf]
      %v1608 = vld [vmem:[%s1601 + $0x18] sm:$0xf]
      %v1609 = vld [vmem:[%s1601 + $0x1c] sm:$0xf]
      %v1618 = vunpack.c.l.b16 %v1602
      %v1619 = vunpack.c.l.b16 %v1603
      %v1620 = vunpack.c.l.b16 %v1604
      %v1621 = vunpack.c.l.b16 %v1605
      %v1622 = vunpack.c.l.b16 %v1606
      %v1623 = vunpack.c.l.b16 %v1607
      %v1624 = vunpack.c.l.b16 %v1608
      %v1625 = vunpack.c.l.b16 %v1609
      %v1626 = vpack.c.b16 %v1619, %v1618
      %v1627 = vpack.c.b16 %v1621, %v1620
      %v1628 = vpack.c.b16 %v1623, %v1622
      %v1629 = vpack.c.b16 %v1625, %v1624
      %v1635 = vsel %vm514, %v1600, 0
      %1637 = vmatprep.subr.bf16.mxu0 0
      %1638 = vmatpush1.bf16.msra.mxu0 %v1626
      %1639 = vmatprep.subr.bf16.mxu0 0
      %1640 = vmatpush1.bf16.msra.mxu0 %v1627
      %1641 = vmatprep.subr.bf16.mxu0 0
      %1642 = vmatpush1.bf16.msra.mxu0 %v1628
      %1643 = vmatprep.subr.bf16.mxu0 0
      %1644 = vmatpush1.bf16.msra.mxu0 %v1629
      %1645 = vmatprep.subr.bf16.mxu0 0
      %1646 = vmatpush1.bf16.msra.mxu0 0
      %1647 = vmatprep.subr.bf16.mxu0 0
      %1648 = vmatpush1.bf16.msra.mxu0 0
      %1649 = vmatprep.subr.bf16.mxu0 0
      %1650 = vmatpush1.bf16.msra.mxu0 0
      %1651 = vmatprep.subr.bf16.mxu0 0
      %1652 = vmatpush1.bf16.msra.mxu0 0
      %1653 = vmatprep.subr.bf16.mxu0 0
      %1654 = vmatpush1.bf16.msra.mxu0 0
      %1655 = vmatprep.subr.bf16.mxu0 0
      %1656 = vmatpush1.bf16.msra.mxu0 0
      %1657 = vmatprep.subr.bf16.mxu0 0
      %1658 = vmatpush1.bf16.msra.mxu0 0
      %1659 = vmatprep.subr.bf16.mxu0 0
      %1660 = vmatpush1.bf16.msra.mxu0 0
      %1661 = vmatprep.subr.bf16.mxu0 0
      %1662 = vmatpush1.bf16.msra.mxu0 0
      %1663 = vmatprep.subr.bf16.mxu0 0
      %1664 = vmatpush1.bf16.msra.mxu0 0
      %1665 = vmatprep.subr.bf16.mxu0 0
      %1666 = vmatpush1.bf16.msra.mxu0 0
      %1667 = vmatprep.subr.bf16.mxu0 0
      %1668 = vmatpush1.bf16.msra.mxu0 0
      %1669 = vmatprep.mubr.bf16.mxu0 0
      %1670 = vmatmul.mubr.bf16.gmra.mrb[0].mxu0 %v519
      %v1671 = vpop.f32.mrb[0].mxu0
      %v1672 = vadd.f32 0.0, %v1671
      %v1673 = vpop.f32.mrb[0].mxu0
      %v1674 = vpop.f32.mrb[0].mxu0
      %v1675 = vadd.f32 0.0, %v1674
      %v1676 = vpop.f32.mrb[0].mxu0
      %1677 = vmatprep.mubr.bf16.mxu0 0
      %1678 = vmatmul.mubr.bf16.gmra.mrb[0].mxu0 %v522
      %v1679 = vpop.f32.mrb[0].mxu0
      %v1680 = vadd.f32 0.0, %v1679
      %v1681 = vpop.f32.mrb[0].mxu0
      %v1682 = vpop.f32.mrb[0].mxu0
      %v1683 = vadd.f32 0.0, %v1682
      %v1684 = vpop.f32.mrb[0].mxu0
      %1685 = vmatprep.mubr.bf16.mxu0 0
      %1686 = vmatmul.mubr.bf16.gmra.mrb[0].mxu0 %v525
      %v1687 = vpop.f32.mrb[0].mxu0
      %v1688 = vadd.f32 0.0, %v1687
      %v1689 = vpop.f32.mrb[0].mxu0
      %v1690 = vpop.f32.mrb[0].mxu0
      %v1691 = vadd.f32 0.0, %v1690
      %v1692 = vpop.f32.mrb[0].mxu0
      %1693 = vmatprep.mubr.bf16.mxu0 0
      %1694 = vmatmul.mubr.bf16.gmra.mrb[0].mxu0 %v528
      %v1695 = vpop.f32.mrb[0].mxu0
      %v1696 = vadd.f32 0.0, %v1695
      %v1697 = vpop.f32.mrb[0].mxu0
      %v1698 = vpop.f32.mrb[0].mxu0
      %v1699 = vadd.f32 0.0, %v1698
      %v1700 = vpop.f32.mrb[0].mxu0
      %1701 = vmatprep.mubr.bf16.mxu0 0
      %1702 = vmatmul.mubr.bf16.gmra.mrb[0].mxu0 %v531
      %v1703 = vpop.f32.mrb[0].mxu0
      %v1704 = vadd.f32 0.0, %v1703
      %v1705 = vpop.f32.mrb[0].mxu0
      %v1706 = vpop.f32.mrb[0].mxu0
      %v1707 = vadd.f32 0.0, %v1706
      %v1708 = vpop.f32.mrb[0].mxu0
      %1709 = vmatprep.mubr.bf16.mxu0 0
      %1710 = vmatmul.mubr.bf16.gmra.mrb[0].mxu0 %v534
      %v1711 = vpop.f32.mrb[0].mxu0
      %v1712 = vadd.f32 0.0, %v1711
      %v1713 = vpop.f32.mrb[0].mxu0
      %v1714 = vpop.f32.mrb[0].mxu0
      %v1715 = vadd.f32 0.0, %v1714
      %v1716 = vpop.f32.mrb[0].mxu0
      %1717 = vmatprep.mubr.bf16.mxu0 0
      %1718 = vmatmul.mubr.bf16.gmra.mrb[0].mxu0 %v537
      %v1719 = vpop.f32.mrb[0].mxu0
      %v1720 = vadd.f32 0.0, %v1719
      %v1721 = vpop.f32.mrb[0].mxu0
      %v1722 = vpop.f32.mrb[0].mxu0
      %v1723 = vadd.f32 0.0, %v1722
      %v1724 = vpop.f32.mrb[0].mxu0
      %1725 = vmatprep.mubr.bf16.mxu0 0
      %1726 = vmatmul.mubr.bf16.gmra.mrb[0].mxu0 %v540
      %v1727 = vpop.f32.mrb[0].mxu0
      %v1728 = vadd.f32 0.0, %v1727
      %v1729 = vpop.f32.mrb[0].mxu0
      %v1730 = vpop.f32.mrb[0].mxu0
      %v1731 = vadd.f32 0.0, %v1730
      %v1732 = vpop.f32.mrb[0].mxu0
      %1733 = vmatprep.mubr.bf16.mxu0 0
      %1734 = vmatmul.mubr.bf16.gmra.mrb[0].mxu0 %v543
      %v1735 = vpop.f32.mrb[0].mxu0
      %v1736 = vadd.f32 0.0, %v1735
      %v1737 = vpop.f32.mrb[0].mxu0
      %v1738 = vpop.f32.mrb[0].mxu0
      %v1739 = vadd.f32 0.0, %v1738
      %v1740 = vpop.f32.mrb[0].mxu0
      %1741 = vmatprep.mubr.bf16.mxu0 0
      %1742 = vmatmul.mubr.bf16.gmra.mrb[0].mxu0 %v546
      %v1743 = vpop.f32.mrb[0].mxu0
      %v1744 = vadd.f32 0.0, %v1743
      %v1745 = vpop.f32.mrb[0].mxu0
      %v1746 = vpop.f32.mrb[0].mxu0
      %v1747 = vadd.f32 0.0, %v1746
      %v1748 = vpop.f32.mrb[0].mxu0
      %1749 = vmatprep.mubr.bf16.mxu0 0
      %1750 = vmatmul.mubr.bf16.gmra.mrb[0].mxu0 %v549
      %v1751 = vpop.f32.mrb[0].mxu0
      %v1752 = vadd.f32 0.0, %v1751
      %v1753 = vpop.f32.mrb[0].mxu0
      %v1754 = vpop.f32.mrb[0].mxu0
      %v1755 = vadd.f32 0.0, %v1754
      %v1756 = vpop.f32.mrb[0].mxu0
      %1757 = vmatprep.mubr.bf16.mxu0 0
      %1758 = vmatmul.mubr.bf16.gmra.mrb[0].mxu0 %v552
      %v1759 = vpop.f32.mrb[0].mxu0
      %v1760 = vadd.f32 0.0, %v1759
      %v1761 = vpop.f32.mrb[0].mxu0
      %v1762 = vpop.f32.mrb[0].mxu0
      %v1763 = vadd.f32 0.0, %v1762
      %v1764 = vpop.f32.mrb[0].mxu0
      %1765 = vmatprep.mubr.bf16.mxu0 0
      %1766 = vmatmul.mubr.bf16.gmra.mrb[0].mxu0 %v555
      %v1767 = vpop.f32.mrb[0].mxu0
      %v1768 = vadd.f32 0.0, %v1767
      %v1769 = vpop.f32.mrb[0].mxu0
      %v1770 = vpop.f32.mrb[0].mxu0
      %v1771 = vadd.f32 0.0, %v1770
      %v1772 = vpop.f32.mrb[0].mxu0
      %1773 = vmatprep.mubr.bf16.mxu0 0
      %1774 = vmatmul.mubr.bf16.gmra.mrb[0].mxu0 %v558
      %v1775 = vpop.f32.mrb[0].mxu0
      %v1776 = vadd.f32 0.0, %v1775
      %v1777 = vpop.f32.mrb[0].mxu0
      %v1778 = vpop.f32.mrb[0].mxu0
      %v1779 = vadd.f32 0.0, %v1778
      %v1780 = vpop.f32.mrb[0].mxu0
      %1781 = vmatprep.mubr.bf16.mxu0 0
      %1782 = vmatmul.mubr.bf16.gmra.mrb[0].mxu0 %v561
      %v1783 = vpop.f32.mrb[0].mxu0
      %v1784 = vadd.f32 0.0, %v1783
      %v1785 = vpop.f32.mrb[0].mxu0
      %v1786 = vpop.f32.mrb[0].mxu0
      %v1787 = vadd.f32 0.0, %v1786
      %v1788 = vpop.f32.mrb[0].mxu0
      %1789 = vmatprep.mubr.bf16.mxu0 0
      %1790 = vmatmul.mubr.bf16.gmra.mrb[0].mxu0 %v1635
      %v1791 = vpop.f32.mrb[0].mxu0
      %v1792 = vadd.f32 0.0, %v1791
      %v1793 = vpop.f32.mrb[0].mxu0
      %v1794 = vpop.f32.mrb[0].mxu0
      %v1795 = vadd.f32 0.0, %v1794
      %v1796 = vpop.f32.mrb[0].mxu0
      %1797 = vdwg.mxu0
      %v1798 = vadd.f32 %v1558, %v1672
      %v1799 = vadd.f32 %v1559, %v1675
      %v1800 = vadd.f32 %v1560, %v1680
      %v1801 = vadd.f32 %v1561, %v1683
      %v1802 = vadd.f32 %v1562, %v1688
      %v1803 = vadd.f32 %v1563, %v1691
      %v1804 = vadd.f32 %v1564, %v1696
      %v1805 = vadd.f32 %v1565, %v1699
      %v1806 = vadd.f32 %v1566, %v1704
      %v1807 = vadd.f32 %v1567, %v1707
      %v1808 = vadd.f32 %v1568, %v1712
      %v1809 = vadd.f32 %v1569, %v1715
      %v1810 = vadd.f32 %v1570, %v1720
      %v1811 = vadd.f32 %v1571, %v1723
      %v1812 = vadd.f32 %v1572, %v1728
      %v1813 = vadd.f32 %v1573, %v1731
      %v1814 = vadd.f32 %v1574, %v1736
      %v1815 = vadd.f32 %v1575, %v1739
      %v1816 = vadd.f32 %v1576, %v1744
      %v1817 = vadd.f32 %v1577, %v1747
      %v1818 = vadd.f32 %v1578, %v1752
      %v1819 = vadd.f32 %v1579, %v1755
      %v1820 = vadd.f32 %v1580, %v1760
      %v1821 = vadd.f32 %v1581, %v1763
      %v1822 = vadd.f32 %v1582, %v1768
      %v1823 = vadd.f32 %v1583, %v1771
      %v1824 = vadd.f32 %v1584, %v1776
      %v1825 = vadd.f32 %v1585, %v1779
      %v1826 = vadd.f32 %v1586, %v1784
      %v1827 = vadd.f32 %v1587, %v1787
      %v1828 = vadd.f32 %v1588, %v1792
      %v1829 = vadd.f32 %v1589, %v1795
      %v1830 = vrot.slane %v274, 2
      %v1831 = vrot.slane %v275, 2
      %v1832 = vsel %vm957, %v1830, %v1831
      %v1833 = vrot.slane %v276, 2
      %v1834 = vsel %vm957, %v1831, %v1833
      %v1837 = vpack.c.bf16 %v1834, %v1832
      %s1838 = scalar_lea.vmem %s1, 160
      %v1839 = vld [vmem:[%s1838] sm:$0xf]
      %v1840 = vld [vmem:[%s1838 + $0x4] sm:$0xf]
      %v1841 = vld [vmem:[%s1838 + $0x8] sm:$0xf]
      %v1842 = vld [vmem:[%s1838 + $0xc] sm:$0xf]
      %v1843 = vld [vmem:[%s1838 + $0x10] sm:$0xf]
      %v1844 = vld [vmem:[%s1838 + $0x14] sm:$0xf]
      %v1845 = vld [vmem:[%s1838 + $0x18] sm:$0xf]
      %v1846 = vld [vmem:[%s1838 + $0x1c] sm:$0xf]
      %v1855 = vunpack.c.l.b16 %v1839
      %v1856 = vunpack.c.l.b16 %v1840
      %v1857 = vunpack.c.l.b16 %v1841
      %v1858 = vunpack.c.l.b16 %v1842
      %v1859 = vunpack.c.l.b16 %v1843
      %v1860 = vunpack.c.l.b16 %v1844
      %v1861 = vunpack.c.l.b16 %v1845
      %v1862 = vunpack.c.l.b16 %v1846
      %v1863 = vpack.c.b16 %v1856, %v1855
      %v1864 = vpack.c.b16 %v1858, %v1857
      %v1865 = vpack.c.b16 %v1860, %v1859
      %v1866 = vpack.c.b16 %v1862, %v1861
      %v1872 = vsel %vm514, %v1837, 0
      %1874 = vmatprep.subr.bf16.mxu0 0
      %1875 = vmatpush1.bf16.msra.mxu0 %v1863
      %1876 = vmatprep.subr.bf16.mxu0 0
      %1877 = vmatpush1.bf16.msra.mxu0 %v1864
      %1878 = vmatprep.subr.bf16.mxu0 0
      %1879 = vmatpush1.bf16.msra.mxu0 %v1865
      %1880 = vmatprep.subr.bf16.mxu0 0
      %1881 = vmatpush1.bf16.msra.mxu0 %v1866
      %1882 = vmatprep.subr.bf16.mxu0 0
      %1883 = vmatpush1.bf16.msra.mxu0 0
      %1884 = vmatprep.subr.bf16.mxu0 0
      %1885 = vmatpush1.bf16.msra.mxu0 0
      %1886 = vmatprep.subr.bf16.mxu0 0
      %1887 = vmatpush1.bf16.msra.mxu0 0
      %1888 = vmatprep.subr.bf16.mxu0 0
      %1889 = vmatpush1.bf16.msra.mxu0 0
      %1890 = vmatprep.subr.bf16.mxu0 0
      %1891 = vmatpush1.bf16.msra.mxu0 0
      %1892 = vmatprep.subr.bf16.mxu0 0
      %1893 = vmatpush1.bf16.msra.mxu0 0
      %1894 = vmatprep.subr.bf16.mxu0 0
      %1895 = vmatpush1.bf16.msra.mxu0 0
      %1896 = vmatprep.subr.bf16.mxu0 0
      %1897 = vmatpush1.bf16.msra.mxu0 0
      %1898 = vmatprep.subr.bf16.mxu0 0
      %1899 = vmatpush1.bf16.msra.mxu0 0
      %1900 = vmatprep.subr.bf16.mxu0 0
      %1901 = vmatpush1.bf16.msra.mxu0 0
      %1902 = vmatprep.subr.bf16.mxu0 0
      %1903 = vmatpush1.bf16.msra.mxu0 0
      %1904 = vmatprep.subr.bf16.mxu0 0
      %1905 = vmatpush1.bf16.msra.mxu0 0
      %1906 = vmatprep.mubr.bf16.mxu0 0
      %1907 = vmatmul.mubr.bf16.gmra.mrb[0].mxu0 %v1123
      %v1908 = vpop.f32.mrb[0].mxu0
      %v1909 = vadd.f32 0.0, %v1908
      %v1910 = vpop.f32.mrb[0].mxu0
      %v1911 = vpop.f32.mrb[0].mxu0
      %v1912 = vadd.f32 0.0, %v1911
      %v1913 = vpop.f32.mrb[0].mxu0
      %1914 = vmatprep.mubr.bf16.mxu0 0
      %1915 = vmatmul.mubr.bf16.gmra.mrb[0].mxu0 %v1126
      %v1916 = vpop.f32.mrb[0].mxu0
      %v1917 = vadd.f32 0.0, %v1916
      %v1918 = vpop.f32.mrb[0].mxu0
      %v1919 = vpop.f32.mrb[0].mxu0
      %v1920 = vadd.f32 0.0, %v1919
      %v1921 = vpop.f32.mrb[0].mxu0
      %1922 = vmatprep.mubr.bf16.mxu0 0
      %1923 = vmatmul.mubr.bf16.gmra.mrb[0].mxu0 %v1129
      %v1924 = vpop.f32.mrb[0].mxu0
      %v1925 = vadd.f32 0.0, %v1924
      %v1926 = vpop.f32.mrb[0].mxu0
      %v1927 = vpop.f32.mrb[0].mxu0
      %v1928 = vadd.f32 0.0, %v1927
      %v1929 = vpop.f32.mrb[0].mxu0
      %1930 = vmatprep.mubr.bf16.mxu0 0
      %1931 = vmatmul.mubr.bf16.gmra.mrb[0].mxu0 %v1132
      %v1932 = vpop.f32.mrb[0].mxu0
      %v1933 = vadd.f32 0.0, %v1932
      %v1934 = vpop.f32.mrb[0].mxu0
      %v1935 = vpop.f32.mrb[0].mxu0
      %v1936 = vadd.f32 0.0, %v1935
      %v1937 = vpop.f32.mrb[0].mxu0
      %1938 = vmatprep.mubr.bf16.mxu0 0
      %1939 = vmatmul.mubr.bf16.gmra.mrb[0].mxu0 %v1135
      %v1940 = vpop.f32.mrb[0].mxu0
      %v1941 = vadd.f32 0.0, %v1940
      %v1942 = vpop.f32.mrb[0].mxu0
      %v1943 = vpop.f32.mrb[0].mxu0
      %v1944 = vadd.f32 0.0, %v1943
      %v1945 = vpop.f32.mrb[0].mxu0
      %1946 = vmatprep.mubr.bf16.mxu0 0
      %1947 = vmatmul.mubr.bf16.gmra.mrb[0].mxu0 %v1138
      %v1948 = vpop.f32.mrb[0].mxu0
      %v1949 = vadd.f32 0.0, %v1948
      %v1950 = vpop.f32.mrb[0].mxu0
      %v1951 = vpop.f32.mrb[0].mxu0
      %v1952 = vadd.f32 0.0, %v1951
      %v1953 = vpop.f32.mrb[0].mxu0
      %1954 = vmatprep.mubr.bf16.mxu0 0
      %1955 = vmatmul.mubr.bf16.gmra.mrb[0].mxu0 %v1141
      %v1956 = vpop.f32.mrb[0].mxu0
      %v1957 = vadd.f32 0.0, %v1956
      %v1958 = vpop.f32.mrb[0].mxu0
      %v1959 = vpop.f32.mrb[0].mxu0
      %v1960 = vadd.f32 0.0, %v1959
      %v1961 = vpop.f32.mrb[0].mxu0
      %1962 = vmatprep.mubr.bf16.mxu0 0
      %1963 = vmatmul.mubr.bf16.gmra.mrb[0].mxu0 %v1144
      %v1964 = vpop.f32.mrb[0].mxu0
      %v1965 = vadd.f32 0.0, %v1964
      %v1966 = vpop.f32.mrb[0].mxu0
      %v1967 = vpop.f32.mrb[0].mxu0
      %v1968 = vadd.f32 0.0, %v1967
      %v1969 = vpop.f32.mrb[0].mxu0
      %1970 = vmatprep.mubr.bf16.mxu0 0
      %1971 = vmatmul.mubr.bf16.gmra.mrb[0].mxu0 %v1147
      %v1972 = vpop.f32.mrb[0].mxu0
      %v1973 = vadd.f32 0.0, %v1972
      %v1974 = vpop.f32.mrb[0].mxu0
      %v1975 = vpop.f32.mrb[0].mxu0
      %v1976 = vadd.f32 0.0, %v1975
      %v1977 = vpop.f32.mrb[0].mxu0
      %1978 = vmatprep.mubr.bf16.mxu0 0
      %1979 = vmatmul.mubr.bf16.gmra.mrb[0].mxu0 %v1150
      %v1980 = vpop.f32.mrb[0].mxu0
      %v1981 = vadd.f32 0.0, %v1980
      %v1982 = vpop.f32.mrb[0].mxu0
      %v1983 = vpop.f32.mrb[0].mxu0
      %v1984 = vadd.f32 0.0, %v1983
      %v1985 = vpop.f32.mrb[0].mxu0
      %1986 = vmatprep.mubr.bf16.mxu0 0
      %1987 = vmatmul.mubr.bf16.gmra.mrb[0].mxu0 %v1153
      %v1988 = vpop.f32.mrb[0].mxu0
      %v1989 = vadd.f32 0.0, %v1988
      %v1990 = vpop.f32.mrb[0].mxu0
      %v1991 = vpop.f32.mrb[0].mxu0
      %v1992 = vadd.f32 0.0, %v1991
      %v1993 = vpop.f32.mrb[0].mxu0
      %1994 = vmatprep.mubr.bf16.mxu0 0
      %1995 = vmatmul.mubr.bf16.gmra.mrb[0].mxu0 %v1156
      %v1996 = vpop.f32.mrb[0].mxu0
      %v1997 = vadd.f32 0.0, %v1996
      %v1998 = vpop.f32.mrb[0].mxu0
      %v1999 = vpop.f32.mrb[0].mxu0
      %v2000 = vadd.f32 0.0, %v1999
      %v2001 = vpop.f32.mrb[0].mxu0
      %2002 = vmatprep.mubr.bf16.mxu0 0
      %2003 = vmatmul.mubr.bf16.gmra.mrb[0].mxu0 %v1159
      %v2004 = vpop.f32.mrb[0].mxu0
      %v2005 = vadd.f32 0.0, %v2004
      %v2006 = vpop.f32.mrb[0].mxu0
      %v2007 = vpop.f32.mrb[0].mxu0
      %v2008 = vadd.f32 0.0, %v2007
      %v2009 = vpop.f32.mrb[0].mxu0
      %2010 = vmatprep.mubr.bf16.mxu0 0
      %2011 = vmatmul.mubr.bf16.gmra.mrb[0].mxu0 %v1162
      %v2012 = vpop.f32.mrb[0].mxu0
      %v2013 = vadd.f32 0.0, %v2012
      %v2014 = vpop.f32.mrb[0].mxu0
      %v2015 = vpop.f32.mrb[0].mxu0
      %v2016 = vadd.f32 0.0, %v2015
      %v2017 = vpop.f32.mrb[0].mxu0
      %2018 = vmatprep.mubr.bf16.mxu0 0
      %2019 = vmatmul.mubr.bf16.gmra.mrb[0].mxu0 %v1165
      %v2020 = vpop.f32.mrb[0].mxu0
      %v2021 = vadd.f32 0.0, %v2020
      %v2022 = vpop.f32.mrb[0].mxu0
      %v2023 = vpop.f32.mrb[0].mxu0
      %v2024 = vadd.f32 0.0, %v2023
      %v2025 = vpop.f32.mrb[0].mxu0
      %2026 = vmatprep.mubr.bf16.mxu0 0
      %2027 = vmatmul.mubr.bf16.gmra.mrb[0].mxu0 %v1872
      %v2028 = vpop.f32.mrb[0].mxu0
      %v2029 = vadd.f32 0.0, %v2028
      %v2030 = vpop.f32.mrb[0].mxu0
      %v2031 = vpop.f32.mrb[0].mxu0
      %v2032 = vadd.f32 0.0, %v2031
      %v2033 = vpop.f32.mrb[0].mxu0
      %2034 = vdwg.mxu0
      %v2035 = vadd.f32 %v1798, %v1909
      %v2036 = vadd.f32 %v1799, %v1912
      %v2037 = vadd.f32 %v1800, %v1917
      %v2038 = vadd.f32 %v1801, %v1920
      %v2039 = vadd.f32 %v1802, %v1925
      %v2040 = vadd.f32 %v1803, %v1928
      %v2041 = vadd.f32 %v1804, %v1933
      %v2042 = vadd.f32 %v1805, %v1936
      %v2043 = vadd.f32 %v1806, %v1941
      %v2044 = vadd.f32 %v1807, %v1944
      %v2045 = vadd.f32 %v1808, %v1949
      %v2046 = vadd.f32 %v1809, %v1952
      %v2047 = vadd.f32 %v1810, %v1957
      %v2048 = vadd.f32 %v1811, %v1960
      %v2049 = vadd.f32 %v1812, %v1965
      %v2050 = vadd.f32 %v1813, %v1968
      %v2051 = vadd.f32 %v1814, %v1973
      %v2052 = vadd.f32 %v1815, %v1976
      %v2053 = vadd.f32 %v1816, %v1981
      %v2054 = vadd.f32 %v1817, %v1984
      %v2055 = vadd.f32 %v1818, %v1989
      %v2056 = vadd.f32 %v1819, %v1992
      %v2057 = vadd.f32 %v1820, %v1997
      %v2058 = vadd.f32 %v1821, %v2000
      %v2059 = vadd.f32 %v1822, %v2005
      %v2060 = vadd.f32 %v1823, %v2008
      %v2061 = vadd.f32 %v1824, %v2013
      %v2062 = vadd.f32 %v1825, %v2016
      %v2063 = vadd.f32 %v1826, %v2021
      %v2064 = vadd.f32 %v1827, %v2024
      %v2065 = vadd.f32 %v1828, %v2029
      %v2066 = vadd.f32 %v1829, %v2032
      %v2067 = vpack.c.bf16 %v278, %v277
      %s2068 = scalar_lea.vmem %s1, 192
      %v2069 = vld [vmem:[%s2068] sm:$0xf]
      %v2070 = vld [vmem:[%s2068 + $0x4] sm:$0xf]
      %v2071 = vld [vmem:[%s2068 + $0x8] sm:$0xf]
      %v2072 = vld [vmem:[%s2068 + $0xc] sm:$0xf]
      %v2073 = vld [vmem:[%s2068 + $0x10] sm:$0xf]
      %v2074 = vld [vmem:[%s2068 + $0x14] sm:$0xf]
      %v2075 = vld [vmem:[%s2068 + $0x18] sm:$0xf]
      %v2076 = vld [vmem:[%s2068 + $0x1c] sm:$0xf]
      %v2085 = vunpack.c.l.b16 %v2069
      %v2086 = vunpack.c.l.b16 %v2070
      %v2087 = vunpack.c.l.b16 %v2071
      %v2088 = vunpack.c.l.b16 %v2072
      %v2089 = vunpack.c.l.b16 %v2073
      %v2090 = vunpack.c.l.b16 %v2074
      %v2091 = vunpack.c.l.b16 %v2075
      %v2092 = vunpack.c.l.b16 %v2076
      %v2093 = vpack.c.b16 %v2086, %v2085
      %v2094 = vpack.c.b16 %v2088, %v2087
      %v2095 = vpack.c.b16 %v2090, %v2089
      %v2096 = vpack.c.b16 %v2092, %v2091
      %v2102 = vsel %vm514, %v2067, 0
      %2104 = vmatprep.subr.bf16.mxu0 0
      %2105 = vmatpush1.bf16.msra.mxu0 %v2093
      %2106 = vmatprep.subr.bf16.mxu0 0
      %2107 = vmatpush1.bf16.msra.mxu0 %v2094
      %2108 = vmatprep.subr.bf16.mxu0 0
      %2109 = vmatpush1.bf16.msra.mxu0 %v2095
      %2110 = vmatprep.subr.bf16.mxu0 0
      %2111 = vmatpush1.bf16.msra.mxu0 %v2096
      %2112 = vmatprep.subr.bf16.mxu0 0
      %2113 = vmatpush1.bf16.msra.mxu0 0
      %2114 = vmatprep.subr.bf16.mxu0 0
      %2115 = vmatpush1.bf16.msra.mxu0 0
      %2116 = vmatprep.subr.bf16.mxu0 0
      %2117 = vmatpush1.bf16.msra.mxu0 0
      %2118 = vmatprep.subr.bf16.mxu0 0
      %2119 = vmatpush1.bf16.msra.mxu0 0
      %2120 = vmatprep.subr.bf16.mxu0 0
      %2121 = vmatpush1.bf16.msra.mxu0 0
      %2122 = vmatprep.subr.bf16.mxu0 0
      %2123 = vmatpush1.bf16.msra.mxu0 0
      %2124 = vmatprep.subr.bf16.mxu0 0
      %2125 = vmatpush1.bf16.msra.mxu0 0
      %2126 = vmatprep.subr.bf16.mxu0 0
      %2127 = vmatpush1.bf16.msra.mxu0 0
      %2128 = vmatprep.subr.bf16.mxu0 0
      %2129 = vmatpush1.bf16.msra.mxu0 0
      %2130 = vmatprep.subr.bf16.mxu0 0
      %2131 = vmatpush1.bf16.msra.mxu0 0
      %2132 = vmatprep.subr.bf16.mxu0 0
      %2133 = vmatpush1.bf16.msra.mxu0 0
      %2134 = vmatprep.subr.bf16.mxu0 0
      %2135 = vmatpush1.bf16.msra.mxu0 0
      %2136 = vmatprep.mubr.bf16.mxu0 0
      %2137 = vmatmul.mubr.bf16.gmra.mrb[0].mxu0 %v755
      %v2138 = vpop.f32.mrb[0].mxu0
      %v2139 = vadd.f32 0.0, %v2138
      %v2140 = vpop.f32.mrb[0].mxu0
      %v2141 = vpop.f32.mrb[0].mxu0
      %v2142 = vadd.f32 0.0, %v2141
      %v2143 = vpop.f32.mrb[0].mxu0
      %2144 = vmatprep.mubr.bf16.mxu0 0
      %2145 = vmatmul.mubr.bf16.gmra.mrb[0].mxu0 %v758
      %v2146 = vpop.f32.mrb[0].mxu0
      %v2147 = vadd.f32 0.0, %v2146
      %v2148 = vpop.f32.mrb[0].mxu0
      %v2149 = vpop.f32.mrb[0].mxu0
      %v2150 = vadd.f32 0.0, %v2149
      %v2151 = vpop.f32.mrb[0].mxu0
      %2152 = vmatprep.mubr.bf16.mxu0 0
      %2153 = vmatmul.mubr.bf16.gmra.mrb[0].mxu0 %v761
      %v2154 = vpop.f32.mrb[0].mxu0
      %v2155 = vadd.f32 0.0, %v2154
      %v2156 = vpop.f32.mrb[0].mxu0
      %v2157 = vpop.f32.mrb[0].mxu0
      %v2158 = vadd.f32 0.0, %v2157
      %v2159 = vpop.f32.mrb[0].mxu0
      %2160 = vmatprep.mubr.bf16.mxu0 0
      %2161 = vmatmul.mubr.bf16.gmra.mrb[0].mxu0 %v764
      %v2162 = vpop.f32.mrb[0].mxu0
      %v2163 = vadd.f32 0.0, %v2162
      %v2164 = vpop.f32.mrb[0].mxu0
      %v2165 = vpop.f32.mrb[0].mxu0
      %v2166 = vadd.f32 0.0, %v2165
      %v2167 = vpop.f32.mrb[0].mxu0
      %2168 = vmatprep.mubr.bf16.mxu0 0
      %2169 = vmatmul.mubr.bf16.gmra.mrb[0].mxu0 %v767
      %v2170 = vpop.f32.mrb[0].mxu0
      %v2171 = vadd.f32 0.0, %v2170
      %v2172 = vpop.f32.mrb[0].mxu0
      %v2173 = vpop.f32.mrb[0].mxu0
      %v2174 = vadd.f32 0.0, %v2173
      %v2175 = vpop.f32.mrb[0].mxu0
      %2176 = vmatprep.mubr.bf16.mxu0 0
      %2177 = vmatmul.mubr.bf16.gmra.mrb[0].mxu0 %v770
      %v2178 = vpop.f32.mrb[0].mxu0
      %v2179 = vadd.f32 0.0, %v2178
      %v2180 = vpop.f32.mrb[0].mxu0
      %v2181 = vpop.f32.mrb[0].mxu0
      %v2182 = vadd.f32 0.0, %v2181
      %v2183 = vpop.f32.mrb[0].mxu0
      %2184 = vmatprep.mubr.bf16.mxu0 0
      %2185 = vmatmul.mubr.bf16.gmra.mrb[0].mxu0 %v773
      %v2186 = vpop.f32.mrb[0].mxu0
      %v2187 = vadd.f32 0.0, %v2186
      %v2188 = vpop.f32.mrb[0].mxu0
      %v2189 = vpop.f32.mrb[0].mxu0
      %v2190 = vadd.f32 0.0, %v2189
      %v2191 = vpop.f32.mrb[0].mxu0
      %2192 = vmatprep.mubr.bf16.mxu0 0
      %2193 = vmatmul.mubr.bf16.gmra.mrb[0].mxu0 %v776
      %v2194 = vpop.f32.mrb[0].mxu0
      %v2195 = vadd.f32 0.0, %v2194
      %v2196 = vpop.f32.mrb[0].mxu0
      %v2197 = vpop.f32.mrb[0].mxu0
      %v2198 = vadd.f32 0.0, %v2197
      %v2199 = vpop.f32.mrb[0].mxu0
      %2200 = vmatprep.mubr.bf16.mxu0 0
      %2201 = vmatmul.mubr.bf16.gmra.mrb[0].mxu0 %v779
      %v2202 = vpop.f32.mrb[0].mxu0
      %v2203 = vadd.f32 0.0, %v2202
      %v2204 = vpop.f32.mrb[0].mxu0
      %v2205 = vpop.f32.mrb[0].mxu0
      %v2206 = vadd.f32 0.0, %v2205
      %v2207 = vpop.f32.mrb[0].mxu0
      %2208 = vmatprep.mubr.bf16.mxu0 0
      %2209 = vmatmul.mubr.bf16.gmra.mrb[0].mxu0 %v782
      %v2210 = vpop.f32.mrb[0].mxu0
      %v2211 = vadd.f32 0.0, %v2210
      %v2212 = vpop.f32.mrb[0].mxu0
      %v2213 = vpop.f32.mrb[0].mxu0
      %v2214 = vadd.f32 0.0, %v2213
      %v2215 = vpop.f32.mrb[0].mxu0
      %2216 = vmatprep.mubr.bf16.mxu0 0
      %2217 = vmatmul.mubr.bf16.gmra.mrb[0].mxu0 %v785
      %v2218 = vpop.f32.mrb[0].mxu0
      %v2219 = vadd.f32 0.0, %v2218
      %v2220 = vpop.f32.mrb[0].mxu0
      %v2221 = vpop.f32.mrb[0].mxu0
      %v2222 = vadd.f32 0.0, %v2221
      %v2223 = vpop.f32.mrb[0].mxu0
      %2224 = vmatprep.mubr.bf16.mxu0 0
      %2225 = vmatmul.mubr.bf16.gmra.mrb[0].mxu0 %v788
      %v2226 = vpop.f32.mrb[0].mxu0
      %v2227 = vadd.f32 0.0, %v2226
      %v2228 = vpop.f32.mrb[0].mxu0
      %v2229 = vpop.f32.mrb[0].mxu0
      %v2230 = vadd.f32 0.0, %v2229
      %v2231 = vpop.f32.mrb[0].mxu0
      %2232 = vmatprep.mubr.bf16.mxu0 0
      %2233 = vmatmul.mubr.bf16.gmra.mrb[0].mxu0 %v791
      %v2234 = vpop.f32.mrb[0].mxu0
      %v2235 = vadd.f32 0.0, %v2234
      %v2236 = vpop.f32.mrb[0].mxu0
      %v2237 = vpop.f32.mrb[0].mxu0
      %v2238 = vadd.f32 0.0, %v2237
      %v2239 = vpop.f32.mrb[0].mxu0
      %2240 = vmatprep.mubr.bf16.mxu0 0
      %2241 = vmatmul.mubr.bf16.gmra.mrb[0].mxu0 %v794
      %v2242 = vpop.f32.mrb[0].mxu0
      %v2243 = vadd.f32 0.0, %v2242
      %v2244 = vpop.f32.mrb[0].mxu0
      %v2245 = vpop.f32.mrb[0].mxu0
      %v2246 = vadd.f32 0.0, %v2245
      %v2247 = vpop.f32.mrb[0].mxu0
      %2248 = vmatprep.mubr.bf16.mxu0 0
      %2249 = vmatmul.mubr.bf16.gmra.mrb[0].mxu0 %v1395
      %v2250 = vpop.f32.mrb[0].mxu0
      %v2251 = vadd.f32 0.0, %v2250
      %v2252 = vpop.f32.mrb[0].mxu0
      %v2253 = vpop.f32.mrb[0].mxu0
      %v2254 = vadd.f32 0.0, %v2253
      %v2255 = vpop.f32.mrb[0].mxu0
      %2256 = vmatprep.mubr.bf16.mxu0 0
      %2257 = vmatmul.mubr.bf16.gmra.mrb[0].mxu0 %v2102
      %v2258 = vpop.f32.mrb[0].mxu0
      %v2259 = vadd.f32 0.0, %v2258
      %v2260 = vpop.f32.mrb[0].mxu0
      %v2261 = vpop.f32.mrb[0].mxu0
      %v2262 = vadd.f32 0.0, %v2261
      %v2263 = vpop.f32.mrb[0].mxu0
      %2264 = vdwg.mxu0
      %v2265 = vadd.f32 %v2035, %v2139
      %v2266 = vadd.f32 %v2036, %v2142
      %v2267 = vadd.f32 %v2037, %v2147
      %v2268 = vadd.f32 %v2038, %v2150
      %v2269 = vadd.f32 %v2039, %v2155
      %v2270 = vadd.f32 %v2040, %v2158
      %v2271 = vadd.f32 %v2041, %v2163
      %v2272 = vadd.f32 %v2042, %v2166
      %v2273 = vadd.f32 %v2043, %v2171
      %v2274 = vadd.f32 %v2044, %v2174
      %v2275 = vadd.f32 %v2045, %v2179
      %v2276 = vadd.f32 %v2046, %v2182
      %v2277 = vadd.f32 %v2047, %v2187
      %v2278 = vadd.f32 %v2048, %v2190
      %v2279 = vadd.f32 %v2049, %v2195
      %v2280 = vadd.f32 %v2050, %v2198
      %v2281 = vadd.f32 %v2051, %v2203
      %v2282 = vadd.f32 %v2052, %v2206
      %v2283 = vadd.f32 %v2053, %v2211
      %v2284 = vadd.f32 %v2054, %v2214
      %v2285 = vadd.f32 %v2055, %v2219
      %v2286 = vadd.f32 %v2056, %v2222
      %v2287 = vadd.f32 %v2057, %v2227
      %v2288 = vadd.f32 %v2058, %v2230
      %v2289 = vadd.f32 %v2059, %v2235
      %v2290 = vadd.f32 %v2060, %v2238
      %v2291 = vadd.f32 %v2061, %v2243
      %v2292 = vadd.f32 %v2062, %v2246
      %v2293 = vadd.f32 %v2063, %v2251
      %v2294 = vadd.f32 %v2064, %v2254
      %v2295 = vadd.f32 %v2065, %v2259
      %v2296 = vadd.f32 %v2066, %v2262
      %v2300 = vrot.slane %v277, 1
      %v2301 = vrot.slane %v278, 1
      %v2302 = vsel %vm352, %v2300, %v2301
      %v2303 = vrot.slane %v279, 1
      %v2304 = vsel %vm352, %v2301, %v2303
      %v2307 = vpack.c.bf16 %v2304, %v2302
      %s2308 = scalar_lea.vmem %s1, 224
      %v2309 = vld [vmem:[%s2308] sm:$0xf]
      %v2310 = vld [vmem:[%s2308 + $0x4] sm:$0xf]
      %v2311 = vld [vmem:[%s2308 + $0x8] sm:$0xf]
      %v2312 = vld [vmem:[%s2308 + $0xc] sm:$0xf]
      %v2313 = vld [vmem:[%s2308 + $0x10] sm:$0xf]
      %v2314 = vld [vmem:[%s2308 + $0x14] sm:$0xf]
      %v2315 = vld [vmem:[%s2308 + $0x18] sm:$0xf]
      %v2316 = vld [vmem:[%s2308 + $0x1c] sm:$0xf]
      %v2325 = vunpack.c.l.b16 %v2309
      %v2326 = vunpack.c.l.b16 %v2310
      %v2327 = vunpack.c.l.b16 %v2311
      %v2328 = vunpack.c.l.b16 %v2312
      %v2329 = vunpack.c.l.b16 %v2313
      %v2330 = vunpack.c.l.b16 %v2314
      %v2331 = vunpack.c.l.b16 %v2315
      %v2332 = vunpack.c.l.b16 %v2316
      %v2333 = vpack.c.b16 %v2326, %v2325
      %v2334 = vpack.c.b16 %v2328, %v2327
      %v2335 = vpack.c.b16 %v2330, %v2329
      %v2336 = vpack.c.b16 %v2332, %v2331
      %v2342 = vsel %vm514, %v2307, 0
      %2344 = vmatprep.subr.bf16.mxu0 0
      %2345 = vmatpush1.bf16.msra.mxu0 %v2333
      %2346 = vmatprep.subr.bf16.mxu0 0
      %2347 = vmatpush1.bf16.msra.mxu0 %v2334
      %2348 = vmatprep.subr.bf16.mxu0 0
      %2349 = vmatpush1.bf16.msra.mxu0 %v2335
      %2350 = vmatprep.subr.bf16.mxu0 0
      %2351 = vmatpush1.bf16.msra.mxu0 %v2336
      %2352 = vmatprep.subr.bf16.mxu0 0
      %2353 = vmatpush1.bf16.msra.mxu0 0
      %2354 = vmatprep.subr.bf16.mxu0 0
      %2355 = vmatpush1.bf16.msra.mxu0 0
      %2356 = vmatprep.subr.bf16.mxu0 0
      %2357 = vmatpush1.bf16.msra.mxu0 0
      %2358 = vmatprep.subr.bf16.mxu0 0
      %2359 = vmatpush1.bf16.msra.mxu0 0
      %2360 = vmatprep.subr.bf16.mxu0 0
      %2361 = vmatpush1.bf16.msra.mxu0 0
      %2362 = vmatprep.subr.bf16.mxu0 0
      %2363 = vmatpush1.bf16.msra.mxu0 0
      %2364 = vmatprep.subr.bf16.mxu0 0
      %2365 = vmatpush1.bf16.msra.mxu0 0
      %2366 = vmatprep.subr.bf16.mxu0 0
      %2367 = vmatpush1.bf16.msra.mxu0 0
      %2368 = vmatprep.subr.bf16.mxu0 0
      %2369 = vmatpush1.bf16.msra.mxu0 0
      %2370 = vmatprep.subr.bf16.mxu0 0
      %2371 = vmatpush1.bf16.msra.mxu0 0
      %2372 = vmatprep.subr.bf16.mxu0 0
      %2373 = vmatpush1.bf16.msra.mxu0 0
      %2374 = vmatprep.subr.bf16.mxu0 0
      %2375 = vmatpush1.bf16.msra.mxu0 0
      %2376 = vmatprep.mubr.bf16.mxu0 0
      %2377 = vmatmul.mubr.bf16.gmra.mrb[0].mxu0 %v522
      %v2378 = vpop.f32.mrb[0].mxu0
      %v2379 = vadd.f32 0.0, %v2378
      %v2380 = vpop.f32.mrb[0].mxu0
      %v2381 = vpop.f32.mrb[0].mxu0
      %v2382 = vadd.f32 0.0, %v2381
      %v2383 = vpop.f32.mrb[0].mxu0
      %2384 = vmatprep.mubr.bf16.mxu0 0
      %2385 = vmatmul.mubr.bf16.gmra.mrb[0].mxu0 %v525
      %v2386 = vpop.f32.mrb[0].mxu0
      %v2387 = vadd.f32 0.0, %v2386
      %v2388 = vpop.f32.mrb[0].mxu0
      %v2389 = vpop.f32.mrb[0].mxu0
      %v2390 = vadd.f32 0.0, %v2389
      %v2391 = vpop.f32.mrb[0].mxu0
      %2392 = vmatprep.mubr.bf16.mxu0 0
      %2393 = vmatmul.mubr.bf16.gmra.mrb[0].mxu0 %v528
      %v2394 = vpop.f32.mrb[0].mxu0
      %v2395 = vadd.f32 0.0, %v2394
      %v2396 = vpop.f32.mrb[0].mxu0
      %v2397 = vpop.f32.mrb[0].mxu0
      %v2398 = vadd.f32 0.0, %v2397
      %v2399 = vpop.f32.mrb[0].mxu0
      %2400 = vmatprep.mubr.bf16.mxu0 0
      %2401 = vmatmul.mubr.bf16.gmra.mrb[0].mxu0 %v531
      %v2402 = vpop.f32.mrb[0].mxu0
      %v2403 = vadd.f32 0.0, %v2402
      %v2404 = vpop.f32.mrb[0].mxu0
      %v2405 = vpop.f32.mrb[0].mxu0
      %v2406 = vadd.f32 0.0, %v2405
      %v2407 = vpop.f32.mrb[0].mxu0
      %2408 = vmatprep.mubr.bf16.mxu0 0
      %2409 = vmatmul.mubr.bf16.gmra.mrb[0].mxu0 %v534
      %v2410 = vpop.f32.mrb[0].mxu0
      %v2411 = vadd.f32 0.0, %v2410
      %v2412 = vpop.f32.mrb[0].mxu0
      %v2413 = vpop.f32.mrb[0].mxu0
      %v2414 = vadd.f32 0.0, %v2413
      %v2415 = vpop.f32.mrb[0].mxu0
      %2416 = vmatprep.mubr.bf16.mxu0 0
      %2417 = vmatmul.mubr.bf16.gmra.mrb[0].mxu0 %v537
      %v2418 = vpop.f32.mrb[0].mxu0
      %v2419 = vadd.f32 0.0, %v2418
      %v2420 = vpop.f32.mrb[0].mxu0
      %v2421 = vpop.f32.mrb[0].mxu0
      %v2422 = vadd.f32 0.0, %v2421
      %v2423 = vpop.f32.mrb[0].mxu0
      %2424 = vmatprep.mubr.bf16.mxu0 0
      %2425 = vmatmul.mubr.bf16.gmra.mrb[0].mxu0 %v540
      %v2426 = vpop.f32.mrb[0].mxu0
      %v2427 = vadd.f32 0.0, %v2426
      %v2428 = vpop.f32.mrb[0].mxu0
      %v2429 = vpop.f32.mrb[0].mxu0
      %v2430 = vadd.f32 0.0, %v2429
      %v2431 = vpop.f32.mrb[0].mxu0
      %2432 = vmatprep.mubr.bf16.mxu0 0
      %2433 = vmatmul.mubr.bf16.gmra.mrb[0].mxu0 %v543
      %v2434 = vpop.f32.mrb[0].mxu0
      %v2435 = vadd.f32 0.0, %v2434
      %v2436 = vpop.f32.mrb[0].mxu0
      %v2437 = vpop.f32.mrb[0].mxu0
      %v2438 = vadd.f32 0.0, %v2437
      %v2439 = vpop.f32.mrb[0].mxu0
      %2440 = vmatprep.mubr.bf16.mxu0 0
      %2441 = vmatmul.mubr.bf16.gmra.mrb[0].mxu0 %v546
      %v2442 = vpop.f32.mrb[0].mxu0
      %v2443 = vadd.f32 0.0, %v2442
      %v2444 = vpop.f32.mrb[0].mxu0
      %v2445 = vpop.f32.mrb[0].mxu0
      %v2446 = vadd.f32 0.0, %v2445
      %v2447 = vpop.f32.mrb[0].mxu0
      %2448 = vmatprep.mubr.bf16.mxu0 0
      %2449 = vmatmul.mubr.bf16.gmra.mrb[0].mxu0 %v549
      %v2450 = vpop.f32.mrb[0].mxu0
      %v2451 = vadd.f32 0.0, %v2450
      %v2452 = vpop.f32.mrb[0].mxu0
      %v2453 = vpop.f32.mrb[0].mxu0
      %v2454 = vadd.f32 0.0, %v2453
      %v2455 = vpop.f32.mrb[0].mxu0
      %2456 = vmatprep.mubr.bf16.mxu0 0
      %2457 = vmatmul.mubr.bf16.gmra.mrb[0].mxu0 %v552
      %v2458 = vpop.f32.mrb[0].mxu0
      %v2459 = vadd.f32 0.0, %v2458
      %v2460 = vpop.f32.mrb[0].mxu0
      %v2461 = vpop.f32.mrb[0].mxu0
      %v2462 = vadd.f32 0.0, %v2461
      %v2463 = vpop.f32.mrb[0].mxu0
      %2464 = vmatprep.mubr.bf16.mxu0 0
      %2465 = vmatmul.mubr.bf16.gmra.mrb[0].mxu0 %v555
      %v2466 = vpop.f32.mrb[0].mxu0
      %v2467 = vadd.f32 0.0, %v2466
      %v2468 = vpop.f32.mrb[0].mxu0
      %v2469 = vpop.f32.mrb[0].mxu0
      %v2470 = vadd.f32 0.0, %v2469
      %v2471 = vpop.f32.mrb[0].mxu0
      %2472 = vmatprep.mubr.bf16.mxu0 0
      %2473 = vmatmul.mubr.bf16.gmra.mrb[0].mxu0 %v558
      %v2474 = vpop.f32.mrb[0].mxu0
      %v2475 = vadd.f32 0.0, %v2474
      %v2476 = vpop.f32.mrb[0].mxu0
      %v2477 = vpop.f32.mrb[0].mxu0
      %v2478 = vadd.f32 0.0, %v2477
      %v2479 = vpop.f32.mrb[0].mxu0
      %2480 = vmatprep.mubr.bf16.mxu0 0
      %2481 = vmatmul.mubr.bf16.gmra.mrb[0].mxu0 %v561
      %v2482 = vpop.f32.mrb[0].mxu0
      %v2483 = vadd.f32 0.0, %v2482
      %v2484 = vpop.f32.mrb[0].mxu0
      %v2485 = vpop.f32.mrb[0].mxu0
      %v2486 = vadd.f32 0.0, %v2485
      %v2487 = vpop.f32.mrb[0].mxu0
      %2488 = vmatprep.mubr.bf16.mxu0 0
      %2489 = vmatmul.mubr.bf16.gmra.mrb[0].mxu0 %v1635
      %v2490 = vpop.f32.mrb[0].mxu0
      %v2491 = vadd.f32 0.0, %v2490
      %v2492 = vpop.f32.mrb[0].mxu0
      %v2493 = vpop.f32.mrb[0].mxu0
      %v2494 = vadd.f32 0.0, %v2493
      %v2495 = vpop.f32.mrb[0].mxu0
      %2496 = vmatprep.mubr.bf16.mxu0 0
      %2497 = vmatmul.mubr.bf16.gmra.mrb[0].mxu0 %v2342
      %v2498 = vpop.f32.mrb[0].mxu0
      %v2499 = vadd.f32 0.0, %v2498
      %v2500 = vpop.f32.mrb[0].mxu0
      %v2501 = vpop.f32.mrb[0].mxu0
      %v2502 = vadd.f32 0.0, %v2501
      %v2503 = vpop.f32.mrb[0].mxu0
      %2504 = vdwg.mxu0
      %v2505 = vadd.f32 %v2265, %v2379
      %v2506 = vadd.f32 %v2266, %v2382
      %v2507 = vadd.f32 %v2267, %v2387
      %v2508 = vadd.f32 %v2268, %v2390
      %v2509 = vadd.f32 %v2269, %v2395
      %v2510 = vadd.f32 %v2270, %v2398
      %v2511 = vadd.f32 %v2271, %v2403
      %v2512 = vadd.f32 %v2272, %v2406
      %v2513 = vadd.f32 %v2273, %v2411
      %v2514 = vadd.f32 %v2274, %v2414
      %v2515 = vadd.f32 %v2275, %v2419
      %v2516 = vadd.f32 %v2276, %v2422
      %v2517 = vadd.f32 %v2277, %v2427
      %v2518 = vadd.f32 %v2278, %v2430
      %v2519 = vadd.f32 %v2279, %v2435
      %v2520 = vadd.f32 %v2280, %v2438
      %v2521 = vadd.f32 %v2281, %v2443
      %v2522 = vadd.f32 %v2282, %v2446
      %v2523 = vadd.f32 %v2283, %v2451
      %v2524 = vadd.f32 %v2284, %v2454
      %v2525 = vadd.f32 %v2285, %v2459
      %v2526 = vadd.f32 %v2286, %v2462
      %v2527 = vadd.f32 %v2287, %v2467
      %v2528 = vadd.f32 %v2288, %v2470
      %v2529 = vadd.f32 %v2289, %v2475
      %v2530 = vadd.f32 %v2290, %v2478
      %v2531 = vadd.f32 %v2291, %v2483
      %v2532 = vadd.f32 %v2292, %v2486
      %v2533 = vadd.f32 %v2293, %v2491
      %v2534 = vadd.f32 %v2294, %v2494
      %v2535 = vadd.f32 %v2295, %v2499
      %v2536 = vadd.f32 %v2296, %v2502
      %v2537 = vrot.slane %v277, 2
      %v2538 = vrot.slane %v278, 2
      %v2539 = vsel %vm957, %v2537, %v2538
      %v2540 = vrot.slane %v279, 2
      %v2541 = vsel %vm957, %v2538, %v2540
      %v2544 = vpack.c.bf16 %v2541, %v2539
      %s2545 = scalar_lea.vmem %s1, 256
      %v2546 = vld [vmem:[%s2545] sm:$0xf]
      %v2547 = vld [vmem:[%s2545 + $0x4] sm:$0xf]
      %v2548 = vld [vmem:[%s2545 + $0x8] sm:$0xf]
      %v2549 = vld [vmem:[%s2545 + $0xc] sm:$0xf]
      %v2550 = vld [vmem:[%s2545 + $0x10] sm:$0xf]
      %v2551 = vld [vmem:[%s2545 + $0x14] sm:$0xf]
      %v2552 = vld [vmem:[%s2545 + $0x18] sm:$0xf]
      %v2553 = vld [vmem:[%s2545 + $0x1c] sm:$0xf]
      %v2562 = vunpack.c.l.b16 %v2546
      %v2563 = vunpack.c.l.b16 %v2547
      %v2564 = vunpack.c.l.b16 %v2548
      %v2565 = vunpack.c.l.b16 %v2549
      %v2566 = vunpack.c.l.b16 %v2550
      %v2567 = vunpack.c.l.b16 %v2551
      %v2568 = vunpack.c.l.b16 %v2552
      %v2569 = vunpack.c.l.b16 %v2553
      %v2570 = vpack.c.b16 %v2563, %v2562
      %v2571 = vpack.c.b16 %v2565, %v2564
      %v2572 = vpack.c.b16 %v2567, %v2566
      %v2573 = vpack.c.b16 %v2569, %v2568
      %v2579 = vsel %vm514, %v2544, 0
      %2581 = vmatprep.subr.bf16.mxu0 0
      %2582 = vmatpush1.bf16.msra.mxu0 %v2570
      %2583 = vmatprep.subr.bf16.mxu0 0
      %2584 = vmatpush1.bf16.msra.mxu0 %v2571
      %2585 = vmatprep.subr.bf16.mxu0 0
      %2586 = vmatpush1.bf16.msra.mxu0 %v2572
      %2587 = vmatprep.subr.bf16.mxu0 0
      %2588 = vmatpush1.bf16.msra.mxu0 %v2573
      %2589 = vmatprep.subr.bf16.mxu0 0
      %2590 = vmatpush1.bf16.msra.mxu0 0
      %2591 = vmatprep.subr.bf16.mxu0 0
      %2592 = vmatpush1.bf16.msra.mxu0 0
      %2593 = vmatprep.subr.bf16.mxu0 0
      %2594 = vmatpush1.bf16.msra.mxu0 0
      %2595 = vmatprep.subr.bf16.mxu0 0
      %2596 = vmatpush1.bf16.msra.mxu0 0
      %2597 = vmatprep.subr.bf16.mxu0 0
      %2598 = vmatpush1.bf16.msra.mxu0 0
      %2599 = vmatprep.subr.bf16.mxu0 0
      %2600 = vmatpush1.bf16.msra.mxu0 0
      %2601 = vmatprep.subr.bf16.mxu0 0
      %2602 = vmatpush1.bf16.msra.mxu0 0
      %2603 = vmatprep.subr.bf16.mxu0 0
      %2604 = vmatpush1.bf16.msra.mxu0 0
      %2605 = vmatprep.subr.bf16.mxu0 0
      %2606 = vmatpush1.bf16.msra.mxu0 0
      %2607 = vmatprep.subr.bf16.mxu0 0
      %2608 = vmatpush1.bf16.msra.mxu0 0
      %2609 = vmatprep.subr.bf16.mxu0 0
      %2610 = vmatpush1.bf16.msra.mxu0 0
      %2611 = vmatprep.subr.bf16.mxu0 0
      %2612 = vmatpush1.bf16.msra.mxu0 0
      %2613 = vmatprep.mubr.bf16.mxu0 0
      %2614 = vmatmul.mubr.bf16.gmra.mrb[0].mxu0 %v1126
      %v2615 = vpop.f32.mrb[0].mxu0
      %v2616 = vadd.f32 0.0, %v2615
      %v2617 = vpop.f32.mrb[0].mxu0
      %v2618 = vpop.f32.mrb[0].mxu0
      %v2619 = vadd.f32 0.0, %v2618
      %v2620 = vpop.f32.mrb[0].mxu0
      %2621 = vmatprep.mubr.bf16.mxu0 0
      %2622 = vmatmul.mubr.bf16.gmra.mrb[0].mxu0 %v1129
      %v2623 = vpop.f32.mrb[0].mxu0
      %v2624 = vadd.f32 0.0, %v2623
      %v2625 = vpop.f32.mrb[0].mxu0
      %v2626 = vpop.f32.mrb[0].mxu0
      %v2627 = vadd.f32 0.0, %v2626
      %v2628 = vpop.f32.mrb[0].mxu0
      %2629 = vmatprep.mubr.bf16.mxu0 0
      %2630 = vmatmul.mubr.bf16.gmra.mrb[0].mxu0 %v1132
      %v2631 = vpop.f32.mrb[0].mxu0
      %v2632 = vadd.f32 0.0, %v2631
      %v2633 = vpop.f32.mrb[0].mxu0
      %v2634 = vpop.f32.mrb[0].mxu0
      %v2635 = vadd.f32 0.0, %v2634
      %v2636 = vpop.f32.mrb[0].mxu0
      %2637 = vmatprep.mubr.bf16.mxu0 0
      %2638 = vmatmul.mubr.bf16.gmra.mrb[0].mxu0 %v1135
      %v2639 = vpop.f32.mrb[0].mxu0
      %v2640 = vadd.f32 0.0, %v2639
      %v2641 = vpop.f32.mrb[0].mxu0
      %v2642 = vpop.f32.mrb[0].mxu0
      %v2643 = vadd.f32 0.0, %v2642
      %v2644 = vpop.f32.mrb[0].mxu0
      %2645 = vmatprep.mubr.bf16.mxu0 0
      %2646 = vmatmul.mubr.bf16.gmra.mrb[0].mxu0 %v1138
      %v2647 = vpop.f32.mrb[0].mxu0
      %v2648 = vadd.f32 0.0, %v2647
      %v2649 = vpop.f32.mrb[0].mxu0
      %v2650 = vpop.f32.mrb[0].mxu0
      %v2651 = vadd.f32 0.0, %v2650
      %v2652 = vpop.f32.mrb[0].mxu0
      %2653 = vmatprep.mubr.bf16.mxu0 0
      %2654 = vmatmul.mubr.bf16.gmra.mrb[0].mxu0 %v1141
      %v2655 = vpop.f32.mrb[0].mxu0
      %v2656 = vadd.f32 0.0, %v2655
      %v2657 = vpop.f32.mrb[0].mxu0
      %v2658 = vpop.f32.mrb[0].mxu0
      %v2659 = vadd.f32 0.0, %v2658
      %v2660 = vpop.f32.mrb[0].mxu0
      %2661 = vmatprep.mubr.bf16.mxu0 0
      %2662 = vmatmul.mubr.bf16.gmra.mrb[0].mxu0 %v1144
      %v2663 = vpop.f32.mrb[0].mxu0
      %v2664 = vadd.f32 0.0, %v2663
      %v2665 = vpop.f32.mrb[0].mxu0
      %v2666 = vpop.f32.mrb[0].mxu0
      %v2667 = vadd.f32 0.0, %v2666
      %v2668 = vpop.f32.mrb[0].mxu0
      %2669 = vmatprep.mubr.bf16.mxu0 0
      %2670 = vmatmul.mubr.bf16.gmra.mrb[0].mxu0 %v1147
      %v2671 = vpop.f32.mrb[0].mxu0
      %v2672 = vadd.f32 0.0, %v2671
      %v2673 = vpop.f32.mrb[0].mxu0
      %v2674 = vpop.f32.mrb[0].mxu0
      %v2675 = vadd.f32 0.0, %v2674
      %v2676 = vpop.f32.mrb[0].mxu0
      %2677 = vmatprep.mubr.bf16.mxu0 0
      %2678 = vmatmul.mubr.bf16.gmra.mrb[0].mxu0 %v1150
      %v2679 = vpop.f32.mrb[0].mxu0
      %v2680 = vadd.f32 0.0, %v2679
      %v2681 = vpop.f32.mrb[0].mxu0
      %v2682 = vpop.f32.mrb[0].mxu0
      %v2683 = vadd.f32 0.0, %v2682
      %v2684 = vpop.f32.mrb[0].mxu0
      %2685 = vmatprep.mubr.bf16.mxu0 0
      %2686 = vmatmul.mubr.bf16.gmra.mrb[0].mxu0 %v1153
      %v2687 = vpop.f32.mrb[0].mxu0
      %v2688 = vadd.f32 0.0, %v2687
      %v2689 = vpop.f32.mrb[0].mxu0
      %v2690 = vpop.f32.mrb[0].mxu0
      %v2691 = vadd.f32 0.0, %v2690
      %v2692 = vpop.f32.mrb[0].mxu0
      %2693 = vmatprep.mubr.bf16.mxu0 0
      %2694 = vmatmul.mubr.bf16.gmra.mrb[0].mxu0 %v1156
      %v2695 = vpop.f32.mrb[0].mxu0
      %v2696 = vadd.f32 0.0, %v2695
      %v2697 = vpop.f32.mrb[0].mxu0
      %v2698 = vpop.f32.mrb[0].mxu0
      %v2699 = vadd.f32 0.0, %v2698
      %v2700 = vpop.f32.mrb[0].mxu0
      %2701 = vmatprep.mubr.bf16.mxu0 0
      %2702 = vmatmul.mubr.bf16.gmra.mrb[0].mxu0 %v1159
      %v2703 = vpop.f32.mrb[0].mxu0
      %v2704 = vadd.f32 0.0, %v2703
      %v2705 = vpop.f32.mrb[0].mxu0
      %v2706 = vpop.f32.mrb[0].mxu0
      %v2707 = vadd.f32 0.0, %v2706
      %v2708 = vpop.f32.mrb[0].mxu0
      %2709 = vmatprep.mubr.bf16.mxu0 0
      %2710 = vmatmul.mubr.bf16.gmra.mrb[0].mxu0 %v1162
      %v2711 = vpop.f32.mrb[0].mxu0
      %v2712 = vadd.f32 0.0, %v2711
      %v2713 = vpop.f32.mrb[0].mxu0
      %v2714 = vpop.f32.mrb[0].mxu0
      %v2715 = vadd.f32 0.0, %v2714
      %v2716 = vpop.f32.mrb[0].mxu0
      %2717 = vmatprep.mubr.bf16.mxu0 0
      %2718 = vmatmul.mubr.bf16.gmra.mrb[0].mxu0 %v1165
      %v2719 = vpop.f32.mrb[0].mxu0
      %v2720 = vadd.f32 0.0, %v2719
      %v2721 = vpop.f32.mrb[0].mxu0
      %v2722 = vpop.f32.mrb[0].mxu0
      %v2723 = vadd.f32 0.0, %v2722
      %v2724 = vpop.f32.mrb[0].mxu0
      %2725 = vmatprep.mubr.bf16.mxu0 0
      %2726 = vmatmul.mubr.bf16.gmra.mrb[0].mxu0 %v1872
      %v2727 = vpop.f32.mrb[0].mxu0
      %v2728 = vadd.f32 0.0, %v2727
      %v2729 = vpop.f32.mrb[0].mxu0
      %v2730 = vpop.f32.mrb[0].mxu0
      %v2731 = vadd.f32 0.0, %v2730
      %v2732 = vpop.f32.mrb[0].mxu0
      %2733 = vmatprep.mubr.bf16.mxu0 0
      %2734 = vmatmul.mubr.bf16.gmra.mrb[0].mxu0 %v2579
      %v2735 = vpop.f32.mrb[0].mxu0
      %v2736 = vadd.f32 0.0, %v2735
      %v2737 = vpop.f32.mrb[0].mxu0
      %v2738 = vpop.f32.mrb[0].mxu0
      %v2739 = vadd.f32 0.0, %v2738
      %v2740 = vpop.f32.mrb[0].mxu0
      %2741 = vdwg.mxu0
      %v2742 = vadd.f32 %v2505, %v2616
      %v2743 = vadd.f32 %v2506, %v2619
      %v2744 = vadd.f32 %v2507, %v2624
      %v2745 = vadd.f32 %v2508, %v2627
      %v2746 = vadd.f32 %v2509, %v2632
      %v2747 = vadd.f32 %v2510, %v2635
      %v2748 = vadd.f32 %v2511, %v2640
      %v2749 = vadd.f32 %v2512, %v2643
      %v2750 = vadd.f32 %v2513, %v2648
      %v2751 = vadd.f32 %v2514, %v2651
      %v2752 = vadd.f32 %v2515, %v2656
      %v2753 = vadd.f32 %v2516, %v2659
      %v2754 = vadd.f32 %v2517, %v2664
      %v2755 = vadd.f32 %v2518, %v2667
      %v2756 = vadd.f32 %v2519, %v2672
      %v2757 = vadd.f32 %v2520, %v2675
      %v2758 = vadd.f32 %v2521, %v2680
      %v2759 = vadd.f32 %v2522, %v2683
      %v2760 = vadd.f32 %v2523, %v2688
      %v2761 = vadd.f32 %v2524, %v2691
      %v2762 = vadd.f32 %v2525, %v2696
      %v2763 = vadd.f32 %v2526, %v2699
      %v2764 = vadd.f32 %v2527, %v2704
      %v2765 = vadd.f32 %v2528, %v2707
      %v2766 = vadd.f32 %v2529, %v2712
      %v2767 = vadd.f32 %v2530, %v2715
      %v2768 = vadd.f32 %v2531, %v2720
      %v2769 = vadd.f32 %v2532, %v2723
      %v2770 = vadd.f32 %v2533, %v2728
      %v2771 = vadd.f32 %v2534, %v2731
      %v2772 = vadd.f32 %v2535, %v2736
      %v2773 = vadd.f32 %v2536, %v2739
      %v2774 = vld [vmem:[%s2] sm:$0x1]
      %v2776 = vlaneseq
      %v2777 = vshrl.u32 %v2776, 7
      %v2778 = vsub.s32 0, %v2777
      %v2779 = vrot.slane %v2774, %v2778
      %v2781 = vadd.f32 %v2742, %v2779
      %v2782 = vadd.f32 %v2743, %v2779
      %v2783 = vadd.f32 %v2744, %v2779
      %v2784 = vadd.f32 %v2745, %v2779
      %v2785 = vadd.f32 %v2746, %v2779
      %v2786 = vadd.f32 %v2747, %v2779
      %v2787 = vadd.f32 %v2748, %v2779
      %v2788 = vadd.f32 %v2749, %v2779
      %v2789 = vadd.f32 %v2750, %v2779
      %v2790 = vadd.f32 %v2751, %v2779
      %v2791 = vadd.f32 %v2752, %v2779
      %v2792 = vadd.f32 %v2753, %v2779
      %v2793 = vadd.f32 %v2754, %v2779
      %v2794 = vadd.f32 %v2755, %v2779
      %v2795 = vadd.f32 %v2756, %v2779
      %v2796 = vadd.f32 %v2757, %v2779
      %v2797 = vadd.f32 %v2758, %v2779
      %v2798 = vadd.f32 %v2759, %v2779
      %v2799 = vadd.f32 %v2760, %v2779
      %v2800 = vadd.f32 %v2761, %v2779
      %v2801 = vadd.f32 %v2762, %v2779
      %v2802 = vadd.f32 %v2763, %v2779
      %v2803 = vadd.f32 %v2764, %v2779
      %v2804 = vadd.f32 %v2765, %v2779
      %v2805 = vadd.f32 %v2766, %v2779
      %v2806 = vadd.f32 %v2767, %v2779
      %v2807 = vadd.f32 %v2768, %v2779
      %v2808 = vadd.f32 %v2769, %v2779
      %v2809 = vadd.f32 %v2770, %v2779
      %v2810 = vadd.f32 %v2771, %v2779
      %v2811 = vadd.f32 %v2772, %v2779
      %v2812 = vadd.f32 %v2773, %v2779
      %v2813 = vmax.f32 %v2781, 0.0
      %v2814 = vmax.f32 %v2782, 0.0
      %v2815 = vmax.f32 %v2783, 0.0
      %v2816 = vmax.f32 %v2784, 0.0
      %v2817 = vmax.f32 %v2785, 0.0
      %v2818 = vmax.f32 %v2786, 0.0
      %v2819 = vmax.f32 %v2787, 0.0
      %v2820 = vmax.f32 %v2788, 0.0
      %v2821 = vmax.f32 %v2789, 0.0
      %v2822 = vmax.f32 %v2790, 0.0
      %v2823 = vmax.f32 %v2791, 0.0
      %v2824 = vmax.f32 %v2792, 0.0
      %v2825 = vmax.f32 %v2793, 0.0
      %v2826 = vmax.f32 %v2794, 0.0
      %v2827 = vmax.f32 %v2795, 0.0
      %v2828 = vmax.f32 %v2796, 0.0
      %v2829 = vmax.f32 %v2797, 0.0
      %v2830 = vmax.f32 %v2798, 0.0
      %v2831 = vmax.f32 %v2799, 0.0
      %v2832 = vmax.f32 %v2800, 0.0
      %v2833 = vmax.f32 %v2801, 0.0
      %v2834 = vmax.f32 %v2802, 0.0
      %v2835 = vmax.f32 %v2803, 0.0
      %v2836 = vmax.f32 %v2804, 0.0
      %v2837 = vmax.f32 %v2805, 0.0
      %v2838 = vmax.f32 %v2806, 0.0
      %v2839 = vmax.f32 %v2807, 0.0
      %v2840 = vmax.f32 %v2808, 0.0
      %v2841 = vmax.f32 %v2809, 0.0
      %v2842 = vmax.f32 %v2810, 0.0
      %v2843 = vmax.f32 %v2811, 0.0
      %v2844 = vmax.f32 %v2812, 0.0
      %v2845 = vpack.c.bf16 %v2814, %v2813
      %v2846 = vpack.c.bf16 %v2816, %v2815
      %v2847 = vpack.c.bf16 %v2818, %v2817
      %v2848 = vpack.c.bf16 %v2820, %v2819
      %v2849 = vpack.c.bf16 %v2822, %v2821
      %v2850 = vpack.c.bf16 %v2824, %v2823
      %v2851 = vpack.c.bf16 %v2826, %v2825
      %v2852 = vpack.c.bf16 %v2828, %v2827
      %v2853 = vpack.c.bf16 %v2830, %v2829
      %v2854 = vpack.c.bf16 %v2832, %v2831
      %v2855 = vpack.c.bf16 %v2834, %v2833
      %v2856 = vpack.c.bf16 %v2836, %v2835
      %v2857 = vpack.c.bf16 %v2838, %v2837
      %v2858 = vpack.c.bf16 %v2840, %v2839
      %v2859 = vpack.c.bf16 %v2842, %v2841
      %v2860 = vpack.c.bf16 %v2844, %v2843
      %v2877 = vunpack.c.l.b16 %v2845
      %v2878 = vunpack.c.h.b16 %v2845
      %v2879 = vunpack.c.l.b16 %v2846
      %v2880 = vunpack.c.h.b16 %v2846
      %v2881 = vunpack.c.l.b16 %v2847
      %v2882 = vunpack.c.h.b16 %v2847
      %v2883 = vunpack.c.l.b16 %v2848
      %v2884 = vunpack.c.h.b16 %v2848
      %v2885 = vunpack.c.l.b16 %v2849
      %v2886 = vunpack.c.h.b16 %v2849
      %v2887 = vunpack.c.l.b16 %v2850
      %v2888 = vunpack.c.h.b16 %v2850
      %v2889 = vunpack.c.l.b16 %v2851
      %v2890 = vunpack.c.h.b16 %v2851
      %v2891 = vunpack.c.l.b16 %v2852
      %v2892 = vunpack.c.h.b16 %v2852
      %v2893 = vunpack.c.l.b16 %v2853
      %v2894 = vunpack.c.h.b16 %v2853
      %v2895 = vunpack.c.l.b16 %v2854
      %v2896 = vunpack.c.h.b16 %v2854
      %v2897 = vunpack.c.l.b16 %v2855
      %v2898 = vunpack.c.h.b16 %v2855
      %v2899 = vunpack.c.l.b16 %v2856
      %v2900 = vunpack.c.h.b16 %v2856
      %v2901 = vunpack.c.l.b16 %v2857
      %v2902 = vunpack.c.h.b16 %v2857
      %v2903 = vunpack.c.l.b16 %v2858
      %v2904 = vunpack.c.h.b16 %v2858
      %v2905 = vunpack.c.l.b16 %v2859
      %v2906 = vunpack.c.h.b16 %v2859
      %v2907 = vunpack.c.l.b16 %v2860
      %v2908 = vunpack.c.h.b16 %v2860
      %v2909 = vpack.c.b16 %v2877, %v2877
      %v2910 = vpack.c.b16 %v2878, %v2878
      %v2911 = vpack.c.b16 %v2879, %v2879
      %v2912 = vpack.c.b16 %v2880, %v2880
      %v2913 = vpack.c.b16 %v2881, %v2881
      %v2914 = vpack.c.b16 %v2882, %v2882
      %v2915 = vpack.c.b16 %v2883, %v2883
      %v2916 = vpack.c.b16 %v2884, %v2884
      %v2917 = vpack.c.b16 %v2885, %v2885
      %v2918 = vpack.c.b16 %v2886, %v2886
      %v2919 = vpack.c.b16 %v2887, %v2887
      %v2920 = vpack.c.b16 %v2888, %v2888
      %v2921 = vpack.c.b16 %v2889, %v2889
      %v2922 = vpack.c.b16 %v2890, %v2890
      %v2923 = vpack.c.b16 %v2891, %v2891
      %v2924 = vpack.c.b16 %v2892, %v2892
      %v2925 = vpack.c.b16 %v2893, %v2893
      %v2926 = vpack.c.b16 %v2894, %v2894
      %v2927 = vpack.c.b16 %v2895, %v2895
      %v2928 = vpack.c.b16 %v2896, %v2896
      %v2929 = vpack.c.b16 %v2897, %v2897
      %v2930 = vpack.c.b16 %v2898, %v2898
      %v2931 = vpack.c.b16 %v2899, %v2899
      %v2932 = vpack.c.b16 %v2900, %v2900
      %v2933 = vpack.c.b16 %v2901, %v2901
      %v2934 = vpack.c.b16 %v2902, %v2902
      %v2935 = vpack.c.b16 %v2903, %v2903
      %v2936 = vpack.c.b16 %v2904, %v2904
      %v2937 = vpack.c.b16 %v2905, %v2905
      %v2938 = vpack.c.b16 %v2906, %v2906
      %v2939 = vpack.c.b16 %v2907, %v2907
      %v2940 = vpack.c.b16 %v2908, %v2908
      %2973 = vst [vmem:[%s170] sm:$0xf] %v2909
      %2974 = vst [vmem:[%s170 + $0x4] sm:$0xf] %v2910
      %2975 = vst [vmem:[%s170 + $0x8] sm:$0xf] %v2911
      %2976 = vst [vmem:[%s170 + $0xc] sm:$0xf] %v2912
      %2977 = vst [vmem:[%s170 + $0x10] sm:$0xf] %v2913
      %2978 = vst [vmem:[%s170 + $0x14] sm:$0xf] %v2914
      %2979 = vst [vmem:[%s170 + $0x18] sm:$0xf] %v2915
      %2980 = vst [vmem:[%s170 + $0x1c] sm:$0xf] %v2916
      %2981 = vst [vmem:[%s170 + $0x20] sm:$0xf] %v2917
      %2982 = vst [vmem:[%s170 + $0x24] sm:$0xf] %v2918
      %2983 = vst [vmem:[%s170 + $0x28] sm:$0xf] %v2919
      %2984 = vst [vmem:[%s170 + $0x2c] sm:$0xf] %v2920
      %2985 = vst [vmem:[%s170 + $0x30] sm:$0xf] %v2921
      %2986 = vst [vmem:[%s170 + $0x34] sm:$0xf] %v2922
      %2987 = vst [vmem:[%s170 + $0x38] sm:$0xf] %v2923
      %2988 = vst [vmem:[%s170 + $0x3c] sm:$0xf] %v2924
      %2989 = vst [vmem:[%s170 + $0x40] sm:$0xf] %v2925
      %2990 = vst [vmem:[%s170 + $0x44] sm:$0xf] %v2926
      %2991 = vst [vmem:[%s170 + $0x48] sm:$0xf] %v2927
      %2992 = vst [vmem:[%s170 + $0x4c] sm:$0xf] %v2928
      %2993 = vst [vmem:[%s170 + $0x50] sm:$0xf] %v2929
      %2994 = vst [vmem:[%s170 + $0x54] sm:$0xf] %v2930
      %2995 = vst [vmem:[%s170 + $0x58] sm:$0xf] %v2931
      %2996 = vst [vmem:[%s170 + $0x5c] sm:$0xf] %v2932
      %2997 = vst [vmem:[%s170 + $0x60] sm:$0xf] %v2933
      %2998 = vst [vmem:[%s170 + $0x64] sm:$0xf] %v2934
      %2999 = vst [vmem:[%s170 + $0x68] sm:$0xf] %v2935
      %3000 = vst [vmem:[%s170 + $0x6c] sm:$0xf] %v2936
      %3001 = vst [vmem:[%s170 + $0x70] sm:$0xf] %v2937
      %3002 = vst [vmem:[%s170 + $0x74] sm:$0xf] %v2938
      %3003 = vst [vmem:[%s170 + $0x78] sm:$0xf] %v2939
      %3004 = vst [vmem:[%s170 + $0x7c] sm:$0xf] %v2940
      %p3005 = scmp.lt.s32.totalorder %s14, 1
      %s3006 = scalar_select %p3005, %s14, 1
      %s3007 = smul.addr %s3006, 32
      %s3008 = smul.addr %s3007, 4
      %s3009 = scalar_lea.vmem %s3, %s3008
      // Predicated region
      $region33: #{resblock_forward.2} parent=31 // pred_check
        %p3010 = pneg %p100
      $region34: #{resblock_forward.2} parent=31 // pred_check_branch
        %3012 = sbr.rel (%p3010) target = $region36
      $region35: #{resblock_forward.2} parent=31 // pred_region
        _
      $region36: #{resblock_forward.2} parent=31 // pred_fallthru
        _
    $region32: #{resblock_forward.2} parent=5 // pred_fallthru
      _
    %p3013 = scmp.le.s32.totalorder 2, %s9
    // Predicated region
    $region37: #{resblock_forward.2} parent=5 // pred_check
      %p3014 = pneg %p3013
    $region38: #{resblock_forward.2} parent=5 // pred_check_branch
      %3016 = sbr.rel (%p3014) target = $region40
    $region39: #{resblock_forward.2} parent=5 // pred_region
      %s3017 = ssub.s32 %s9, 2
      // Predicated region
      $region41: #{resblock_forward.2} parent=39 // pred_check
        %p3018 = pneg %p106
      $region42: #{resblock_forward.2} parent=39 // pred_check_branch
        %3020 = sbr.rel (%p3018) target = $region44
      $region43: #{resblock_forward.2} parent=39 // pred_region
        %p3021 = scmp.lt.s32.totalorder %s15, 1
        %s3022 = scalar_select %p3021, %s15, 1
        %s3023 = smul.addr %s3022, 32
        %s3024 = smul.addr %s3023, 4
        %s3025 = scalar_lea.vmem %s3, %s3024
      $region44: #{resblock_forward.2} parent=39 // pred_fallthru
        _
    $region40: #{resblock_forward.2} parent=5 // pred_fallthru
      _
  $region6: #{resblock_forward.2} parent=0 // loop_footer
    %s13 = sadd.s32 1, %s9
  $region7: #{resblock_forward.2} parent=0 // loop_footer_branch
    %8 = sbr.rel target = $region3
  $region8: #{resblock_forward.2} parent=0 // loop_exit
    _

// kernel: resblock_forward.3
$region0: #{resblock_forward.3}
  #allocation0 [shape = 'u32[]', space=smem, size = 0x4, offset = 0x4, fixed_abs, tag = 'smem constant byte address 0x4 - core index']
  #allocation1 [shape = 'u32[144,128]{1,0:T(1,128)}', space=vmem, size = 0x12000, scoped, tag = 'internal scratch']
  %s0 = inlined_call_operand.vmem [shape: bf16[2,18,18,128], index: 0, kind: input, shape index: {}]
  %s1 = inlined_call_operand.vmem [shape: f32[2,16,16,64], index: 1, kind: input, shape index: {}]
  %s2 = inlined_call_operand.vmem [shape: bf16[9,128,128], index: 2, kind: input, shape index: {}]
  %s3 = inlined_call_operand.vmem [shape: f32[1,128], index: 3, kind: input, shape index: {}]
  %s4 = inlined_call_operand.vmem [shape: bf16[64,128], index: 4, kind: input, shape index: {}]
  %s5 = inlined_call_operand.vmem [shape: f32[1,128], index: 5, kind: input, shape index: {}]
  %s6 = inlined_call_operand.vmem [shape: f32[64,256], index: 6, kind: input, shape index: {}]
  %s7 = inlined_call_operand.hbm [shape: f32[2,64,128], index: 7, kind: output, shape index: {}]
  %s8 = sld [smem:[#allocation0]]
  $region61: #{resblock_forward.3} parent=0
    _
  %s10 = ssub.s32 1, %s8
  %s11 = scalar_select 0, %s10, %s8
  $region1: #{resblock_forward.3} parent=0
    #allocation2 [shape = 'u8[65536]{0}', space=vmem, size = 0x10000, scoped, tag = 'output window, operand 0']
    #allocation3 [shape = 's32[2]{0}', space=sflag, size = 0x8, scoped, tag = 'scoped memory for resblock_forward.3']
    %12 = vsyncpa [#allocation3], 0
    %s13 = scalar_lea.sflag [#allocation3], 1
    %14 = vsyncpa %s13, 0
    loop: start=0, step=1, limit=4
    $region2: #{resblock_forward.3} parent=1 // loop_pre_header
      _
    $region3: #{resblock_forward.3} parent=1 // loop_header
      %s16 = sphi 0, %s20
      %p17 = scmp.ge.s32.totalorder %s16, 4
      %s26 = sphi 0, %s28
      %s29 = sphi 0, %s26
      %s30 = sphi 0, %s29
      %s46 = sphi 0, %s30
      %s52 = sphi 0, %s54
      %s55 = sphi 0, %s52
      %s56 = sphi 0, %s55
      %s72 = sphi 0, %s56
      %s76 = sphi 0, %s76
      %s78 = sphi 0, %s76
      %s79 = sphi 0, %s78
      %s93 = sphi 0, %s79
      %s97 = sphi 0, %s97
      %s99 = sphi 0, %s97
      %s100 = sphi 0, %s99
      %s114 = sphi 0, %s100
      %s118 = sphi 0, %s118
      %s120 = sphi 0, %s118
      %s121 = sphi 0, %s120
      %s135 = sphi 0, %s121
      %s139 = sphi 0, %s139
      %s141 = sphi 0, %s139
      %s142 = sphi 0, %s141
      %s156 = sphi 0, %s142
      %s160 = sphi 0, %s160
      %s162 = sphi 0, %s160
      %s163 = sphi 0, %s162
      %s177 = sphi 0, %s163
      %s183 = sphi 0, %s185
      %s186 = sphi 0, %s183
      %s187 = sphi 0, %s186
      %s203 = sphi 0, %s187
    $region4: #{resblock_forward.3} parent=1 // loop_header_branch
      %19 = sbr.rel (%p17) target = $region8
    $region5: #{resblock_forward.3} parent=1 // loop_body
      %s21 = ssub.s32 %s16, 1
      %s22 = ssub.s32 %s16, 2
      %s23 = sadd.s32 %s16, 1
      %s24 = ssub.s32 %s16, %s23
      %p25 = scmp.eq.s32.totalorder %s24, 0
      %s27 = sadd.s32 %s26, 1
      %s28 = scalar_select %p25, %s26, %s27
      %p31 = pneg %p25
      %p32 = scmp.eq.s32.totalorder %s16, 1
      %p33 = por %p31, %p32
      %p34 = scmp.ne.s32.totalorder %s26, %s29
      %p35 = scmp.eq.s32.totalorder %s16, 0
      %p36 = por %p34, %p35
      %p37 = scmp.ne.s32.totalorder %s26, %s29
      %p38 = scmp.eq.s32.totalorder %s21, 1
      %p39 = por %p37, %p38
      %p40 = scmp.ne.s32.totalorder %s29, %s30
      %p41 = scmp.eq.s32.totalorder %s21, 0
      %p42 = por %p40, %p41
      %p43 = scmp.ne.s32.totalorder %s29, %s30
      %p44 = scmp.eq.s32.totalorder %s22, 1
      %p45 = por %p43, %p44
      %p47 = scmp.ne.s32.totalorder %s30, %s46
      %p48 = scmp.eq.s32.totalorder %s22, 0
      %p49 = por %p47, %p48
      %s50 = ssub.s32 %s16, %s23
      %p51 = scmp.eq.s32.totalorder %s50, 0
      %s53 = sadd.s32 %s52, 1
      %s54 = scalar_select %p51, %s52, %s53
      %p57 = pneg %p51
      %p58 = scmp.eq.s32.totalorder %s16, 1
      %p59 = por %p57, %p58
      %p60 = scmp.ne.s32.totalorder %s52, %s55
      %p61 = scmp.eq.s32.totalorder %s16, 0
      %p62 = por %p60, %p61
      %p63 = scmp.ne.s32.totalorder %s52, %s55
      %p64 = scmp.eq.s32.totalorder %s21, 1
      %p65 = por %p63, %p64
      %p66 = scmp.ne.s32.totalorder %s55, %s56
      %p67 = scmp.eq.s32.totalorder %s21, 0
      %p68 = por %p66, %p67
      %p69 = scmp.ne.s32.totalorder %s55, %s56
      %p70 = scmp.eq.s32.totalorder %s22, 1
      %p71 = por %p69, %p70
      %p73 = scmp.ne.s32.totalorder %s56, %s72
      %p74 = scmp.eq.s32.totalorder %s22, 0
      %p75 = por %p73, %p74
      %s77 = sadd.s32 %s76, 1
      %p80 = scmp.eq.s32.totalorder %s16, 1
      %p81 = scmp.ne.s32.totalorder %s76, %s78
      %p82 = scmp.eq.s32.totalorder %s16, 0
      %p83 = por %p81, %p82
      %p84 = scmp.ne.s32.totalorder %s76, %s78
      %p85 = scmp.eq.s32.totalorder %s21, 1
      %p86 = por %p84, %p85
      %p87 = scmp.ne.s32.totalorder %s78, %s79
      %p88 = scmp.eq.s32.totalorder %s21, 0
      %p89 = por %p87, %p88
      %p90 = scmp.ne.s32.totalorder %s78, %s79
      %p91 = scmp.eq.s32.totalorder %s22, 1
      %p92 = por %p90, %p91
      %p94 = scmp.ne.s32.totalorder %s79, %s93
      %p95 = scmp.eq.s32.totalorder %s22, 0
      %p96 = por %p94, %p95
      %s98 = sadd.s32 %s97, 1
      %p101 = scmp.eq.s32.totalorder %s16, 1
      %p102 = scmp.ne.s32.totalorder %s97, %s99
      %p103 = scmp.eq.s32.totalorder %s16, 0
      %p104 = por %p102, %p103
      %p105 = scmp.ne.s32.totalorder %s97, %s99
      %p106 = scmp.eq.s32.totalorder %s21, 1
      %p107 = por %p105, %p106
      %p108 = scmp.ne.s32.totalorder %s99, %s100
      %p109 = scmp.eq.s32.totalorder %s21, 0
      %p110 = por %p108, %p109
      %p111 = scmp.ne.s32.totalorder %s99, %s100
      %p112 = scmp.eq.s32.totalorder %s22, 1
      %p113 = por %p111, %p112
      %p115 = scmp.ne.s32.totalorder %s100, %s114
      %p116 = scmp.eq.s32.totalorder %s22, 0
      %p117 = por %p115, %p116
      %s119 = sadd.s32 %s118, 1
      %p122 = scmp.eq.s32.totalorder %s16, 1
      %p123 = scmp.ne.s32.totalorder %s118, %s120
      %p124 = scmp.eq.s32.totalorder %s16, 0
      %p125 = por %p123, %p124
      %p126 = scmp.ne.s32.totalorder %s118, %s120
      %p127 = scmp.eq.s32.totalorder %s21, 1
      %p128 = por %p126, %p127
      %p129 = scmp.ne.s32.totalorder %s120, %s121
      %p130 = scmp.eq.s32.totalorder %s21, 0
      %p131 = por %p129, %p130
      %p132 = scmp.ne.s32.totalorder %s120, %s121
      %p133 = scmp.eq.s32.totalorder %s22, 1
      %p134 = por %p132, %p133
      %p136 = scmp.ne.s32.totalorder %s121, %s135
      %p137 = scmp.eq.s32.totalorder %s22, 0
      %p138 = por %p136, %p137
      %s140 = sadd.s32 %s139, 1
      %p143 = scmp.eq.s32.totalorder %s16, 1
      %p144 = scmp.ne.s32.totalorder %s139, %s141
      %p145 = scmp.eq.s32.totalorder %s16, 0
      %p146 = por %p144, %p145
      %p147 = scmp.ne.s32.totalorder %s139, %s141
      %p148 = scmp.eq.s32.totalorder %s21, 1
      %p149 = por %p147, %p148
      %p150 = scmp.ne.s32.totalorder %s141, %s142
      %p151 = scmp.eq.s32.totalorder %s21, 0
      %p152 = por %p150, %p151
      %p153 = scmp.ne.s32.totalorder %s141, %s142
      %p154 = scmp.eq.s32.totalorder %s22, 1
      %p155 = por %p153, %p154
      %p157 = scmp.ne.s32.totalorder %s142, %s156
      %p158 = scmp.eq.s32.totalorder %s22, 0
      %p159 = por %p157, %p158
      %s161 = sadd.s32 %s160, 1
      %p164 = scmp.eq.s32.totalorder %s16, 1
      %p165 = scmp.ne.s32.totalorder %s160, %s162
      %p166 = scmp.eq.s32.totalorder %s16, 0
      %p167 = por %p165, %p166
      %p168 = scmp.ne.s32.totalorder %s160, %s162
      %p169 = scmp.eq.s32.totalorder %s21, 1
      %p170 = por %p168, %p169
      %p171 = scmp.ne.s32.totalorder %s162, %s163
      %p172 = scmp.eq.s32.totalorder %s21, 0
      %p173 = por %p171, %p172
      %p174 = scmp.ne.s32.totalorder %s162, %s163
      %p175 = scmp.eq.s32.totalorder %s22, 1
      %p176 = por %p174, %p175
      %p178 = scmp.ne.s32.totalorder %s163, %s177
      %p179 = scmp.eq.s32.totalorder %s22, 0
      %p180 = por %p178, %p179
      %s181 = ssub.s32 %s16, %s23
      %p182 = scmp.eq.s32.totalorder %s181, 0
      %s184 = sadd.s32 %s183, 1
      %s185 = scalar_select %p182, %s183, %s184
      %p188 = pneg %p182
      %p189 = scmp.eq.s32.totalorder %s16, 1
      %p190 = por %p188, %p189
      %p191 = scmp.ne.s32.totalorder %s183, %s186
      %p192 = scmp.eq.s32.totalorder %s16, 0
      %p193 = por %p191, %p192
      %p194 = scmp.ne.s32.totalorder %s183, %s186
      %p195 = scmp.eq.s32.totalorder %s21, 1
      %p196 = por %p194, %p195
      %p197 = scmp.ne.s32.totalorder %s186, %s187
      %p198 = scmp.eq.s32.totalorder %s21, 0
      %p199 = por %p197, %p198
      %p200 = scmp.ne.s32.totalorder %s186, %s187
      %p201 = scmp.eq.s32.totalorder %s22, 1
      %p202 = por %p200, %p201
      %p204 = scmp.ne.s32.totalorder %s187, %s203
      %p205 = scmp.eq.s32.totalorder %s22, 0
      %p206 = por %p204, %p205
      %p207 = scmp.le.s32.totalorder 1, %s16
      %p208 = scmp.lt.s32.totalorder %s16, 3
      %p209 = pnand %p207, %p208
      %p210 = pneg %p209
      // Predicated region
      $region9: #{resblock_forward.3} parent=5 // pred_check
        _
      $region10: #{resblock_forward.3} parent=5 // pred_check_branch
        %212 = sbr.rel (%p209) target = $region12
      $region11: #{resblock_forward.3} parent=5 // pred_region
        %s213 = ssub.s32 %s16, 1
        // Predicated region
        $region13: #{resblock_forward.3} parent=11 // pred_check
          %p214 = pneg %p89
        $region14: #{resblock_forward.3} parent=11 // pred_check_branch
          %216 = sbr.rel (%p214) target = $region16
        $region15: #{resblock_forward.3} parent=11 // pred_region
          _
        $region16: #{resblock_forward.3} parent=11 // pred_fallthru
          _
        // Predicated region
        $region17: #{resblock_forward.3} parent=11 // pred_check
          %p217 = pneg %p110
        $region18: #{resblock_forward.3} parent=11 // pred_check_branch
          %219 = sbr.rel (%p217) target = $region20
        $region19: #{resblock_forward.3} parent=11 // pred_region
          _
        $region20: #{resblock_forward.3} parent=11 // pred_fallthru
          _
        // Predicated region
        $region21: #{resblock_forward.3} parent=11 // pred_check
          %p220 = pneg %p131
        $region22: #{resblock_forward.3} parent=11 // pred_check_branch
          %222 = sbr.rel (%p220) target = $region24
        $region23: #{resblock_forward.3} parent=11 // pred_region
          _
        $region24: #{resblock_forward.3} parent=11 // pred_fallthru
          _
        // Predicated region
        $region25: #{resblock_forward.3} parent=11 // pred_check
          %p223 = pneg %p152
        $region26: #{resblock_forward.3} parent=11 // pred_check_branch
          %225 = sbr.rel (%p223) target = $region28
        $region27: #{resblock_forward.3} parent=11 // pred_region
          _
        $region28: #{resblock_forward.3} parent=11 // pred_fallthru
          _
        // Predicated region
        $region29: #{resblock_forward.3} parent=11 // pred_check
          %p226 = pneg %p173
        $region30: #{resblock_forward.3} parent=11 // pred_check_branch
          %228 = sbr.rel (%p226) target = $region32
        $region31: #{resblock_forward.3} parent=11 // pred_region
          _
        $region32: #{resblock_forward.3} parent=11 // pred_fallthru
          _
      $region12: #{resblock_forward.3} parent=5 // pred_fallthru
        _
      %p229 = scmp.lt.s32.totalorder %s16, 2
      // Predicated region
      $region33: #{resblock_forward.3} parent=5 // pred_check
        %p230 = pneg %p229
      $region34: #{resblock_forward.3} parent=5 // pred_check_branch
        %232 = sbr.rel (%p230) target = $region36
      $region35: #{resblock_forward.3} parent=5 // pred_region
        // Predicated region
        $region37: #{resblock_forward.3} parent=35 // pred_check
          %p233 = pneg %p36
        $region38: #{resblock_forward.3} parent=35 // pred_check_branch
          %235 = sbr.rel (%p233) target = $region40
        $region39: #{resblock_forward.3} parent=35 // pred_region
          %p236 = scmp.lt.s32.totalorder %s16, 1
          %s237 = scalar_select %p236, %s16, 1
          %s238 = smul.addr %s237, 54
          %s239 = smul.addr %s238, 4
          %s240 = scalar_lea.vmem %s0, %s239
        $region40: #{resblock_forward.3} parent=35 // pred_fallthru
          _
        // Predicated region
        $region41: #{resblock_forward.3} parent=35 // pred_check
          %p241 = pneg %p62
        $region42: #{resblock_forward.3} parent=35 // pred_check_branch
          %243 = sbr.rel (%p241) target = $region44
        $region43: #{resblock_forward.3} parent=35 // pred_region
          %p244 = scmp.lt.s32.totalorder %s16, 1
          %s245 = scalar_select %p244, %s16, 1
          %s246 = smul.addr %s245, 32
          %s247 = smul.addr %s246, 8
          %s248 = scalar_lea.vmem %s1, %s247
        $region44: #{resblock_forward.3} parent=35 // pred_fallthru
          _
      $region36: #{resblock_forward.3} parent=5 // pred_fallthru
        _
      %p249 = scmp.le.s32.totalorder 1, %s16
      %p250 = scmp.lt.s32.totalorder %s16, 3
      %p251 = pnand %p249, %p250
      %p252 = pneg %p251
      // Predicated region
      $region45: #{resblock_forward.3} parent=5 // pred_check
        _
      $region46: #{resblock_forward.3} parent=5 // pred_check_branch
        %254 = sbr.rel (%p251) target = $region48
      $region47: #{resblock_forward.3} parent=5 // pred_region
        %s255 = ssub.s32 %s16, 1
        %p256 = scmp.lt.s32.totalorder %s21, 1
        %s257 = scalar_select %p256, %s21, 1
        %s258 = smul.addr %s257, 54
        %s259 = smul.addr %s258, 4
        %s260 = scalar_lea.vmem %s0, %s259
        %p261 = pneg %p42
        %p262 = pneg %p39
        %p263 = scmp.lt.s32.totalorder %s21, 1
        %s264 = scalar_select %p263, %s21, 1
        %s265 = smul.addr %s264, 32
        %s266 = smul.addr %s265, 8
        %s267 = scalar_lea.vmem %s1, %s266
        %p268 = pneg %p68
        %p269 = pneg %p65
        %p270 = pneg %p89
        %p271 = pneg %p86
        %p272 = pneg %p110
        %p273 = pneg %p107
        %p274 = pneg %p131
        %p275 = pneg %p128
        %p276 = pneg %p152
        %p277 = pneg %p149
        %p278 = pneg %p173
        %p279 = pneg %p170
        %p280 = pneg %p199
        %p281 = pneg %p196
        %s282 = sand.u32 %s186, 1
        %s283 = scalar_lea.sflag [#allocation3], %s282
        %s284 = sand.u32 %s186, 1
        %s285 = smul.addr %s284, 64
        %s286 = scalar_lea.vmem [#allocation2], %s285
        %p287 = scmp.lt.s32.totalorder %s21, 1
        %s288 = scalar_select %p287, %s21, 1
        %s289 = smul.addr %s288, 54
        %s290 = smul.addr %s289, 4
        %s291 = scalar_lea.vmem %s0, %s290
        %p292 = scmp.lt.s32.totalorder %s21, 1
        %s293 = scalar_select %p292, %s21, 1
        %s294 = smul.addr %s293, 32
        %s295 = smul.addr %s294, 8
        %s296 = scalar_lea.vmem %s1, %s295
        %v298 = vld [vmem:[%s291] sm:$0xf]
        %v299 = vld [vmem:[%s291 + $0x4] sm:$0xf]
        %v300 = vld [vmem:[%s291 + $0x8] sm:$0x1]
        %v301 = vld [vmem:[%s291 + $0xc] sm:$0xf]
        %v302 = vld [vmem:[%s291 + $0x10] sm:$0xf]
        %v303 = vld [vmem:[%s291 + $0x14] sm:$0x1]
        %v304 = vld [vmem:[%s291 + $0x18] sm:$0xf]
        %v305 = vld [vmem:[%s291 + $0x1c] sm:$0xf]
        %v306 = vld [vmem:[%s291 + $0x20] sm:$0x1]
        %v307 = vld [vmem:[%s291 + $0x24] sm:$0xf]
        %v308 = vld [vmem:[%s291 + $0x28] sm:$0xf]
        %v309 = vld [vmem:[%s291 + $0x2c] sm:$0x1]
        %v310 = vld [vmem:[%s291 + $0x30] sm:$0xf]
        %v311 = vld [vmem:[%s291 + $0x34] sm:$0xf]
        %v312 = vld [vmem:[%s291 + $0x38] sm:$0x1]
        %v313 = vld [vmem:[%s291 + $0x3c] sm:$0xf]
        %v314 = vld [vmem:[%s291 + $0x40] sm:$0xf]
        %v315 = vld [vmem:[%s291 + $0x44] sm:$0x1]
        %v316 = vld [vmem:[%s291 + $0x48] sm:$0xf]
        %v317 = vld [vmem:[%s291 + $0x4c] sm:$0xf]
        %v318 = vld [vmem:[%s291 + $0x50] sm:$0x1]
        %v319 = vld [vmem:[%s291 + $0x54] sm:$0xf]
        %v320 = vld [vmem:[%s291 + $0x58] sm:$0xf]
        %v321 = vld [vmem:[%s291 + $0x5c] sm:$0x1]
        %v322 = vld [vmem:[%s291 + $0x60] sm:$0xf]
        %v323 = vld [vmem:[%s291 + $0x64] sm:$0xf]
        %v324 = vld [vmem:[%s291 + $0x68] sm:$0x1]
        %v325 = vld [vmem:[%s291 + $0x6c] sm:$0xf]
        %v326 = vld [vmem:[%s291 + $0x70] sm:$0xf]
        %v327 = vld [vmem:[%s291 + $0x74] sm:$0x1]
        %v328 = vld [vmem:[%s291 + $0x78] sm:$0xf]
        %v329 = vld [vmem:[%s291 + $0x7c] sm:$0xf]
        %v330 = vld [vmem:[%s291 + $0x80] sm:$0x1]
        %v331 = vld [vmem:[%s291 + $0x84] sm:$0xf]
        %v332 = vld [vmem:[%s291 + $0x88] sm:$0xf]
        %v333 = vld [vmem:[%s291 + $0x8c] sm:$0x1]
        %v334 = vld [vmem:[%s291 + $0x90] sm:$0xf]
        %v335 = vld [vmem:[%s291 + $0x94] sm:$0xf]
        %v336 = vld [vmem:[%s291 + $0x98] sm:$0x1]
        %v337 = vld [vmem:[%s291 + $0x9c] sm:$0xf]
        %v338 = vld [vmem:[%s291 + $0xa0] sm:$0xf]
        %v339 = vld [vmem:[%s291 + $0xa4] sm:$0x1]
        %v340 = vld [vmem:[%s291 + $0xa8] sm:$0xf]
        %v341 = vld [vmem:[%s291 + $0xac] sm:$0xf]
        %v342 = vld [vmem:[%s291 + $0xb0] sm:$0x1]
        %v343 = vld [vmem:[%s291 + $0xb4] sm:$0xf]
        %v344 = vld [vmem:[%s291 + $0xb8] sm:$0xf]
        %v345 = vld [vmem:[%s291 + $0xbc] sm:$0x1]
        %v346 = vld [vmem:[%s291 + $0xc0] sm:$0xf]
        %v347 = vld [vmem:[%s291 + $0xc4] sm:$0xf]
        %v348 = vld [vmem:[%s291 + $0xc8] sm:$0x1]
        %v349 = vld [vmem:[%s291 + $0xcc] sm:$0xf]
        %v350 = vld [vmem:[%s291 + $0xd0] sm:$0xf]
        %v351 = vld [vmem:[%s291 + $0xd4] sm:$0x1]
        %v352 = vunpack.c.l.bf16 %v298
        %v353 = vunpack.c.l.bf16 %v299
        %v354 = vunpack.c.l.bf16 %v300
        %v355 = vunpack.c.l.bf16 %v301
        %v356 = vunpack.c.l.bf16 %v302
        %v357 = vunpack.c.l.bf16 %v303
        %v358 = vunpack.c.l.bf16 %v304
        %v359 = vunpack.c.l.bf16 %v305
        %v360 = vunpack.c.l.bf16 %v306
        %v361 = vunpack.c.l.bf16 %v307
        %v362 = vunpack.c.l.bf16 %v308
        %v363 = vunpack.c.l.bf16 %v309
        %v364 = vunpack.c.l.bf16 %v310
        %v365 = vunpack.c.l.bf16 %v311
        %v366 = vunpack.c.l.bf16 %v312
        %v367 = vunpack.c.l.bf16 %v313
        %v368 = vunpack.c.l.bf16 %v314
        %v369 = vunpack.c.l.bf16 %v315
        %v370 = vunpack.c.l.bf16 %v316
        %v371 = vunpack.c.l.bf16 %v317
        %v372 = vunpack.c.l.bf16 %v318
        %v373 = vunpack.c.l.bf16 %v319
        %v374 = vunpack.c.l.bf16 %v320
        %v375 = vunpack.c.l.bf16 %v321
        %v376 = vunpack.c.l.bf16 %v322
        %v377 = vunpack.c.l.bf16 %v323
        %v378 = vunpack.c.l.bf16 %v324
        %v379 = vunpack.c.l.bf16 %v325
        %v380 = vunpack.c.l.bf16 %v326
        %v381 = vunpack.c.l.bf16 %v327
        %v382 = vunpack.c.l.bf16 %v328
        %v383 = vunpack.c.l.bf16 %v329
        %v384 = vunpack.c.l.bf16 %v330
        %v385 = vunpack.c.l.bf16 %v331
        %v386 = vunpack.c.l.bf16 %v332
        %v387 = vunpack.c.l.bf16 %v333
        %v388 = vunpack.c.l.bf16 %v334
        %v389 = vunpack.c.l.bf16 %v335
        %v390 = vunpack.c.l.bf16 %v336
        %v391 = vunpack.c.l.bf16 %v337
        %v392 = vunpack.c.l.bf16 %v338
        %v393 = vunpack.c.l.bf16 %v339
        %v394 = vunpack.c.l.bf16 %v340
        %v395 = vunpack.c.l.bf16 %v341
        %v396 = vunpack.c.l.bf16 %v342
        %v397 = vunpack.c.l.bf16 %v343
        %v398 = vunpack.c.l.bf16 %v344
        %v399 = vunpack.c.l.bf16 %v345
        %v400 = vunpack.c.l.bf16 %v346
        %v401 = vunpack.c.l.bf16 %v347
        %v402 = vunpack.c.l.bf16 %v348
        %v403 = vunpack.c.l.bf16 %v349
        %v404 = vunpack.c.l.bf16 %v350
        %v405 = vunpack.c.l.bf16 %v351
        %v406 = vpack.c.bf16 %v353, %v352
        %v407 = vpack.c.bf16 %v356, %v355
        %v408 = vpack.c.bf16 %v359, %v358
        %v409 = vpack.c.bf16 %v362, %v361
        %v410 = vpack.c.bf16 %v365, %v364
        %v411 = vpack.c.bf16 %v368, %v367
        %v412 = vpack.c.bf16 %v371, %v370
        %v413 = vpack.c.bf16 %v374, %v373
        %v414 = vpack.c.bf16 %v377, %v376
        %v415 = vpack.c.bf16 %v380, %v379
        %v416 = vpack.c.bf16 %v383, %v382
        %v417 = vpack.c.bf16 %v386, %v385
        %v418 = vpack.c.bf16 %v389, %v388
        %v419 = vpack.c.bf16 %v392, %v391
        %v420 = vpack.c.bf16 %v395, %v394
        %v421 = vpack.c.bf16 %v398, %v397
        %v422 = vld [vmem:[%s2] sm:$0xf]
        %v423 = vld [vmem:[%s2 + $0x4] sm:$0xf]
        %v424 = vld [vmem:[%s2 + $0x8] sm:$0xf]
        %v425 = vld [vmem:[%s2 + $0xc] sm:$0xf]
        %v426 = vld [vmem:[%s2 + $0x10] sm:$0xf]
        %v427 = vld [vmem:[%s2 + $0x14] sm:$0xf]
        %v428 = vld [vmem:[%s2 + $0x18] sm:$0xf]
        %v429 = vld [vmem:[%s2 + $0x1c] sm:$0xf]
        %v430 = vld [vmem:[%s2 + $0x20] sm:$0xf]
        %v431 = vld [vmem:[%s2 + $0x24] sm:$0xf]
        %v432 = vld [vmem:[%s2 + $0x28] sm:$0xf]
        %v433 = vld [vmem:[%s2 + $0x2c] sm:$0xf]
        %v434 = vld [vmem:[%s2 + $0x30] sm:$0xf]
        %v435 = vld [vmem:[%s2 + $0x34] sm:$0xf]
        %v436 = vld [vmem:[%s2 + $0x38] sm:$0xf]
        %v437 = vld [vmem:[%s2 + $0x3c] sm:$0xf]
        %vm486 = vcmask 1046528
        %v487 = vrot.slane %v352, 1
        %v488 = vrot.slane %v353, 1
        %v489 = vsel %vm486, %v487, %v488
        %v490 = vrot.slane %v354, 1
        %v491 = vsel %vm486, %v488, %v490
        %v492 = vrot.slane %v355, 1
        %v493 = vrot.slane %v356, 1
        %v494 = vsel %vm486, %v492, %v493
        %v495 = vrot.slane %v357, 1
        %v496 = vsel %vm486, %v493, %v495
        %v497 = vrot.slane %v358, 1
        %v498 = vrot.slane %v359, 1
        %v499 = vsel %vm486, %v497, %v498
        %v500 = vrot.slane %v360, 1
        %v501 = vsel %vm486, %v498, %v500
        %v502 = vrot.slane %v361, 1
        %v503 = vrot.slane %v362, 1
        %v504 = vsel %vm486, %v502, %v503
        %v505 = vrot.slane %v363, 1
        %v506 = vsel %vm486, %v503, %v505
        %v507 = vrot.slane %v364, 1
        %v508 = vrot.slane %v365, 1
        %v509 = vsel %vm486, %v507, %v508
        %v510 = vrot.slane %v366, 1
        %v511 = vsel %vm486, %v508, %v510
        %v512 = vrot.slane %v367, 1
        %v513 = vrot.slane %v368, 1
        %v514 = vsel %vm486, %v512, %v513
        %v515 = vrot.slane %v369, 1
        %v516 = vsel %vm486, %v513, %v515
        %v517 = vrot.slane %v370, 1
        %v518 = vrot.slane %v371, 1
        %v519 = vsel %vm486, %v517, %v518
        %v520 = vrot.slane %v372, 1
        %v521 = vsel %vm486, %v518, %v520
        %v522 = vrot.slane %v373, 1
        %v523 = vrot.slane %v374, 1
        %v524 = vsel %vm486, %v522, %v523
        %v525 = vrot.slane %v375, 1
        %v526 = vsel %vm486, %v523, %v525
        %v527 = vrot.slane %v376, 1
        %v528 = vrot.slane %v377, 1
        %v529 = vsel %vm486, %v527, %v528
        %v530 = vrot.slane %v378, 1
        %v531 = vsel %vm486, %v528, %v530
        %v532 = vrot.slane %v379, 1
        %v533 = vrot.slane %v380, 1
        %v534 = vsel %vm486, %v532, %v533
        %v535 = vrot.slane %v381, 1
        %v536 = vsel %vm486, %v533, %v535
        %v537 = vrot.slane %v382, 1
        %v538 = vrot.slane %v383, 1
        %v539 = vsel %vm486, %v537, %v538
        %v540 = vrot.slane %v384, 1
        %v541 = vsel %vm486, %v538, %v540
        %v542 = vrot.slane %v385, 1
        %v543 = vrot.slane %v386, 1
        %v544 = vsel %vm486, %v542, %v543
        %v545 = vrot.slane %v387, 1
        %v546 = vsel %vm486, %v543, %v545
        %v547 = vrot.slane %v388, 1
        %v548 = vrot.slane %v389, 1
        %v549 = vsel %vm486, %v547, %v548
        %v550 = vrot.slane %v390, 1
        %v551 = vsel %vm486, %v548, %v550
        %v552 = vrot.slane %v391, 1
        %v553 = vrot.slane %v392, 1
        %v554 = vsel %vm486, %v552, %v553
        %v555 = vrot.slane %v393, 1
        %v556 = vsel %vm486, %v553, %v555
        %v557 = vrot.slane %v394, 1
        %v558 = vrot.slane %v395, 1
        %v559 = vsel %vm486, %v557, %v558
        %v560 = vrot.slane %v396, 1
        %v561 = vsel %vm486, %v558, %v560
        %v562 = vrot.slane %v397, 1
        %v563 = vrot.slane %v398, 1
        %v564 = vsel %vm486, %v562, %v563
        %v565 = vrot.slane %v399, 1
        %v566 = vsel %vm486, %v563, %v565
        %v599 = vpack.c.bf16 %v491, %v489
        %v600 = vpack.c.bf16 %v496, %v494
        %v601 = vpack.c.bf16 %v501, %v499
        %v602 = vpack.c.bf16 %v506, %v504
        %v603 = vpack.c.bf16 %v511, %v509
        %v604 = vpack.c.bf16 %v516, %v514
        %v605 = vpack.c.bf16 %v521, %v519
        %v606 = vpack.c.bf16 %v526, %v524
        %v607 = vpack.c.bf16 %v531, %v529
        %v608 = vpack.c.bf16 %v536, %v534
        %v609 = vpack.c.bf16 %v541, %v539
        %v610 = vpack.c.bf16 %v546, %v544
        %v611 = vpack.c.bf16 %v551, %v549
        %v612 = vpack.c.bf16 %v556, %v554
        %v613 = vpack.c.bf16 %v561, %v559
        %v614 = vpack.c.bf16 %v566, %v564
        %s615 = scalar_lea.vmem %s2, 64
        %v616 = vld [vmem:[%s615] sm:$0xf]
        %v617 = vld [vmem:[%s615 + $0x4] sm:$0xf]
        %v618 = vld [vmem:[%s615 + $0x8] sm:$0xf]
        %v619 = vld [vmem:[%s615 + $0xc] sm:$0xf]
        %v620 = vld [vmem:[%s615 + $0x10] sm:$0xf]
        %v621 = vld [vmem:[%s615 + $0x14] sm:$0xf]
        %v622 = vld [vmem:[%s615 + $0x18] sm:$0xf]
        %v623 = vld [vmem:[%s615 + $0x1c] sm:$0xf]
        %v624 = vld [vmem:[%s615 + $0x20] sm:$0xf]
        %v625 = vld [vmem:[%s615 + $0x24] sm:$0xf]
        %v626 = vld [vmem:[%s615 + $0x28] sm:$0xf]
        %v627 = vld [vmem:[%s615 + $0x2c] sm:$0xf]
        %v628 = vld [vmem:[%s615 + $0x30] sm:$0xf]
        %v629 = vld [vmem:[%s615 + $0x34] sm:$0xf]
        %v630 = vld [vmem:[%s615 + $0x38] sm:$0xf]
        %v631 = vld [vmem:[%s615 + $0x3c] sm:$0xf]
        %v648 = vunpack.c.l.b16 %v616
        %v649 = vunpack.c.l.b16 %v617
        %v650 = vunpack.c.l.b16 %v618
        %v651 = vunpack.c.l.b16 %v619
        %v652 = vunpack.c.l.b16 %v620
        %v653 = vunpack.c.l.b16 %v621
        %v654 = vunpack.c.l.b16 %v622
        %v655 = vunpack.c.l.b16 %v623
        %v656 = vunpack.c.l.b16 %v624
        %v657 = vunpack.c.l.b16 %v625
        %v658 = vunpack.c.l.b16 %v626
        %v659 = vunpack.c.l.b16 %v627
        %v660 = vunpack.c.l.b16 %v628
        %v661 = vunpack.c.l.b16 %v629
        %v662 = vunpack.c.l.b16 %v630
        %v663 = vunpack.c.l.b16 %v631
        %v664 = vpack.c.b16 %v649, %v648
        %v665 = vpack.c.b16 %v651, %v650
        %v666 = vpack.c.b16 %v653, %v652
        %v667 = vpack.c.b16 %v655, %v654
        %v668 = vpack.c.b16 %v657, %v656
        %v669 = vpack.c.b16 %v659, %v658
        %v670 = vpack.c.b16 %v661, %v660
        %v671 = vpack.c.b16 %v663, %v662
        %680 = vmatprep.subr.bf16.mxu0 0
        %681 = vmatpush1.bf16.msra.mxu0 %v664
        %682 = vmatprep.subr.bf16.mxu0 0
        %683 = vmatpush1.bf16.msra.mxu0 %v665
        %684 = vmatprep.subr.bf16.mxu0 0
        %685 = vmatpush1.bf16.msra.mxu0 %v666
        %686 = vmatprep.subr.bf16.mxu0 0
        %687 = vmatpush1.bf16.msra.mxu0 %v667
        %688 = vmatprep.subr.bf16.mxu0 0
        %689 = vmatpush1.bf16.msra.mxu0 %v668
        %690 = vmatprep.subr.bf16.mxu0 0
        %691 = vmatpush1.bf16.msra.mxu0 %v669
        %692 = vmatprep.subr.bf16.mxu0 0
        %693 = vmatpush1.bf16.msra.mxu0 %v670
        %694 = vmatprep.subr.bf16.mxu0 0
        %695 = vmatpush1.bf16.msra.mxu0 %v671
        %696 = vmatprep.subr.bf16.mxu0 0
        %697 = vmatpush1.bf16.msra.mxu0 0
        %698 = vmatprep.subr.bf16.mxu0 0
        %699 = vmatpush1.bf16.msra.mxu0 0
        %700 = vmatprep.subr.bf16.mxu0 0
        %701 = vmatpush1.bf16.msra.mxu0 0
        %702 = vmatprep.subr.bf16.mxu0 0
        %703 = vmatpush1.bf16.msra.mxu0 0
        %704 = vmatprep.subr.bf16.mxu0 0
        %705 = vmatpush1.bf16.msra.mxu0 0
        %706 = vmatprep.subr.bf16.mxu0 0
        %707 = vmatpush1.bf16.msra.mxu0 0
        %708 = vmatprep.subr.bf16.mxu0 0
        %709 = vmatpush1.bf16.msra.mxu0 0
        %710 = vmatprep.subr.bf16.mxu0 0
        %711 = vmatpush1.bf16.msra.mxu0 0
        %712 = vmatprep.mubr.bf16.mxu0 0
        %713 = vmatmul.mubr.bf16.gmra.mrb[0].mxu0 %v599
        %v714 = vpop.f32.mrb[0].mxu0
        %v715 = vadd.f32 0.0, %v714
        %v716 = vpop.f32.mrb[0].mxu0
        %v717 = vpop.f32.mrb[0].mxu0
        %v718 = vadd.f32 0.0, %v717
        %v719 = vpop.f32.mrb[0].mxu0
        %720 = vmatprep.mubr.bf16.mxu0 0
        %721 = vmatmul.mubr.bf16.gmra.mrb[0].mxu0 %v600
        %v722 = vpop.f32.mrb[0].mxu0
        %v723 = vadd.f32 0.0, %v722
        %v724 = vpop.f32.mrb[0].mxu0
        %v725 = vpop.f32.mrb[0].mxu0
        %v726 = vadd.f32 0.0, %v725
        %v727 = vpop.f32.mrb[0].mxu0
        %728 = vmatprep.mubr.bf16.mxu0 0
        %729 = vmatmul.mubr.bf16.gmra.mrb[0].mxu0 %v601
        %v730 = vpop.f32.mrb[0].mxu0
        %v731 = vadd.f32 0.0, %v730
        %v732 = vpop.f32.mrb[0].mxu0
        %v733 = vpop.f32.mrb[0].mxu0
        %v734 = vadd.f32 0.0, %v733
        %v735 = vpop.f32.mrb[0].mxu0
        %736 = vmatprep.mubr.bf16.mxu0 0
        %737 = vmatmul.mubr.bf16.gmra.mrb[0].mxu0 %v602
        %v738 = vpop.f32.mrb[0].mxu0
        %v739 = vadd.f32 0.0, %v738
        %v740 = vpop.f32.mrb[0].mxu0
        %v741 = vpop.f32.mrb[0].mxu0
        %v742 = vadd.f32 0.0, %v741
        %v743 = vpop.f32.mrb[0].mxu0
        %744 = vmatprep.mubr.bf16.mxu0 0
        %745 = vmatmul.mubr.bf16.gmra.mrb[0].mxu0 %v603
        %v746 = vpop.f32.mrb[0].mxu0
        %v747 = vadd.f32 0.0, %v746
        %v748 = vpop.f32.mrb[0].mxu0
        %v749 = vpop.f32.mrb[0].mxu0
        %v750 = vadd.f32 0.0, %v749
        %v751 = vpop.f32.mrb[0].mxu0
        %752 = vmatprep.mubr.bf16.mxu0 0
        %753 = vmatmul.mubr.bf16.gmra.mrb[0].mxu0 %v604
        %v754 = vpop.f32.mrb[0].mxu0
        %v755 = vadd.f32 0.0, %v754
        %v756 = vpop.f32.mrb[0].mxu0
        %v757 = vpop.f32.mrb[0].mxu0
        %v758 = vadd.f32 0.0, %v757
        %v759 = vpop.f32.mrb[0].mxu0
        %760 = vmatprep.mubr.bf16.mxu0 0
        %761 = vmatmul.mubr.bf16.gmra.mrb[0].mxu0 %v605
        %v762 = vpop.f32.mrb[0].mxu0
        %v763 = vadd.f32 0.0, %v762
        %v764 = vpop.f32.mrb[0].mxu0
        %v765 = vpop.f32.mrb[0].mxu0
        %v766 = vadd.f32 0.0, %v765
        %v767 = vpop.f32.mrb[0].mxu0
        %768 = vmatprep.mubr.bf16.mxu0 0
        %769 = vmatmul.mubr.bf16.gmra.mrb[0].mxu0 %v606
        %v770 = vpop.f32.mrb[0].mxu0
        %v771 = vadd.f32 0.0, %v770
        %v772 = vpop.f32.mrb[0].mxu0
        %v773 = vpop.f32.mrb[0].mxu0
        %v774 = vadd.f32 0.0, %v773
        %v775 = vpop.f32.mrb[0].mxu0
        %776 = vmatprep.mubr.bf16.mxu0 0
        %777 = vmatmul.mubr.bf16.gmra.mrb[0].mxu0 %v607
        %v778 = vpop.f32.mrb[0].mxu0
        %v779 = vadd.f32 0.0, %v778
        %v780 = vpop.f32.mrb[0].mxu0
        %v781 = vpop.f32.mrb[0].mxu0
        %v782 = vadd.f32 0.0, %v781
        %v783 = vpop.f32.mrb[0].mxu0
        %784 = vmatprep.mubr.bf16.mxu0 0
        %785 = vmatmul.mubr.bf16.gmra.mrb[0].mxu0 %v608
        %v786 = vpop.f32.mrb[0].mxu0
        %v787 = vadd.f32 0.0, %v786
        %v788 = vpop.f32.mrb[0].mxu0
        %v789 = vpop.f32.mrb[0].mxu0
        %v790 = vadd.f32 0.0, %v789
        %v791 = vpop.f32.mrb[0].mxu0
        %792 = vmatprep.mubr.bf16.mxu0 0
        %793 = vmatmul.mubr.bf16.gmra.mrb[0].mxu0 %v609
        %v794 = vpop.f32.mrb[0].mxu0
        %v795 = vadd.f32 0.0, %v794
        %v796 = vpop.f32.mrb[0].mxu0
        %v797 = vpop.f32.mrb[0].mxu0
        %v798 = vadd.f32 0.0, %v797
        %v799 = vpop.f32.mrb[0].mxu0
        %800 = vmatprep.mubr.bf16.mxu0 0
        %801 = vmatmul.mubr.bf16.gmra.mrb[0].mxu0 %v610
        %v802 = vpop.f32.mrb[0].mxu0
        %v803 = vadd.f32 0.0, %v802
        %v804 = vpop.f32.mrb[0].mxu0
        %v805 = vpop.f32.mrb[0].mxu0
        %v806 = vadd.f32 0.0, %v805
        %v807 = vpop.f32.mrb[0].mxu0
        %808 = vmatprep.mubr.bf16.mxu0 0
        %809 = vmatmul.mubr.bf16.gmra.mrb[0].mxu0 %v611
        %v810 = vpop.f32.mrb[0].mxu0
        %v811 = vadd.f32 0.0, %v810
        %v812 = vpop.f32.mrb[0].mxu0
        %v813 = vpop.f32.mrb[0].mxu0
        %v814 = vadd.f32 0.0, %v813
        %v815 = vpop.f32.mrb[0].mxu0
        %816 = vmatprep.mubr.bf16.mxu0 0
        %817 = vmatmul.mubr.bf16.gmra.mrb[0].mxu0 %v612
        %v818 = vpop.f32.mrb[0].mxu0
        %v819 = vadd.f32 0.0, %v818
        %v820 = vpop.f32.mrb[0].mxu0
        %v821 = vpop.f32.mrb[0].mxu0
        %v822 = vadd.f32 0.0, %v821
        %v823 = vpop.f32.mrb[0].mxu0
        %824 = vmatprep.mubr.bf16.mxu0 0
        %825 = vmatmul.mubr.bf16.gmra.mrb[0].mxu0 %v613
        %v826 = vpop.f32.mrb[0].mxu0
        %v827 = vadd.f32 0.0, %v826
        %v828 = vpop.f32.mrb[0].mxu0
        %v829 = vpop.f32.mrb[0].mxu0
        %v830 = vadd.f32 0.0, %v829
        %v831 = vpop.f32.mrb[0].mxu0
        %832 = vmatprep.mubr.bf16.mxu0 0
        %833 = vmatmul.mubr.bf16.gmra.mrb[0].mxu0 %v614
        %v834 = vpop.f32.mrb[0].mxu0
        %v835 = vadd.f32 0.0, %v834
        %v836 = vpop.f32.mrb[0].mxu0
        %v837 = vpop.f32.mrb[0].mxu0
        %v838 = vadd.f32 0.0, %v837
        %v839 = vpop.f32.mrb[0].mxu0
        %840 = vdwg.mxu0
        %v857 = vunpack.c.l.b16 %v422
        %v858 = vunpack.c.l.b16 %v423
        %v859 = vunpack.c.l.b16 %v424
        %v860 = vunpack.c.l.b16 %v425
        %v861 = vunpack.c.l.b16 %v426
        %v862 = vunpack.c.l.b16 %v427
        %v863 = vunpack.c.l.b16 %v428
        %v864 = vunpack.c.l.b16 %v429
        %v865 = vunpack.c.l.b16 %v430
        %v866 = vunpack.c.l.b16 %v431
        %v867 = vunpack.c.l.b16 %v432
        %v868 = vunpack.c.l.b16 %v433
        %v869 = vunpack.c.l.b16 %v434
        %v870 = vunpack.c.l.b16 %v435
        %v871 = vunpack.c.l.b16 %v436
        %v872 = vunpack.c.l.b16 %v437
        %v873 = vpack.c.b16 %v858, %v857
        %v874 = vpack.c.b16 %v860, %v859
        %v875 = vpack.c.b16 %v862, %v861
        %v876 = vpack.c.b16 %v864, %v863
        %v877 = vpack.c.b16 %v866, %v865
        %v878 = vpack.c.b16 %v868, %v867
        %v879 = vpack.c.b16 %v870, %v869
        %v880 = vpack.c.b16 %v872, %v871
        %889 = vmatprep.subr.bf16.mxu0 0
        %890 = vmatpush1.bf16.msra.mxu0 %v873
        %891 = vmatprep.subr.bf16.mxu0 0
        %892 = vmatpush1.bf16.msra.mxu0 %v874
        %893 = vmatprep.subr.bf16.mxu0 0
        %894 = vmatpush1.bf16.msra.mxu0 %v875
        %895 = vmatprep.subr.bf16.mxu0 0
        %896 = vmatpush1.bf16.msra.mxu0 %v876
        %897 = vmatprep.subr.bf16.mxu0 0
        %898 = vmatpush1.bf16.msra.mxu0 %v877
        %899 = vmatprep.subr.bf16.mxu0 0
        %900 = vmatpush1.bf16.msra.mxu0 %v878
        %901 = vmatprep.subr.bf16.mxu0 0
        %902 = vmatpush1.bf16.msra.mxu0 %v879
        %903 = vmatprep.subr.bf16.mxu0 0
        %904 = vmatpush1.bf16.msra.mxu0 %v880
        %905 = vmatprep.subr.bf16.mxu0 0
        %906 = vmatpush1.bf16.msra.mxu0 0
        %907 = vmatprep.subr.bf16.mxu0 0
        %908 = vmatpush1.bf16.msra.mxu0 0
        %909 = vmatprep.subr.bf16.mxu0 0
        %910 = vmatpush1.bf16.msra.mxu0 0
        %911 = vmatprep.subr.bf16.mxu0 0
        %912 = vmatpush1.bf16.msra.mxu0 0
        %913 = vmatprep.subr.bf16.mxu0 0
        %914 = vmatpush1.bf16.msra.mxu0 0
        %915 = vmatprep.subr.bf16.mxu0 0
        %916 = vmatpush1.bf16.msra.mxu0 0
        %917 = vmatprep.subr.bf16.mxu0 0
        %918 = vmatpush1.bf16.msra.mxu0 0
        %919 = vmatprep.subr.bf16.mxu0 0
        %920 = vmatpush1.bf16.msra.mxu0 0
        %921 = vmatprep.mubr.bf16.mxu0 0
        %922 = vmatmul.mubr.bf16.gmra.mrb[0].mxu0 %v406
        %v923 = vpop.f32.mrb[0].mxu0
        %v924 = vadd.f32 %v715, %v923
        %v925 = vpop.f32.mrb[0].mxu0
        %v926 = vpop.f32.mrb[0].mxu0
        %v927 = vadd.f32 %v718, %v926
        %v928 = vpop.f32.mrb[0].mxu0
        %929 = vmatprep.mubr.bf16.mxu0 0
        %930 = vmatmul.mubr.bf16.gmra.mrb[0].mxu0 %v407
        %v931 = vpop.f32.mrb[0].mxu0
        %v932 = vadd.f32 %v723, %v931
        %v933 = vpop.f32.mrb[0].mxu0
        %v934 = vpop.f32.mrb[0].mxu0
        %v935 = vadd.f32 %v726, %v934
        %v936 = vpop.f32.mrb[0].mxu0
        %937 = vmatprep.mubr.bf16.mxu0 0
        %938 = vmatmul.mubr.bf16.gmra.mrb[0].mxu0 %v408
        %v939 = vpop.f32.mrb[0].mxu0
        %v940 = vadd.f32 %v731, %v939
        %v941 = vpop.f32.mrb[0].mxu0
        %v942 = vpop.f32.mrb[0].mxu0
        %v943 = vadd.f32 %v734, %v942
        %v944 = vpop.f32.mrb[0].mxu0
        %945 = vmatprep.mubr.bf16.mxu0 0
        %946 = vmatmul.mubr.bf16.gmra.mrb[0].mxu0 %v409
        %v947 = vpop.f32.mrb[0].mxu0
        %v948 = vadd.f32 %v739, %v947
        %v949 = vpop.f32.mrb[0].mxu0
        %v950 = vpop.f32.mrb[0].mxu0
        %v951 = vadd.f32 %v742, %v950
        %v952 = vpop.f32.mrb[0].mxu0
        %953 = vmatprep.mubr.bf16.mxu0 0
        %954 = vmatmul.mubr.bf16.gmra.mrb[0].mxu0 %v410
        %v955 = vpop.f32.mrb[0].mxu0
        %v956 = vadd.f32 %v747, %v955
        %v957 = vpop.f32.mrb[0].mxu0
        %v958 = vpop.f32.mrb[0].mxu0
        %v959 = vadd.f32 %v750, %v958
        %v960 = vpop.f32.mrb[0].mxu0
        %961 = vmatprep.mubr.bf16.mxu0 0
        %962 = vmatmul.mubr.bf16.gmra.mrb[0].mxu0 %v411
        %v963 = vpop.f32.mrb[0].mxu0
        %v964 = vadd.f32 %v755, %v963
        %v965 = vpop.f32.mrb[0].mxu0
        %v966 = vpop.f32.mrb[0].mxu0
        %v967 = vadd.f32 %v758, %v966
        %v968 = vpop.f32.mrb[0].mxu0
        %969 = vmatprep.mubr.bf16.mxu0 0
        %970 = vmatmul.mubr.bf16.gmra.mrb[0].mxu0 %v412
        %v971 = vpop.f32.mrb[0].mxu0
        %v972 = vadd.f32 %v763, %v971
        %v973 = vpop.f32.mrb[0].mxu0
        %v974 = vpop.f32.mrb[0].mxu0
        %v975 = vadd.f32 %v766, %v974
        %v976 = vpop.f32.mrb[0].mxu0
        %977 = vmatprep.mubr.bf16.mxu0 0
        %978 = vmatmul.mubr.bf16.gmra.mrb[0].mxu0 %v413
        %v979 = vpop.f32.mrb[0].mxu0
        %v980 = vadd.f32 %v771, %v979
        %v981 = vpop.f32.mrb[0].mxu0
        %v982 = vpop.f32.mrb[0].mxu0
        %v983 = vadd.f32 %v774, %v982
        %v984 = vpop.f32.mrb[0].mxu0
        %985 = vmatprep.mubr.bf16.mxu0 0
        %986 = vmatmul.mubr.bf16.gmra.mrb[0].mxu0 %v414
        %v987 = vpop.f32.mrb[0].mxu0
        %v988 = vadd.f32 %v779, %v987
        %v989 = vpop.f32.mrb[0].mxu0
        %v990 = vpop.f32.mrb[0].mxu0
        %v991 = vadd.f32 %v782, %v990
        %v992 = vpop.f32.mrb[0].mxu0
        %993 = vmatprep.mubr.bf16.mxu0 0
        %994 = vmatmul.mubr.bf16.gmra.mrb[0].mxu0 %v415
        %v995 = vpop.f32.mrb[0].mxu0
        %v996 = vadd.f32 %v787, %v995
        %v997 = vpop.f32.mrb[0].mxu0
        %v998 = vpop.f32.mrb[0].mxu0
        %v999 = vadd.f32 %v790, %v998
        %v1000 = vpop.f32.mrb[0].mxu0
        %1001 = vmatprep.mubr.bf16.mxu0 0
        %1002 = vmatmul.mubr.bf16.gmra.mrb[0].mxu0 %v416
        %v1003 = vpop.f32.mrb[0].mxu0
        %v1004 = vadd.f32 %v795, %v1003
        %v1005 = vpop.f32.mrb[0].mxu0
        %v1006 = vpop.f32.mrb[0].mxu0
        %v1007 = vadd.f32 %v798, %v1006
        %v1008 = vpop.f32.mrb[0].mxu0
        %1009 = vmatprep.mubr.bf16.mxu0 0
        %1010 = vmatmul.mubr.bf16.gmra.mrb[0].mxu0 %v417
        %v1011 = vpop.f32.mrb[0].mxu0
        %v1012 = vadd.f32 %v803, %v1011
        %v1013 = vpop.f32.mrb[0].mxu0
        %v1014 = vpop.f32.mrb[0].mxu0
        %v1015 = vadd.f32 %v806, %v1014
        %v1016 = vpop.f32.mrb[0].mxu0
        %1017 = vmatprep.mubr.bf16.mxu0 0
        %1018 = vmatmul.mubr.bf16.gmra.mrb[0].mxu0 %v418
        %v1019 = vpop.f32.mrb[0].mxu0
        %v1020 = vadd.f32 %v811, %v1019
        %v1021 = vpop.f32.mrb[0].mxu0
        %v1022 = vpop.f32.mrb[0].mxu0
        %v1023 = vadd.f32 %v814, %v1022
        %v1024 = vpop.f32.mrb[0].mxu0
        %1025 = vmatprep.mubr.bf16.mxu0 0
        %1026 = vmatmul.mubr.bf16.gmra.mrb[0].mxu0 %v419
        %v1027 = vpop.f32.mrb[0].mxu0
        %v1028 = vadd.f32 %v819, %v1027
        %v1029 = vpop.f32.mrb[0].mxu0
        %v1030 = vpop.f32.mrb[0].mxu0
        %v1031 = vadd.f32 %v822, %v1030
        %v1032 = vpop.f32.mrb[0].mxu0
        %1033 = vmatprep.mubr.bf16.mxu0 0
        %1034 = vmatmul.mubr.bf16.gmra.mrb[0].mxu0 %v420
        %v1035 = vpop.f32.mrb[0].mxu0
        %v1036 = vadd.f32 %v827, %v1035
        %v1037 = vpop.f32.mrb[0].mxu0
        %v1038 = vpop.f32.mrb[0].mxu0
        %v1039 = vadd.f32 %v830, %v1038
        %v1040 = vpop.f32.mrb[0].mxu0
        %1041 = vmatprep.mubr.bf16.mxu0 0
        %1042 = vmatmul.mubr.bf16.gmra.mrb[0].mxu0 %v421
        %v1043 = vpop.f32.mrb[0].mxu0
        %v1044 = vadd.f32 %v835, %v1043
        %v1045 = vpop.f32.mrb[0].mxu0
        %v1046 = vpop.f32.mrb[0].mxu0
        %v1047 = vadd.f32 %v838, %v1046
        %v1048 = vpop.f32.mrb[0].mxu0
        %1049 = vdwg.mxu0
        %vm1050 = vcmask 1045504
        %v1051 = vrot.slane %v352, 2
        %v1052 = vrot.slane %v353, 2
        %v1053 = vsel %vm1050, %v1051, %v1052
        %v1054 = vrot.slane %v354, 2
        %v1055 = vsel %vm1050, %v1052, %v1054
        %v1056 = vrot.slane %v355, 2
        %v1057 = vrot.slane %v356, 2
        %v1058 = vsel %vm1050, %v1056, %v1057
        %v1059 = vrot.slane %v357, 2
        %v1060 = vsel %vm1050, %v1057, %v1059
        %v1061 = vrot.slane %v358, 2
        %v1062 = vrot.slane %v359, 2
        %v1063 = vsel %vm1050, %v1061, %v1062
        %v1064 = vrot.slane %v360, 2
        %v1065 = vsel %vm1050, %v1062, %v1064
        %v1066 = vrot.slane %v361, 2
        %v1067 = vrot.slane %v362, 2
        %v1068 = vsel %vm1050, %v1066, %v1067
        %v1069 = vrot.slane %v363, 2
        %v1070 = vsel %vm1050, %v1067, %v1069
        %v1071 = vrot.slane %v364, 2
        %v1072 = vrot.slane %v365, 2
        %v1073 = vsel %vm1050, %v1071, %v1072
        %v1074 = vrot.slane %v366, 2
        %v1075 = vsel %vm1050, %v1072, %v1074
        %v1076 = vrot.slane %v367, 2
        %v1077 = vrot.slane %v368, 2
        %v1078 = vsel %vm1050, %v1076, %v1077
        %v1079 = vrot.slane %v369, 2
        %v1080 = vsel %vm1050, %v1077, %v1079
        %v1081 = vrot.slane %v370, 2
        %v1082 = vrot.slane %v371, 2
        %v1083 = vsel %vm1050, %v1081, %v1082
        %v1084 = vrot.slane %v372, 2
        %v1085 = vsel %vm1050, %v1082, %v1084
        %v1086 = vrot.slane %v373, 2
        %v1087 = vrot.slane %v374, 2
        %v1088 = vsel %vm1050, %v1086, %v1087
        %v1089 = vrot.slane %v375, 2
        %v1090 = vsel %vm1050, %v1087, %v1089
        %v1091 = vrot.slane %v376, 2
        %v1092 = vrot.slane %v377, 2
        %v1093 = vsel %vm1050, %v1091, %v1092
        %v1094 = vrot.slane %v378, 2
        %v1095 = vsel %vm1050, %v1092, %v1094
        %v1096 = vrot.slane %v379, 2
        %v1097 = vrot.slane %v380, 2
        %v1098 = vsel %vm1050, %v1096, %v1097
        %v1099 = vrot.slane %v381, 2
        %v1100 = vsel %vm1050, %v1097, %v1099
        %v1101 = vrot.slane %v382, 2
        %v1102 = vrot.slane %v383, 2
        %v1103 = vsel %vm1050, %v1101, %v1102
        %v1104 = vrot.slane %v384, 2
        %v1105 = vsel %vm1050, %v1102, %v1104
        %v1106 = vrot.slane %v385, 2
        %v1107 = vrot.slane %v386, 2
        %v1108 = vsel %vm1050, %v1106, %v1107
        %v1109 = vrot.slane %v387, 2
        %v1110 = vsel %vm1050, %v1107, %v1109
        %v1111 = vrot.slane %v388, 2
        %v1112 = vrot.slane %v389, 2
        %v1113 = vsel %vm1050, %v1111, %v1112
        %v1114 = vrot.slane %v390, 2
        %v1115 = vsel %vm1050, %v1112, %v1114
        %v1116 = vrot.slane %v391, 2
        %v1117 = vrot.slane %v392, 2
        %v1118 = vsel %vm1050, %v1116, %v1117
        %v1119 = vrot.slane %v393, 2
        %v1120 = vsel %vm1050, %v1117, %v1119
        %v1121 = vrot.slane %v394, 2
        %v1122 = vrot.slane %v395, 2
        %v1123 = vsel %vm1050, %v1121, %v1122
        %v1124 = vrot.slane %v396, 2
        %v1125 = vsel %vm1050, %v1122, %v1124
        %v1126 = vrot.slane %v397, 2
        %v1127 = vrot.slane %v398, 2
        %v1128 = vsel %vm1050, %v1126, %v1127
        %v1129 = vrot.slane %v399, 2
        %v1130 = vsel %vm1050, %v1127, %v1129
        %v1163 = vpack.c.bf16 %v1055, %v1053
        %v1164 = vpack.c.bf16 %v1060, %v1058
        %v1165 = vpack.c.bf16 %v1065, %v1063
        %v1166 = vpack.c.bf16 %v1070, %v1068
        %v1167 = vpack.c.bf16 %v1075, %v1073
        %v1168 = vpack.c.bf16 %v1080, %v1078
        %v1169 = vpack.c.bf16 %v1085, %v1083
        %v1170 = vpack.c.bf16 %v1090, %v1088
        %v1171 = vpack.c.bf16 %v1095, %v1093
        %v1172 = vpack.c.bf16 %v1100, %v1098
        %v1173 = vpack.c.bf16 %v1105, %v1103
        %v1174 = vpack.c.bf16 %v1110, %v1108
        %v1175 = vpack.c.bf16 %v1115, %v1113
        %v1176 = vpack.c.bf16 %v1120, %v1118
        %v1177 = vpack.c.bf16 %v1125, %v1123
        %v1178 = vpack.c.bf16 %v1130, %v1128
        %s1179 = scalar_lea.vmem %s2, 128
        %v1180 = vld [vmem:[%s1179] sm:$0xf]
        %v1181 = vld [vmem:[%s1179 + $0x4] sm:$0xf]
        %v1182 = vld [vmem:[%s1179 + $0x8] sm:$0xf]
        %v1183 = vld [vmem:[%s1179 + $0xc] sm:$0xf]
        %v1184 = vld [vmem:[%s1179 + $0x10] sm:$0xf]
        %v1185 = vld [vmem:[%s1179 + $0x14] sm:$0xf]
        %v1186 = vld [vmem:[%s1179 + $0x18] sm:$0xf]
        %v1187 = vld [vmem:[%s1179 + $0x1c] sm:$0xf]
        %v1188 = vld [vmem:[%s1179 + $0x20] sm:$0xf]
        %v1189 = vld [vmem:[%s1179 + $0x24] sm:$0xf]
        %v1190 = vld [vmem:[%s1179 + $0x28] sm:$0xf]
        %v1191 = vld [vmem:[%s1179 + $0x2c] sm:$0xf]
        %v1192 = vld [vmem:[%s1179 + $0x30] sm:$0xf]
        %v1193 = vld [vmem:[%s1179 + $0x34] sm:$0xf]
        %v1194 = vld [vmem:[%s1179 + $0x38] sm:$0xf]
        %v1195 = vld [vmem:[%s1179 + $0x3c] sm:$0xf]
        %v1212 = vunpack.c.l.b16 %v1180
        %v1213 = vunpack.c.l.b16 %v1181
        %v1214 = vunpack.c.l.b16 %v1182
        %v1215 = vunpack.c.l.b16 %v1183
        %v1216 = vunpack.c.l.b16 %v1184
        %v1217 = vunpack.c.l.b16 %v1185
        %v1218 = vunpack.c.l.b16 %v1186
        %v1219 = vunpack.c.l.b16 %v1187
        %v1220 = vunpack.c.l.b16 %v1188
        %v1221 = vunpack.c.l.b16 %v1189
        %v1222 = vunpack.c.l.b16 %v1190
        %v1223 = vunpack.c.l.b16 %v1191
        %v1224 = vunpack.c.l.b16 %v1192
        %v1225 = vunpack.c.l.b16 %v1193
        %v1226 = vunpack.c.l.b16 %v1194
        %v1227 = vunpack.c.l.b16 %v1195
        %v1228 = vpack.c.b16 %v1213, %v1212
        %v1229 = vpack.c.b16 %v1215, %v1214
        %v1230 = vpack.c.b16 %v1217, %v1216
        %v1231 = vpack.c.b16 %v1219, %v1218
        %v1232 = vpack.c.b16 %v1221, %v1220
        %v1233 = vpack.c.b16 %v1223, %v1222
        %v1234 = vpack.c.b16 %v1225, %v1224
        %v1235 = vpack.c.b16 %v1227, %v1226
        %1244 = vmatprep.subr.bf16.mxu0 0
        %1245 = vmatpush1.bf16.msra.mxu0 %v1228
        %1246 = vmatprep.subr.bf16.mxu0 0
        %1247 = vmatpush1.bf16.msra.mxu0 %v1229
        %1248 = vmatprep.subr.bf16.mxu0 0
        %1249 = vmatpush1.bf16.msra.mxu0 %v1230
        %1250 = vmatprep.subr.bf16.mxu0 0
        %1251 = vmatpush1.bf16.msra.mxu0 %v1231
        %1252 = vmatprep.subr.bf16.mxu0 0
        %1253 = vmatpush1.bf16.msra.mxu0 %v1232
        %1254 = vmatprep.subr.bf16.mxu0 0
        %1255 = vmatpush1.bf16.msra.mxu0 %v1233
        %1256 = vmatprep.subr.bf16.mxu0 0
        %1257 = vmatpush1.bf16.msra.mxu0 %v1234
        %1258 = vmatprep.subr.bf16.mxu0 0
        %1259 = vmatpush1.bf16.msra.mxu0 %v1235
        %1260 = vmatprep.subr.bf16.mxu0 0
        %1261 = vmatpush1.bf16.msra.mxu0 0
        %1262 = vmatprep.subr.bf16.mxu0 0
        %1263 = vmatpush1.bf16.msra.mxu0 0
        %1264 = vmatprep.subr.bf16.mxu0 0
        %1265 = vmatpush1.bf16.msra.mxu0 0
        %1266 = vmatprep.subr.bf16.mxu0 0
        %1267 = vmatpush1.bf16.msra.mxu0 0
        %1268 = vmatprep.subr.bf16.mxu0 0
        %1269 = vmatpush1.bf16.msra.mxu0 0
        %1270 = vmatprep.subr.bf16.mxu0 0
        %1271 = vmatpush1.bf16.msra.mxu0 0
        %1272 = vmatprep.subr.bf16.mxu0 0
        %1273 = vmatpush1.bf16.msra.mxu0 0
        %1274 = vmatprep.subr.bf16.mxu0 0
        %1275 = vmatpush1.bf16.msra.mxu0 0
        %1276 = vmatprep.mubr.bf16.mxu0 0
        %1277 = vmatmul.mubr.bf16.gmra.mrb[0].mxu0 %v1163
        %v1278 = vpop.f32.mrb[0].mxu0
        %v1279 = vadd.f32 0.0, %v1278
        %v1280 = vpop.f32.mrb[0].mxu0
        %v1281 = vpop.f32.mrb[0].mxu0
        %v1282 = vadd.f32 0.0, %v1281
        %v1283 = vpop.f32.mrb[0].mxu0
        %1284 = vmatprep.mubr.bf16.mxu0 0
        %1285 = vmatmul.mubr.bf16.gmra.mrb[0].mxu0 %v1164
        %v1286 = vpop.f32.mrb[0].mxu0
        %v1287 = vadd.f32 0.0, %v1286
        %v1288 = vpop.f32.mrb[0].mxu0
        %v1289 = vpop.f32.mrb[0].mxu0
        %v1290 = vadd.f32 0.0, %v1289
        %v1291 = vpop.f32.mrb[0].mxu0
        %1292 = vmatprep.mubr.bf16.mxu0 0
        %1293 = vmatmul.mubr.bf16.gmra.mrb[0].mxu0 %v1165
        %v1294 = vpop.f32.mrb[0].mxu0
        %v1295 = vadd.f32 0.0, %v1294
        %v1296 = vpop.f32.mrb[0].mxu0
        %v1297 = vpop.f32.mrb[0].mxu0
        %v1298 = vadd.f32 0.0, %v1297
        %v1299 = vpop.f32.mrb[0].mxu0
        %1300 = vmatprep.mubr.bf16.mxu0 0
        %1301 = vmatmul.mubr.bf16.gmra.mrb[0].mxu0 %v1166
        %v1302 = vpop.f32.mrb[0].mxu0
        %v1303 = vadd.f32 0.0, %v1302
        %v1304 = vpop.f32.mrb[0].mxu0
        %v1305 = vpop.f32.mrb[0].mxu0
        %v1306 = vadd.f32 0.0, %v1305
        %v1307 = vpop.f32.mrb[0].mxu0
        %1308 = vmatprep.mubr.bf16.mxu0 0
        %1309 = vmatmul.mubr.bf16.gmra.mrb[0].mxu0 %v1167
        %v1310 = vpop.f32.mrb[0].mxu0
        %v1311 = vadd.f32 0.0, %v1310
        %v1312 = vpop.f32.mrb[0].mxu0
        %v1313 = vpop.f32.mrb[0].mxu0
        %v1314 = vadd.f32 0.0, %v1313
        %v1315 = vpop.f32.mrb[0].mxu0
        %1316 = vmatprep.mubr.bf16.mxu0 0
        %1317 = vmatmul.mubr.bf16.gmra.mrb[0].mxu0 %v1168
        %v1318 = vpop.f32.mrb[0].mxu0
        %v1319 = vadd.f32 0.0, %v1318
        %v1320 = vpop.f32.mrb[0].mxu0
        %v1321 = vpop.f32.mrb[0].mxu0
        %v1322 = vadd.f32 0.0, %v1321
        %v1323 = vpop.f32.mrb[0].mxu0
        %1324 = vmatprep.mubr.bf16.mxu0 0
        %1325 = vmatmul.mubr.bf16.gmra.mrb[0].mxu0 %v1169
        %v1326 = vpop.f32.mrb[0].mxu0
        %v1327 = vadd.f32 0.0, %v1326
        %v1328 = vpop.f32.mrb[0].mxu0
        %v1329 = vpop.f32.mrb[0].mxu0
        %v1330 = vadd.f32 0.0, %v1329
        %v1331 = vpop.f32.mrb[0].mxu0
        %1332 = vmatprep.mubr.bf16.mxu0 0
        %1333 = vmatmul.mubr.bf16.gmra.mrb[0].mxu0 %v1170
        %v1334 = vpop.f32.mrb[0].mxu0
        %v1335 = vadd.f32 0.0, %v1334
        %v1336 = vpop.f32.mrb[0].mxu0
        %v1337 = vpop.f32.mrb[0].mxu0
        %v1338 = vadd.f32 0.0, %v1337
        %v1339 = vpop.f32.mrb[0].mxu0
        %1340 = vmatprep.mubr.bf16.mxu0 0
        %1341 = vmatmul.mubr.bf16.gmra.mrb[0].mxu0 %v1171
        %v1342 = vpop.f32.mrb[0].mxu0
        %v1343 = vadd.f32 0.0, %v1342
        %v1344 = vpop.f32.mrb[0].mxu0
        %v1345 = vpop.f32.mrb[0].mxu0
        %v1346 = vadd.f32 0.0, %v1345
        %v1347 = vpop.f32.mrb[0].mxu0
        %1348 = vmatprep.mubr.bf16.mxu0 0
        %1349 = vmatmul.mubr.bf16.gmra.mrb[0].mxu0 %v1172
        %v1350 = vpop.f32.mrb[0].mxu0
        %v1351 = vadd.f32 0.0, %v1350
        %v1352 = vpop.f32.mrb[0].mxu0
        %v1353 = vpop.f32.mrb[0].mxu0
        %v1354 = vadd.f32 0.0, %v1353
        %v1355 = vpop.f32.mrb[0].mxu0
        %1356 = vmatprep.mubr.bf16.mxu0 0
        %1357 = vmatmul.mubr.bf16.gmra.mrb[0].mxu0 %v1173
        %v1358 = vpop.f32.mrb[0].mxu0
        %v1359 = vadd.f32 0.0, %v1358
        %v1360 = vpop.f32.mrb[0].mxu0
        %v1361 = vpop.f32.mrb[0].mxu0
        %v1362 = vadd.f32 0.0, %v1361
        %v1363 = vpop.f32.mrb[0].mxu0
        %1364 = vmatprep.mubr.bf16.mxu0 0
        %1365 = vmatmul.mubr.bf16.gmra.mrb[0].mxu0 %v1174
        %v1366 = vpop.f32.mrb[0].mxu0
        %v1367 = vadd.f32 0.0, %v1366
        %v1368 = vpop.f32.mrb[0].mxu0
        %v1369 = vpop.f32.mrb[0].mxu0
        %v1370 = vadd.f32 0.0, %v1369
        %v1371 = vpop.f32.mrb[0].mxu0
        %1372 = vmatprep.mubr.bf16.mxu0 0
        %1373 = vmatmul.mubr.bf16.gmra.mrb[0].mxu0 %v1175
        %v1374 = vpop.f32.mrb[0].mxu0
        %v1375 = vadd.f32 0.0, %v1374
        %v1376 = vpop.f32.mrb[0].mxu0
        %v1377 = vpop.f32.mrb[0].mxu0
        %v1378 = vadd.f32 0.0, %v1377
        %v1379 = vpop.f32.mrb[0].mxu0
        %1380 = vmatprep.mubr.bf16.mxu0 0
        %1381 = vmatmul.mubr.bf16.gmra.mrb[0].mxu0 %v1176
        %v1382 = vpop.f32.mrb[0].mxu0
        %v1383 = vadd.f32 0.0, %v1382
        %v1384 = vpop.f32.mrb[0].mxu0
        %v1385 = vpop.f32.mrb[0].mxu0
        %v1386 = vadd.f32 0.0, %v1385
        %v1387 = vpop.f32.mrb[0].mxu0
        %1388 = vmatprep.mubr.bf16.mxu0 0
        %1389 = vmatmul.mubr.bf16.gmra.mrb[0].mxu0 %v1177
        %v1390 = vpop.f32.mrb[0].mxu0
        %v1391 = vadd.f32 0.0, %v1390
        %v1392 = vpop.f32.mrb[0].mxu0
        %v1393 = vpop.f32.mrb[0].mxu0
        %v1394 = vadd.f32 0.0, %v1393
        %v1395 = vpop.f32.mrb[0].mxu0
        %1396 = vmatprep.mubr.bf16.mxu0 0
        %1397 = vmatmul.mubr.bf16.gmra.mrb[0].mxu0 %v1178
        %v1398 = vpop.f32.mrb[0].mxu0
        %v1399 = vadd.f32 0.0, %v1398
        %v1400 = vpop.f32.mrb[0].mxu0
        %v1401 = vpop.f32.mrb[0].mxu0
        %v1402 = vadd.f32 0.0, %v1401
        %v1403 = vpop.f32.mrb[0].mxu0
        %1404 = vdwg.mxu0
        %v1405 = vadd.f32 %v924, %v1279
        %v1406 = vadd.f32 %v927, %v1282
        %v1407 = vadd.f32 %v932, %v1287
        %v1408 = vadd.f32 %v935, %v1290
        %v1409 = vadd.f32 %v940, %v1295
        %v1410 = vadd.f32 %v943, %v1298
        %v1411 = vadd.f32 %v948, %v1303
        %v1412 = vadd.f32 %v951, %v1306
        %v1413 = vadd.f32 %v956, %v1311
        %v1414 = vadd.f32 %v959, %v1314
        %v1415 = vadd.f32 %v964, %v1319
        %v1416 = vadd.f32 %v967, %v1322
        %v1417 = vadd.f32 %v972, %v1327
        %v1418 = vadd.f32 %v975, %v1330
        %v1419 = vadd.f32 %v980, %v1335
        %v1420 = vadd.f32 %v983, %v1338
        %v1421 = vadd.f32 %v988, %v1343
        %v1422 = vadd.f32 %v991, %v1346
        %v1423 = vadd.f32 %v996, %v1351
        %v1424 = vadd.f32 %v999, %v1354
        %v1425 = vadd.f32 %v1004, %v1359
        %v1426 = vadd.f32 %v1007, %v1362
        %v1427 = vadd.f32 %v1012, %v1367
        %v1428 = vadd.f32 %v1015, %v1370
        %v1429 = vadd.f32 %v1020, %v1375
        %v1430 = vadd.f32 %v1023, %v1378
        %v1431 = vadd.f32 %v1028, %v1383
        %v1432 = vadd.f32 %v1031, %v1386
        %v1433 = vadd.f32 %v1036, %v1391
        %v1434 = vadd.f32 %v1039, %v1394
        %v1435 = vadd.f32 %v1044, %v1399
        %v1436 = vadd.f32 %v1047, %v1402
        %v1437 = vpack.c.bf16 %v401, %v400
        %s1438 = scalar_lea.vmem %s2, 192
        %v1439 = vld [vmem:[%s1438] sm:$0xf]
        %v1440 = vld [vmem:[%s1438 + $0x4] sm:$0xf]
        %v1441 = vld [vmem:[%s1438 + $0x8] sm:$0xf]
        %v1442 = vld [vmem:[%s1438 + $0xc] sm:$0xf]
        %v1443 = vld [vmem:[%s1438 + $0x10] sm:$0xf]
        %v1444 = vld [vmem:[%s1438 + $0x14] sm:$0xf]
        %v1445 = vld [vmem:[%s1438 + $0x18] sm:$0xf]
        %v1446 = vld [vmem:[%s1438 + $0x1c] sm:$0xf]
        %v1447 = vld [vmem:[%s1438 + $0x20] sm:$0xf]
        %v1448 = vld [vmem:[%s1438 + $0x24] sm:$0xf]
        %v1449 = vld [vmem:[%s1438 + $0x28] sm:$0xf]
        %v1450 = vld [vmem:[%s1438 + $0x2c] sm:$0xf]
        %v1451 = vld [vmem:[%s1438 + $0x30] sm:$0xf]
        %v1452 = vld [vmem:[%s1438 + $0x34] sm:$0xf]
        %v1453 = vld [vmem:[%s1438 + $0x38] sm:$0xf]
        %v1454 = vld [vmem:[%s1438 + $0x3c] sm:$0xf]
        %v1471 = vunpack.c.l.b16 %v1439
        %v1472 = vunpack.c.l.b16 %v1440
        %v1473 = vunpack.c.l.b16 %v1441
        %v1474 = vunpack.c.l.b16 %v1442
        %v1475 = vunpack.c.l.b16 %v1443
        %v1476 = vunpack.c.l.b16 %v1444
        %v1477 = vunpack.c.l.b16 %v1445
        %v1478 = vunpack.c.l.b16 %v1446
        %v1479 = vunpack.c.l.b16 %v1447
        %v1480 = vunpack.c.l.b16 %v1448
        %v1481 = vunpack.c.l.b16 %v1449
        %v1482 = vunpack.c.l.b16 %v1450
        %v1483 = vunpack.c.l.b16 %v1451
        %v1484 = vunpack.c.l.b16 %v1452
        %v1485 = vunpack.c.l.b16 %v1453
        %v1486 = vunpack.c.l.b16 %v1454
        %v1487 = vpack.c.b16 %v1472, %v1471
        %v1488 = vpack.c.b16 %v1474, %v1473
        %v1489 = vpack.c.b16 %v1476, %v1475
        %v1490 = vpack.c.b16 %v1478, %v1477
        %v1491 = vpack.c.b16 %v1480, %v1479
        %v1492 = vpack.c.b16 %v1482, %v1481
        %v1493 = vpack.c.b16 %v1484, %v1483
        %v1494 = vpack.c.b16 %v1486, %v1485
        %1503 = vmatprep.subr.bf16.mxu0 0
        %1504 = vmatpush1.bf16.msra.mxu0 %v1487
        %1505 = vmatprep.subr.bf16.mxu0 0
        %1506 = vmatpush1.bf16.msra.mxu0 %v1488
        %1507 = vmatprep.subr.bf16.mxu0 0
        %1508 = vmatpush1.bf16.msra.mxu0 %v1489
        %1509 = vmatprep.subr.bf16.mxu0 0
        %1510 = vmatpush1.bf16.msra.mxu0 %v1490
        %1511 = vmatprep.subr.bf16.mxu0 0
        %1512 = vmatpush1.bf16.msra.mxu0 %v1491
        %1513 = vmatprep.subr.bf16.mxu0 0
        %1514 = vmatpush1.bf16.msra.mxu0 %v1492
        %1515 = vmatprep.subr.bf16.mxu0 0
        %1516 = vmatpush1.bf16.msra.mxu0 %v1493
        %1517 = vmatprep.subr.bf16.mxu0 0
        %1518 = vmatpush1.bf16.msra.mxu0 %v1494
        %1519 = vmatprep.subr.bf16.mxu0 0
        %1520 = vmatpush1.bf16.msra.mxu0 0
        %1521 = vmatprep.subr.bf16.mxu0 0
        %1522 = vmatpush1.bf16.msra.mxu0 0
        %1523 = vmatprep.subr.bf16.mxu0 0
        %1524 = vmatpush1.bf16.msra.mxu0 0
        %1525 = vmatprep.subr.bf16.mxu0 0
        %1526 = vmatpush1.bf16.msra.mxu0 0
        %1527 = vmatprep.subr.bf16.mxu0 0
        %1528 = vmatpush1.bf16.msra.mxu0 0
        %1529 = vmatprep.subr.bf16.mxu0 0
        %1530 = vmatpush1.bf16.msra.mxu0 0
        %1531 = vmatprep.subr.bf16.mxu0 0
        %1532 = vmatpush1.bf16.msra.mxu0 0
        %1533 = vmatprep.subr.bf16.mxu0 0
        %1534 = vmatpush1.bf16.msra.mxu0 0
        %1535 = vmatprep.mubr.bf16.mxu0 0
        %1536 = vmatmul.mubr.bf16.gmra.mrb[0].mxu0 %v407
        %v1537 = vpop.f32.mrb[0].mxu0
        %v1538 = vadd.f32 0.0, %v1537
        %v1539 = vpop.f32.mrb[0].mxu0
        %v1540 = vpop.f32.mrb[0].mxu0
        %v1541 = vadd.f32 0.0, %v1540
        %v1542 = vpop.f32.mrb[0].mxu0
        %1543 = vmatprep.mubr.bf16.mxu0 0
        %1544 = vmatmul.mubr.bf16.gmra.mrb[0].mxu0 %v408
        %v1545 = vpop.f32.mrb[0].mxu0
        %v1546 = vadd.f32 0.0, %v1545
        %v1547 = vpop.f32.mrb[0].mxu0
        %v1548 = vpop.f32.mrb[0].mxu0
        %v1549 = vadd.f32 0.0, %v1548
        %v1550 = vpop.f32.mrb[0].mxu0
        %1551 = vmatprep.mubr.bf16.mxu0 0
        %1552 = vmatmul.mubr.bf16.gmra.mrb[0].mxu0 %v409
        %v1553 = vpop.f32.mrb[0].mxu0
        %v1554 = vadd.f32 0.0, %v1553
        %v1555 = vpop.f32.mrb[0].mxu0
        %v1556 = vpop.f32.mrb[0].mxu0
        %v1557 = vadd.f32 0.0, %v1556
        %v1558 = vpop.f32.mrb[0].mxu0
        %1559 = vmatprep.mubr.bf16.mxu0 0
        %1560 = vmatmul.mubr.bf16.gmra.mrb[0].mxu0 %v410
        %v1561 = vpop.f32.mrb[0].mxu0
        %v1562 = vadd.f32 0.0, %v1561
        %v1563 = vpop.f32.mrb[0].mxu0
        %v1564 = vpop.f32.mrb[0].mxu0
        %v1565 = vadd.f32 0.0, %v1564
        %v1566 = vpop.f32.mrb[0].mxu0
        %1567 = vmatprep.mubr.bf16.mxu0 0
        %1568 = vmatmul.mubr.bf16.gmra.mrb[0].mxu0 %v411
        %v1569 = vpop.f32.mrb[0].mxu0
        %v1570 = vadd.f32 0.0, %v1569
        %v1571 = vpop.f32.mrb[0].mxu0
        %v1572 = vpop.f32.mrb[0].mxu0
        %v1573 = vadd.f32 0.0, %v1572
        %v1574 = vpop.f32.mrb[0].mxu0
        %1575 = vmatprep.mubr.bf16.mxu0 0
        %1576 = vmatmul.mubr.bf16.gmra.mrb[0].mxu0 %v412
        %v1577 = vpop.f32.mrb[0].mxu0
        %v1578 = vadd.f32 0.0, %v1577
        %v1579 = vpop.f32.mrb[0].mxu0
        %v1580 = vpop.f32.mrb[0].mxu0
        %v1581 = vadd.f32 0.0, %v1580
        %v1582 = vpop.f32.mrb[0].mxu0
        %1583 = vmatprep.mubr.bf16.mxu0 0
        %1584 = vmatmul.mubr.bf16.gmra.mrb[0].mxu0 %v413
        %v1585 = vpop.f32.mrb[0].mxu0
        %v1586 = vadd.f32 0.0, %v1585
        %v1587 = vpop.f32.mrb[0].mxu0
        %v1588 = vpop.f32.mrb[0].mxu0
        %v1589 = vadd.f32 0.0, %v1588
        %v1590 = vpop.f32.mrb[0].mxu0
        %1591 = vmatprep.mubr.bf16.mxu0 0
        %1592 = vmatmul.mubr.bf16.gmra.mrb[0].mxu0 %v414
        %v1593 = vpop.f32.mrb[0].mxu0
        %v1594 = vadd.f32 0.0, %v1593
        %v1595 = vpop.f32.mrb[0].mxu0
        %v1596 = vpop.f32.mrb[0].mxu0
        %v1597 = vadd.f32 0.0, %v1596
        %v1598 = vpop.f32.mrb[0].mxu0
        %1599 = vmatprep.mubr.bf16.mxu0 0
        %1600 = vmatmul.mubr.bf16.gmra.mrb[0].mxu0 %v415
        %v1601 = vpop.f32.mrb[0].mxu0
        %v1602 = vadd.f32 0.0, %v1601
        %v1603 = vpop.f32.mrb[0].mxu0
        %v1604 = vpop.f32.mrb[0].mxu0
        %v1605 = vadd.f32 0.0, %v1604
        %v1606 = vpop.f32.mrb[0].mxu0
        %1607 = vmatprep.mubr.bf16.mxu0 0
        %1608 = vmatmul.mubr.bf16.gmra.mrb[0].mxu0 %v416
        %v1609 = vpop.f32.mrb[0].mxu0
        %v1610 = vadd.f32 0.0, %v1609
        %v1611 = vpop.f32.mrb[0].mxu0
        %v1612 = vpop.f32.mrb[0].mxu0
        %v1613 = vadd.f32 0.0, %v1612
        %v1614 = vpop.f32.mrb[0].mxu0
        %1615 = vmatprep.mubr.bf16.mxu0 0
        %1616 = vmatmul.mubr.bf16.gmra.mrb[0].mxu0 %v417
        %v1617 = vpop.f32.mrb[0].mxu0
        %v1618 = vadd.f32 0.0, %v1617
        %v1619 = vpop.f32.mrb[0].mxu0
        %v1620 = vpop.f32.mrb[0].mxu0
        %v1621 = vadd.f32 0.0, %v1620
        %v1622 = vpop.f32.mrb[0].mxu0
        %1623 = vmatprep.mubr.bf16.mxu0 0
        %1624 = vmatmul.mubr.bf16.gmra.mrb[0].mxu0 %v418
        %v1625 = vpop.f32.mrb[0].mxu0
        %v1626 = vadd.f32 0.0, %v1625
        %v1627 = vpop.f32.mrb[0].mxu0
        %v1628 = vpop.f32.mrb[0].mxu0
        %v1629 = vadd.f32 0.0, %v1628
        %v1630 = vpop.f32.mrb[0].mxu0
        %1631 = vmatprep.mubr.bf16.mxu0 0
        %1632 = vmatmul.mubr.bf16.gmra.mrb[0].mxu0 %v419
        %v1633 = vpop.f32.mrb[0].mxu0
        %v1634 = vadd.f32 0.0, %v1633
        %v1635 = vpop.f32.mrb[0].mxu0
        %v1636 = vpop.f32.mrb[0].mxu0
        %v1637 = vadd.f32 0.0, %v1636
        %v1638 = vpop.f32.mrb[0].mxu0
        %1639 = vmatprep.mubr.bf16.mxu0 0
        %1640 = vmatmul.mubr.bf16.gmra.mrb[0].mxu0 %v420
        %v1641 = vpop.f32.mrb[0].mxu0
        %v1642 = vadd.f32 0.0, %v1641
        %v1643 = vpop.f32.mrb[0].mxu0
        %v1644 = vpop.f32.mrb[0].mxu0
        %v1645 = vadd.f32 0.0, %v1644
        %v1646 = vpop.f32.mrb[0].mxu0
        %1647 = vmatprep.mubr.bf16.mxu0 0
        %1648 = vmatmul.mubr.bf16.gmra.mrb[0].mxu0 %v421
        %v1649 = vpop.f32.mrb[0].mxu0
        %v1650 = vadd.f32 0.0, %v1649
        %v1651 = vpop.f32.mrb[0].mxu0
        %v1652 = vpop.f32.mrb[0].mxu0
        %v1653 = vadd.f32 0.0, %v1652
        %v1654 = vpop.f32.mrb[0].mxu0
        %1655 = vmatprep.mubr.bf16.mxu0 0
        %1656 = vmatmul.mubr.bf16.gmra.mrb[0].mxu0 %v1437
        %v1657 = vpop.f32.mrb[0].mxu0
        %v1658 = vadd.f32 0.0, %v1657
        %v1659 = vpop.f32.mrb[0].mxu0
        %v1660 = vpop.f32.mrb[0].mxu0
        %v1661 = vadd.f32 0.0, %v1660
        %v1662 = vpop.f32.mrb[0].mxu0
        %1663 = vdwg.mxu0
        %v1664 = vadd.f32 %v1405, %v1538
        %v1665 = vadd.f32 %v1406, %v1541
        %v1666 = vadd.f32 %v1407, %v1546
        %v1667 = vadd.f32 %v1408, %v1549
        %v1668 = vadd.f32 %v1409, %v1554
        %v1669 = vadd.f32 %v1410, %v1557
        %v1670 = vadd.f32 %v1411, %v1562
        %v1671 = vadd.f32 %v1412, %v1565
        %v1672 = vadd.f32 %v1413, %v1570
        %v1673 = vadd.f32 %v1414, %v1573
        %v1674 = vadd.f32 %v1415, %v1578
        %v1675 = vadd.f32 %v1416, %v1581
        %v1676 = vadd.f32 %v1417, %v1586
        %v1677 = vadd.f32 %v1418, %v1589
        %v1678 = vadd.f32 %v1419, %v1594
        %v1679 = vadd.f32 %v1420, %v1597
        %v1680 = vadd.f32 %v1421, %v1602
        %v1681 = vadd.f32 %v1422, %v1605
        %v1682 = vadd.f32 %v1423, %v1610
        %v1683 = vadd.f32 %v1424, %v1613
        %v1684 = vadd.f32 %v1425, %v1618
        %v1685 = vadd.f32 %v1426, %v1621
        %v1686 = vadd.f32 %v1427, %v1626
        %v1687 = vadd.f32 %v1428, %v1629
        %v1688 = vadd.f32 %v1429, %v1634
        %v1689 = vadd.f32 %v1430, %v1637
        %v1690 = vadd.f32 %v1431, %v1642
        %v1691 = vadd.f32 %v1432, %v1645
        %v1692 = vadd.f32 %v1433, %v1650
        %v1693 = vadd.f32 %v1434, %v1653
        %v1694 = vadd.f32 %v1435, %v1658
        %v1695 = vadd.f32 %v1436, %v1661
        %v1699 = vrot.slane %v400, 1
        %v1700 = vrot.slane %v401, 1
        %v1701 = vsel %vm486, %v1699, %v1700
        %v1702 = vrot.slane %v402, 1
        %v1703 = vsel %vm486, %v1700, %v1702
        %v1706 = vpack.c.bf16 %v1703, %v1701
        %s1707 = scalar_lea.vmem %s2, 256
        %v1708 = vld [vmem:[%s1707] sm:$0xf]
        %v1709 = vld [vmem:[%s1707 + $0x4] sm:$0xf]
        %v1710 = vld [vmem:[%s1707 + $0x8] sm:$0xf]
        %v1711 = vld [vmem:[%s1707 + $0xc] sm:$0xf]
        %v1712 = vld [vmem:[%s1707 + $0x10] sm:$0xf]
        %v1713 = vld [vmem:[%s1707 + $0x14] sm:$0xf]
        %v1714 = vld [vmem:[%s1707 + $0x18] sm:$0xf]
        %v1715 = vld [vmem:[%s1707 + $0x1c] sm:$0xf]
        %v1716 = vld [vmem:[%s1707 + $0x20] sm:$0xf]
        %v1717 = vld [vmem:[%s1707 + $0x24] sm:$0xf]
        %v1718 = vld [vmem:[%s1707 + $0x28] sm:$0xf]
        %v1719 = vld [vmem:[%s1707 + $0x2c] sm:$0xf]
        %v1720 = vld [vmem:[%s1707 + $0x30] sm:$0xf]
        %v1721 = vld [vmem:[%s1707 + $0x34] sm:$0xf]
        %v1722 = vld [vmem:[%s1707 + $0x38] sm:$0xf]
        %v1723 = vld [vmem:[%s1707 + $0x3c] sm:$0xf]
        %v1740 = vunpack.c.l.b16 %v1708
        %v1741 = vunpack.c.l.b16 %v1709
        %v1742 = vunpack.c.l.b16 %v1710
        %v1743 = vunpack.c.l.b16 %v1711
        %v1744 = vunpack.c.l.b16 %v1712
        %v1745 = vunpack.c.l.b16 %v1713
        %v1746 = vunpack.c.l.b16 %v1714
        %v1747 = vunpack.c.l.b16 %v1715
        %v1748 = vunpack.c.l.b16 %v1716
        %v1749 = vunpack.c.l.b16 %v1717
        %v1750 = vunpack.c.l.b16 %v1718
        %v1751 = vunpack.c.l.b16 %v1719
        %v1752 = vunpack.c.l.b16 %v1720
        %v1753 = vunpack.c.l.b16 %v1721
        %v1754 = vunpack.c.l.b16 %v1722
        %v1755 = vunpack.c.l.b16 %v1723
        %v1756 = vpack.c.b16 %v1741, %v1740
        %v1757 = vpack.c.b16 %v1743, %v1742
        %v1758 = vpack.c.b16 %v1745, %v1744
        %v1759 = vpack.c.b16 %v1747, %v1746
        %v1760 = vpack.c.b16 %v1749, %v1748
        %v1761 = vpack.c.b16 %v1751, %v1750
        %v1762 = vpack.c.b16 %v1753, %v1752
        %v1763 = vpack.c.b16 %v1755, %v1754
        %1772 = vmatprep.subr.bf16.mxu0 0
        %1773 = vmatpush1.bf16.msra.mxu0 %v1756
        %1774 = vmatprep.subr.bf16.mxu0 0
        %1775 = vmatpush1.bf16.msra.mxu0 %v1757
        %1776 = vmatprep.subr.bf16.mxu0 0
        %1777 = vmatpush1.bf16.msra.mxu0 %v1758
        %1778 = vmatprep.subr.bf16.mxu0 0
        %1779 = vmatpush1.bf16.msra.mxu0 %v1759
        %1780 = vmatprep.subr.bf16.mxu0 0
        %1781 = vmatpush1.bf16.msra.mxu0 %v1760
        %1782 = vmatprep.subr.bf16.mxu0 0
        %1783 = vmatpush1.bf16.msra.mxu0 %v1761
        %1784 = vmatprep.subr.bf16.mxu0 0
        %1785 = vmatpush1.bf16.msra.mxu0 %v1762
        %1786 = vmatprep.subr.bf16.mxu0 0
        %1787 = vmatpush1.bf16.msra.mxu0 %v1763
        %1788 = vmatprep.subr.bf16.mxu0 0
        %1789 = vmatpush1.bf16.msra.mxu0 0
        %1790 = vmatprep.subr.bf16.mxu0 0
        %1791 = vmatpush1.bf16.msra.mxu0 0
        %1792 = vmatprep.subr.bf16.mxu0 0
        %1793 = vmatpush1.bf16.msra.mxu0 0
        %1794 = vmatprep.subr.bf16.mxu0 0
        %1795 = vmatpush1.bf16.msra.mxu0 0
        %1796 = vmatprep.subr.bf16.mxu0 0
        %1797 = vmatpush1.bf16.msra.mxu0 0
        %1798 = vmatprep.subr.bf16.mxu0 0
        %1799 = vmatpush1.bf16.msra.mxu0 0
        %1800 = vmatprep.subr.bf16.mxu0 0
        %1801 = vmatpush1.bf16.msra.mxu0 0
        %1802 = vmatprep.subr.bf16.mxu0 0
        %1803 = vmatpush1.bf16.msra.mxu0 0
        %1804 = vmatprep.mubr.bf16.mxu0 0
        %1805 = vmatmul.mubr.bf16.gmra.mrb[0].mxu0 %v600
        %v1806 = vpop.f32.mrb[0].mxu0
        %v1807 = vadd.f32 0.0, %v1806
        %v1808 = vpop.f32.mrb[0].mxu0
        %v1809 = vpop.f32.mrb[0].mxu0
        %v1810 = vadd.f32 0.0, %v1809
        %v1811 = vpop.f32.mrb[0].mxu0
        %1812 = vmatprep.mubr.bf16.mxu0 0
        %1813 = vmatmul.mubr.bf16.gmra.mrb[0].mxu0 %v601
        %v1814 = vpop.f32.mrb[0].mxu0
        %v1815 = vadd.f32 0.0, %v1814
        %v1816 = vpop.f32.mrb[0].mxu0
        %v1817 = vpop.f32.mrb[0].mxu0
        %v1818 = vadd.f32 0.0, %v1817
        %v1819 = vpop.f32.mrb[0].mxu0
        %1820 = vmatprep.mubr.bf16.mxu0 0
        %1821 = vmatmul.mubr.bf16.gmra.mrb[0].mxu0 %v602
        %v1822 = vpop.f32.mrb[0].mxu0
        %v1823 = vadd.f32 0.0, %v1822
        %v1824 = vpop.f32.mrb[0].mxu0
        %v1825 = vpop.f32.mrb[0].mxu0
        %v1826 = vadd.f32 0.0, %v1825
        %v1827 = vpop.f32.mrb[0].mxu0
        %1828 = vmatprep.mubr.bf16.mxu0 0
        %1829 = vmatmul.mubr.bf16.gmra.mrb[0].mxu0 %v603
        %v1830 = vpop.f32.mrb[0].mxu0
        %v1831 = vadd.f32 0.0, %v1830
        %v1832 = vpop.f32.mrb[0].mxu0
        %v1833 = vpop.f32.mrb[0].mxu0
        %v1834 = vadd.f32 0.0, %v1833
        %v1835 = vpop.f32.mrb[0].mxu0
        %1836 = vmatprep.mubr.bf16.mxu0 0
        %1837 = vmatmul.mubr.bf16.gmra.mrb[0].mxu0 %v604
        %v1838 = vpop.f32.mrb[0].mxu0
        %v1839 = vadd.f32 0.0, %v1838
        %v1840 = vpop.f32.mrb[0].mxu0
        %v1841 = vpop.f32.mrb[0].mxu0
        %v1842 = vadd.f32 0.0, %v1841
        %v1843 = vpop.f32.mrb[0].mxu0
        %1844 = vmatprep.mubr.bf16.mxu0 0
        %1845 = vmatmul.mubr.bf16.gmra.mrb[0].mxu0 %v605
        %v1846 = vpop.f32.mrb[0].mxu0
        %v1847 = vadd.f32 0.0, %v1846
        %v1848 = vpop.f32.mrb[0].mxu0
        %v1849 = vpop.f32.mrb[0].mxu0
        %v1850 = vadd.f32 0.0, %v1849
        %v1851 = vpop.f32.mrb[0].mxu0
        %1852 = vmatprep.mubr.bf16.mxu0 0
        %1853 = vmatmul.mubr.bf16.gmra.mrb[0].mxu0 %v606
        %v1854 = vpop.f32.mrb[0].mxu0
        %v1855 = vadd.f32 0.0, %v1854
        %v1856 = vpop.f32.mrb[0].mxu0
        %v1857 = vpop.f32.mrb[0].mxu0
        %v1858 = vadd.f32 0.0, %v1857
        %v1859 = vpop.f32.mrb[0].mxu0
        %1860 = vmatprep.mubr.bf16.mxu0 0
        %1861 = vmatmul.mubr.bf16.gmra.mrb[0].mxu0 %v607
        %v1862 = vpop.f32.mrb[0].mxu0
        %v1863 = vadd.f32 0.0, %v1862
        %v1864 = vpop.f32.mrb[0].mxu0
        %v1865 = vpop.f32.mrb[0].mxu0
        %v1866 = vadd.f32 0.0, %v1865
        %v1867 = vpop.f32.mrb[0].mxu0
        %1868 = vmatprep.mubr.bf16.mxu0 0
        %1869 = vmatmul.mubr.bf16.gmra.mrb[0].mxu0 %v608
        %v1870 = vpop.f32.mrb[0].mxu0
        %v1871 = vadd.f32 0.0, %v1870
        %v1872 = vpop.f32.mrb[0].mxu0
        %v1873 = vpop.f32.mrb[0].mxu0
        %v1874 = vadd.f32 0.0, %v1873
        %v1875 = vpop.f32.mrb[0].mxu0
        %1876 = vmatprep.mubr.bf16.mxu0 0
        %1877 = vmatmul.mubr.bf16.gmra.mrb[0].mxu0 %v609
        %v1878 = vpop.f32.mrb[0].mxu0
        %v1879 = vadd.f32 0.0, %v1878
        %v1880 = vpop.f32.mrb[0].mxu0
        %v1881 = vpop.f32.mrb[0].mxu0
        %v1882 = vadd.f32 0.0, %v1881
        %v1883 = vpop.f32.mrb[0].mxu0
        %1884 = vmatprep.mubr.bf16.mxu0 0
        %1885 = vmatmul.mubr.bf16.gmra.mrb[0].mxu0 %v610
        %v1886 = vpop.f32.mrb[0].mxu0
        %v1887 = vadd.f32 0.0, %v1886
        %v1888 = vpop.f32.mrb[0].mxu0
        %v1889 = vpop.f32.mrb[0].mxu0
        %v1890 = vadd.f32 0.0, %v1889
        %v1891 = vpop.f32.mrb[0].mxu0
        %1892 = vmatprep.mubr.bf16.mxu0 0
        %1893 = vmatmul.mubr.bf16.gmra.mrb[0].mxu0 %v611
        %v1894 = vpop.f32.mrb[0].mxu0
        %v1895 = vadd.f32 0.0, %v1894
        %v1896 = vpop.f32.mrb[0].mxu0
        %v1897 = vpop.f32.mrb[0].mxu0
        %v1898 = vadd.f32 0.0, %v1897
        %v1899 = vpop.f32.mrb[0].mxu0
        %1900 = vmatprep.mubr.bf16.mxu0 0
        %1901 = vmatmul.mubr.bf16.gmra.mrb[0].mxu0 %v612
        %v1902 = vpop.f32.mrb[0].mxu0
        %v1903 = vadd.f32 0.0, %v1902
        %v1904 = vpop.f32.mrb[0].mxu0
        %v1905 = vpop.f32.mrb[0].mxu0
        %v1906 = vadd.f32 0.0, %v1905
        %v1907 = vpop.f32.mrb[0].mxu0
        %1908 = vmatprep.mubr.bf16.mxu0 0
        %1909 = vmatmul.mubr.bf16.gmra.mrb[0].mxu0 %v613
        %v1910 = vpop.f32.mrb[0].mxu0
        %v1911 = vadd.f32 0.0, %v1910
        %v1912 = vpop.f32.mrb[0].mxu0
        %v1913 = vpop.f32.mrb[0].mxu0
        %v1914 = vadd.f32 0.0, %v1913
        %v1915 = vpop.f32.mrb[0].mxu0
        %1916 = vmatprep.mubr.bf16.mxu0 0
        %1917 = vmatmul.mubr.bf16.gmra.mrb[0].mxu0 %v614
        %v1918 = vpop.f32.mrb[0].mxu0
        %v1919 = vadd.f32 0.0, %v1918
        %v1920 = vpop.f32.mrb[0].mxu0
        %v1921 = vpop.f32.mrb[0].mxu0
        %v1922 = vadd.f32 0.0, %v1921
        %v1923 = vpop.f32.mrb[0].mxu0
        %1924 = vmatprep.mubr.bf16.mxu0 0
        %1925 = vmatmul.mubr.bf16.gmra.mrb[0].mxu0 %v1706
        %v1926 = vpop.f32.mrb[0].mxu0
        %v1927 = vadd.f32 0.0, %v1926
        %v1928 = vpop.f32.mrb[0].mxu0
        %v1929 = vpop.f32.mrb[0].mxu0
        %v1930 = vadd.f32 0.0, %v1929
        %v1931 = vpop.f32.mrb[0].mxu0
        %1932 = vdwg.mxu0
        %v1933 = vadd.f32 %v1664, %v1807
        %v1934 = vadd.f32 %v1665, %v1810
        %v1935 = vadd.f32 %v1666, %v1815
        %v1936 = vadd.f32 %v1667, %v1818
        %v1937 = vadd.f32 %v1668, %v1823
        %v1938 = vadd.f32 %v1669, %v1826
        %v1939 = vadd.f32 %v1670, %v1831
        %v1940 = vadd.f32 %v1671, %v1834
        %v1941 = vadd.f32 %v1672, %v1839
        %v1942 = vadd.f32 %v1673, %v1842
        %v1943 = vadd.f32 %v1674, %v1847
        %v1944 = vadd.f32 %v1675, %v1850
        %v1945 = vadd.f32 %v1676, %v1855
        %v1946 = vadd.f32 %v1677, %v1858
        %v1947 = vadd.f32 %v1678, %v1863
        %v1948 = vadd.f32 %v1679, %v1866
        %v1949 = vadd.f32 %v1680, %v1871
        %v1950 = vadd.f32 %v1681, %v1874
        %v1951 = vadd.f32 %v1682, %v1879
        %v1952 = vadd.f32 %v1683, %v1882
        %v1953 = vadd.f32 %v1684, %v1887
        %v1954 = vadd.f32 %v1685, %v1890
        %v1955 = vadd.f32 %v1686, %v1895
        %v1956 = vadd.f32 %v1687, %v1898
        %v1957 = vadd.f32 %v1688, %v1903
        %v1958 = vadd.f32 %v1689, %v1906
        %v1959 = vadd.f32 %v1690, %v1911
        %v1960 = vadd.f32 %v1691, %v1914
        %v1961 = vadd.f32 %v1692, %v1919
        %v1962 = vadd.f32 %v1693, %v1922
        %v1963 = vadd.f32 %v1694, %v1927
        %v1964 = vadd.f32 %v1695, %v1930
        %v1965 = vrot.slane %v400, 2
        %v1966 = vrot.slane %v401, 2
        %v1967 = vsel %vm1050, %v1965, %v1966
        %v1968 = vrot.slane %v402, 2
        %v1969 = vsel %vm1050, %v1966, %v1968
        %v1972 = vpack.c.bf16 %v1969, %v1967
        %s1973 = scalar_lea.vmem %s2, 320
        %v1974 = vld [vmem:[%s1973] sm:$0xf]
        %v1975 = vld [vmem:[%s1973 + $0x4] sm:$0xf]
        %v1976 = vld [vmem:[%s1973 + $0x8] sm:$0xf]
        %v1977 = vld [vmem:[%s1973 + $0xc] sm:$0xf]
        %v1978 = vld [vmem:[%s1973 + $0x10] sm:$0xf]
        %v1979 = vld [vmem:[%s1973 + $0x14] sm:$0xf]
        %v1980 = vld [vmem:[%s1973 + $0x18] sm:$0xf]
        %v1981 = vld [vmem:[%s1973 + $0x1c] sm:$0xf]
        %v1982 = vld [vmem:[%s1973 + $0x20] sm:$0xf]
        %v1983 = vld [vmem:[%s1973 + $0x24] sm:$0xf]
        %v1984 = vld [vmem:[%s1973 + $0x28] sm:$0xf]
        %v1985 = vld [vmem:[%s1973 + $0x2c] sm:$0xf]
        %v1986 = vld [vmem:[%s1973 + $0x30] sm:$0xf]
        %v1987 = vld [vmem:[%s1973 + $0x34] sm:$0xf]
        %v1988 = vld [vmem:[%s1973 + $0x38] sm:$0xf]
        %v1989 = vld [vmem:[%s1973 + $0x3c] sm:$0xf]
        %v2006 = vunpack.c.l.b16 %v1974
        %v2007 = vunpack.c.l.b16 %v1975
        %v2008 = vunpack.c.l.b16 %v1976
        %v2009 = vunpack.c.l.b16 %v1977
        %v2010 = vunpack.c.l.b16 %v1978
        %v2011 = vunpack.c.l.b16 %v1979
        %v2012 = vunpack.c.l.b16 %v1980
        %v2013 = vunpack.c.l.b16 %v1981
        %v2014 = vunpack.c.l.b16 %v1982
        %v2015 = vunpack.c.l.b16 %v1983
        %v2016 = vunpack.c.l.b16 %v1984
        %v2017 = vunpack.c.l.b16 %v1985
        %v2018 = vunpack.c.l.b16 %v1986
        %v2019 = vunpack.c.l.b16 %v1987
        %v2020 = vunpack.c.l.b16 %v1988
        %v2021 = vunpack.c.l.b16 %v1989
        %v2022 = vpack.c.b16 %v2007, %v2006
        %v2023 = vpack.c.b16 %v2009, %v2008
        %v2024 = vpack.c.b16 %v2011, %v2010
        %v2025 = vpack.c.b16 %v2013, %v2012
        %v2026 = vpack.c.b16 %v2015, %v2014
        %v2027 = vpack.c.b16 %v2017, %v2016
        %v2028 = vpack.c.b16 %v2019, %v2018
        %v2029 = vpack.c.b16 %v2021, %v2020
        %2038 = vmatprep.subr.bf16.mxu0 0
        %2039 = vmatpush1.bf16.msra.mxu0 %v2022
        %2040 = vmatprep.subr.bf16.mxu0 0
        %2041 = vmatpush1.bf16.msra.mxu0 %v2023
        %2042 = vmatprep.subr.bf16.mxu0 0
        %2043 = vmatpush1.bf16.msra.mxu0 %v2024
        %2044 = vmatprep.subr.bf16.mxu0 0
        %2045 = vmatpush1.bf16.msra.mxu0 %v2025
        %2046 = vmatprep.subr.bf16.mxu0 0
        %2047 = vmatpush1.bf16.msra.mxu0 %v2026
        %2048 = vmatprep.subr.bf16.mxu0 0
        %2049 = vmatpush1.bf16.msra.mxu0 %v2027
        %2050 = vmatprep.subr.bf16.mxu0 0
        %2051 = vmatpush1.bf16.msra.mxu0 %v2028
        %2052 = vmatprep.subr.bf16.mxu0 0
        %2053 = vmatpush1.bf16.msra.mxu0 %v2029
        %2054 = vmatprep.subr.bf16.mxu0 0
        %2055 = vmatpush1.bf16.msra.mxu0 0
        %2056 = vmatprep.subr.bf16.mxu0 0
        %2057 = vmatpush1.bf16.msra.mxu0 0
        %2058 = vmatprep.subr.bf16.mxu0 0
        %2059 = vmatpush1.bf16.msra.mxu0 0
        %2060 = vmatprep.subr.bf16.mxu0 0
        %2061 = vmatpush1.bf16.msra.mxu0 0
        %2062 = vmatprep.subr.bf16.mxu0 0
        %2063 = vmatpush1.bf16.msra.mxu0 0
        %2064 = vmatprep.subr.bf16.mxu0 0
        %2065 = vmatpush1.bf16.msra.mxu0 0
        %2066 = vmatprep.subr.bf16.mxu0 0
        %2067 = vmatpush1.bf16.msra.mxu0 0
        %2068 = vmatprep.subr.bf16.mxu0 0
        %2069 = vmatpush1.bf16.msra.mxu0 0
        %2070 = vmatprep.mubr.bf16.mxu0 0
        %2071 = vmatmul.mubr.bf16.gmra.mrb[0].mxu0 %v1164
        %v2072 = vpop.f32.mrb[0].mxu0
        %v2073 = vadd.f32 0.0, %v2072
        %v2074 = vpop.f32.mrb[0].mxu0
        %v2075 = vpop.f32.mrb[0].mxu0
        %v2076 = vadd.f32 0.0, %v2075
        %v2077 = vpop.f32.mrb[0].mxu0
        %2078 = vmatprep.mubr.bf16.mxu0 0
        %2079 = vmatmul.mubr.bf16.gmra.mrb[0].mxu0 %v1165
        %v2080 = vpop.f32.mrb[0].mxu0
        %v2081 = vadd.f32 0.0, %v2080
        %v2082 = vpop.f32.mrb[0].mxu0
        %v2083 = vpop.f32.mrb[0].mxu0
        %v2084 = vadd.f32 0.0, %v2083
        %v2085 = vpop.f32.mrb[0].mxu0
        %2086 = vmatprep.mubr.bf16.mxu0 0
        %2087 = vmatmul.mubr.bf16.gmra.mrb[0].mxu0 %v1166
        %v2088 = vpop.f32.mrb[0].mxu0
        %v2089 = vadd.f32 0.0, %v2088
        %v2090 = vpop.f32.mrb[0].mxu0
        %v2091 = vpop.f32.mrb[0].mxu0
        %v2092 = vadd.f32 0.0, %v2091
        %v2093 = vpop.f32.mrb[0].mxu0
        %2094 = vmatprep.mubr.bf16.mxu0 0
        %2095 = vmatmul.mubr.bf16.gmra.mrb[0].mxu0 %v1167
        %v2096 = vpop.f32.mrb[0].mxu0
        %v2097 = vadd.f32 0.0, %v2096
        %v2098 = vpop.f32.mrb[0].mxu0
        %v2099 = vpop.f32.mrb[0].mxu0
        %v2100 = vadd.f32 0.0, %v2099
        %v2101 = vpop.f32.mrb[0].mxu0
        %2102 = vmatprep.mubr.bf16.mxu0 0
        %2103 = vmatmul.mubr.bf16.gmra.mrb[0].mxu0 %v1168
        %v2104 = vpop.f32.mrb[0].mxu0
        %v2105 = vadd.f32 0.0, %v2104
        %v2106 = vpop.f32.mrb[0].mxu0
        %v2107 = vpop.f32.mrb[0].mxu0
        %v2108 = vadd.f32 0.0, %v2107
        %v2109 = vpop.f32.mrb[0].mxu0
        %2110 = vmatprep.mubr.bf16.mxu0 0
        %2111 = vmatmul.mubr.bf16.gmra.mrb[0].mxu0 %v1169
        %v2112 = vpop.f32.mrb[0].mxu0
        %v2113 = vadd.f32 0.0, %v2112
        %v2114 = vpop.f32.mrb[0].mxu0
        %v2115 = vpop.f32.mrb[0].mxu0
        %v2116 = vadd.f32 0.0, %v2115
        %v2117 = vpop.f32.mrb[0].mxu0
        %2118 = vmatprep.mubr.bf16.mxu0 0
        %2119 = vmatmul.mubr.bf16.gmra.mrb[0].mxu0 %v1170
        %v2120 = vpop.f32.mrb[0].mxu0
        %v2121 = vadd.f32 0.0, %v2120
        %v2122 = vpop.f32.mrb[0].mxu0
        %v2123 = vpop.f32.mrb[0].mxu0
        %v2124 = vadd.f32 0.0, %v2123
        %v2125 = vpop.f32.mrb[0].mxu0
        %2126 = vmatprep.mubr.bf16.mxu0 0
        %2127 = vmatmul.mubr.bf16.gmra.mrb[0].mxu0 %v1171
        %v2128 = vpop.f32.mrb[0].mxu0
        %v2129 = vadd.f32 0.0, %v2128
        %v2130 = vpop.f32.mrb[0].mxu0
        %v2131 = vpop.f32.mrb[0].mxu0
        %v2132 = vadd.f32 0.0, %v2131
        %v2133 = vpop.f32.mrb[0].mxu0
        %2134 = vmatprep.mubr.bf16.mxu0 0
        %2135 = vmatmul.mubr.bf16.gmra.mrb[0].mxu0 %v1172
        %v2136 = vpop.f32.mrb[0].mxu0
        %v2137 = vadd.f32 0.0, %v2136
        %v2138 = vpop.f32.mrb[0].mxu0
        %v2139 = vpop.f32.mrb[0].mxu0
        %v2140 = vadd.f32 0.0, %v2139
        %v2141 = vpop.f32.mrb[0].mxu0
        %2142 = vmatprep.mubr.bf16.mxu0 0
        %2143 = vmatmul.mubr.bf16.gmra.mrb[0].mxu0 %v1173
        %v2144 = vpop.f32.mrb[0].mxu0
        %v2145 = vadd.f32 0.0, %v2144
        %v2146 = vpop.f32.mrb[0].mxu0
        %v2147 = vpop.f32.mrb[0].mxu0
        %v2148 = vadd.f32 0.0, %v2147
        %v2149 = vpop.f32.mrb[0].mxu0
        %2150 = vmatprep.mubr.bf16.mxu0 0
        %2151 = vmatmul.mubr.bf16.gmra.mrb[0].mxu0 %v1174
        %v2152 = vpop.f32.mrb[0].mxu0
        %v2153 = vadd.f32 0.0, %v2152
        %v2154 = vpop.f32.mrb[0].mxu0
        %v2155 = vpop.f32.mrb[0].mxu0
        %v2156 = vadd.f32 0.0, %v2155
        %v2157 = vpop.f32.mrb[0].mxu0
        %2158 = vmatprep.mubr.bf16.mxu0 0
        %2159 = vmatmul.mubr.bf16.gmra.mrb[0].mxu0 %v1175
        %v2160 = vpop.f32.mrb[0].mxu0
        %v2161 = vadd.f32 0.0, %v2160
        %v2162 = vpop.f32.mrb[0].mxu0
        %v2163 = vpop.f32.mrb[0].mxu0
        %v2164 = vadd.f32 0.0, %v2163
        %v2165 = vpop.f32.mrb[0].mxu0
        %2166 = vmatprep.mubr.bf16.mxu0 0
        %2167 = vmatmul.mubr.bf16.gmra.mrb[0].mxu0 %v1176
        %v2168 = vpop.f32.mrb[0].mxu0
        %v2169 = vadd.f32 0.0, %v2168
        %v2170 = vpop.f32.mrb[0].mxu0
        %v2171 = vpop.f32.mrb[0].mxu0
        %v2172 = vadd.f32 0.0, %v2171
        %v2173 = vpop.f32.mrb[0].mxu0
        %2174 = vmatprep.mubr.bf16.mxu0 0
        %2175 = vmatmul.mubr.bf16.gmra.mrb[0].mxu0 %v1177
        %v2176 = vpop.f32.mrb[0].mxu0
        %v2177 = vadd.f32 0.0, %v2176
        %v2178 = vpop.f32.mrb[0].mxu0
        %v2179 = vpop.f32.mrb[0].mxu0
        %v2180 = vadd.f32 0.0, %v2179
        %v2181 = vpop.f32.mrb[0].mxu0
        %2182 = vmatprep.mubr.bf16.mxu0 0
        %2183 = vmatmul.mubr.bf16.gmra.mrb[0].mxu0 %v1178
        %v2184 = vpop.f32.mrb[0].mxu0
        %v2185 = vadd.f32 0.0, %v2184
        %v2186 = vpop.f32.mrb[0].mxu0
        %v2187 = vpop.f32.mrb[0].mxu0
        %v2188 = vadd.f32 0.0, %v2187
        %v2189 = vpop.f32.mrb[0].mxu0
        %2190 = vmatprep.mubr.bf16.mxu0 0
        %2191 = vmatmul.mubr.bf16.gmra.mrb[0].mxu0 %v1972
        %v2192 = vpop.f32.mrb[0].mxu0
        %v2193 = vadd.f32 0.0, %v2192
        %v2194 = vpop.f32.mrb[0].mxu0
        %v2195 = vpop.f32.mrb[0].mxu0
        %v2196 = vadd.f32 0.0, %v2195
        %v2197 = vpop.f32.mrb[0].mxu0
        %2198 = vdwg.mxu0
        %v2199 = vadd.f32 %v1933, %v2073
        %v2200 = vadd.f32 %v1934, %v2076
        %v2201 = vadd.f32 %v1935, %v2081
        %v2202 = vadd.f32 %v1936, %v2084
        %v2203 = vadd.f32 %v1937, %v2089
        %v2204 = vadd.f32 %v1938, %v2092
        %v2205 = vadd.f32 %v1939, %v2097
        %v2206 = vadd.f32 %v1940, %v2100
        %v2207 = vadd.f32 %v1941, %v2105
        %v2208 = vadd.f32 %v1942, %v2108
        %v2209 = vadd.f32 %v1943, %v2113
        %v2210 = vadd.f32 %v1944, %v2116
        %v2211 = vadd.f32 %v1945, %v2121
        %v2212 = vadd.f32 %v1946, %v2124
        %v2213 = vadd.f32 %v1947, %v2129
        %v2214 = vadd.f32 %v1948, %v2132
        %v2215 = vadd.f32 %v1949, %v2137
        %v2216 = vadd.f32 %v1950, %v2140
        %v2217 = vadd.f32 %v1951, %v2145
        %v2218 = vadd.f32 %v1952, %v2148
        %v2219 = vadd.f32 %v1953, %v2153
        %v2220 = vadd.f32 %v1954, %v2156
        %v2221 = vadd.f32 %v1955, %v2161
        %v2222 = vadd.f32 %v1956, %v2164
        %v2223 = vadd.f32 %v1957, %v2169
        %v2224 = vadd.f32 %v1958, %v2172
        %v2225 = vadd.f32 %v1959, %v2177
        %v2226 = vadd.f32 %v1960, %v2180
        %v2227 = vadd.f32 %v1961, %v2185
        %v2228 = vadd.f32 %v1962, %v2188
        %v2229 = vadd.f32 %v1963, %v2193
        %v2230 = vadd.f32 %v1964, %v2196
        %v2231 = vpack.c.bf16 %v404, %v403
        %s2232 = scalar_lea.vmem %s2, 384
        %v2233 = vld [vmem:[%s2232] sm:$0xf]
        %v2234 = vld [vmem:[%s2232 + $0x4] sm:$0xf]
        %v2235 = vld [vmem:[%s2232 + $0x8] sm:$0xf]
        %v2236 = vld [vmem:[%s2232 + $0xc] sm:$0xf]
        %v2237 = vld [vmem:[%s2232 + $0x10] sm:$0xf]
        %v2238 = vld [vmem:[%s2232 + $0x14] sm:$0xf]
        %v2239 = vld [vmem:[%s2232 + $0x18] sm:$0xf]
        %v2240 = vld [vmem:[%s2232 + $0x1c] sm:$0xf]
        %v2241 = vld [vmem:[%s2232 + $0x20] sm:$0xf]
        %v2242 = vld [vmem:[%s2232 + $0x24] sm:$0xf]
        %v2243 = vld [vmem:[%s2232 + $0x28] sm:$0xf]
        %v2244 = vld [vmem:[%s2232 + $0x2c] sm:$0xf]
        %v2245 = vld [vmem:[%s2232 + $0x30] sm:$0xf]
        %v2246 = vld [vmem:[%s2232 + $0x34] sm:$0xf]
        %v2247 = vld [vmem:[%s2232 + $0x38] sm:$0xf]
        %v2248 = vld [vmem:[%s2232 + $0x3c] sm:$0xf]
        %v2265 = vunpack.c.l.b16 %v2233
        %v2266 = vunpack.c.l.b16 %v2234
        %v2267 = vunpack.c.l.b16 %v2235
        %v2268 = vunpack.c.l.b16 %v2236
        %v2269 = vunpack.c.l.b16 %v2237
        %v2270 = vunpack.c.l.b16 %v2238
        %v2271 = vunpack.c.l.b16 %v2239
        %v2272 = vunpack.c.l.b16 %v2240
        %v2273 = vunpack.c.l.b16 %v2241
        %v2274 = vunpack.c.l.b16 %v2242
        %v2275 = vunpack.c.l.b16 %v2243
        %v2276 = vunpack.c.l.b16 %v2244
        %v2277 = vunpack.c.l.b16 %v2245
        %v2278 = vunpack.c.l.b16 %v2246
        %v2279 = vunpack.c.l.b16 %v2247
        %v2280 = vunpack.c.l.b16 %v2248
        %v2281 = vpack.c.b16 %v2266, %v2265
        %v2282 = vpack.c.b16 %v2268, %v2267
        %v2283 = vpack.c.b16 %v2270, %v2269
        %v2284 = vpack.c.b16 %v2272, %v2271
        %v2285 = vpack.c.b16 %v2274, %v2273
        %v2286 = vpack.c.b16 %v2276, %v2275
        %v2287 = vpack.c.b16 %v2278, %v2277
        %v2288 = vpack.c.b16 %v2280, %v2279
        %2297 = vmatprep.subr.bf16.mxu0 0
        %2298 = vmatpush1.bf16.msra.mxu0 %v2281
        %2299 = vmatprep.subr.bf16.mxu0 0
        %2300 = vmatpush1.bf16.msra.mxu0 %v2282
        %2301 = vmatprep.subr.bf16.mxu0 0
        %2302 = vmatpush1.bf16.msra.mxu0 %v2283
        %2303 = vmatprep.subr.bf16.mxu0 0
        %2304 = vmatpush1.bf16.msra.mxu0 %v2284
        %2305 = vmatprep.subr.bf16.mxu0 0
        %2306 = vmatpush1.bf16.msra.mxu0 %v2285
        %2307 = vmatprep.subr.bf16.mxu0 0
        %2308 = vmatpush1.bf16.msra.mxu0 %v2286
        %2309 = vmatprep.subr.bf16.mxu0 0
        %2310 = vmatpush1.bf16.msra.mxu0 %v2287
        %2311 = vmatprep.subr.bf16.mxu0 0
        %2312 = vmatpush1.bf16.msra.mxu0 %v2288
        %2313 = vmatprep.subr.bf16.mxu0 0
        %2314 = vmatpush1.bf16.msra.mxu0 0
        %2315 = vmatprep.subr.bf16.mxu0 0
        %2316 = vmatpush1.bf16.msra.mxu0 0
        %2317 = vmatprep.subr.bf16.mxu0 0
        %2318 = vmatpush1.bf16.msra.mxu0 0
        %2319 = vmatprep.subr.bf16.mxu0 0
        %2320 = vmatpush1.bf16.msra.mxu0 0
        %2321 = vmatprep.subr.bf16.mxu0 0
        %2322 = vmatpush1.bf16.msra.mxu0 0
        %2323 = vmatprep.subr.bf16.mxu0 0
        %2324 = vmatpush1.bf16.msra.mxu0 0
        %2325 = vmatprep.subr.bf16.mxu0 0
        %2326 = vmatpush1.bf16.msra.mxu0 0
        %2327 = vmatprep.subr.bf16.mxu0 0
        %2328 = vmatpush1.bf16.msra.mxu0 0
        %2329 = vmatprep.mubr.bf16.mxu0 0
        %2330 = vmatmul.mubr.bf16.gmra.mrb[0].mxu0 %v408
        %v2331 = vpop.f32.mrb[0].mxu0
        %v2332 = vadd.f32 0.0, %v2331
        %v2333 = vpop.f32.mrb[0].mxu0
        %v2334 = vpop.f32.mrb[0].mxu0
        %v2335 = vadd.f32 0.0, %v2334
        %v2336 = vpop.f32.mrb[0].mxu0
        %2337 = vmatprep.mubr.bf16.mxu0 0
        %2338 = vmatmul.mubr.bf16.gmra.mrb[0].mxu0 %v409
        %v2339 = vpop.f32.mrb[0].mxu0
        %v2340 = vadd.f32 0.0, %v2339
        %v2341 = vpop.f32.mrb[0].mxu0
        %v2342 = vpop.f32.mrb[0].mxu0
        %v2343 = vadd.f32 0.0, %v2342
        %v2344 = vpop.f32.mrb[0].mxu0
        %2345 = vmatprep.mubr.bf16.mxu0 0
        %2346 = vmatmul.mubr.bf16.gmra.mrb[0].mxu0 %v410
        %v2347 = vpop.f32.mrb[0].mxu0
        %v2348 = vadd.f32 0.0, %v2347
        %v2349 = vpop.f32.mrb[0].mxu0
        %v2350 = vpop.f32.mrb[0].mxu0
        %v2351 = vadd.f32 0.0, %v2350
        %v2352 = vpop.f32.mrb[0].mxu0
        %2353 = vmatprep.mubr.bf16.mxu0 0
        %2354 = vmatmul.mubr.bf16.gmra.mrb[0].mxu0 %v411
        %v2355 = vpop.f32.mrb[0].mxu0
        %v2356 = vadd.f32 0.0, %v2355
        %v2357 = vpop.f32.mrb[0].mxu0
        %v2358 = vpop.f32.mrb[0].mxu0
        %v2359 = vadd.f32 0.0, %v2358
        %v2360 = vpop.f32.mrb[0].mxu0
        %2361 = vmatprep.mubr.bf16.mxu0 0
        %2362 = vmatmul.mubr.bf16.gmra.mrb[0].mxu0 %v412
        %v2363 = vpop.f32.mrb[0].mxu0
        %v2364 = vadd.f32 0.0, %v2363
        %v2365 = vpop.f32.mrb[0].mxu0
        %v2366 = vpop.f32.mrb[0].mxu0
        %v2367 = vadd.f32 0.0, %v2366
        %v2368 = vpop.f32.mrb[0].mxu0
        %2369 = vmatprep.mubr.bf16.mxu0 0
        %2370 = vmatmul.mubr.bf16.gmra.mrb[0].mxu0 %v413
        %v2371 = vpop.f32.mrb[0].mxu0
        %v2372 = vadd.f32 0.0, %v2371
        %v2373 = vpop.f32.mrb[0].mxu0
        %v2374 = vpop.f32.mrb[0].mxu0
        %v2375 = vadd.f32 0.0, %v2374
        %v2376 = vpop.f32.mrb[0].mxu0
        %2377 = vmatprep.mubr.bf16.mxu0 0
        %2378 = vmatmul.mubr.bf16.gmra.mrb[0].mxu0 %v414
        %v2379 = vpop.f32.mrb[0].mxu0
        %v2380 = vadd.f32 0.0, %v2379
        %v2381 = vpop.f32.mrb[0].mxu0
        %v2382 = vpop.f32.mrb[0].mxu0
        %v2383 = vadd.f32 0.0, %v2382
        %v2384 = vpop.f32.mrb[0].mxu0
        %2385 = vmatprep.mubr.bf16.mxu0 0
        %2386 = vmatmul.mubr.bf16.gmra.mrb[0].mxu0 %v415
        %v2387 = vpop.f32.mrb[0].mxu0
        %v2388 = vadd.f32 0.0, %v2387
        %v2389 = vpop.f32.mrb[0].mxu0
        %v2390 = vpop.f32.mrb[0].mxu0
        %v2391 = vadd.f32 0.0, %v2390
        %v2392 = vpop.f32.mrb[0].mxu0
        %2393 = vmatprep.mubr.bf16.mxu0 0
        %2394 = vmatmul.mubr.bf16.gmra.mrb[0].mxu0 %v416
        %v2395 = vpop.f32.mrb[0].mxu0
        %v2396 = vadd.f32 0.0, %v2395
        %v2397 = vpop.f32.mrb[0].mxu0
        %v2398 = vpop.f32.mrb[0].mxu0
        %v2399 = vadd.f32 0.0, %v2398
        %v2400 = vpop.f32.mrb[0].mxu0
        %2401 = vmatprep.mubr.bf16.mxu0 0
        %2402 = vmatmul.mubr.bf16.gmra.mrb[0].mxu0 %v417
        %v2403 = vpop.f32.mrb[0].mxu0
        %v2404 = vadd.f32 0.0, %v2403
        %v2405 = vpop.f32.mrb[0].mxu0
        %v2406 = vpop.f32.mrb[0].mxu0
        %v2407 = vadd.f32 0.0, %v2406
        %v2408 = vpop.f32.mrb[0].mxu0
        %2409 = vmatprep.mubr.bf16.mxu0 0
        %2410 = vmatmul.mubr.bf16.gmra.mrb[0].mxu0 %v418
        %v2411 = vpop.f32.mrb[0].mxu0
        %v2412 = vadd.f32 0.0, %v2411
        %v2413 = vpop.f32.mrb[0].mxu0
        %v2414 = vpop.f32.mrb[0].mxu0
        %v2415 = vadd.f32 0.0, %v2414
        %v2416 = vpop.f32.mrb[0].mxu0
        %2417 = vmatprep.mubr.bf16.mxu0 0
        %2418 = vmatmul.mubr.bf16.gmra.mrb[0].mxu0 %v419
        %v2419 = vpop.f32.mrb[0].mxu0
        %v2420 = vadd.f32 0.0, %v2419
        %v2421 = vpop.f32.mrb[0].mxu0
        %v2422 = vpop.f32.mrb[0].mxu0
        %v2423 = vadd.f32 0.0, %v2422
        %v2424 = vpop.f32.mrb[0].mxu0
        %2425 = vmatprep.mubr.bf16.mxu0 0
        %2426 = vmatmul.mubr.bf16.gmra.mrb[0].mxu0 %v420
        %v2427 = vpop.f32.mrb[0].mxu0
        %v2428 = vadd.f32 0.0, %v2427
        %v2429 = vpop.f32.mrb[0].mxu0
        %v2430 = vpop.f32.mrb[0].mxu0
        %v2431 = vadd.f32 0.0, %v2430
        %v2432 = vpop.f32.mrb[0].mxu0
        %2433 = vmatprep.mubr.bf16.mxu0 0
        %2434 = vmatmul.mubr.bf16.gmra.mrb[0].mxu0 %v421
        %v2435 = vpop.f32.mrb[0].mxu0
        %v2436 = vadd.f32 0.0, %v2435
        %v2437 = vpop.f32.mrb[0].mxu0
        %v2438 = vpop.f32.mrb[0].mxu0
        %v2439 = vadd.f32 0.0, %v2438
        %v2440 = vpop.f32.mrb[0].mxu0
        %2441 = vmatprep.mubr.bf16.mxu0 0
        %2442 = vmatmul.mubr.bf16.gmra.mrb[0].mxu0 %v1437
        %v2443 = vpop.f32.mrb[0].mxu0
        %v2444 = vadd.f32 0.0, %v2443
        %v2445 = vpop.f32.mrb[0].mxu0
        %v2446 = vpop.f32.mrb[0].mxu0
        %v2447 = vadd.f32 0.0, %v2446
        %v2448 = vpop.f32.mrb[0].mxu0
        %2449 = vmatprep.mubr.bf16.mxu0 0
        %2450 = vmatmul.mubr.bf16.gmra.mrb[0].mxu0 %v2231
        %v2451 = vpop.f32.mrb[0].mxu0
        %v2452 = vadd.f32 0.0, %v2451
        %v2453 = vpop.f32.mrb[0].mxu0
        %v2454 = vpop.f32.mrb[0].mxu0
        %v2455 = vadd.f32 0.0, %v2454
        %v2456 = vpop.f32.mrb[0].mxu0
        %2457 = vdwg.mxu0
        %v2458 = vadd.f32 %v2199, %v2332
        %v2459 = vadd.f32 %v2200, %v2335
        %v2460 = vadd.f32 %v2201, %v2340
        %v2461 = vadd.f32 %v2202, %v2343
        %v2462 = vadd.f32 %v2203, %v2348
        %v2463 = vadd.f32 %v2204, %v2351
        %v2464 = vadd.f32 %v2205, %v2356
        %v2465 = vadd.f32 %v2206, %v2359
        %v2466 = vadd.f32 %v2207, %v2364
        %v2467 = vadd.f32 %v2208, %v2367
        %v2468 = vadd.f32 %v2209, %v2372
        %v2469 = vadd.f32 %v2210, %v2375
        %v2470 = vadd.f32 %v2211, %v2380
        %v2471 = vadd.f32 %v2212, %v2383
        %v2472 = vadd.f32 %v2213, %v2388
        %v2473 = vadd.f32 %v2214, %v2391
        %v2474 = vadd.f32 %v2215, %v2396
        %v2475 = vadd.f32 %v2216, %v2399
        %v2476 = vadd.f32 %v2217, %v2404
        %v2477 = vadd.f32 %v2218, %v2407
        %v2478 = vadd.f32 %v2219, %v2412
        %v2479 = vadd.f32 %v2220, %v2415
        %v2480 = vadd.f32 %v2221, %v2420
        %v2481 = vadd.f32 %v2222, %v2423
        %v2482 = vadd.f32 %v2223, %v2428
        %v2483 = vadd.f32 %v2224, %v2431
        %v2484 = vadd.f32 %v2225, %v2436
        %v2485 = vadd.f32 %v2226, %v2439
        %v2486 = vadd.f32 %v2227, %v2444
        %v2487 = vadd.f32 %v2228, %v2447
        %v2488 = vadd.f32 %v2229, %v2452
        %v2489 = vadd.f32 %v2230, %v2455
        %v2493 = vrot.slane %v403, 1
        %v2494 = vrot.slane %v404, 1
        %v2495 = vsel %vm486, %v2493, %v2494
        %v2496 = vrot.slane %v405, 1
        %v2497 = vsel %vm486, %v2494, %v2496
        %v2500 = vpack.c.bf16 %v2497, %v2495
        %s2501 = scalar_lea.vmem %s2, 448
        %v2502 = vld [vmem:[%s2501] sm:$0xf]
        %v2503 = vld [vmem:[%s2501 + $0x4] sm:$0xf]
        %v2504 = vld [vmem:[%s2501 + $0x8] sm:$0xf]
        %v2505 = vld [vmem:[%s2501 + $0xc] sm:$0xf]
        %v2506 = vld [vmem:[%s2501 + $0x10] sm:$0xf]
        %v2507 = vld [vmem:[%s2501 + $0x14] sm:$0xf]
        %v2508 = vld [vmem:[%s2501 + $0x18] sm:$0xf]
        %v2509 = vld [vmem:[%s2501 + $0x1c] sm:$0xf]
        %v2510 = vld [vmem:[%s2501 + $0x20] sm:$0xf]
        %v2511 = vld [vmem:[%s2501 + $0x24] sm:$0xf]
        %v2512 = vld [vmem:[%s2501 + $0x28] sm:$0xf]
        %v2513 = vld [vmem:[%s2501 + $0x2c] sm:$0xf]
        %v2514 = vld [vmem:[%s2501 + $0x30] sm:$0xf]
        %v2515 = vld [vmem:[%s2501 + $0x34] sm:$0xf]
        %v2516 = vld [vmem:[%s2501 + $0x38] sm:$0xf]
        %v2517 = vld [vmem:[%s2501 + $0x3c] sm:$0xf]
        %v2534 = vunpack.c.l.b16 %v2502
        %v2535 = vunpack.c.l.b16 %v2503
        %v2536 = vunpack.c.l.b16 %v2504
        %v2537 = vunpack.c.l.b16 %v2505
        %v2538 = vunpack.c.l.b16 %v2506
        %v2539 = vunpack.c.l.b16 %v2507
        %v2540 = vunpack.c.l.b16 %v2508
        %v2541 = vunpack.c.l.b16 %v2509
        %v2542 = vunpack.c.l.b16 %v2510
        %v2543 = vunpack.c.l.b16 %v2511
        %v2544 = vunpack.c.l.b16 %v2512
        %v2545 = vunpack.c.l.b16 %v2513
        %v2546 = vunpack.c.l.b16 %v2514
        %v2547 = vunpack.c.l.b16 %v2515
        %v2548 = vunpack.c.l.b16 %v2516
        %v2549 = vunpack.c.l.b16 %v2517
        %v2550 = vpack.c.b16 %v2535, %v2534
        %v2551 = vpack.c.b16 %v2537, %v2536
        %v2552 = vpack.c.b16 %v2539, %v2538
        %v2553 = vpack.c.b16 %v2541, %v2540
        %v2554 = vpack.c.b16 %v2543, %v2542
        %v2555 = vpack.c.b16 %v2545, %v2544
        %v2556 = vpack.c.b16 %v2547, %v2546
        %v2557 = vpack.c.b16 %v2549, %v2548
        %2566 = vmatprep.subr.bf16.mxu0 0
        %2567 = vmatpush1.bf16.msra.mxu0 %v2550
        %2568 = vmatprep.subr.bf16.mxu0 0
        %2569 = vmatpush1.bf16.msra.mxu0 %v2551
        %2570 = vmatprep.subr.bf16.mxu0 0
        %2571 = vmatpush1.bf16.msra.mxu0 %v2552
        %2572 = vmatprep.subr.bf16.mxu0 0
        %2573 = vmatpush1.bf16.msra.mxu0 %v2553
        %2574 = vmatprep.subr.bf16.mxu0 0
        %2575 = vmatpush1.bf16.msra.mxu0 %v2554
        %2576 = vmatprep.subr.bf16.mxu0 0
        %2577 = vmatpush1.bf16.msra.mxu0 %v2555
        %2578 = vmatprep.subr.bf16.mxu0 0
        %2579 = vmatpush1.bf16.msra.mxu0 %v2556
        %2580 = vmatprep.subr.bf16.mxu0 0
        %2581 = vmatpush1.bf16.msra.mxu0 %v2557
        %2582 = vmatprep.subr.bf16.mxu0 0
        %2583 = vmatpush1.bf16.msra.mxu0 0
        %2584 = vmatprep.subr.bf16.mxu0 0
        %2585 = vmatpush1.bf16.msra.mxu0 0
        %2586 = vmatprep.subr.bf16.mxu0 0
        %2587 = vmatpush1.bf16.msra.mxu0 0
        %2588 = vmatprep.subr.bf16.mxu0 0
        %2589 = vmatpush1.bf16.msra.mxu0 0
        %2590 = vmatprep.subr.bf16.mxu0 0
        %2591 = vmatpush1.bf16.msra.mxu0 0
        %2592 = vmatprep.subr.bf16.mxu0 0
        %2593 = vmatpush1.bf16.msra.mxu0 0
        %2594 = vmatprep.subr.bf16.mxu0 0
        %2595 = vmatpush1.bf16.msra.mxu0 0
        %2596 = vmatprep.subr.bf16.mxu0 0
        %2597 = vmatpush1.bf16.msra.mxu0 0
        %2598 = vmatprep.mubr.bf16.mxu0 0
        %2599 = vmatmul.mubr.bf16.gmra.mrb[0].mxu0 %v601
        %v2600 = vpop.f32.mrb[0].mxu0
        %v2601 = vadd.f32 0.0, %v2600
        %v2602 = vpop.f32.mrb[0].mxu0
        %v2603 = vpop.f32.mrb[0].mxu0
        %v2604 = vadd.f32 0.0, %v2603
        %v2605 = vpop.f32.mrb[0].mxu0
        %2606 = vmatprep.mubr.bf16.mxu0 0
        %2607 = vmatmul.mubr.bf16.gmra.mrb[0].mxu0 %v602
        %v2608 = vpop.f32.mrb[0].mxu0
        %v2609 = vadd.f32 0.0, %v2608
        %v2610 = vpop.f32.mrb[0].mxu0
        %v2611 = vpop.f32.mrb[0].mxu0
        %v2612 = vadd.f32 0.0, %v2611
        %v2613 = vpop.f32.mrb[0].mxu0
        %2614 = vmatprep.mubr.bf16.mxu0 0
        %2615 = vmatmul.mubr.bf16.gmra.mrb[0].mxu0 %v603
        %v2616 = vpop.f32.mrb[0].mxu0
        %v2617 = vadd.f32 0.0, %v2616
        %v2618 = vpop.f32.mrb[0].mxu0
        %v2619 = vpop.f32.mrb[0].mxu0
        %v2620 = vadd.f32 0.0, %v2619
        %v2621 = vpop.f32.mrb[0].mxu0
        %2622 = vmatprep.mubr.bf16.mxu0 0
        %2623 = vmatmul.mubr.bf16.gmra.mrb[0].mxu0 %v604
        %v2624 = vpop.f32.mrb[0].mxu0
        %v2625 = vadd.f32 0.0, %v2624
        %v2626 = vpop.f32.mrb[0].mxu0
        %v2627 = vpop.f32.mrb[0].mxu0
        %v2628 = vadd.f32 0.0, %v2627
        %v2629 = vpop.f32.mrb[0].mxu0
        %2630 = vmatprep.mubr.bf16.mxu0 0
        %2631 = vmatmul.mubr.bf16.gmra.mrb[0].mxu0 %v605
        %v2632 = vpop.f32.mrb[0].mxu0
        %v2633 = vadd.f32 0.0, %v2632
        %v2634 = vpop.f32.mrb[0].mxu0
        %v2635 = vpop.f32.mrb[0].mxu0
        %v2636 = vadd.f32 0.0, %v2635
        %v2637 = vpop.f32.mrb[0].mxu0
        %2638 = vmatprep.mubr.bf16.mxu0 0
        %2639 = vmatmul.mubr.bf16.gmra.mrb[0].mxu0 %v606
        %v2640 = vpop.f32.mrb[0].mxu0
        %v2641 = vadd.f32 0.0, %v2640
        %v2642 = vpop.f32.mrb[0].mxu0
        %v2643 = vpop.f32.mrb[0].mxu0
        %v2644 = vadd.f32 0.0, %v2643
        %v2645 = vpop.f32.mrb[0].mxu0
        %2646 = vmatprep.mubr.bf16.mxu0 0
        %2647 = vmatmul.mubr.bf16.gmra.mrb[0].mxu0 %v607
        %v2648 = vpop.f32.mrb[0].mxu0
        %v2649 = vadd.f32 0.0, %v2648
        %v2650 = vpop.f32.mrb[0].mxu0
        %v2651 = vpop.f32.mrb[0].mxu0
        %v2652 = vadd.f32 0.0, %v2651
        %v2653 = vpop.f32.mrb[0].mxu0
        %2654 = vmatprep.mubr.bf16.mxu0 0
        %2655 = vmatmul.mubr.bf16.gmra.mrb[0].mxu0 %v608
        %v2656 = vpop.f32.mrb[0].mxu0
        %v2657 = vadd.f32 0.0, %v2656
        %v2658 = vpop.f32.mrb[0].mxu0
        %v2659 = vpop.f32.mrb[0].mxu0
        %v2660 = vadd.f32 0.0, %v2659
        %v2661 = vpop.f32.mrb[0].mxu0
        %2662 = vmatprep.mubr.bf16.mxu0 0
        %2663 = vmatmul.mubr.bf16.gmra.mrb[0].mxu0 %v609
        %v2664 = vpop.f32.mrb[0].mxu0
        %v2665 = vadd.f32 0.0, %v2664
        %v2666 = vpop.f32.mrb[0].mxu0
        %v2667 = vpop.f32.mrb[0].mxu0
        %v2668 = vadd.f32 0.0, %v2667
        %v2669 = vpop.f32.mrb[0].mxu0
        %2670 = vmatprep.mubr.bf16.mxu0 0
        %2671 = vmatmul.mubr.bf16.gmra.mrb[0].mxu0 %v610
        %v2672 = vpop.f32.mrb[0].mxu0
        %v2673 = vadd.f32 0.0, %v2672
        %v2674 = vpop.f32.mrb[0].mxu0
        %v2675 = vpop.f32.mrb[0].mxu0
        %v2676 = vadd.f32 0.0, %v2675
        %v2677 = vpop.f32.mrb[0].mxu0
        %2678 = vmatprep.mubr.bf16.mxu0 0
        %2679 = vmatmul.mubr.bf16.gmra.mrb[0].mxu0 %v611
        %v2680 = vpop.f32.mrb[0].mxu0
        %v2681 = vadd.f32 0.0, %v2680
        %v2682 = vpop.f32.mrb[0].mxu0
        %v2683 = vpop.f32.mrb[0].mxu0
        %v2684 = vadd.f32 0.0, %v2683
        %v2685 = vpop.f32.mrb[0].mxu0
        %2686 = vmatprep.mubr.bf16.mxu0 0
        %2687 = vmatmul.mubr.bf16.gmra.mrb[0].mxu0 %v612
        %v2688 = vpop.f32.mrb[0].mxu0
        %v2689 = vadd.f32 0.0, %v2688
        %v2690 = vpop.f32.mrb[0].mxu0
        %v2691 = vpop.f32.mrb[0].mxu0
        %v2692 = vadd.f32 0.0, %v2691
        %v2693 = vpop.f32.mrb[0].mxu0
        %2694 = vmatprep.mubr.bf16.mxu0 0
        %2695 = vmatmul.mubr.bf16.gmra.mrb[0].mxu0 %v613
        %v2696 = vpop.f32.mrb[0].mxu0
        %v2697 = vadd.f32 0.0, %v2696
        %v2698 = vpop.f32.mrb[0].mxu0
        %v2699 = vpop.f32.mrb[0].mxu0
        %v2700 = vadd.f32 0.0, %v2699
        %v2701 = vpop.f32.mrb[0].mxu0
        %2702 = vmatprep.mubr.bf16.mxu0 0
        %2703 = vmatmul.mubr.bf16.gmra.mrb[0].mxu0 %v614
        %v2704 = vpop.f32.mrb[0].mxu0
        %v2705 = vadd.f32 0.0, %v2704
        %v2706 = vpop.f32.mrb[0].mxu0
        %v2707 = vpop.f32.mrb[0].mxu0
        %v2708 = vadd.f32 0.0, %v2707
        %v2709 = vpop.f32.mrb[0].mxu0
        %2710 = vmatprep.mubr.bf16.mxu0 0
        %2711 = vmatmul.mubr.bf16.gmra.mrb[0].mxu0 %v1706
        %v2712 = vpop.f32.mrb[0].mxu0
        %v2713 = vadd.f32 0.0, %v2712
        %v2714 = vpop.f32.mrb[0].mxu0
        %v2715 = vpop.f32.mrb[0].mxu0
        %v2716 = vadd.f32 0.0, %v2715
        %v2717 = vpop.f32.mrb[0].mxu0
        %2718 = vmatprep.mubr.bf16.mxu0 0
        %2719 = vmatmul.mubr.bf16.gmra.mrb[0].mxu0 %v2500
        %v2720 = vpop.f32.mrb[0].mxu0
        %v2721 = vadd.f32 0.0, %v2720
        %v2722 = vpop.f32.mrb[0].mxu0
        %v2723 = vpop.f32.mrb[0].mxu0
        %v2724 = vadd.f32 0.0, %v2723
        %v2725 = vpop.f32.mrb[0].mxu0
        %2726 = vdwg.mxu0
        %v2727 = vadd.f32 %v2458, %v2601
        %v2728 = vadd.f32 %v2459, %v2604
        %v2729 = vadd.f32 %v2460, %v2609
        %v2730 = vadd.f32 %v2461, %v2612
        %v2731 = vadd.f32 %v2462, %v2617
        %v2732 = vadd.f32 %v2463, %v2620
        %v2733 = vadd.f32 %v2464, %v2625
        %v2734 = vadd.f32 %v2465, %v2628
        %v2735 = vadd.f32 %v2466, %v2633
        %v2736 = vadd.f32 %v2467, %v2636
        %v2737 = vadd.f32 %v2468, %v2641
        %v2738 = vadd.f32 %v2469, %v2644
        %v2739 = vadd.f32 %v2470, %v2649
        %v2740 = vadd.f32 %v2471, %v2652
        %v2741 = vadd.f32 %v2472, %v2657
        %v2742 = vadd.f32 %v2473, %v2660
        %v2743 = vadd.f32 %v2474, %v2665
        %v2744 = vadd.f32 %v2475, %v2668
        %v2745 = vadd.f32 %v2476, %v2673
        %v2746 = vadd.f32 %v2477, %v2676
        %v2747 = vadd.f32 %v2478, %v2681
        %v2748 = vadd.f32 %v2479, %v2684
        %v2749 = vadd.f32 %v2480, %v2689
        %v2750 = vadd.f32 %v2481, %v2692
        %v2751 = vadd.f32 %v2482, %v2697
        %v2752 = vadd.f32 %v2483, %v2700
        %v2753 = vadd.f32 %v2484, %v2705
        %v2754 = vadd.f32 %v2485, %v2708
        %v2755 = vadd.f32 %v2486, %v2713
        %v2756 = vadd.f32 %v2487, %v2716
        %v2757 = vadd.f32 %v2488, %v2721
        %v2758 = vadd.f32 %v2489, %v2724
        %v2759 = vrot.slane %v403, 2
        %v2760 = vrot.slane %v404, 2
        %v2761 = vsel %vm1050, %v2759, %v2760
        %v2762 = vrot.slane %v405, 2
        %v2763 = vsel %vm1050, %v2760, %v2762
        %v2766 = vpack.c.bf16 %v2763, %v2761
        %s2767 = scalar_lea.vmem %s2, 512
        %v2768 = vld [vmem:[%s2767] sm:$0xf]
        %v2769 = vld [vmem:[%s2767 + $0x4] sm:$0xf]
        %v2770 = vld [vmem:[%s2767 + $0x8] sm:$0xf]
        %v2771 = vld [vmem:[%s2767 + $0xc] sm:$0xf]
        %v2772 = vld [vmem:[%s2767 + $0x10] sm:$0xf]
        %v2773 = vld [vmem:[%s2767 + $0x14] sm:$0xf]
        %v2774 = vld [vmem:[%s2767 + $0x18] sm:$0xf]
        %v2775 = vld [vmem:[%s2767 + $0x1c] sm:$0xf]
        %v2776 = vld [vmem:[%s2767 + $0x20] sm:$0xf]
        %v2777 = vld [vmem:[%s2767 + $0x24] sm:$0xf]
        %v2778 = vld [vmem:[%s2767 + $0x28] sm:$0xf]
        %v2779 = vld [vmem:[%s2767 + $0x2c] sm:$0xf]
        %v2780 = vld [vmem:[%s2767 + $0x30] sm:$0xf]
        %v2781 = vld [vmem:[%s2767 + $0x34] sm:$0xf]
        %v2782 = vld [vmem:[%s2767 + $0x38] sm:$0xf]
        %v2783 = vld [vmem:[%s2767 + $0x3c] sm:$0xf]
        %v2800 = vunpack.c.l.b16 %v2768
        %v2801 = vunpack.c.l.b16 %v2769
        %v2802 = vunpack.c.l.b16 %v2770
        %v2803 = vunpack.c.l.b16 %v2771
        %v2804 = vunpack.c.l.b16 %v2772
        %v2805 = vunpack.c.l.b16 %v2773
        %v2806 = vunpack.c.l.b16 %v2774
        %v2807 = vunpack.c.l.b16 %v2775
        %v2808 = vunpack.c.l.b16 %v2776
        %v2809 = vunpack.c.l.b16 %v2777
        %v2810 = vunpack.c.l.b16 %v2778
        %v2811 = vunpack.c.l.b16 %v2779
        %v2812 = vunpack.c.l.b16 %v2780
        %v2813 = vunpack.c.l.b16 %v2781
        %v2814 = vunpack.c.l.b16 %v2782
        %v2815 = vunpack.c.l.b16 %v2783
        %v2816 = vpack.c.b16 %v2801, %v2800
        %v2817 = vpack.c.b16 %v2803, %v2802
        %v2818 = vpack.c.b16 %v2805, %v2804
        %v2819 = vpack.c.b16 %v2807, %v2806
        %v2820 = vpack.c.b16 %v2809, %v2808
        %v2821 = vpack.c.b16 %v2811, %v2810
        %v2822 = vpack.c.b16 %v2813, %v2812
        %v2823 = vpack.c.b16 %v2815, %v2814
        %2832 = vmatprep.subr.bf16.mxu0 0
        %2833 = vmatpush1.bf16.msra.mxu0 %v2816
        %2834 = vmatprep.subr.bf16.mxu0 0
        %2835 = vmatpush1.bf16.msra.mxu0 %v2817
        %2836 = vmatprep.subr.bf16.mxu0 0
        %2837 = vmatpush1.bf16.msra.mxu0 %v2818
        %2838 = vmatprep.subr.bf16.mxu0 0
        %2839 = vmatpush1.bf16.msra.mxu0 %v2819
        %2840 = vmatprep.subr.bf16.mxu0 0
        %2841 = vmatpush1.bf16.msra.mxu0 %v2820
        %2842 = vmatprep.subr.bf16.mxu0 0
        %2843 = vmatpush1.bf16.msra.mxu0 %v2821
        %2844 = vmatprep.subr.bf16.mxu0 0
        %2845 = vmatpush1.bf16.msra.mxu0 %v2822
        %2846 = vmatprep.subr.bf16.mxu0 0
        %2847 = vmatpush1.bf16.msra.mxu0 %v2823
        %2848 = vmatprep.subr.bf16.mxu0 0
        %2849 = vmatpush1.bf16.msra.mxu0 0
        %2850 = vmatprep.subr.bf16.mxu0 0
        %2851 = vmatpush1.bf16.msra.mxu0 0
        %2852 = vmatprep.subr.bf16.mxu0 0
        %2853 = vmatpush1.bf16.msra.mxu0 0
        %2854 = vmatprep.subr.bf16.mxu0 0
        %2855 = vmatpush1.bf16.msra.mxu0 0
        %2856 = vmatprep.subr.bf16.mxu0 0
        %2857 = vmatpush1.bf16.msra.mxu0 0
        %2858 = vmatprep.subr.bf16.mxu0 0
        %2859 = vmatpush1.bf16.msra.mxu0 0
        %2860 = vmatprep.subr.bf16.mxu0 0
        %2861 = vmatpush1.bf16.msra.mxu0 0
        %2862 = vmatprep.subr.bf16.mxu0 0
        %2863 = vmatpush1.bf16.msra.mxu0 0
        %2864 = vmatprep.mubr.bf16.mxu0 0
        %2865 = vmatmul.mubr.bf16.gmra.mrb[0].mxu0 %v1165
        %v2866 = vpop.f32.mrb[0].mxu0
        %v2867 = vadd.f32 0.0, %v2866
        %v2868 = vpop.f32.mrb[0].mxu0
        %v2869 = vpop.f32.mrb[0].mxu0
        %v2870 = vadd.f32 0.0, %v2869
        %v2871 = vpop.f32.mrb[0].mxu0
        %2872 = vmatprep.mubr.bf16.mxu0 0
        %2873 = vmatmul.mubr.bf16.gmra.mrb[0].mxu0 %v1166
        %v2874 = vpop.f32.mrb[0].mxu0
        %v2875 = vadd.f32 0.0, %v2874
        %v2876 = vpop.f32.mrb[0].mxu0
        %v2877 = vpop.f32.mrb[0].mxu0
        %v2878 = vadd.f32 0.0, %v2877
        %v2879 = vpop.f32.mrb[0].mxu0
        %2880 = vmatprep.mubr.bf16.mxu0 0
        %2881 = vmatmul.mubr.bf16.gmra.mrb[0].mxu0 %v1167
        %v2882 = vpop.f32.mrb[0].mxu0
        %v2883 = vadd.f32 0.0, %v2882
        %v2884 = vpop.f32.mrb[0].mxu0
        %v2885 = vpop.f32.mrb[0].mxu0
        %v2886 = vadd.f32 0.0, %v2885
        %v2887 = vpop.f32.mrb[0].mxu0
        %2888 = vmatprep.mubr.bf16.mxu0 0
        %2889 = vmatmul.mubr.bf16.gmra.mrb[0].mxu0 %v1168
        %v2890 = vpop.f32.mrb[0].mxu0
        %v2891 = vadd.f32 0.0, %v2890
        %v2892 = vpop.f32.mrb[0].mxu0
        %v2893 = vpop.f32.mrb[0].mxu0
        %v2894 = vadd.f32 0.0, %v2893
        %v2895 = vpop.f32.mrb[0].mxu0
        %2896 = vmatprep.mubr.bf16.mxu0 0
        %2897 = vmatmul.mubr.bf16.gmra.mrb[0].mxu0 %v1169
        %v2898 = vpop.f32.mrb[0].mxu0
        %v2899 = vadd.f32 0.0, %v2898
        %v2900 = vpop.f32.mrb[0].mxu0
        %v2901 = vpop.f32.mrb[0].mxu0
        %v2902 = vadd.f32 0.0, %v2901
        %v2903 = vpop.f32.mrb[0].mxu0
        %2904 = vmatprep.mubr.bf16.mxu0 0
        %2905 = vmatmul.mubr.bf16.gmra.mrb[0].mxu0 %v1170
        %v2906 = vpop.f32.mrb[0].mxu0
        %v2907 = vadd.f32 0.0, %v2906
        %v2908 = vpop.f32.mrb[0].mxu0
        %v2909 = vpop.f32.mrb[0].mxu0
        %v2910 = vadd.f32 0.0, %v2909
        %v2911 = vpop.f32.mrb[0].mxu0
        %2912 = vmatprep.mubr.bf16.mxu0 0
        %2913 = vmatmul.mubr.bf16.gmra.mrb[0].mxu0 %v1171
        %v2914 = vpop.f32.mrb[0].mxu0
        %v2915 = vadd.f32 0.0, %v2914
        %v2916 = vpop.f32.mrb[0].mxu0
        %v2917 = vpop.f32.mrb[0].mxu0
        %v2918 = vadd.f32 0.0, %v2917
        %v2919 = vpop.f32.mrb[0].mxu0
        %2920 = vmatprep.mubr.bf16.mxu0 0
        %2921 = vmatmul.mubr.bf16.gmra.mrb[0].mxu0 %v1172
        %v2922 = vpop.f32.mrb[0].mxu0
        %v2923 = vadd.f32 0.0, %v2922
        %v2924 = vpop.f32.mrb[0].mxu0
        %v2925 = vpop.f32.mrb[0].mxu0
        %v2926 = vadd.f32 0.0, %v2925
        %v2927 = vpop.f32.mrb[0].mxu0
        %2928 = vmatprep.mubr.bf16.mxu0 0
        %2929 = vmatmul.mubr.bf16.gmra.mrb[0].mxu0 %v1173
        %v2930 = vpop.f32.mrb[0].mxu0
        %v2931 = vadd.f32 0.0, %v2930
        %v2932 = vpop.f32.mrb[0].mxu0
        %v2933 = vpop.f32.mrb[0].mxu0
        %v2934 = vadd.f32 0.0, %v2933
        %v2935 = vpop.f32.mrb[0].mxu0
        %2936 = vmatprep.mubr.bf16.mxu0 0
        %2937 = vmatmul.mubr.bf16.gmra.mrb[0].mxu0 %v1174
        %v2938 = vpop.f32.mrb[0].mxu0
        %v2939 = vadd.f32 0.0, %v2938
        %v2940 = vpop.f32.mrb[0].mxu0
        %v2941 = vpop.f32.mrb[0].mxu0
        %v2942 = vadd.f32 0.0, %v2941
        %v2943 = vpop.f32.mrb[0].mxu0
        %2944 = vmatprep.mubr.bf16.mxu0 0
        %2945 = vmatmul.mubr.bf16.gmra.mrb[0].mxu0 %v1175
        %v2946 = vpop.f32.mrb[0].mxu0
        %v2947 = vadd.f32 0.0, %v2946
        %v2948 = vpop.f32.mrb[0].mxu0
        %v2949 = vpop.f32.mrb[0].mxu0
        %v2950 = vadd.f32 0.0, %v2949
        %v2951 = vpop.f32.mrb[0].mxu0
        %2952 = vmatprep.mubr.bf16.mxu0 0
        %2953 = vmatmul.mubr.bf16.gmra.mrb[0].mxu0 %v1176
        %v2954 = vpop.f32.mrb[0].mxu0
        %v2955 = vadd.f32 0.0, %v2954
        %v2956 = vpop.f32.mrb[0].mxu0
        %v2957 = vpop.f32.mrb[0].mxu0
        %v2958 = vadd.f32 0.0, %v2957
        %v2959 = vpop.f32.mrb[0].mxu0
        %2960 = vmatprep.mubr.bf16.mxu0 0
        %2961 = vmatmul.mubr.bf16.gmra.mrb[0].mxu0 %v1177
        %v2962 = vpop.f32.mrb[0].mxu0
        %v2963 = vadd.f32 0.0, %v2962
        %v2964 = vpop.f32.mrb[0].mxu0
        %v2965 = vpop.f32.mrb[0].mxu0
        %v2966 = vadd.f32 0.0, %v2965
        %v2967 = vpop.f32.mrb[0].mxu0
        %2968 = vmatprep.mubr.bf16.mxu0 0
        %2969 = vmatmul.mubr.bf16.gmra.mrb[0].mxu0 %v1178
        %v2970 = vpop.f32.mrb[0].mxu0
        %v2971 = vadd.f32 0.0, %v2970
        %v2972 = vpop.f32.mrb[0].mxu0
        %v2973 = vpop.f32.mrb[0].mxu0
        %v2974 = vadd.f32 0.0, %v2973
        %v2975 = vpop.f32.mrb[0].mxu0
        %2976 = vmatprep.mubr.bf16.mxu0 0
        %2977 = vmatmul.mubr.bf16.gmra.mrb[0].mxu0 %v1972
        %v2978 = vpop.f32.mrb[0].mxu0
        %v2979 = vadd.f32 0.0, %v2978
        %v2980 = vpop.f32.mrb[0].mxu0
        %v2981 = vpop.f32.mrb[0].mxu0
        %v2982 = vadd.f32 0.0, %v2981
        %v2983 = vpop.f32.mrb[0].mxu0
        %2984 = vmatprep.mubr.bf16.mxu0 0
        %2985 = vmatmul.mubr.bf16.gmra.mrb[0].mxu0 %v2766
        %v2986 = vpop.f32.mrb[0].mxu0
        %v2987 = vadd.f32 0.0, %v2986
        %v2988 = vpop.f32.mrb[0].mxu0
        %v2989 = vpop.f32.mrb[0].mxu0
        %v2990 = vadd.f32 0.0, %v2989
        %v2991 = vpop.f32.mrb[0].mxu0
        %2992 = vdwg.mxu0
        %v2993 = vadd.f32 %v2727, %v2867
        %v2994 = vadd.f32 %v2728, %v2870
        %v2995 = vadd.f32 %v2729, %v2875
        %v2996 = vadd.f32 %v2730, %v2878
        %v2997 = vadd.f32 %v2731, %v2883
        %v2998 = vadd.f32 %v2732, %v2886
        %v2999 = vadd.f32 %v2733, %v2891
        %v3000 = vadd.f32 %v2734, %v2894
        %v3001 = vadd.f32 %v2735, %v2899
        %v3002 = vadd.f32 %v2736, %v2902
        %v3003 = vadd.f32 %v2737, %v2907
        %v3004 = vadd.f32 %v2738, %v2910
        %v3005 = vadd.f32 %v2739, %v2915
        %v3006 = vadd.f32 %v2740, %v2918
        %v3007 = vadd.f32 %v2741, %v2923
        %v3008 = vadd.f32 %v2742, %v2926
        %v3009 = vadd.f32 %v2743, %v2931
        %v3010 = vadd.f32 %v2744, %v2934
        %v3011 = vadd.f32 %v2745, %v2939
        %v3012 = vadd.f32 %v2746, %v2942
        %v3013 = vadd.f32 %v2747, %v2947
        %v3014 = vadd.f32 %v2748, %v2950
        %v3015 = vadd.f32 %v2749, %v2955
        %v3016 = vadd.f32 %v2750, %v2958
        %v3017 = vadd.f32 %v2751, %v2963
        %v3018 = vadd.f32 %v2752, %v2966
        %v3019 = vadd.f32 %v2753, %v2971
        %v3020 = vadd.f32 %v2754, %v2974
        %v3021 = vadd.f32 %v2755, %v2979
        %v3022 = vadd.f32 %v2756, %v2982
        %v3023 = vadd.f32 %v2757, %v2987
        %v3024 = vadd.f32 %v2758, %v2990
        %v3025 = vld [vmem:[%s3] sm:$0x1]
        %v3027 = vlaneseq
        %v3028 = vshrl.u32 %v3027, 7
        %v3029 = vsub.s32 0, %v3028
        %v3030 = vrot.slane %v3025, %v3029
        %v3032 = vadd.f32 %v2993, %v3030
        %v3033 = vadd.f32 %v2994, %v3030
        %v3034 = vadd.f32 %v2995, %v3030
        %v3035 = vadd.f32 %v2996, %v3030
        %v3036 = vadd.f32 %v2997, %v3030
        %v3037 = vadd.f32 %v2998, %v3030
        %v3038 = vadd.f32 %v2999, %v3030
        %v3039 = vadd.f32 %v3000, %v3030
        %v3040 = vadd.f32 %v3001, %v3030
        %v3041 = vadd.f32 %v3002, %v3030
        %v3042 = vadd.f32 %v3003, %v3030
        %v3043 = vadd.f32 %v3004, %v3030
        %v3044 = vadd.f32 %v3005, %v3030
        %v3045 = vadd.f32 %v3006, %v3030
        %v3046 = vadd.f32 %v3007, %v3030
        %v3047 = vadd.f32 %v3008, %v3030
        %v3048 = vadd.f32 %v3009, %v3030
        %v3049 = vadd.f32 %v3010, %v3030
        %v3050 = vadd.f32 %v3011, %v3030
        %v3051 = vadd.f32 %v3012, %v3030
        %v3052 = vadd.f32 %v3013, %v3030
        %v3053 = vadd.f32 %v3014, %v3030
        %v3054 = vadd.f32 %v3015, %v3030
        %v3055 = vadd.f32 %v3016, %v3030
        %v3056 = vadd.f32 %v3017, %v3030
        %v3057 = vadd.f32 %v3018, %v3030
        %v3058 = vadd.f32 %v3019, %v3030
        %v3059 = vadd.f32 %v3020, %v3030
        %v3060 = vadd.f32 %v3021, %v3030
        %v3061 = vadd.f32 %v3022, %v3030
        %v3062 = vadd.f32 %v3023, %v3030
        %v3063 = vadd.f32 %v3024, %v3030
        %v3064 = vld [vmem:[%s296] sm:$0xff]
        %v3065 = vld [vmem:[%s296 + $0x8] sm:$0xff]
        %v3066 = vld [vmem:[%s296 + $0x10] sm:$0xff]
        %v3067 = vld [vmem:[%s296 + $0x18] sm:$0xff]
        %v3068 = vld [vmem:[%s296 + $0x20] sm:$0xff]
        %v3069 = vld [vmem:[%s296 + $0x28] sm:$0xff]
        %v3070 = vld [vmem:[%s296 + $0x30] sm:$0xff]
        %v3071 = vld [vmem:[%s296 + $0x38] sm:$0xff]
        %v3072 = vld [vmem:[%s296 + $0x40] sm:$0xff]
        %v3073 = vld [vmem:[%s296 + $0x48] sm:$0xff]
        %v3074 = vld [vmem:[%s296 + $0x50] sm:$0xff]
        %v3075 = vld [vmem:[%s296 + $0x58] sm:$0xff]
        %v3076 = vld [vmem:[%s296 + $0x60] sm:$0xff]
        %v3077 = vld [vmem:[%s296 + $0x68] sm:$0xff]
        %v3078 = vld [vmem:[%s296 + $0x70] sm:$0xff]
        %v3079 = vld [vmem:[%s296 + $0x78] sm:$0xff]
        %v3080 = vld [vmem:[%s296 + $0x80] sm:$0xff]
        %v3081 = vld [vmem:[%s296 + $0x88] sm:$0xff]
        %v3082 = vld [vmem:[%s296 + $0x90] sm:$0xff]
        %v3083 = vld [vmem:[%s296 + $0x98] sm:$0xff]
        %v3084 = vld [vmem:[%s296 + $0xa0] sm:$0xff]
        %v3085 = vld [vmem:[%s296 + $0xa8] sm:$0xff]
        %v3086 = vld [vmem:[%s296 + $0xb0] sm:$0xff]
        %v3087 = vld [vmem:[%s296 + $0xb8] sm:$0xff]
        %v3088 = vld [vmem:[%s296 + $0xc0] sm:$0xff]
        %v3089 = vld [vmem:[%s296 + $0xc8] sm:$0xff]
        %v3090 = vld [vmem:[%s296 + $0xd0] sm:$0xff]
        %v3091 = vld [vmem:[%s296 + $0xd8] sm:$0xff]
        %v3092 = vld [vmem:[%s296 + $0xe0] sm:$0xff]
        %v3093 = vld [vmem:[%s296 + $0xe8] sm:$0xff]
        %v3094 = vld [vmem:[%s296 + $0xf0] sm:$0xff]
        %v3095 = vld [vmem:[%s296 + $0xf8] sm:$0xff]
        %v3096 = vld [vmem:[%s6] sm:$0xff]
        %v3097 = vld [vmem:[%s6 + $0x8] sm:$0xff]
        %v3098 = vld [vmem:[%s6 + $0x10] sm:$0xff]
        %v3099 = vld [vmem:[%s6 + $0x18] sm:$0xff]
        %v3100 = vld [vmem:[%s6 + $0x20] sm:$0xff]
        %v3101 = vld [vmem:[%s6 + $0x28] sm:$0xff]
        %v3102 = vld [vmem:[%s6 + $0x30] sm:$0xff]
        %v3103 = vld [vmem:[%s6 + $0x38] sm:$0xff]
        %v3104 = vld [vmem:[%s6 + $0x40] sm:$0xff]
        %v3105 = vld [vmem:[%s6 + $0x48] sm:$0xff]
        %v3106 = vld [vmem:[%s6 + $0x50] sm:$0xff]
        %v3107 = vld [vmem:[%s6 + $0x58] sm:$0xff]
        %v3108 = vld [vmem:[%s6 + $0x60] sm:$0xff]
        %v3109 = vld [vmem:[%s6 + $0x68] sm:$0xff]
        %v3110 = vld [vmem:[%s6 + $0x70] sm:$0xff]
        %v3111 = vld [vmem:[%s6 + $0x78] sm:$0xff]
        %3112 = vmatprep.subr.mxu0 0.0
        %3113 = vmatpush1.msra.mxu0 %v3064
        %3114 = vmatprep.subr.mxu0 0.0
        %3115 = vmatpush1.msra.mxu0 %v3065
        %3116 = vmatprep.subr.mxu0 0.0
        %3117 = vmatpush1.msra.mxu0 %v3066
        %3118 = vmatprep.subr.mxu0 0.0
        %3119 = vmatpush1.msra.mxu0 %v3067
        %3120 = vmatprep.subr.mxu0 0.0
        %3121 = vmatpush1.msra.mxu0 %v3068
        %3122 = vmatprep.subr.mxu0 0.0
        %3123 = vmatpush1.msra.mxu0 %v3069
        %3124 = vmatprep.subr.mxu0 0.0
        %3125 = vmatpush1.msra.mxu0 %v3070
        %3126 = vmatprep.subr.mxu0 0.0
        %3127 = vmatpush1.msra.mxu0 %v3071
        %3128 = vmatprep.subr.mxu0 0.0
        %3129 = vmatpush1.msra.mxu0 %v3072
        %3130 = vmatprep.subr.mxu0 0.0
        %3131 = vmatpush1.msra.mxu0 %v3073
        %3132 = vmatprep.subr.mxu0 0.0
        %3133 = vmatpush1.msra.mxu0 %v3074
        %3134 = vmatprep.subr.mxu0 0.0
        %3135 = vmatpush1.msra.mxu0 %v3075
        %3136 = vmatprep.subr.mxu0 0.0
        %3137 = vmatpush1.msra.mxu0 %v3076
        %3138 = vmatprep.subr.mxu0 0.0
        %3139 = vmatpush1.msra.mxu0 %v3077
        %3140 = vmatprep.subr.mxu0 0.0
        %3141 = vmatpush1.msra.mxu0 %v3078
        %3142 = vmatprep.subr.mxu0 0.0
        %3143 = vmatpush1.msra.mxu0 %v3079
        %3144 = vmatprep.subr.mxu0 0.0
        %3145 = vmatpush1.msra.mxu0 %v3080
        %3146 = vmatprep.subr.mxu0 0.0
        %3147 = vmatpush1.msra.mxu0 %v3081
        %3148 = vmatprep.subr.mxu0 0.0
        %3149 = vmatpush1.msra.mxu0 %v3082
        %3150 = vmatprep.subr.mxu0 0.0
        %3151 = vmatpush1.msra.mxu0 %v3083
        %3152 = vmatprep.subr.mxu0 0.0
        %3153 = vmatpush1.msra.mxu0 %v3084
        %3154 = vmatprep.subr.mxu0 0.0
        %3155 = vmatpush1.msra.mxu0 %v3085
        %3156 = vmatprep.subr.mxu0 0.0
        %3157 = vmatpush1.msra.mxu0 %v3086
        %3158 = vmatprep.subr.mxu0 0.0
        %3159 = vmatpush1.msra.mxu0 %v3087
        %3160 = vmatprep.subr.mxu0 0.0
        %3161 = vmatpush1.msra.mxu0 %v3088
        %3162 = vmatprep.subr.mxu0 0.0
        %3163 = vmatpush1.msra.mxu0 %v3089
        %3164 = vmatprep.subr.mxu0 0.0
        %3165 = vmatpush1.msra.mxu0 %v3090
        %3166 = vmatprep.subr.mxu0 0.0
        %3167 = vmatpush1.msra.mxu0 %v3091
        %3168 = vmatprep.subr.mxu0 0.0
        %3169 = vmatpush1.msra.mxu0 %v3092
        %3170 = vmatprep.subr.mxu0 0.0
        %3171 = vmatpush1.msra.mxu0 %v3093
        %3172 = vmatprep.subr.mxu0 0.0
        %3173 = vmatpush1.msra.mxu0 %v3094
        %3174 = vmatprep.subr.mxu0 0.0
        %3175 = vmatpush1.msra.mxu0 %v3095
        %3176 = vmatprep.mubr.f32.mxu0 %v3097
        %3177 = vmatmul.mubr.f32.gmra.mrb[0].mxu0 %v3096
        %v3178 = vpop.f32.mrb[0].mxu0
        %v3179 = vadd.f32 0.0, %v3178
        %v3180 = vpop.f32.mrb[0].mxu0
        %3181 = vmatprep.mubr.f32.mxu0 %v3099
        %3182 = vmatmul.mubr.f32.gmra.mrb[0].mxu0 %v3098
        %v3183 = vpop.f32.mrb[0].mxu0
        %v3184 = vadd.f32 0.0, %v3183
        %v3185 = vpop.f32.mrb[0].mxu0
        %3186 = vmatprep.mubr.f32.mxu0 %v3101
        %3187 = vmatmul.mubr.f32.gmra.mrb[0].mxu0 %v3100
        %v3188 = vpop.f32.mrb[0].mxu0
        %v3189 = vadd.f32 0.0, %v3188
        %v3190 = vpop.f32.mrb[0].mxu0
        %3191 = vmatprep.mubr.f32.mxu0 %v3103
        %3192 = vmatmul.mubr.f32.gmra.mrb[0].mxu0 %v3102
        %v3193 = vpop.f32.mrb[0].mxu0
        %v3194 = vadd.f32 0.0, %v3193
        %v3195 = vpop.f32.mrb[0].mxu0
        %3196 = vmatprep.mubr.f32.mxu0 %v3105
        %3197 = vmatmul.mubr.f32.gmra.mrb[0].mxu0 %v3104
        %v3198 = vpop.f32.mrb[0].mxu0
        %v3199 = vadd.f32 0.0, %v3198
        %v3200 = vpop.f32.mrb[0].mxu0
        %3201 = vmatprep.mubr.f32.mxu0 %v3107
        %3202 = vmatmul.mubr.f32.gmra.mrb[0].mxu0 %v3106
        %v3203 = vpop.f32.mrb[0].mxu0
        %v3204 = vadd.f32 0.0, %v3203
        %v3205 = vpop.f32.mrb[0].mxu0
        %3206 = vmatprep.mubr.f32.mxu0 %v3109
        %3207 = vmatmul.mubr.f32.gmra.mrb[0].mxu0 %v3108
        %v3208 = vpop.f32.mrb[0].mxu0
        %v3209 = vadd.f32 0.0, %v3208
        %v3210 = vpop.f32.mrb[0].mxu0
        %3211 = vmatprep.mubr.f32.mxu0 %v3111
        %3212 = vmatmul.mubr.f32.gmra.mrb[0].mxu0 %v3110
        %v3213 = vpop.f32.mrb[0].mxu0
        %v3214 = vadd.f32 0.0, %v3213
        %v3215 = vpop.f32.mrb[0].mxu0
        %3216 = vdwg.mxu0
        %v3217 = vpack.c.bf16 %v3184, %v3179
        %v3218 = vpack.c.bf16 %v3194, %v3189
        %v3219 = vpack.c.bf16 %v3204, %v3199
        %v3220 = vpack.c.bf16 %v3214, %v3209
        %v3221 = vld [vmem:[%s4] sm:$0xf]
        %v3222 = vld [vmem:[%s4 + $0x4] sm:$0xf]
        %v3223 = vld [vmem:[%s4 + $0x8] sm:$0xf]
        %v3224 = vld [vmem:[%s4 + $0xc] sm:$0xf]
        %v3225 = vld [vmem:[%s4 + $0x10] sm:$0xf]
        %v3226 = vld [vmem:[%s4 + $0x14] sm:$0xf]
        %v3227 = vld [vmem:[%s4 + $0x18] sm:$0xf]
        %v3228 = vld [vmem:[%s4 + $0x1c] sm:$0xf]
        %v3229 = vld [vmem:[%s5] sm:$0x1]
        %v3231 = vlaneseq
        %v3232 = vshrl.u32 %v3231, 7
        %v3233 = vsub.s32 0, %v3232
        %v3234 = vrot.slane %v3229, %v3233
        %v3244 = vunpack.c.l.b16 %v3221
        %v3245 = vunpack.c.l.b16 %v3222
        %v3246 = vunpack.c.l.b16 %v3223
        %v3247 = vunpack.c.l.b16 %v3224
        %v3248 = vunpack.c.l.b16 %v3225
        %v3249 = vunpack.c.l.b16 %v3226
        %v3250 = vunpack.c.l.b16 %v3227
        %v3251 = vunpack.c.l.b16 %v3228
        %v3252 = vpack.c.b16 %v3245, %v3244
        %v3253 = vpack.c.b16 %v3247, %v3246
        %v3254 = vpack.c.b16 %v3249, %v3248
        %v3255 = vpack.c.b16 %v3251, %v3250
        %vm3260 = vcmask 523264
        %v3262 = vsel %vm3260, %v3217, 0
        %v3265 = vsel %vm3260, %v3218, 0
        %v3268 = vsel %vm3260, %v3219, 0
        %v3271 = vsel %vm3260, %v3220, 0
        %3273 = vmatprep.subr.bf16.mxu0 0
        %3274 = vmatpush1.bf16.msra.mxu0 %v3252
        %3275 = vmatprep.subr.bf16.mxu0 0
        %3276 = vmatpush1.bf16.msra.mxu0 %v3253
        %3277 = vmatprep.subr.bf16.mxu0 0
        %3278 = vmatpush1.bf16.msra.mxu0 %v3254
        %3279 = vmatprep.subr.bf16.mxu0 0
        %3280 = vmatpush1.bf16.msra.mxu0 %v3255
        %3281 = vmatprep.subr.bf16.mxu0 0
        %3282 = vmatpush1.bf16.msra.mxu0 0
        %3283 = vmatprep.subr.bf16.mxu0 0
        %3284 = vmatpush1.bf16.msra.mxu0 0
        %3285 = vmatprep.subr.bf16.mxu0 0
        %3286 = vmatpush1.bf16.msra.mxu0 0
        %3287 = vmatprep.subr.bf16.mxu0 0
        %3288 = vmatpush1.bf16.msra.mxu0 0
        %3289 = vmatprep.subr.bf16.mxu0 0
        %3290 = vmatpush1.bf16.msra.mxu0 0
        %3291 = vmatprep.subr.bf16.mxu0 0
        %3292 = vmatpush1.bf16.msra.mxu0 0
        %3293 = vmatprep.subr.bf16.mxu0 0
        %3294 = vmatpush1.bf16.msra.mxu0 0
        %3295 = vmatprep.subr.bf16.mxu0 0
        %3296 = vmatpush1.bf16.msra.mxu0 0
        %3297 = vmatprep.subr.bf16.mxu0 0
        %3298 = vmatpush1.bf16.msra.mxu0 0
        %3299 = vmatprep.subr.bf16.mxu0 0
        %3300 = vmatpush1.bf16.msra.mxu0 0
        %3301 = vmatprep.subr.bf16.mxu0 0
        %3302 = vmatpush1.bf16.msra.mxu0 0
        %3303 = vmatprep.subr.bf16.mxu0 0
        %3304 = vmatpush1.bf16.msra.mxu0 0
        %3305 = vmatprep.mubr.bf16.mxu0 0
        %3306 = vmatmul.mubr.bf16.gmra.mrb[0].mxu0 %v3262
        %v3307 = vpop.f32.mrb[0].mxu0
        %v3308 = vadd.f32 %v3234, %v3307
        %v3309 = vpop.f32.mrb[0].mxu0
        %v3310 = vpop.f32.mrb[0].mxu0
        %v3311 = vadd.f32 %v3234, %v3310
        %v3312 = vpop.f32.mrb[0].mxu0
        %3313 = vmatprep.mubr.bf16.mxu0 0
        %3314 = vmatmul.mubr.bf16.gmra.mrb[0].mxu0 %v3265
        %v3315 = vpop.f32.mrb[0].mxu0
        %v3316 = vadd.f32 %v3234, %v3315
        %v3317 = vpop.f32.mrb[0].mxu0
        %v3318 = vpop.f32.mrb[0].mxu0
        %v3319 = vadd.f32 %v3234, %v3318
        %v3320 = vpop.f32.mrb[0].mxu0
        %3321 = vmatprep.mubr.bf16.mxu0 0
        %3322 = vmatmul.mubr.bf16.gmra.mrb[0].mxu0 %v3268
        %v3323 = vpop.f32.mrb[0].mxu0
        %v3324 = vadd.f32 %v3234, %v3323
        %v3325 = vpop.f32.mrb[0].mxu0
        %v3326 = vpop.f32.mrb[0].mxu0
        %v3327 = vadd.f32 %v3234, %v3326
        %v3328 = vpop.f32.mrb[0].mxu0
        %3329 = vmatprep.mubr.bf16.mxu0 0
        %3330 = vmatmul.mubr.bf16.gmra.mrb[0].mxu0 %v3271
        %v3331 = vpop.f32.mrb[0].mxu0
        %v3332 = vadd.f32 %v3234, %v3331
        %v3333 = vpop.f32.mrb[0].mxu0
        %v3334 = vpop.f32.mrb[0].mxu0
        %v3335 = vadd.f32 %v3234, %v3334
        %v3336 = vpop.f32.mrb[0].mxu0
        %3337 = vdwg.mxu0
        %3338 = vmatprep.subr.mxu0 0.0
        %3339 = vmatpush1.msra.mxu0 %v3032
        %3340 = vmatprep.subr.mxu0 0.0
        %3341 = vmatpush1.msra.mxu0 %v3033
        %3342 = vmatprep.subr.mxu0 0.0
        %3343 = vmatpush1.msra.mxu0 %v3034
        %3344 = vmatprep.subr.mxu0 0.0
        %3345 = vmatpush1.msra.mxu0 %v3035
        %3346 = vmatprep.subr.mxu0 0.0
        %3347 = vmatpush1.msra.mxu0 %v3036
        %3348 = vmatprep.subr.mxu0 0.0
        %3349 = vmatpush1.msra.mxu0 %v3037
        %3350 = vmatprep.subr.mxu0 0.0
        %3351 = vmatpush1.msra.mxu0 %v3038
        %3352 = vmatprep.subr.mxu0 0.0
        %3353 = vmatpush1.msra.mxu0 %v3039
        %3354 = vmatprep.subr.mxu0 0.0
        %3355 = vmatpush1.msra.mxu0 %v3040
        %3356 = vmatprep.subr.mxu0 0.0
        %3357 = vmatpush1.msra.mxu0 %v3041
        %3358 = vmatprep.subr.mxu0 0.0
        %3359 = vmatpush1.msra.mxu0 %v3042
        %3360 = vmatprep.subr.mxu0 0.0
        %3361 = vmatpush1.msra.mxu0 %v3043
        %3362 = vmatprep.subr.mxu0 0.0
        %3363 = vmatpush1.msra.mxu0 %v3044
        %3364 = vmatprep.subr.mxu0 0.0
        %3365 = vmatpush1.msra.mxu0 %v3045
        %3366 = vmatprep.subr.mxu0 0.0
        %3367 = vmatpush1.msra.mxu0 %v3046
        %3368 = vmatprep.subr.mxu0 0.0
        %3369 = vmatpush1.msra.mxu0 %v3047
        %3370 = vmatprep.subr.mxu0 0.0
        %3371 = vmatpush1.msra.mxu0 %v3048
        %3372 = vmatprep.subr.mxu0 0.0
        %3373 = vmatpush1.msra.mxu0 %v3049
        %3374 = vmatprep.subr.mxu0 0.0
        %3375 = vmatpush1.msra.mxu0 %v3050
        %3376 = vmatprep.subr.mxu0 0.0
        %3377 = vmatpush1.msra.mxu0 %v3051
        %3378 = vmatprep.subr.mxu0 0.0
        %3379 = vmatpush1.msra.mxu0 %v3052
        %3380 = vmatprep.subr.mxu0 0.0
        %3381 = vmatpush1.msra.mxu0 %v3053
        %3382 = vmatprep.subr.mxu0 0.0
        %3383 = vmatpush1.msra.mxu0 %v3054
        %3384 = vmatprep.subr.mxu0 0.0
        %3385 = vmatpush1.msra.mxu0 %v3055
        %3386 = vmatprep.subr.mxu0 0.0
        %3387 = vmatpush1.msra.mxu0 %v3056
        %3388 = vmatprep.subr.mxu0 0.0
        %3389 = vmatpush1.msra.mxu0 %v3057
        %3390 = vmatprep.subr.mxu0 0.0
        %3391 = vmatpush1.msra.mxu0 %v3058
        %3392 = vmatprep.subr.mxu0 0.0
        %3393 = vmatpush1.msra.mxu0 %v3059
        %3394 = vmatprep.subr.mxu0 0.0
        %3395 = vmatpush1.msra.mxu0 %v3060
        %3396 = vmatprep.subr.mxu0 0.0
        %3397 = vmatpush1.msra.mxu0 %v3061
        %3398 = vmatprep.subr.mxu0 0.0
        %3399 = vmatpush1.msra.mxu0 %v3062
        %3400 = vmatprep.subr.mxu0 0.0
        %3401 = vmatpush1.msra.mxu0 %v3063
        %3402 = vmatprep.mubr.f32.mxu0 %v3097
        %3403 = vmatmul.mubr.f32.gmra.mrb[0].mxu0 %v3096
        %v3404 = vpop.f32.mrb[0].mxu0
        %v3405 = vadd.f32 %v3308, %v3404
        %v3406 = vpop.f32.mrb[0].mxu0
        %3407 = vmatprep.mubr.f32.mxu0 %v3099
        %3408 = vmatmul.mubr.f32.gmra.mrb[0].mxu0 %v3098
        %v3409 = vpop.f32.mrb[0].mxu0
        %v3410 = vadd.f32 %v3311, %v3409
        %v3411 = vpop.f32.mrb[0].mxu0
        %3412 = vmatprep.mubr.f32.mxu0 %v3101
        %3413 = vmatmul.mubr.f32.gmra.mrb[0].mxu0 %v3100
        %v3414 = vpop.f32.mrb[0].mxu0
        %v3415 = vadd.f32 %v3316, %v3414
        %v3416 = vpop.f32.mrb[0].mxu0
        %3417 = vmatprep.mubr.f32.mxu0 %v3103
        %3418 = vmatmul.mubr.f32.gmra.mrb[0].mxu0 %v3102
        %v3419 = vpop.f32.mrb[0].mxu0
        %v3420 = vadd.f32 %v3319, %v3419
        %v3421 = vpop.f32.mrb[0].mxu0
        %3422 = vmatprep.mubr.f32.mxu0 %v3105
        %3423 = vmatmul.mubr.f32.gmra.mrb[0].mxu0 %v3104
        %v3424 = vpop.f32.mrb[0].mxu0
        %v3425 = vadd.f32 %v3324, %v3424
        %v3426 = vpop.f32.mrb[0].mxu0
        %3427 = vmatprep.mubr.f32.mxu0 %v3107
        %3428 = vmatmul.mubr.f32.gmra.mrb[0].mxu0 %v3106
        %v3429 = vpop.f32.mrb[0].mxu0
        %v3430 = vadd.f32 %v3327, %v3429
        %v3431 = vpop.f32.mrb[0].mxu0
        %3432 = vmatprep.mubr.f32.mxu0 %v3109
        %3433 = vmatmul.mubr.f32.gmra.mrb[0].mxu0 %v3108
        %v3434 = vpop.f32.mrb[0].mxu0
        %v3435 = vadd.f32 %v3332, %v3434
        %v3436 = vpop.f32.mrb[0].mxu0
        %3437 = vmatprep.mubr.f32.mxu0 %v3111
        %3438 = vmatmul.mubr.f32.gmra.mrb[0].mxu0 %v3110
        %v3439 = vpop.f32.mrb[0].mxu0
        %v3440 = vadd.f32 %v3335, %v3439
        %v3441 = vpop.f32.mrb[0].mxu0
        %3442 = vdwg.mxu0
        %3443 = vst [vmem:[%s286] sm:$0xff] %v3405
        %3444 = vst [vmem:[%s286 + $0x8] sm:$0xff] %v3410
        %3445 = vst [vmem:[%s286 + $0x10] sm:$0xff] %v3415
        %3446 = vst [vmem:[%s286 + $0x18] sm:$0xff] %v3420
        %3447 = vst [vmem:[%s286 + $0x20] sm:$0xff] %v3425
        %3448 = vst [vmem:[%s286 + $0x28] sm:$0xff] %v3430
        %3449 = vst [vmem:[%s286 + $0x30] sm:$0xff] %v3435
        %3450 = vst [vmem:[%s286 + $0x38] sm:$0xff] %v3440
        %s3451 = sand.u32 %s186, 1
        %s3452 = scalar_lea.sflag [#allocation3], %s3451
        %s3453 = sand.u32 %s186, 1
        %s3454 = smul.addr %s3453, 64
        %s3455 = scalar_lea.vmem [#allocation2], %s3454
        // Predicated region
        $region49: #{resblock_forward.3} parent=47 // pred_check
          %p3456 = pneg %p196
        $region50: #{resblock_forward.3} parent=47 // pred_check_branch
          %3458 = sbr.rel (%p3456) target = $region52
        $region51: #{resblock_forward.3} parent=47 // pred_region
          %s3460 = ssub.s32 1024, 1024
          %3461 = vsyncadd %s3452, %s3460
          %s3462 = smul.addr %s21, 8
          %s3463 = smul.addr %s3462, 128
          %s3464 = scalar_lea.hbm %s7, %s3463
          %s3465 = sshll.u32 %s3455, 4
          %s3466 = int_to_ptr.vmem [resolvable:$true] %s3465
          %3471 = dma.vmem_to_hbm [thread:$0]  %s3466, 1024, %s3464, %s3452, 128, 128, 8
        $region52: #{resblock_forward.3} parent=47 // pred_fallthru
          _
      $region48: #{resblock_forward.3} parent=5 // pred_fallthru
        _
      %p3472 = scmp.le.s32.totalorder 2, %s16
      // Predicated region
      $region53: #{resblock_forward.3} parent=5 // pred_check
        %p3473 = pneg %p3472
      $region54: #{resblock_forward.3} parent=5 // pred_check_branch
        %3475 = sbr.rel (%p3473) target = $region56
      $region55: #{resblock_forward.3} parent=5 // pred_region
        %s3476 = ssub.s32 %s16, 2
        // Predicated region
        $region57: #{resblock_forward.3} parent=55 // pred_check
          %p3477 = pneg %p202
        $region58: #{resblock_forward.3} parent=55 // pred_check_branch
          %3479 = sbr.rel (%p3477) target = $region60
        $region59: #{resblock_forward.3} parent=55 // pred_region
          %s3480 = sand.u32 %s187, 1
          %s3481 = scalar_lea.sflag [#allocation3], %s3480
          %s3482 = sand.u32 %s187, 1
          %s3483 = smul.addr %s3482, 64
          %s3484 = scalar_lea.vmem [#allocation2], %s3483
          %3485 = dma.done %s3481, 1024
        $region60: #{resblock_forward.3} parent=55 // pred_fallthru
          _
      $region56: #{resblock_forward.3} parent=5 // pred_fallthru
        _
    $region6: #{resblock_forward.3} parent=1 // loop_footer
      %s20 = sadd.s32 1, %s16
    $region7: #{resblock_forward.3} parent=1 // loop_footer_branch
      %15 = sbr.rel target = $region3
    $region8: #{resblock_forward.3} parent=1 // loop_exit
      _
    %3486 = vsyncpa [#allocation3], 1
    %s3487 = scalar_lea.sflag [#allocation3], 1
    %3488 = vsyncpa %s3487, 1

</llo_original>
